<compile_context>
chip_gen: v5e
topology: v5e:2x2
jax: 0.10.0
libtpu: 0.0.40
codegen_flags: <defaults>
</compile_context>

<pallas_src>
import jax
import jax.numpy as jnp
from jax.experimental import pallas as pl
from jax.experimental.pallas import tpu as pltpu


VMEM_LIMIT = 32 * 1024 * 1024  # explicit scoped-VMEM budget, safe on v5e/v6e/v7x


def _round_up(n, m):
    return ((n + m - 1) // m) * m


def _pick_tile(n, cap):
    """Largest tile <= cap dividing n that is 128-aligned, else the full dim."""
    t = min(n, cap)
    while t > 1:
        if n % t == 0 and (t % 128 == 0 or t == n):
            return t
        t -= 1
    return n


# ----------------------------- Pallas kernels -----------------------------

def _proj_stats_kernel(x_ref, wk_ref, bk_ref, qk_ref, st_ref):
    # x_ref: (tm, C) f32   wk_ref: (C, KP) f32   bk_ref: (1, KP) f32
    # qk_ref: (tm, KP) bf16 (shared f_key/f_query projection, K zero-padded)
    # st_ref: (1, 2, KP) f32 per-tile BatchNorm partials (sum, sum of squares)
    qk = jnp.dot(x_ref[...], wk_ref[...],
                 preferred_element_type=jnp.float32) + bk_ref[...]
    qk_ref[...] = qk.astype(jnp.bfloat16)
    st_ref[0] = jnp.concatenate(
        [jnp.sum(qk, axis=0, keepdims=True),
         jnp.sum(qk * qk, axis=0, keepdims=True)], axis=0)


def _flash_attn_kernel(q_ref, k_ref, v_ref, scale_ref, shift_ref, ww_ref, bw_ref,
                       o_ref, m_sc, l_sc, acc_sc):
    # Online-softmax attention over kv tiles (grid = (B, nq, nk), nk last).
    # q_ref/k_ref: (1, tq/tk, KP) bf16 raw projection; BN affine applied here.
    # v_ref: (1, tk, VP) bf16.  Output: (1, tq, OP) f32, written at last kv tile.
    ki = pl.program_id(2)

    @pl.when(ki == 0)
    def _init():
        m_sc[...] = jnp.full(m_sc.shape, -jnp.inf, jnp.float32)
        l_sc[...] = jnp.zeros(l_sc.shape, jnp.float32)
        acc_sc[...] = jnp.zeros(acc_sc.shape, jnp.float32)

    scale = scale_ref[...]                                         # (1, KP) f32
    shift = shift_ref[...]
    q = (q_ref[0].astype(jnp.float32) * scale + shift).astype(jnp.bfloat16)
    k = (k_ref[0].astype(jnp.float32) * scale + shift).astype(jnp.bfloat16)

    # sim tile = q . k^T  (bf16 MXU, f32 accumulation), full 128-deep contraction
    s = jax.lax.dot_general(q, k, (((1,), (1,)), ((), ())),
                            preferred_element_type=jnp.float32)    # (tq, tk) f32

    m_prev = m_sc[...]                                             # (tq, 1)
    m_new = jnp.maximum(m_prev, jnp.max(s, axis=-1, keepdims=True))
    alpha = jnp.exp(m_prev - m_new)
    p = jnp.exp(s - m_new)                                         # f32 softmax math
    l_sc[...] = alpha * l_sc[...] + jnp.sum(p, axis=-1, keepdims=True)
    acc_sc[...] = alpha * acc_sc[...] + jnp.dot(
        p.astype(jnp.bfloat16), v_ref[0], preferred_element_type=jnp.float32)
    m_sc[...] = m_new

    @pl.when(ki == pl.num_programs(2) - 1)
    def _finalize():
        # normalize after the context matmul; approx reciprocal -> EUP slot
        ctx = acc_sc[...] * pl.reciprocal(l_sc[...], approx=True)  # (tq, VP)
        o_ref[0] = jnp.dot(ctx, ww_ref[...],
                           preferred_element_type=jnp.float32) + bw_ref[...]


# ------------------------------- wrapper ----------------------------------

def self_attention_block(x_nchw, params, eps=1e-5):
    B, C, H, W = x_nchw.shape
    N = H * W
    K = params["wk"].shape[1]
    Vc = params["wv"].shape[0]
    C_out = params["ww"].shape[1]
    assert C_out == C, "residual x + W(context) requires out_channels == in_channels"
    f32, bf16 = jnp.float32, jnp.bfloat16

    KP, VP, OP = _round_up(K, 128), _round_up(Vc, 128), _round_up(C_out, 128)

    # layout glue: NCHW -> channels-last flattened spatial
    x_flat = jnp.transpose(x_nchw, (0, 2, 3, 1)).reshape(B, N, C)

    # zero-padded (lane/MXU dense) parameters; padding is mathematically identity
    wk_pad = jnp.zeros((C, KP), f32).at[:, :K].set(params["wk"])
    bk_pad = jnp.zeros((1, KP), f32).at[:, :K].set(params["bk"])
    gamma_pad = jnp.zeros((KP,), f32).at[:K].set(params["bn_gamma"])
    beta_pad = jnp.zeros((KP,), f32).at[:K].set(params["bn_beta"])
    wv9 = jnp.transpose(params["wv"], (2, 3, 1, 0)).reshape(9, C, Vc)   # (tap, C, V)
    wv9_pad = jnp.zeros((9, C, VP), f32).at[:, :, :Vc].set(wv9)
    bv_pad = jnp.zeros((1, VP), f32).at[:, :Vc].set(params["bv"])
    ww_pad = jnp.zeros((VP, OP), f32).at[:Vc, :C_out].set(params["ww"])
    bw_pad = jnp.zeros((1, OP), f32).at[:, :C_out].set(params["bw"])

    # ---- kernel 1: shared f_key/f_query 1x1 projection, row-tiled over B*N ----
    x2d = x_flat.reshape(B * N, C)
    tm = _pick_tile(B * N, 512)
    n_tiles = (B * N) // tm

    qk_raw, stats = pl.pallas_call(
        _proj_stats_kernel,
        out_shape=(jax.ShapeDtypeStruct((B * N, KP), bf16),
                   jax.ShapeDtypeStruct((n_tiles, 2, KP), f32)),
        grid_spec=pltpu.PrefetchScalarGridSpec(
            num_scalar_prefetch=0, grid=(n_tiles,),
            in_specs=[pl.BlockSpec((tm, C), lambda i: (i, 0)),
                      pl.BlockSpec((C, KP), lambda i: (0, 0)),
                      pl.BlockSpec((1, KP), lambda i: (0, 0))],
            out_specs=[pl.BlockSpec((tm, KP), lambda i: (i, 0)),
                       pl.BlockSpec((1, 2, KP), lambda i: (i, 0, 0))]),
        compiler_params=pltpu.CompilerParams(
            dimension_semantics=("parallel",),
            vmem_limit_bytes=VMEM_LIMIT),
    )(x2d, wk_pad, bk_pad)

    # BatchNorm2d (training mode, biased variance) folded into a single affine
    cnt = float(B * N)
    mean = jnp.sum(stats[:, 0, :], axis=0) / cnt
    var = jnp.maximum(jnp.sum(stats[:, 1, :], axis=0) / cnt - mean * mean, 0.0)
    scale = (gamma_pad * jax.lax.rsqrt(var + eps)).reshape(1, KP)
    shift = (beta_pad - mean * scale[0]).reshape(1, KP)

    # ---- kernel 2: f_value 3x3 conv (pad=1) as 9 shifted masked matmuls ----
    # flat halo of W+1 zero rows on each side; per-tap boundary masks from glue.
    x_halo = jnp.pad(x_flat, ((0, 0), (W + 1, W + 1), (0, 0)))
    hh = jnp.arange(N, dtype=jnp.int32) // W
    cc = jnp.arange(N, dtype=jnp.int32) % W
    masks = []
    for ky in range(3):
        for kx in range(3):
            dy, dx = ky - 1, kx - 1
            ok = ((hh + dy >= 0) & (hh + dy < H) & (cc + dx >= 0) & (cc + dx < W))
            masks.append(ok.astype(f32))
    mask9 = jnp.stack(masks, axis=0).reshape(9, N, 1)
    n_halo = N + 2 * (W + 1)

    def _value_conv_kernel(xp_ref, wv_ref, bv_ref, m_ref, v_ref):
        # xp_ref: (1, N + 2(W+1), C) f32 ; wv_ref: (9, C, VP) ; m_ref: (9, N, 1)
        acc = jnp.zeros((N, VP), f32) + bv_ref[...]
        for t in range(9):
            ky, kx = t // 3, t % 3
            start = (ky - 1) * W + (kx - 1) + (W + 1)          # static offset
            xs = xp_ref[0, start:start + N, :] * m_ref[t]      # shifted + masked
            acc = acc + jnp.dot(xs.astype(bf16), wv_ref[t].astype(bf16),
                                preferred_element_type=f32)
        v_ref[0] = acc.astype(bf16)

    value = pl.pallas_call(
        _value_conv_kernel,
        out_shape=jax.ShapeDtypeStruct((B, N, VP), bf16),
        grid_spec=pltpu.PrefetchScalarGridSpec(
            num_scalar_prefetch=0, grid=(B,),
            in_specs=[pl.BlockSpec((1, n_halo, C), lambda b: (b, 0, 0)),
                      pl.BlockSpec((9, C, VP), lambda b: (0, 0, 0)),
                      pl.BlockSpec((1, VP), lambda b: (0, 0)),
                      pl.BlockSpec((9, N, 1), lambda b: (0, 0, 0))],
            out_specs=pl.BlockSpec((1, N, VP), lambda b: (b, 0, 0))),
        compiler_params=pltpu.CompilerParams(
            dimension_semantics=("parallel",),
            vmem_limit_bytes=VMEM_LIMIT),
    )(x_halo, wv9_pad, bv_pad, mask9)

    # ---- kernel 3: flash attention + BN affine + W projection ----
    tq = _pick_tile(N, 256)      # biggest dividing tiles that fit comfortably
    tk = _pick_tile(N, 512)      # in VMEM -> fewest grid steps (0.35us each)
    nq, nk = N // tq, N // tk
    qk_bnk = qk_raw.reshape(B, N, KP)

    out_pad = pl.pallas_call(
        _flash_attn_kernel,
        out_shape=jax.ShapeDtypeStruct((B, N, OP), f32),
        grid_spec=pltpu.PrefetchScalarGridSpec(
            num_scalar_prefetch=0, grid=(B, nq, nk),
            in_specs=[pl.BlockSpec((1, tq, KP), lambda b, qi, ki: (b, qi, 0)),
                      pl.BlockSpec((1, tk, KP), lambda b, qi, ki: (b, ki, 0)),
                      pl.BlockSpec((1, tk, VP), lambda b, qi, ki: (b, ki, 0)),
                      pl.BlockSpec((1, KP), lambda b, qi, ki: (0, 0)),
                      pl.BlockSpec((1, KP), lambda b, qi, ki: (0, 0)),
                      pl.BlockSpec((VP, OP), lambda b, qi, ki: (0, 0)),
                      pl.BlockSpec((1, OP), lambda b, qi, ki: (0, 0))],
            out_specs=pl.BlockSpec((1, tq, OP), lambda b, qi, ki: (b, qi, 0)),
            scratch_shapes=[pltpu.VMEM((tq, 1), f32),
                            pltpu.VMEM((tq, 1), f32),
                            pltpu.VMEM((tq, VP), f32)]),
        compiler_params=pltpu.CompilerParams(
            dimension_semantics=("parallel", "parallel", "arbitrary"),
            vmem_limit_bytes=VMEM_LIMIT),
    )(qk_bnk, qk_bnk, value, scale, shift, ww_pad, bw_pad)

    # residual + un-pad padded output channels + back to NCHW (cheap glue)
    out_flat = out_pad[:, :, :C_out] + x_flat
    return jnp.transpose(out_flat.reshape(B, H, W, C_out), (0, 3, 1, 2))


# -------------------------- parameter initialization ----------------------

def init_params(key, in_channels, key_channels, value_channels, out_channels):
    ks = jax.random.split(key, 7)
    wk = 0.02 * jax.random.normal(ks[0], (in_channels, key_channels), jnp.float32)
    bk = 0.02 * jax.random.normal(ks[1], (1, key_channels), jnp.float32)
    bn_gamma = 1.0 + 0.02 * jax.random.normal(ks[2], (key_channels,), jnp.float32)
    bn_beta = jnp.zeros((key_channels,), jnp.float32)
    # f_value 3x3 conv weight kept in PyTorch OIHW layout (V, C, 3, 3)
    wv = 0.02 * jax.random.normal(
        ks[3], (value_channels, in_channels, 3, 3), jnp.float32)
    bv = 0.02 * jax.random.normal(ks[4], (1, value_channels), jnp.float32)
    ww = 0.02 * jax.random.normal(ks[5], (value_channels, out_channels), jnp.float32)
    bw = 0.02 * jax.random.normal(ks[6], (1, out_channels), jnp.float32)
    return dict(wk=wk, bk=bk, bn_gamma=bn_gamma, bn_beta=bn_beta,
                wv=wv, bv=bv, ww=ww, bw=bw)


# ------------------------------ pure-JAX reference -------------------------

def reference(x_nchw, params, eps=1e-5):
    B, C, H, W = x_nchw.shape
    N = H * W
    x_flat = jnp.transpose(x_nchw, (0, 2, 3, 1)).reshape(B, N, C)
    qk_raw = jnp.einsum("bnc,ck->bnk", x_flat, params["wk"]) + params["bk"]
    mean = jnp.mean(qk_raw, axis=(0, 1))
    var = jnp.var(qk_raw, axis=(0, 1))                 # biased, as PyTorch BN
    qk = (qk_raw - mean) / jnp.sqrt(var + eps) * params["bn_gamma"] + params["bn_beta"]
    value = jax.lax.conv_general_dilated(
        x_nchw, params["wv"], window_strides=(1, 1), padding="SAME",
        dimension_numbers=("NCHW", "OIHW", "NCHW"))
    value = value + params["bv"].reshape(1, -1, 1, 1)
    Vc = value.shape[1]
    value = value.reshape(B, Vc, N).transpose(0, 2, 1)
    sim = jax.nn.softmax(jnp.einsum("bik,bjk->bij", qk, qk), axis=-1)
    ctx = jnp.einsum("bij,bjv->biv", sim, value)
    out = jnp.einsum("biv,vo->bio", ctx, params["ww"]) + params["bw"]
    out = out + x_flat
    return jnp.transpose(out.reshape(B, H, W, -1), (0, 3, 1, 2))


if __name__ == "__main__":
    key = jax.random.PRNGKey(0)
    kx, kp = jax.random.split(key)

    B, C_in, H, W = 2, 8, 16, 16
    key_channels, value_channels = 8, 8
    out_channels = C_in  # out_channels=None in PyTorch -> defaults to in_channels

    x = jax.random.normal(kx, (B, C_in, H, W), jnp.float32)
    params = init_params(kp, C_in, key_channels, value_channels, out_channels)

    fwd = jax.jit(self_attention_block)
    out = jax.block_until_ready(fwd(x, params))

    ref = reference(x, params)
    assert out.shape == (B, out_channels, H, W)
    max_err = float(jnp.max(jnp.abs(out - ref)))
    assert jnp.allclose(out, ref, rtol=2e-2, atol=5e-3), max_err

    print("KERNEL_OK")
</pallas_src>

<mosaic_0001>
module attributes {stable_mosaic.version = 11 : i64} {
  func.func @_proj_stats_kernel(%arg0: i32, %arg1: memref<512x8xf32, #tpu.memory_space<vmem>>, %arg2: memref<8x128xf32, #tpu.memory_space<vmem>>, %arg3: memref<1x128xf32, #tpu.memory_space<vmem>>, %arg4: memref<512x128xbf16, #tpu.memory_space<vmem>>, %arg5: memref<1x2x128xf32, #tpu.memory_space<vmem>>) attributes {dimension_semantics = [#tpu.dimension_semantics<parallel>], iteration_bounds = array<i64: 1>, scalar_prefetch = 0 : i64, scratch_operands = 0 : i64, tpu.core_type = #tpu.core_type<tc>, window_params = [{transform_indices = @transform_0, window_bounds = array<i64: 512, 8>}, {pipeline_mode = #tpu.pipeline_mode<synchronous>, transform_indices = @transform_1, window_bounds = array<i64: 8, 128>}, {pipeline_mode = #tpu.pipeline_mode<synchronous>, transform_indices = @transform_2, window_bounds = array<i64: 1, 128>}, {transform_indices = @transform_3, window_bounds = array<i64: 512, 128>}, {transform_indices = @transform_4, window_bounds = array<i64: 1, 2, 128>}]} {
    %c0 = arith.constant 0 : index
    %c0_0 = arith.constant 0 : index
    %0 = vector.load %arg1[%c0, %c0_0] : memref<512x8xf32, #tpu.memory_space<vmem>>, vector<512x8xf32>
    %c0_1 = arith.constant 0 : index
    %c0_2 = arith.constant 0 : index
    %1 = vector.load %arg2[%c0_1, %c0_2] : memref<8x128xf32, #tpu.memory_space<vmem>>, vector<8x128xf32>
    %cst = arith.constant dense<0.000000e+00> : vector<512x128xf32>
    %2 = tpu.matmul %0, %1, %cst {dimension_numbers = #tpu.dot_dimension_numbers<[1], [0], [0], [1], [0, 0, 1, 1], [], []>} : vector<512x8xf32>, vector<8x128xf32>, vector<512x128xf32> -> vector<512x128xf32>
    %c0_3 = arith.constant 0 : index
    %c0_4 = arith.constant 0 : index
    %3 = vector.load %arg3[%c0_3, %c0_4] : memref<1x128xf32, #tpu.memory_space<vmem>>, vector<1x128xf32>
    %4 = vector.broadcast %3 : vector<1x128xf32> to vector<512x128xf32>
    %5 = arith.addf %2, %4 : vector<512x128xf32>
    %6 = arith.truncf %5 : vector<512x128xf32> to vector<512x128xbf16>
    %c0_5 = arith.constant 0 : index
    %c0_6 = arith.constant 0 : index
    %7 = vector.load %arg4[%c0_5, %c0_6] : memref<512x128xbf16, #tpu.memory_space<vmem>>, vector<512x128xbf16>
    tpu.vector_store %arg4[%c0_5, %c0_6], %6 {strides = array<i32>} : memref<512x128xbf16, #tpu.memory_space<vmem>>, vector<512x128xbf16>,
    %cst_7 = arith.constant dense<0.000000e+00> : vector<128xf32>
    %8 = vector.multi_reduction <add>, %5, %cst_7 [0] : vector<512x128xf32> to vector<128xf32>
    %9 = vector.shape_cast %8 : vector<128xf32> to vector<1x128xf32>
    %10 = arith.mulf %5, %5 : vector<512x128xf32>
    %cst_8 = arith.constant dense<0.000000e+00> : vector<128xf32>
    %11 = vector.multi_reduction <add>, %10, %cst_8 [0] : vector<512x128xf32> to vector<128xf32>
    %12 = vector.shape_cast %11 : vector<128xf32> to vector<1x128xf32>
    %13 = tpu.concatenate %9, %12 in 0 : vector<1x128xf32>, vector<1x128xf32> -> vector<2x128xf32>
    %c0_9 = arith.constant 0 : index
    %c0_10 = arith.constant 0 : index
    %c0_11 = arith.constant 0 : index
    %14 = vector.load %arg5[%c0_9, %c0_10, %c0_11] : memref<1x2x128xf32, #tpu.memory_space<vmem>>, vector<1x2x128xf32>
    %15 = vector.shape_cast %14 : vector<1x2x128xf32> to vector<2x128xf32>
    %16 = vector.shape_cast %13 : vector<2x128xf32> to vector<1x2x128xf32>
    tpu.vector_store %arg5[%c0_9, %c0_10, %c0_11], %16 {strides = array<i32>} : memref<1x2x128xf32, #tpu.memory_space<vmem>>, vector<1x2x128xf32>,
    return
  }
  func.func @transform_0(%arg0: i32) -> (i32, i32) {
    %c0_i32 = arith.constant 0 : i32
    %c0_i32_0 = arith.constant 0 : i32
    return %arg0, %c0_i32 : i32, i32
  }
  func.func @transform_1(%arg0: i32) -> (i32, i32) {
    %c0_i32 = arith.constant 0 : i32
    %c0_i32_0 = arith.constant 0 : i32
    %c0_i32_1 = arith.constant 0 : i32
    return %c0_i32, %c0_i32_0 : i32, i32
  }
  func.func @transform_2(%arg0: i32) -> (i32, i32) {
    %c0_i32 = arith.constant 0 : i32
    %c0_i32_0 = arith.constant 0 : i32
    %c0_i32_1 = arith.constant 0 : i32
    return %c0_i32, %c0_i32_0 : i32, i32
  }
  func.func @transform_3(%arg0: i32) -> (i32, i32) {
    %c0_i32 = arith.constant 0 : i32
    %c0_i32_0 = arith.constant 0 : i32
    return %arg0, %c0_i32 : i32, i32
  }
  func.func @transform_4(%arg0: i32) -> (i32, i32, i32) {
    %c0_i32 = arith.constant 0 : i32
    %c0_i32_0 = arith.constant 0 : i32
    %c0_i32_1 = arith.constant 0 : i32
    return %arg0, %c0_i32, %c0_i32_0 : i32, i32, i32
  }
}

module attributes {stable_mosaic.version = 11 : i64} {
  func.func @_value_conv_kernel(%arg0: i32, %arg1: memref<1x290x8xf32, #tpu.memory_space<vmem>>, %arg2: memref<9x8x128xf32, #tpu.memory_space<vmem>>, %arg3: memref<1x128xf32, #tpu.memory_space<vmem>>, %arg4: memref<9x256x1xf32, #tpu.memory_space<vmem>>, %arg5: memref<1x256x128xbf16, #tpu.memory_space<vmem>>) attributes {dimension_semantics = [#tpu.dimension_semantics<parallel>], iteration_bounds = array<i64: 2>, scalar_prefetch = 0 : i64, scratch_operands = 0 : i64, tpu.core_type = #tpu.core_type<tc>, window_params = [{transform_indices = @transform_0, window_bounds = array<i64: 1, 290, 8>}, {pipeline_mode = #tpu.pipeline_mode<synchronous>, transform_indices = @transform_1, window_bounds = array<i64: 9, 8, 128>}, {pipeline_mode = #tpu.pipeline_mode<synchronous>, transform_indices = @transform_2, window_bounds = array<i64: 1, 128>}, {pipeline_mode = #tpu.pipeline_mode<synchronous>, transform_indices = @transform_3, window_bounds = array<i64: 9, 256, 1>}, {transform_indices = @transform_4, window_bounds = array<i64: 1, 256, 128>}]} {
    %cst = arith.constant 0.000000e+00 : f32
    %0 = vector.broadcast %cst : f32 to vector<256x128xf32>
    %c0 = arith.constant 0 : index
    %c0_0 = arith.constant 0 : index
    %1 = vector.load %arg3[%c0, %c0_0] : memref<1x128xf32, #tpu.memory_space<vmem>>, vector<1x128xf32>
    %2 = vector.broadcast %1 : vector<1x128xf32> to vector<256x128xf32>
    %3 = arith.addf %0, %2 : vector<256x128xf32>
    %c0_1 = arith.constant 0 : index
    %c0_2 = arith.constant 0 : index
    %c0_3 = arith.constant 0 : index
    %4 = vector.load %arg1[%c0_1, %c0_2, %c0_3] : memref<1x290x8xf32, #tpu.memory_space<vmem>>, vector<1x256x8xf32>
    %5 = vector.shape_cast %4 : vector<1x256x8xf32> to vector<256x8xf32>
    %c0_4 = arith.constant 0 : index
    %c0_5 = arith.constant 0 : index
    %c0_6 = arith.constant 0 : index
    %6 = vector.load %arg4[%c0_4, %c0_5, %c0_6] : memref<9x256x1xf32, #tpu.memory_space<vmem>>, vector<1x256x1xf32>
    %7 = vector.shape_cast %6 : vector<1x256x1xf32> to vector<256x1xf32>
    %8 = vector.broadcast %7 : vector<256x1xf32> to vector<256x8xf32>
    %9 = arith.mulf %5, %8 : vector<256x8xf32>
    %10 = arith.truncf %9 : vector<256x8xf32> to vector<256x8xbf16>
    %c0_7 = arith.constant 0 : index
    %c0_8 = arith.constant 0 : index
    %c0_9 = arith.constant 0 : index
    %11 = vector.load %arg2[%c0_7, %c0_8, %c0_9] : memref<9x8x128xf32, #tpu.memory_space<vmem>>, vector<1x8x128xf32>
    %12 = vector.shape_cast %11 : vector<1x8x128xf32> to vector<8x128xf32>
    %13 = arith.truncf %12 : vector<8x128xf32> to vector<8x128xbf16>
    %cst_10 = arith.constant dense<0.000000e+00> : vector<256x128xf32>
    %14 = tpu.matmul %10, %13, %cst_10 {dimension_numbers = #tpu.dot_dimension_numbers<[1], [0], [0], [1], [0, 0, 1, 1], [], []>} : vector<256x8xbf16>, vector<8x128xbf16>, vector<256x128xf32> -> vector<256x128xf32>
    %15 = arith.addf %3, %14 : vector<256x128xf32>
    %c0_11 = arith.constant 0 : index
    %c1 = arith.constant 1 : index
    %c0_12 = arith.constant 0 : index
    %16 = vector.load %arg1[%c0_11, %c1, %c0_12] : memref<1x290x8xf32, #tpu.memory_space<vmem>>, vector<1x256x8xf32>
    %17 = vector.shape_cast %16 : vector<1x256x8xf32> to vector<256x8xf32>
    %c1_13 = arith.constant 1 : index
    %c0_14 = arith.constant 0 : index
    %c0_15 = arith.constant 0 : index
    %18 = vector.load %arg4[%c1_13, %c0_14, %c0_15] : memref<9x256x1xf32, #tpu.memory_space<vmem>>, vector<1x256x1xf32>
    %19 = vector.shape_cast %18 : vector<1x256x1xf32> to vector<256x1xf32>
    %20 = vector.broadcast %19 : vector<256x1xf32> to vector<256x8xf32>
    %21 = arith.mulf %17, %20 : vector<256x8xf32>
    %22 = arith.truncf %21 : vector<256x8xf32> to vector<256x8xbf16>
    %c1_16 = arith.constant 1 : index
    %c0_17 = arith.constant 0 : index
    %c0_18 = arith.constant 0 : index
    %23 = vector.load %arg2[%c1_16, %c0_17, %c0_18] : memref<9x8x128xf32, #tpu.memory_space<vmem>>, vector<1x8x128xf32>
    %24 = vector.shape_cast %23 : vector<1x8x128xf32> to vector<8x128xf32>
    %25 = arith.truncf %24 : vector<8x128xf32> to vector<8x128xbf16>
    %cst_19 = arith.constant dense<0.000000e+00> : vector<256x128xf32>
    %26 = tpu.matmul %22, %25, %cst_19 {dimension_numbers = #tpu.dot_dimension_numbers<[1], [0], [0], [1], [0, 0, 1, 1], [], []>} : vector<256x8xbf16>, vector<8x128xbf16>, vector<256x128xf32> -> vector<256x128xf32>
    %27 = arith.addf %15, %26 : vector<256x128xf32>
    %c0_20 = arith.constant 0 : index
    %c2 = arith.constant 2 : index
    %c0_21 = arith.constant 0 : index
    %28 = vector.load %arg1[%c0_20, %c2, %c0_21] : memref<1x290x8xf32, #tpu.memory_space<vmem>>, vector<1x256x8xf32>
    %29 = vector.shape_cast %28 : vector<1x256x8xf32> to vector<256x8xf32>
    %c2_22 = arith.constant 2 : index
    %c0_23 = arith.constant 0 : index
    %c0_24 = arith.constant 0 : index
    %30 = vector.load %arg4[%c2_22, %c0_23, %c0_24] : memref<9x256x1xf32, #tpu.memory_space<vmem>>, vector<1x256x1xf32>
    %31 = vector.shape_cast %30 : vector<1x256x1xf32> to vector<256x1xf32>
    %32 = vector.broadcast %31 : vector<256x1xf32> to vector<256x8xf32>
    %33 = arith.mulf %29, %32 : vector<256x8xf32>
    %34 = arith.truncf %33 : vector<256x8xf32> to vector<256x8xbf16>
    %c2_25 = arith.constant 2 : index
    %c0_26 = arith.constant 0 : index
    %c0_27 = arith.constant 0 : index
    %35 = vector.load %arg2[%c2_25, %c0_26, %c0_27] : memref<9x8x128xf32, #tpu.memory_space<vmem>>, vector<1x8x128xf32>
    %36 = vector.shape_cast %35 : vector<1x8x128xf32> to vector<8x128xf32>
    %37 = arith.truncf %36 : vector<8x128xf32> to vector<8x128xbf16>
    %cst_28 = arith.constant dense<0.000000e+00> : vector<256x128xf32>
    %38 = tpu.matmul %34, %37, %cst_28 {dimension_numbers = #tpu.dot_dimension_numbers<[1], [0], [0], [1], [0, 0, 1, 1], [], []>} : vector<256x8xbf16>, vector<8x128xbf16>, vector<256x128xf32> -> vector<256x128xf32>
    %39 = arith.addf %27, %38 : vector<256x128xf32>
    %c0_29 = arith.constant 0 : index
    %c16 = arith.constant 16 : index
    %c0_30 = arith.constant 0 : index
    %40 = vector.load %arg1[%c0_29, %c16, %c0_30] : memref<1x290x8xf32, #tpu.memory_space<vmem>>, vector<1x256x8xf32>
    %41 = vector.shape_cast %40 : vector<1x256x8xf32> to vector<256x8xf32>
    %c3 = arith.constant 3 : index
    %c0_31 = arith.constant 0 : index
    %c0_32 = arith.constant 0 : index
    %42 = vector.load %arg4[%c3, %c0_31, %c0_32] : memref<9x256x1xf32, #tpu.memory_space<vmem>>, vector<1x256x1xf32>
    %43 = vector.shape_cast %42 : vector<1x256x1xf32> to vector<256x1xf32>
    %44 = vector.broadcast %43 : vector<256x1xf32> to vector<256x8xf32>
    %45 = arith.mulf %41, %44 : vector<256x8xf32>
    %46 = arith.truncf %45 : vector<256x8xf32> to vector<256x8xbf16>
    %c3_33 = arith.constant 3 : index
    %c0_34 = arith.constant 0 : index
    %c0_35 = arith.constant 0 : index
    %47 = vector.load %arg2[%c3_33, %c0_34, %c0_35] : memref<9x8x128xf32, #tpu.memory_space<vmem>>, vector<1x8x128xf32>
    %48 = vector.shape_cast %47 : vector<1x8x128xf32> to vector<8x128xf32>
    %49 = arith.truncf %48 : vector<8x128xf32> to vector<8x128xbf16>
    %cst_36 = arith.constant dense<0.000000e+00> : vector<256x128xf32>
    %50 = tpu.matmul %46, %49, %cst_36 {dimension_numbers = #tpu.dot_dimension_numbers<[1], [0], [0], [1], [0, 0, 1, 1], [], []>} : vector<256x8xbf16>, vector<8x128xbf16>, vector<256x128xf32> -> vector<256x128xf32>
    %51 = arith.addf %39, %50 : vector<256x128xf32>
    %c0_37 = arith.constant 0 : index
    %c17 = arith.constant 17 : index
    %c0_38 = arith.constant 0 : index
    %52 = vector.load %arg1[%c0_37, %c17, %c0_38] : memref<1x290x8xf32, #tpu.memory_space<vmem>>, vector<1x256x8xf32>
    %53 = vector.shape_cast %52 : vector<1x256x8xf32> to vector<256x8xf32>
    %c4 = arith.constant 4 : index
    %c0_39 = arith.constant 0 : index
    %c0_40 = arith.constant 0 : index
    %54 = vector.load %arg4[%c4, %c0_39, %c0_40] : memref<9x256x1xf32, #tpu.memory_space<vmem>>, vector<1x256x1xf32>
    %55 = vector.shape_cast %54 : vector<1x256x1xf32> to vector<256x1xf32>
    %56 = vector.broadcast %55 : vector<256x1xf32> to vector<256x8xf32>
    %57 = arith.mulf %53, %56 : vector<256x8xf32>
    %58 = arith.truncf %57 : vector<256x8xf32> to vector<256x8xbf16>
    %c4_41 = arith.constant 4 : index
    %c0_42 = arith.constant 0 : index
    %c0_43 = arith.constant 0 : index
    %59 = vector.load %arg2[%c4_41, %c0_42, %c0_43] : memref<9x8x128xf32, #tpu.memory_space<vmem>>, vector<1x8x128xf32>
    %60 = vector.shape_cast %59 : vector<1x8x128xf32> to vector<8x128xf32>
    %61 = arith.truncf %60 : vector<8x128xf32> to vector<8x128xbf16>
    %cst_44 = arith.constant dense<0.000000e+00> : vector<256x128xf32>
    %62 = tpu.matmul %58, %61, %cst_44 {dimension_numbers = #tpu.dot_dimension_numbers<[1], [0], [0], [1], [0, 0, 1, 1], [], []>} : vector<256x8xbf16>, vector<8x128xbf16>, vector<256x128xf32> -> vector<256x128xf32>
    %63 = arith.addf %51, %62 : vector<256x128xf32>
    %c0_45 = arith.constant 0 : index
    %c18 = arith.constant 18 : index
    %c0_46 = arith.constant 0 : index
    %64 = vector.load %arg1[%c0_45, %c18, %c0_46] : memref<1x290x8xf32, #tpu.memory_space<vmem>>, vector<1x256x8xf32>
    %65 = vector.shape_cast %64 : vector<1x256x8xf32> to vector<256x8xf32>
    %c5 = arith.constant 5 : index
    %c0_47 = arith.constant 0 : index
    %c0_48 = arith.constant 0 : index
    %66 = vector.load %arg4[%c5, %c0_47, %c0_48] : memref<9x256x1xf32, #tpu.memory_space<vmem>>, vector<1x256x1xf32>
    %67 = vector.shape_cast %66 : vector<1x256x1xf32> to vector<256x1xf32>
    %68 = vector.broadcast %67 : vector<256x1xf32> to vector<256x8xf32>
    %69 = arith.mulf %65, %68 : vector<256x8xf32>
    %70 = arith.truncf %69 : vector<256x8xf32> to vector<256x8xbf16>
    %c5_49 = arith.constant 5 : index
    %c0_50 = arith.constant 0 : index
    %c0_51 = arith.constant 0 : index
    %71 = vector.load %arg2[%c5_49, %c0_50, %c0_51] : memref<9x8x128xf32, #tpu.memory_space<vmem>>, vector<1x8x128xf32>
    %72 = vector.shape_cast %71 : vector<1x8x128xf32> to vector<8x128xf32>
    %73 = arith.truncf %72 : vector<8x128xf32> to vector<8x128xbf16>
    %cst_52 = arith.constant dense<0.000000e+00> : vector<256x128xf32>
    %74 = tpu.matmul %70, %73, %cst_52 {dimension_numbers = #tpu.dot_dimension_numbers<[1], [0], [0], [1], [0, 0, 1, 1], [], []>} : vector<256x8xbf16>, vector<8x128xbf16>, vector<256x128xf32> -> vector<256x128xf32>
    %75 = arith.addf %63, %74 : vector<256x128xf32>
    %c0_53 = arith.constant 0 : index
    %c32 = arith.constant 32 : index
    %c0_54 = arith.constant 0 : index
    %76 = vector.load %arg1[%c0_53, %c32, %c0_54] : memref<1x290x8xf32, #tpu.memory_space<vmem>>, vector<1x256x8xf32>
    %77 = vector.shape_cast %76 : vector<1x256x8xf32> to vector<256x8xf32>
    %c6 = arith.constant 6 : index
    %c0_55 = arith.constant 0 : index
    %c0_56 = arith.constant 0 : index
    %78 = vector.load %arg4[%c6, %c0_55, %c0_56] : memref<9x256x1xf32, #tpu.memory_space<vmem>>, vector<1x256x1xf32>
    %79 = vector.shape_cast %78 : vector<1x256x1xf32> to vector<256x1xf32>
    %80 = vector.broadcast %79 : vector<256x1xf32> to vector<256x8xf32>
    %81 = arith.mulf %77, %80 : vector<256x8xf32>
    %82 = arith.truncf %81 : vector<256x8xf32> to vector<256x8xbf16>
    %c6_57 = arith.constant 6 : index
    %c0_58 = arith.constant 0 : index
    %c0_59 = arith.constant 0 : index
    %83 = vector.load %arg2[%c6_57, %c0_58, %c0_59] : memref<9x8x128xf32, #tpu.memory_space<vmem>>, vector<1x8x128xf32>
    %84 = vector.shape_cast %83 : vector<1x8x128xf32> to vector<8x128xf32>
    %85 = arith.truncf %84 : vector<8x128xf32> to vector<8x128xbf16>
    %cst_60 = arith.constant dense<0.000000e+00> : vector<256x128xf32>
    %86 = tpu.matmul %82, %85, %cst_60 {dimension_numbers = #tpu.dot_dimension_numbers<[1], [0], [0], [1], [0, 0, 1, 1], [], []>} : vector<256x8xbf16>, vector<8x128xbf16>, vector<256x128xf32> -> vector<256x128xf32>
    %87 = arith.addf %75, %86 : vector<256x128xf32>
    %c0_61 = arith.constant 0 : index
    %c33 = arith.constant 33 : index
    %c0_62 = arith.constant 0 : index
    %88 = vector.load %arg1[%c0_61, %c33, %c0_62] : memref<1x290x8xf32, #tpu.memory_space<vmem>>, vector<1x256x8xf32>
    %89 = vector.shape_cast %88 : vector<1x256x8xf32> to vector<256x8xf32>
    %c7 = arith.constant 7 : index
    %c0_63 = arith.constant 0 : index
    %c0_64 = arith.constant 0 : index
    %90 = vector.load %arg4[%c7, %c0_63, %c0_64] : memref<9x256x1xf32, #tpu.memory_space<vmem>>, vector<1x256x1xf32>
    %91 = vector.shape_cast %90 : vector<1x256x1xf32> to vector<256x1xf32>
    %92 = vector.broadcast %91 : vector<256x1xf32> to vector<256x8xf32>
    %93 = arith.mulf %89, %92 : vector<256x8xf32>
    %94 = arith.truncf %93 : vector<256x8xf32> to vector<256x8xbf16>
    %c7_65 = arith.constant 7 : index
    %c0_66 = arith.constant 0 : index
    %c0_67 = arith.constant 0 : index
    %95 = vector.load %arg2[%c7_65, %c0_66, %c0_67] : memref<9x8x128xf32, #tpu.memory_space<vmem>>, vector<1x8x128xf32>
    %96 = vector.shape_cast %95 : vector<1x8x128xf32> to vector<8x128xf32>
    %97 = arith.truncf %96 : vector<8x128xf32> to vector<8x128xbf16>
    %cst_68 = arith.constant dense<0.000000e+00> : vector<256x128xf32>
    %98 = tpu.matmul %94, %97, %cst_68 {dimension_numbers = #tpu.dot_dimension_numbers<[1], [0], [0], [1], [0, 0, 1, 1], [], []>} : vector<256x8xbf16>, vector<8x128xbf16>, vector<256x128xf32> -> vector<256x128xf32>
    %99 = arith.addf %87, %98 : vector<256x128xf32>
    %c0_69 = arith.constant 0 : index
    %c34 = arith.constant 34 : index
    %c0_70 = arith.constant 0 : index
    %100 = vector.load %arg1[%c0_69, %c34, %c0_70] : memref<1x290x8xf32, #tpu.memory_space<vmem>>, vector<1x256x8xf32>
    %101 = vector.shape_cast %100 : vector<1x256x8xf32> to vector<256x8xf32>
    %c8 = arith.constant 8 : index
    %c0_71 = arith.constant 0 : index
    %c0_72 = arith.constant 0 : index
    %102 = vector.load %arg4[%c8, %c0_71, %c0_72] : memref<9x256x1xf32, #tpu.memory_space<vmem>>, vector<1x256x1xf32>
    %103 = vector.shape_cast %102 : vector<1x256x1xf32> to vector<256x1xf32>
    %104 = vector.broadcast %103 : vector<256x1xf32> to vector<256x8xf32>
    %105 = arith.mulf %101, %104 : vector<256x8xf32>
    %106 = arith.truncf %105 : vector<256x8xf32> to vector<256x8xbf16>
    %c8_73 = arith.constant 8 : index
    %c0_74 = arith.constant 0 : index
    %c0_75 = arith.constant 0 : index
    %107 = vector.load %arg2[%c8_73, %c0_74, %c0_75] : memref<9x8x128xf32, #tpu.memory_space<vmem>>, vector<1x8x128xf32>
    %108 = vector.shape_cast %107 : vector<1x8x128xf32> to vector<8x128xf32>
    %109 = arith.truncf %108 : vector<8x128xf32> to vector<8x128xbf16>
    %cst_76 = arith.constant dense<0.000000e+00> : vector<256x128xf32>
    %110 = tpu.matmul %106, %109, %cst_76 {dimension_numbers = #tpu.dot_dimension_numbers<[1], [0], [0], [1], [0, 0, 1, 1], [], []>} : vector<256x8xbf16>, vector<8x128xbf16>, vector<256x128xf32> -> vector<256x128xf32>
    %111 = arith.addf %99, %110 : vector<256x128xf32>
    %112 = arith.truncf %111 : vector<256x128xf32> to vector<256x128xbf16>
    %c0_77 = arith.constant 0 : index
    %c0_78 = arith.constant 0 : index
    %c0_79 = arith.constant 0 : index
    %113 = vector.load %arg5[%c0_77, %c0_78, %c0_79] : memref<1x256x128xbf16, #tpu.memory_space<vmem>>, vector<1x256x128xbf16>
    %114 = vector.shape_cast %113 : vector<1x256x128xbf16> to vector<256x128xbf16>
    %115 = vector.shape_cast %112 : vector<256x128xbf16> to vector<1x256x128xbf16>
    tpu.vector_store %arg5[%c0_77, %c0_78, %c0_79], %115 {strides = array<i32>} : memref<1x256x128xbf16, #tpu.memory_space<vmem>>, vector<1x256x128xbf16>,
    return
  }
  func.func @transform_0(%arg0: i32) -> (i32, i32, i32) {
    %c0_i32 = arith.constant 0 : i32
    %c0_i32_0 = arith.constant 0 : i32
    %c0_i32_1 = arith.constant 0 : i32
    return %arg0, %c0_i32, %c0_i32_0 : i32, i32, i32
  }
  func.func @transform_1(%arg0: i32) -> (i32, i32, i32) {
    %c0_i32 = arith.constant 0 : i32
    %c0_i32_0 = arith.constant 0 : i32
    %c0_i32_1 = arith.constant 0 : i32
    %c0_i32_2 = arith.constant 0 : i32
    return %c0_i32, %c0_i32_0, %c0_i32_1 : i32, i32, i32
  }
  func.func @transform_2(%arg0: i32) -> (i32, i32) {
    %c0_i32 = arith.constant 0 : i32
    %c0_i32_0 = arith.constant 0 : i32
    %c0_i32_1 = arith.constant 0 : i32
    return %c0_i32, %c0_i32_0 : i32, i32
  }
  func.func @transform_3(%arg0: i32) -> (i32, i32, i32) {
    %c0_i32 = arith.constant 0 : i32
    %c0_i32_0 = arith.constant 0 : i32
    %c0_i32_1 = arith.constant 0 : i32
    %c0_i32_2 = arith.constant 0 : i32
    return %c0_i32, %c0_i32_0, %c0_i32_1 : i32, i32, i32
  }
  func.func @transform_4(%arg0: i32) -> (i32, i32, i32) {
    %c0_i32 = arith.constant 0 : i32
    %c0_i32_0 = arith.constant 0 : i32
    %c0_i32_1 = arith.constant 0 : i32
    return %arg0, %c0_i32, %c0_i32_0 : i32, i32, i32
  }
}

module attributes {stable_mosaic.version = 11 : i64} {
  func.func @_flash_attn_kernel(%arg0: i32, %arg1: i32, %arg2: i32, %arg3: memref<1x256x128xbf16, #tpu.memory_space<vmem>>, %arg4: memref<1x256x128xbf16, #tpu.memory_space<vmem>>, %arg5: memref<1x256x128xbf16, #tpu.memory_space<vmem>>, %arg6: memref<1x128xf32, #tpu.memory_space<vmem>>, %arg7: memref<1x128xf32, #tpu.memory_space<vmem>>, %arg8: memref<128x128xf32, #tpu.memory_space<vmem>>, %arg9: memref<1x128xf32, #tpu.memory_space<vmem>>, %arg10: memref<1x256x128xf32, #tpu.memory_space<vmem>>, %arg11: memref<256x1xf32, #tpu.memory_space<vmem>>, %arg12: memref<256x1xf32, #tpu.memory_space<vmem>>, %arg13: memref<256x128xf32, #tpu.memory_space<vmem>>) attributes {dimension_semantics = [#tpu.dimension_semantics<parallel>, #tpu.dimension_semantics<parallel>, #tpu.dimension_semantics<arbitrary>], iteration_bounds = array<i64: 2, 1, 1>, scalar_prefetch = 0 : i64, scratch_operands = 3 : i64, tpu.core_type = #tpu.core_type<tc>, window_params = [{transform_indices = @transform_0, window_bounds = array<i64: 1, 256, 128>}, {transform_indices = @transform_1, window_bounds = array<i64: 1, 256, 128>}, {transform_indices = @transform_2, window_bounds = array<i64: 1, 256, 128>}, {pipeline_mode = #tpu.pipeline_mode<synchronous>, transform_indices = @transform_3, window_bounds = array<i64: 1, 128>}, {pipeline_mode = #tpu.pipeline_mode<synchronous>, transform_indices = @transform_4, window_bounds = array<i64: 1, 128>}, {pipeline_mode = #tpu.pipeline_mode<synchronous>, transform_indices = @transform_5, window_bounds = array<i64: 128, 128>}, {pipeline_mode = #tpu.pipeline_mode<synchronous>, transform_indices = @transform_6, window_bounds = array<i64: 1, 128>}, {transform_indices = @transform_7, window_bounds = array<i64: 1, 256, 128>}]} {
    %c0_i32 = arith.constant 0 : i32
    %0 = arith.cmpi eq, %arg2, %c0_i32 : i32
    %1 = arith.extui %0 : i1 to i32
    %c0_i32_0 = arith.constant 0 : i32
    %2 = arith.cmpi ne, %1, %c0_i32_0 : i32
    scf.if %2 {
      %cst_30 = arith.constant 0xFF800000 : f32
      %50 = vector.broadcast %cst_30 : f32 to vector<256x1xf32>
      %c0_31 = arith.constant 0 : index
      %c0_32 = arith.constant 0 : index
      %51 = vector.load %arg11[%c0_31, %c0_32] : memref<256x1xf32, #tpu.memory_space<vmem>>, vector<256x1xf32>
      tpu.vector_store %arg11[%c0_31, %c0_32], %50 {strides = array<i32>} : memref<256x1xf32, #tpu.memory_space<vmem>>, vector<256x1xf32>,
      %cst_33 = arith.constant 0.000000e+00 : f32
      %52 = vector.broadcast %cst_33 : f32 to vector<256x1xf32>
      %c0_34 = arith.constant 0 : index
      %c0_35 = arith.constant 0 : index
      %53 = vector.load %arg12[%c0_34, %c0_35] : memref<256x1xf32, #tpu.memory_space<vmem>>, vector<256x1xf32>
      tpu.vector_store %arg12[%c0_34, %c0_35], %52 {strides = array<i32>} : memref<256x1xf32, #tpu.memory_space<vmem>>, vector<256x1xf32>,
      %cst_36 = arith.constant 0.000000e+00 : f32
      %54 = vector.broadcast %cst_36 : f32 to vector<256x128xf32>
      %c0_37 = arith.constant 0 : index
      %c0_38 = arith.constant 0 : index
      %55 = vector.load %arg13[%c0_37, %c0_38] : memref<256x128xf32, #tpu.memory_space<vmem>>, vector<256x128xf32>
      tpu.vector_store %arg13[%c0_37, %c0_38], %54 {strides = array<i32>} : memref<256x128xf32, #tpu.memory_space<vmem>>, vector<256x128xf32>,
    } else {
    }
    %c0 = arith.constant 0 : index
    %c0_1 = arith.constant 0 : index
    %3 = vector.load %arg6[%c0, %c0_1] : memref<1x128xf32, #tpu.memory_space<vmem>>, vector<1x128xf32>
    %c0_2 = arith.constant 0 : index
    %c0_3 = arith.constant 0 : index
    %4 = vector.load %arg7[%c0_2, %c0_3] : memref<1x128xf32, #tpu.memory_space<vmem>>, vector<1x128xf32>
    %c0_4 = arith.constant 0 : index
    %c0_5 = arith.constant 0 : index
    %c0_6 = arith.constant 0 : index
    %5 = vector.load %arg3[%c0_4, %c0_5, %c0_6] : memref<1x256x128xbf16, #tpu.memory_space<vmem>>, vector<1x256x128xbf16>
    %6 = vector.shape_cast %5 : vector<1x256x128xbf16> to vector<256x128xbf16>
    %7 = arith.extf %6 : vector<256x128xbf16> to vector<256x128xf32>
    %8 = vector.broadcast %3 : vector<1x128xf32> to vector<256x128xf32>
    %9 = arith.mulf %7, %8 : vector<256x128xf32>
    %10 = vector.broadcast %4 : vector<1x128xf32> to vector<256x128xf32>
    %11 = arith.addf %9, %10 : vector<256x128xf32>
    %12 = arith.truncf %11 : vector<256x128xf32> to vector<256x128xbf16>
    %c0_7 = arith.constant 0 : index
    %c0_8 = arith.constant 0 : index
    %c0_9 = arith.constant 0 : index
    %13 = vector.load %arg4[%c0_7, %c0_8, %c0_9] : memref<1x256x128xbf16, #tpu.memory_space<vmem>>, vector<1x256x128xbf16>
    %14 = vector.shape_cast %13 : vector<1x256x128xbf16> to vector<256x128xbf16>
    %15 = arith.extf %14 : vector<256x128xbf16> to vector<256x128xf32>
    %16 = vector.broadcast %3 : vector<1x128xf32> to vector<256x128xf32>
    %17 = arith.mulf %15, %16 : vector<256x128xf32>
    %18 = vector.broadcast %4 : vector<1x128xf32> to vector<256x128xf32>
    %19 = arith.addf %17, %18 : vector<256x128xf32>
    %20 = arith.truncf %19 : vector<256x128xf32> to vector<256x128xbf16>
    %cst = arith.constant dense<0.000000e+00> : vector<256x256xf32>
    %21 = tpu.matmul %12, %20, %cst {dimension_numbers = #tpu.dot_dimension_numbers<[1], [1], [0], [0], [0, 0, 1, 0], [], []>} : vector<256x128xbf16>, vector<256x128xbf16>, vector<256x256xf32> -> vector<256x256xf32>
    %c0_10 = arith.constant 0 : index
    %c0_11 = arith.constant 0 : index
    %22 = vector.load %arg11[%c0_10, %c0_11] : memref<256x1xf32, #tpu.memory_space<vmem>>, vector<256x1xf32>
    %cst_12 = arith.constant dense<0xFF800000> : vector<256xf32>
    %23 = vector.multi_reduction <maximumf>, %21, %cst_12 [1] : vector<256x256xf32> to vector<256xf32>
    %24 = vector.shape_cast %23 : vector<256xf32> to vector<256x1xf32>
    %25 = arith.maximumf %22, %24 : vector<256x1xf32>
    %26 = arith.subf %22, %25 : vector<256x1xf32>
    %27 = math.exp %26 : vector<256x1xf32>
    %28 = vector.broadcast %25 : vector<256x1xf32> to vector<256x256xf32>
    %29 = arith.subf %21, %28 : vector<256x256xf32>
    %30 = math.exp %29 : vector<256x256xf32>
    %c0_13 = arith.constant 0 : index
    %c0_14 = arith.constant 0 : index
    %31 = vector.load %arg12[%c0_13, %c0_14] : memref<256x1xf32, #tpu.memory_space<vmem>>, vector<256x1xf32>
    %32 = arith.mulf %27, %31 : vector<256x1xf32>
    %cst_15 = arith.constant dense<0.000000e+00> : vector<256xf32>
    %33 = vector.multi_reduction <add>, %30, %cst_15 [1] : vector<256x256xf32> to vector<256xf32>
    %34 = vector.shape_cast %33 : vector<256xf32> to vector<256x1xf32>
    %35 = arith.addf %32, %34 : vector<256x1xf32>
    %c0_16 = arith.constant 0 : index
    %c0_17 = arith.constant 0 : index
    %36 = vector.load %arg12[%c0_16, %c0_17] : memref<256x1xf32, #tpu.memory_space<vmem>>, vector<256x1xf32>
    tpu.vector_store %arg12[%c0_16, %c0_17], %35 {strides = array<i32>} : memref<256x1xf32, #tpu.memory_space<vmem>>, vector<256x1xf32>,
    %c0_18 = arith.constant 0 : index
    %c0_19 = arith.constant 0 : index
    %37 = vector.load %arg13[%c0_18, %c0_19] : memref<256x128xf32, #tpu.memory_space<vmem>>, vector<256x128xf32>
    %38 = vector.broadcast %27 : vector<256x1xf32> to vector<256x128xf32>
    %39 = arith.mulf %38, %37 : vector<256x128xf32>
    %40 = arith.truncf %30 : vector<256x256xf32> to vector<256x256xbf16>
    %c0_20 = arith.constant 0 : index
    %c0_21 = arith.constant 0 : index
    %c0_22 = arith.constant 0 : index
    %41 = vector.load %arg5[%c0_20, %c0_21, %c0_22] : memref<1x256x128xbf16, #tpu.memory_space<vmem>>, vector<1x256x128xbf16>
    %42 = vector.shape_cast %41 : vector<1x256x128xbf16> to vector<256x128xbf16>
    %cst_23 = arith.constant dense<0.000000e+00> : vector<256x128xf32>
    %43 = tpu.matmul %40, %42, %cst_23 {dimension_numbers = #tpu.dot_dimension_numbers<[1], [0], [0], [1], [0, 0, 1, 1], [], []>} : vector<256x256xbf16>, vector<256x128xbf16>, vector<256x128xf32> -> vector<256x128xf32>
    %44 = arith.addf %39, %43 : vector<256x128xf32>
    %c0_24 = arith.constant 0 : index
    %c0_25 = arith.constant 0 : index
    %45 = vector.load %arg13[%c0_24, %c0_25] : memref<256x128xf32, #tpu.memory_space<vmem>>, vector<256x128xf32>
    tpu.vector_store %arg13[%c0_24, %c0_25], %44 {strides = array<i32>} : memref<256x128xf32, #tpu.memory_space<vmem>>, vector<256x128xf32>,
    %c0_26 = arith.constant 0 : index
    %c0_27 = arith.constant 0 : index
    %46 = vector.load %arg11[%c0_26, %c0_27] : memref<256x1xf32, #tpu.memory_space<vmem>>, vector<256x1xf32>
    tpu.vector_store %arg11[%c0_26, %c0_27], %25 {strides = array<i32>} : memref<256x1xf32, #tpu.memory_space<vmem>>, vector<256x1xf32>,
    %c0_i32_28 = arith.constant 0 : i32
    %47 = arith.cmpi eq, %arg2, %c0_i32_28 : i32
    %48 = arith.extui %47 : i1 to i32
    %c0_i32_29 = arith.constant 0 : i32
    %49 = arith.cmpi ne, %48, %c0_i32_29 : i32
    scf.if %49 {
      %c0_30 = arith.constant 0 : index
      %c0_31 = arith.constant 0 : index
      %50 = vector.load %arg13[%c0_30, %c0_31] : memref<256x128xf32, #tpu.memory_space<vmem>>, vector<256x128xf32>
      %c0_32 = arith.constant 0 : index
      %c0_33 = arith.constant 0 : index
      %51 = vector.load %arg12[%c0_32, %c0_33] : memref<256x1xf32, #tpu.memory_space<vmem>>, vector<256x1xf32>
      %52 = tpu.reciprocal %51 {approx = true} : vector<256x1xf32> -> vector<256x1xf32>
      %53 = vector.broadcast %52 : vector<256x1xf32> to vector<256x128xf32>
      %54 = arith.mulf %50, %53 : vector<256x128xf32>
      %c0_34 = arith.constant 0 : index
      %c0_35 = arith.constant 0 : index
      %55 = vector.load %arg8[%c0_34, %c0_35] : memref<128x128xf32, #tpu.memory_space<vmem>>, vector<128x128xf32>
      %cst_36 = arith.constant dense<0.000000e+00> : vector<256x128xf32>
      %56 = tpu.matmul %54, %55, %cst_36 {dimension_numbers = #tpu.dot_dimension_numbers<[1], [0], [0], [1], [0, 0, 1, 1], [], []>} : vector<256x128xf32>, vector<128x128xf32>, vector<256x128xf32> -> vector<256x128xf32>
      %c0_37 = arith.constant 0 : index
      %c0_38 = arith.constant 0 : index
      %57 = vector.load %arg9[%c0_37, %c0_38] : memref<1x128xf32, #tpu.memory_space<vmem>>, vector<1x128xf32>
      %58 = vector.broadcast %57 : vector<1x128xf32> to vector<256x128xf32>
      %59 = arith.addf %56, %58 : vector<256x128xf32>
      %c0_39 = arith.constant 0 : index
      %c0_40 = arith.constant 0 : index
      %c0_41 = arith.constant 0 : index
      %60 = vector.load %arg10[%c0_39, %c0_40, %c0_41] : memref<1x256x128xf32, #tpu.memory_space<vmem>>, vector<1x256x128xf32>
      %61 = vector.shape_cast %60 : vector<1x256x128xf32> to vector<256x128xf32>
      %62 = vector.shape_cast %59 : vector<256x128xf32> to vector<1x256x128xf32>
      tpu.vector_store %arg10[%c0_39, %c0_40, %c0_41], %62 {strides = array<i32>} : memref<1x256x128xf32, #tpu.memory_space<vmem>>, vector<1x256x128xf32>,
    } else {
    }
    return
  }
  func.func @transform_0(%arg0: i32, %arg1: i32, %arg2: i32) -> (i32, i32, i32) {
    %c0_i32 = arith.constant 0 : i32
    %c0_i32_0 = arith.constant 0 : i32
    return %arg0, %arg1, %c0_i32 : i32, i32, i32
  }
  func.func @transform_1(%arg0: i32, %arg1: i32, %arg2: i32) -> (i32, i32, i32) {
    %c0_i32 = arith.constant 0 : i32
    %c0_i32_0 = arith.constant 0 : i32
    return %arg0, %arg2, %c0_i32 : i32, i32, i32
  }
  func.func @transform_2(%arg0: i32, %arg1: i32, %arg2: i32) -> (i32, i32, i32) {
    %c0_i32 = arith.constant 0 : i32
    %c0_i32_0 = arith.constant 0 : i32
    return %arg0, %arg2, %c0_i32 : i32, i32, i32
  }
  func.func @transform_3(%arg0: i32, %arg1: i32, %arg2: i32) -> (i32, i32) {
    %c0_i32 = arith.constant 0 : i32
    %c0_i32_0 = arith.constant 0 : i32
    %c0_i32_1 = arith.constant 0 : i32
    return %c0_i32, %c0_i32_0 : i32, i32
  }
  func.func @transform_4(%arg0: i32, %arg1: i32, %arg2: i32) -> (i32, i32) {
    %c0_i32 = arith.constant 0 : i32
    %c0_i32_0 = arith.constant 0 : i32
    %c0_i32_1 = arith.constant 0 : i32
    return %c0_i32, %c0_i32_0 : i32, i32
  }
  func.func @transform_5(%arg0: i32, %arg1: i32, %arg2: i32) -> (i32, i32) {
    %c0_i32 = arith.constant 0 : i32
    %c0_i32_0 = arith.constant 0 : i32
    %c0_i32_1 = arith.constant 0 : i32
    return %c0_i32, %c0_i32_0 : i32, i32
  }
  func.func @transform_6(%arg0: i32, %arg1: i32, %arg2: i32) -> (i32, i32) {
    %c0_i32 = arith.constant 0 : i32
    %c0_i32_0 = arith.constant 0 : i32
    %c0_i32_1 = arith.constant 0 : i32
    return %c0_i32, %c0_i32_0 : i32, i32
  }
  func.func @transform_7(%arg0: i32, %arg1: i32, %arg2: i32) -> (i32, i32, i32) {
    %c0_i32 = arith.constant 0 : i32
    %c0_i32_0 = arith.constant 0 : i32
    return %arg0, %arg1, %c0_i32 : i32, i32, i32
  }
}

</mosaic_0001>

<llo_original>
// kernel: self_attention_block.3
$region0: #{self_attention_block.3}
  #allocation0 [shape = 'u32[]', space=smem, size = 0x4, offset = 0x4, fixed_abs, tag = 'smem constant byte address 0x4 - core index']
  #allocation1 [shape = 'u32[72,128]{1,0:T(1,128)}', space=vmem, size = 0x9000, scoped, tag = 'internal scratch']
  %s0 = inlined_call_operand.vmem [shape: f32[512,8], index: 0, kind: input, shape index: {}]
  %s1 = inlined_call_operand.vmem [shape: f32[8,128], index: 1, kind: input, shape index: {}]
  %s2 = inlined_call_operand.vmem [shape: f32[1,128], index: 2, kind: input, shape index: {}]
  %s3 = inlined_call_operand.vmem [shape: bf16[512,128], index: 3, kind: output, shape index: {0}]
  %s4 = inlined_call_operand.vmem [shape: f32[1,2,128], index: 4, kind: output, shape index: {1}]
  %5 = xla_tuple %s3, %s4
  %s6 = sld [smem:[#allocation0]]
  $region30: #{self_attention_block.3} parent=0
    _
  %s8 = ssub.s32 1, %s6
  %s9 = scalar_select 0, %s8, %s6
  // Predicated region
  $region2: #{self_attention_block.3} parent=0 // pred_check
    _
  $region3: #{self_attention_block.3} parent=0 // pred_check_branch
    %11 = sbr.rel (0) target = $region5
  $region4: #{self_attention_block.3} parent=0 // pred_region
    _
  $region5: #{self_attention_block.3} parent=0 // pred_fallthru
    _
  // Predicated region
  $region6: #{self_attention_block.3} parent=0 // pred_check
    _
  $region7: #{self_attention_block.3} parent=0 // pred_check_branch
    %13 = sbr.rel (0) target = $region9
  $region8: #{self_attention_block.3} parent=0 // pred_region
    _
  $region9: #{self_attention_block.3} parent=0 // pred_fallthru
    _
  // Predicated region
  $region10: #{self_attention_block.3} parent=0 // pred_check
    _
  $region11: #{self_attention_block.3} parent=0 // pred_check_branch
    %15 = sbr.rel (0) target = $region13
  $region12: #{self_attention_block.3} parent=0 // pred_region
    _
  $region13: #{self_attention_block.3} parent=0 // pred_fallthru
    _
  %v16 = vld [vmem:[%s0] sm:$0xff]
  %v17 = vld [vmem:[%s0 + $0x8] sm:$0xff]
  %v18 = vld [vmem:[%s0 + $0x10] sm:$0xff]
  %v19 = vld [vmem:[%s0 + $0x18] sm:$0xff]
  %v20 = vld [vmem:[%s0 + $0x20] sm:$0xff]
  %v21 = vld [vmem:[%s0 + $0x28] sm:$0xff]
  %v22 = vld [vmem:[%s0 + $0x30] sm:$0xff]
  %v23 = vld [vmem:[%s0 + $0x38] sm:$0xff]
  %v24 = vld [vmem:[%s0 + $0x40] sm:$0xff]
  %v25 = vld [vmem:[%s0 + $0x48] sm:$0xff]
  %v26 = vld [vmem:[%s0 + $0x50] sm:$0xff]
  %v27 = vld [vmem:[%s0 + $0x58] sm:$0xff]
  %v28 = vld [vmem:[%s0 + $0x60] sm:$0xff]
  %v29 = vld [vmem:[%s0 + $0x68] sm:$0xff]
  %v30 = vld [vmem:[%s0 + $0x70] sm:$0xff]
  %v31 = vld [vmem:[%s0 + $0x78] sm:$0xff]
  %v32 = vld [vmem:[%s0 + $0x80] sm:$0xff]
  %v33 = vld [vmem:[%s0 + $0x88] sm:$0xff]
  %v34 = vld [vmem:[%s0 + $0x90] sm:$0xff]
  %v35 = vld [vmem:[%s0 + $0x98] sm:$0xff]
  %v36 = vld [vmem:[%s0 + $0xa0] sm:$0xff]
  %v37 = vld [vmem:[%s0 + $0xa8] sm:$0xff]
  %v38 = vld [vmem:[%s0 + $0xb0] sm:$0xff]
  %v39 = vld [vmem:[%s0 + $0xb8] sm:$0xff]
  %v40 = vld [vmem:[%s0 + $0xc0] sm:$0xff]
  %v41 = vld [vmem:[%s0 + $0xc8] sm:$0xff]
  %v42 = vld [vmem:[%s0 + $0xd0] sm:$0xff]
  %v43 = vld [vmem:[%s0 + $0xd8] sm:$0xff]
  %v44 = vld [vmem:[%s0 + $0xe0] sm:$0xff]
  %v45 = vld [vmem:[%s0 + $0xe8] sm:$0xff]
  %v46 = vld [vmem:[%s0 + $0xf0] sm:$0xff]
  %v47 = vld [vmem:[%s0 + $0xf8] sm:$0xff]
  %v48 = vld [vmem:[%s0 + $0x100] sm:$0xff]
  %v49 = vld [vmem:[%s0 + $0x108] sm:$0xff]
  %v50 = vld [vmem:[%s0 + $0x110] sm:$0xff]
  %v51 = vld [vmem:[%s0 + $0x118] sm:$0xff]
  %v52 = vld [vmem:[%s0 + $0x120] sm:$0xff]
  %v53 = vld [vmem:[%s0 + $0x128] sm:$0xff]
  %v54 = vld [vmem:[%s0 + $0x130] sm:$0xff]
  %v55 = vld [vmem:[%s0 + $0x138] sm:$0xff]
  %v56 = vld [vmem:[%s0 + $0x140] sm:$0xff]
  %v57 = vld [vmem:[%s0 + $0x148] sm:$0xff]
  %v58 = vld [vmem:[%s0 + $0x150] sm:$0xff]
  %v59 = vld [vmem:[%s0 + $0x158] sm:$0xff]
  %v60 = vld [vmem:[%s0 + $0x160] sm:$0xff]
  %v61 = vld [vmem:[%s0 + $0x168] sm:$0xff]
  %v62 = vld [vmem:[%s0 + $0x170] sm:$0xff]
  %v63 = vld [vmem:[%s0 + $0x178] sm:$0xff]
  %v64 = vld [vmem:[%s0 + $0x180] sm:$0xff]
  %v65 = vld [vmem:[%s0 + $0x188] sm:$0xff]
  %v66 = vld [vmem:[%s0 + $0x190] sm:$0xff]
  %v67 = vld [vmem:[%s0 + $0x198] sm:$0xff]
  %v68 = vld [vmem:[%s0 + $0x1a0] sm:$0xff]
  %v69 = vld [vmem:[%s0 + $0x1a8] sm:$0xff]
  %v70 = vld [vmem:[%s0 + $0x1b0] sm:$0xff]
  %v71 = vld [vmem:[%s0 + $0x1b8] sm:$0xff]
  %v72 = vld [vmem:[%s0 + $0x1c0] sm:$0xff]
  %v73 = vld [vmem:[%s0 + $0x1c8] sm:$0xff]
  %v74 = vld [vmem:[%s0 + $0x1d0] sm:$0xff]
  %v75 = vld [vmem:[%s0 + $0x1d8] sm:$0xff]
  %v76 = vld [vmem:[%s0 + $0x1e0] sm:$0xff]
  %v77 = vld [vmem:[%s0 + $0x1e8] sm:$0xff]
  %v78 = vld [vmem:[%s0 + $0x1f0] sm:$0xff]
  %v79 = vld [vmem:[%s0 + $0x1f8] sm:$0xff]
  %v80 = vld [vmem:[%s1] sm:$0xff]
  %v81 = vld [vmem:[%s2] sm:$0x1]
  %v83 = vperm.slane %v81, 0
  %vm85 = vcmask 64512
  %v87 = vsel %vm85, %v16, 0
  %v90 = vsel %vm85, %v17, 0
  %v93 = vsel %vm85, %v18, 0
  %v96 = vsel %vm85, %v19, 0
  %v99 = vsel %vm85, %v20, 0
  %v102 = vsel %vm85, %v21, 0
  %v105 = vsel %vm85, %v22, 0
  %v108 = vsel %vm85, %v23, 0
  %v111 = vsel %vm85, %v24, 0
  %v114 = vsel %vm85, %v25, 0
  %v117 = vsel %vm85, %v26, 0
  %v120 = vsel %vm85, %v27, 0
  %v123 = vsel %vm85, %v28, 0
  %v126 = vsel %vm85, %v29, 0
  %v129 = vsel %vm85, %v30, 0
  %v132 = vsel %vm85, %v31, 0
  %v135 = vsel %vm85, %v32, 0
  %v138 = vsel %vm85, %v33, 0
  %v141 = vsel %vm85, %v34, 0
  %v144 = vsel %vm85, %v35, 0
  %v147 = vsel %vm85, %v36, 0
  %v150 = vsel %vm85, %v37, 0
  %v153 = vsel %vm85, %v38, 0
  %v156 = vsel %vm85, %v39, 0
  %v159 = vsel %vm85, %v40, 0
  %v162 = vsel %vm85, %v41, 0
  %v165 = vsel %vm85, %v42, 0
  %v168 = vsel %vm85, %v43, 0
  %v171 = vsel %vm85, %v44, 0
  %v174 = vsel %vm85, %v45, 0
  %v177 = vsel %vm85, %v46, 0
  %v180 = vsel %vm85, %v47, 0
  %v183 = vsel %vm85, %v48, 0
  %v186 = vsel %vm85, %v49, 0
  %v189 = vsel %vm85, %v50, 0
  %v192 = vsel %vm85, %v51, 0
  %v195 = vsel %vm85, %v52, 0
  %v198 = vsel %vm85, %v53, 0
  %v201 = vsel %vm85, %v54, 0
  %v204 = vsel %vm85, %v55, 0
  %v207 = vsel %vm85, %v56, 0
  %v210 = vsel %vm85, %v57, 0
  %v213 = vsel %vm85, %v58, 0
  %v216 = vsel %vm85, %v59, 0
  %v219 = vsel %vm85, %v60, 0
  %v222 = vsel %vm85, %v61, 0
  %v225 = vsel %vm85, %v62, 0
  %v228 = vsel %vm85, %v63, 0
  %v231 = vsel %vm85, %v64, 0
  %v234 = vsel %vm85, %v65, 0
  %v237 = vsel %vm85, %v66, 0
  %v240 = vsel %vm85, %v67, 0
  %v243 = vsel %vm85, %v68, 0
  %v246 = vsel %vm85, %v69, 0
  %v249 = vsel %vm85, %v70, 0
  %v252 = vsel %vm85, %v71, 0
  %v255 = vsel %vm85, %v72, 0
  %v258 = vsel %vm85, %v73, 0
  %v261 = vsel %vm85, %v74, 0
  %v264 = vsel %vm85, %v75, 0
  %v267 = vsel %vm85, %v76, 0
  %v270 = vsel %vm85, %v77, 0
  %v273 = vsel %vm85, %v78, 0
  %v276 = vsel %vm85, %v79, 0
  %278 = vmatpush.msra.mxu0 0.0
  %279 = vmatpush.msra.mxu0 0.0
  %280 = vmatpush.msra.mxu0 0.0
  %281 = vmatpush.msra.mxu0 0.0
  %282 = vmatpush.msra.mxu0 0.0
  %283 = vmatpush.msra.mxu0 0.0
  %284 = vmatpush.msra.mxu0 0.0
  %285 = vmatpush.msra.mxu0 0.0
  %286 = vmatpush.msra.mxu0 0.0
  %287 = vmatpush.msra.mxu0 0.0
  %288 = vmatpush.msra.mxu0 0.0
  %289 = vmatpush.msra.mxu0 0.0
  %290 = vmatpush.msra.mxu0 0.0
  %291 = vmatpush.msra.mxu0 0.0
  %292 = vmatpush.msra.mxu0 0.0
  %293 = vmatpush.msra.mxu0 %v80
  %294 = vmatmul.f32.gmra.mxu0 %v87
  %v295 = vpop.f32.mrf.mxu0
  %v296 = vadd.f32 %v83, %v295
  %297 = vmatmul.f32.gmra.mxu0 %v90
  %v298 = vpop.f32.mrf.mxu0
  %v299 = vadd.f32 %v83, %v298
  %300 = vmatmul.f32.gmra.mxu0 %v93
  %v301 = vpop.f32.mrf.mxu0
  %v302 = vadd.f32 %v83, %v301
  %303 = vmatmul.f32.gmra.mxu0 %v96
  %v304 = vpop.f32.mrf.mxu0
  %v305 = vadd.f32 %v83, %v304
  %306 = vmatmul.f32.gmra.mxu0 %v99
  %v307 = vpop.f32.mrf.mxu0
  %v308 = vadd.f32 %v83, %v307
  %309 = vmatmul.f32.gmra.mxu0 %v102
  %v310 = vpop.f32.mrf.mxu0
  %v311 = vadd.f32 %v83, %v310
  %312 = vmatmul.f32.gmra.mxu0 %v105
  %v313 = vpop.f32.mrf.mxu0
  %v314 = vadd.f32 %v83, %v313
  %315 = vmatmul.f32.gmra.mxu0 %v108
  %v316 = vpop.f32.mrf.mxu0
  %v317 = vadd.f32 %v83, %v316
  %318 = vmatmul.f32.gmra.mxu0 %v111
  %v319 = vpop.f32.mrf.mxu0
  %v320 = vadd.f32 %v83, %v319
  %321 = vmatmul.f32.gmra.mxu0 %v114
  %v322 = vpop.f32.mrf.mxu0
  %v323 = vadd.f32 %v83, %v322
  %324 = vmatmul.f32.gmra.mxu0 %v117
  %v325 = vpop.f32.mrf.mxu0
  %v326 = vadd.f32 %v83, %v325
  %327 = vmatmul.f32.gmra.mxu0 %v120
  %v328 = vpop.f32.mrf.mxu0
  %v329 = vadd.f32 %v83, %v328
  %330 = vmatmul.f32.gmra.mxu0 %v123
  %v331 = vpop.f32.mrf.mxu0
  %v332 = vadd.f32 %v83, %v331
  %333 = vmatmul.f32.gmra.mxu0 %v126
  %v334 = vpop.f32.mrf.mxu0
  %v335 = vadd.f32 %v83, %v334
  %336 = vmatmul.f32.gmra.mxu0 %v129
  %v337 = vpop.f32.mrf.mxu0
  %v338 = vadd.f32 %v83, %v337
  %339 = vmatmul.f32.gmra.mxu0 %v132
  %v340 = vpop.f32.mrf.mxu0
  %v341 = vadd.f32 %v83, %v340
  %342 = vmatmul.f32.gmra.mxu0 %v135
  %v343 = vpop.f32.mrf.mxu0
  %v344 = vadd.f32 %v83, %v343
  %345 = vmatmul.f32.gmra.mxu0 %v138
  %v346 = vpop.f32.mrf.mxu0
  %v347 = vadd.f32 %v83, %v346
  %348 = vmatmul.f32.gmra.mxu0 %v141
  %v349 = vpop.f32.mrf.mxu0
  %v350 = vadd.f32 %v83, %v349
  %351 = vmatmul.f32.gmra.mxu0 %v144
  %v352 = vpop.f32.mrf.mxu0
  %v353 = vadd.f32 %v83, %v352
  %354 = vmatmul.f32.gmra.mxu0 %v147
  %v355 = vpop.f32.mrf.mxu0
  %v356 = vadd.f32 %v83, %v355
  %357 = vmatmul.f32.gmra.mxu0 %v150
  %v358 = vpop.f32.mrf.mxu0
  %v359 = vadd.f32 %v83, %v358
  %360 = vmatmul.f32.gmra.mxu0 %v153
  %v361 = vpop.f32.mrf.mxu0
  %v362 = vadd.f32 %v83, %v361
  %363 = vmatmul.f32.gmra.mxu0 %v156
  %v364 = vpop.f32.mrf.mxu0
  %v365 = vadd.f32 %v83, %v364
  %366 = vmatmul.f32.gmra.mxu0 %v159
  %v367 = vpop.f32.mrf.mxu0
  %v368 = vadd.f32 %v83, %v367
  %369 = vmatmul.f32.gmra.mxu0 %v162
  %v370 = vpop.f32.mrf.mxu0
  %v371 = vadd.f32 %v83, %v370
  %372 = vmatmul.f32.gmra.mxu0 %v165
  %v373 = vpop.f32.mrf.mxu0
  %v374 = vadd.f32 %v83, %v373
  %375 = vmatmul.f32.gmra.mxu0 %v168
  %v376 = vpop.f32.mrf.mxu0
  %v377 = vadd.f32 %v83, %v376
  %378 = vmatmul.f32.gmra.mxu0 %v171
  %v379 = vpop.f32.mrf.mxu0
  %v380 = vadd.f32 %v83, %v379
  %381 = vmatmul.f32.gmra.mxu0 %v174
  %v382 = vpop.f32.mrf.mxu0
  %v383 = vadd.f32 %v83, %v382
  %384 = vmatmul.f32.gmra.mxu0 %v177
  %v385 = vpop.f32.mrf.mxu0
  %v386 = vadd.f32 %v83, %v385
  %387 = vmatmul.f32.gmra.mxu0 %v180
  %v388 = vpop.f32.mrf.mxu0
  %v389 = vadd.f32 %v83, %v388
  %390 = vmatmul.f32.gmra.mxu0 %v183
  %v391 = vpop.f32.mrf.mxu0
  %v392 = vadd.f32 %v83, %v391
  %393 = vmatmul.f32.gmra.mxu0 %v186
  %v394 = vpop.f32.mrf.mxu0
  %v395 = vadd.f32 %v83, %v394
  %396 = vmatmul.f32.gmra.mxu0 %v189
  %v397 = vpop.f32.mrf.mxu0
  %v398 = vadd.f32 %v83, %v397
  %399 = vmatmul.f32.gmra.mxu0 %v192
  %v400 = vpop.f32.mrf.mxu0
  %v401 = vadd.f32 %v83, %v400
  %402 = vmatmul.f32.gmra.mxu0 %v195
  %v403 = vpop.f32.mrf.mxu0
  %v404 = vadd.f32 %v83, %v403
  %405 = vmatmul.f32.gmra.mxu0 %v198
  %v406 = vpop.f32.mrf.mxu0
  %v407 = vadd.f32 %v83, %v406
  %408 = vmatmul.f32.gmra.mxu0 %v201
  %v409 = vpop.f32.mrf.mxu0
  %v410 = vadd.f32 %v83, %v409
  %411 = vmatmul.f32.gmra.mxu0 %v204
  %v412 = vpop.f32.mrf.mxu0
  %v413 = vadd.f32 %v83, %v412
  %414 = vmatmul.f32.gmra.mxu0 %v207
  %v415 = vpop.f32.mrf.mxu0
  %v416 = vadd.f32 %v83, %v415
  %417 = vmatmul.f32.gmra.mxu0 %v210
  %v418 = vpop.f32.mrf.mxu0
  %v419 = vadd.f32 %v83, %v418
  %420 = vmatmul.f32.gmra.mxu0 %v213
  %v421 = vpop.f32.mrf.mxu0
  %v422 = vadd.f32 %v83, %v421
  %423 = vmatmul.f32.gmra.mxu0 %v216
  %v424 = vpop.f32.mrf.mxu0
  %v425 = vadd.f32 %v83, %v424
  %426 = vmatmul.f32.gmra.mxu0 %v219
  %v427 = vpop.f32.mrf.mxu0
  %v428 = vadd.f32 %v83, %v427
  %429 = vmatmul.f32.gmra.mxu0 %v222
  %v430 = vpop.f32.mrf.mxu0
  %v431 = vadd.f32 %v83, %v430
  %432 = vmatmul.f32.gmra.mxu0 %v225
  %v433 = vpop.f32.mrf.mxu0
  %v434 = vadd.f32 %v83, %v433
  %435 = vmatmul.f32.gmra.mxu0 %v228
  %v436 = vpop.f32.mrf.mxu0
  %v437 = vadd.f32 %v83, %v436
  %438 = vmatmul.f32.gmra.mxu0 %v231
  %v439 = vpop.f32.mrf.mxu0
  %v440 = vadd.f32 %v83, %v439
  %441 = vmatmul.f32.gmra.mxu0 %v234
  %v442 = vpop.f32.mrf.mxu0
  %v443 = vadd.f32 %v83, %v442
  %444 = vmatmul.f32.gmra.mxu0 %v237
  %v445 = vpop.f32.mrf.mxu0
  %v446 = vadd.f32 %v83, %v445
  %447 = vmatmul.f32.gmra.mxu0 %v240
  %v448 = vpop.f32.mrf.mxu0
  %v449 = vadd.f32 %v83, %v448
  %450 = vmatmul.f32.gmra.mxu0 %v243
  %v451 = vpop.f32.mrf.mxu0
  %v452 = vadd.f32 %v83, %v451
  %453 = vmatmul.f32.gmra.mxu0 %v246
  %v454 = vpop.f32.mrf.mxu0
  %v455 = vadd.f32 %v83, %v454
  %456 = vmatmul.f32.gmra.mxu0 %v249
  %v457 = vpop.f32.mrf.mxu0
  %v458 = vadd.f32 %v83, %v457
  %459 = vmatmul.f32.gmra.mxu0 %v252
  %v460 = vpop.f32.mrf.mxu0
  %v461 = vadd.f32 %v83, %v460
  %462 = vmatmul.f32.gmra.mxu0 %v255
  %v463 = vpop.f32.mrf.mxu0
  %v464 = vadd.f32 %v83, %v463
  %465 = vmatmul.f32.gmra.mxu0 %v258
  %v466 = vpop.f32.mrf.mxu0
  %v467 = vadd.f32 %v83, %v466
  %468 = vmatmul.f32.gmra.mxu0 %v261
  %v469 = vpop.f32.mrf.mxu0
  %v470 = vadd.f32 %v83, %v469
  %471 = vmatmul.f32.gmra.mxu0 %v264
  %v472 = vpop.f32.mrf.mxu0
  %v473 = vadd.f32 %v83, %v472
  %474 = vmatmul.f32.gmra.mxu0 %v267
  %v475 = vpop.f32.mrf.mxu0
  %v476 = vadd.f32 %v83, %v475
  %477 = vmatmul.f32.gmra.mxu0 %v270
  %v478 = vpop.f32.mrf.mxu0
  %v479 = vadd.f32 %v83, %v478
  %480 = vmatmul.f32.gmra.mxu0 %v273
  %v481 = vpop.f32.mrf.mxu0
  %v482 = vadd.f32 %v83, %v481
  %483 = vmatmul.f32.gmra.mxu0 %v276
  %v484 = vpop.f32.mrf.mxu0
  %v485 = vadd.f32 %v83, %v484
  %486 = vdwg.mxu0
  %v487 = vpack.c.bf16 %v296, %v296
  %v488 = vpack.c.bf16 %v299, %v299
  %v489 = vpack.c.bf16 %v302, %v302
  %v490 = vpack.c.bf16 %v305, %v305
  %v491 = vpack.c.bf16 %v308, %v308
  %v492 = vpack.c.bf16 %v311, %v311
  %v493 = vpack.c.bf16 %v314, %v314
  %v494 = vpack.c.bf16 %v317, %v317
  %v495 = vpack.c.bf16 %v320, %v320
  %v496 = vpack.c.bf16 %v323, %v323
  %v497 = vpack.c.bf16 %v326, %v326
  %v498 = vpack.c.bf16 %v329, %v329
  %v499 = vpack.c.bf16 %v332, %v332
  %v500 = vpack.c.bf16 %v335, %v335
  %v501 = vpack.c.bf16 %v338, %v338
  %v502 = vpack.c.bf16 %v341, %v341
  %v503 = vpack.c.bf16 %v344, %v344
  %v504 = vpack.c.bf16 %v347, %v347
  %v505 = vpack.c.bf16 %v350, %v350
  %v506 = vpack.c.bf16 %v353, %v353
  %v507 = vpack.c.bf16 %v356, %v356
  %v508 = vpack.c.bf16 %v359, %v359
  %v509 = vpack.c.bf16 %v362, %v362
  %v510 = vpack.c.bf16 %v365, %v365
  %v511 = vpack.c.bf16 %v368, %v368
  %v512 = vpack.c.bf16 %v371, %v371
  %v513 = vpack.c.bf16 %v374, %v374
  %v514 = vpack.c.bf16 %v377, %v377
  %v515 = vpack.c.bf16 %v380, %v380
  %v516 = vpack.c.bf16 %v383, %v383
  %v517 = vpack.c.bf16 %v386, %v386
  %v518 = vpack.c.bf16 %v389, %v389
  %v519 = vpack.c.bf16 %v392, %v392
  %v520 = vpack.c.bf16 %v395, %v395
  %v521 = vpack.c.bf16 %v398, %v398
  %v522 = vpack.c.bf16 %v401, %v401
  %v523 = vpack.c.bf16 %v404, %v404
  %v524 = vpack.c.bf16 %v407, %v407
  %v525 = vpack.c.bf16 %v410, %v410
  %v526 = vpack.c.bf16 %v413, %v413
  %v527 = vpack.c.bf16 %v416, %v416
  %v528 = vpack.c.bf16 %v419, %v419
  %v529 = vpack.c.bf16 %v422, %v422
  %v530 = vpack.c.bf16 %v425, %v425
  %v531 = vpack.c.bf16 %v428, %v428
  %v532 = vpack.c.bf16 %v431, %v431
  %v533 = vpack.c.bf16 %v434, %v434
  %v534 = vpack.c.bf16 %v437, %v437
  %v535 = vpack.c.bf16 %v440, %v440
  %v536 = vpack.c.bf16 %v443, %v443
  %v537 = vpack.c.bf16 %v446, %v446
  %v538 = vpack.c.bf16 %v449, %v449
  %v539 = vpack.c.bf16 %v452, %v452
  %v540 = vpack.c.bf16 %v455, %v455
  %v541 = vpack.c.bf16 %v458, %v458
  %v542 = vpack.c.bf16 %v461, %v461
  %v543 = vpack.c.bf16 %v464, %v464
  %v544 = vpack.c.bf16 %v467, %v467
  %v545 = vpack.c.bf16 %v470, %v470
  %v546 = vpack.c.bf16 %v473, %v473
  %v547 = vpack.c.bf16 %v476, %v476
  %v548 = vpack.c.bf16 %v479, %v479
  %v549 = vpack.c.bf16 %v482, %v482
  %v550 = vpack.c.bf16 %v485, %v485
  %551 = vst [vmem:[%s3] sm:$0xf] %v487
  %552 = vst [vmem:[%s3 + $0x4] sm:$0xf] %v488
  %553 = vst [vmem:[%s3 + $0x8] sm:$0xf] %v489
  %554 = vst [vmem:[%s3 + $0xc] sm:$0xf] %v490
  %555 = vst [vmem:[%s3 + $0x10] sm:$0xf] %v491
  %556 = vst [vmem:[%s3 + $0x14] sm:$0xf] %v492
  %557 = vst [vmem:[%s3 + $0x18] sm:$0xf] %v493
  %558 = vst [vmem:[%s3 + $0x1c] sm:$0xf] %v494
  %559 = vst [vmem:[%s3 + $0x20] sm:$0xf] %v495
  %560 = vst [vmem:[%s3 + $0x24] sm:$0xf] %v496
  %561 = vst [vmem:[%s3 + $0x28] sm:$0xf] %v497
  %562 = vst [vmem:[%s3 + $0x2c] sm:$0xf] %v498
  %563 = vst [vmem:[%s3 + $0x30] sm:$0xf] %v499
  %564 = vst [vmem:[%s3 + $0x34] sm:$0xf] %v500
  %565 = vst [vmem:[%s3 + $0x38] sm:$0xf] %v501
  %566 = vst [vmem:[%s3 + $0x3c] sm:$0xf] %v502
  %567 = vst [vmem:[%s3 + $0x40] sm:$0xf] %v503
  %568 = vst [vmem:[%s3 + $0x44] sm:$0xf] %v504
  %569 = vst [vmem:[%s3 + $0x48] sm:$0xf] %v505
  %570 = vst [vmem:[%s3 + $0x4c] sm:$0xf] %v506
  %571 = vst [vmem:[%s3 + $0x50] sm:$0xf] %v507
  %572 = vst [vmem:[%s3 + $0x54] sm:$0xf] %v508
  %573 = vst [vmem:[%s3 + $0x58] sm:$0xf] %v509
  %574 = vst [vmem:[%s3 + $0x5c] sm:$0xf] %v510
  %575 = vst [vmem:[%s3 + $0x60] sm:$0xf] %v511
  %576 = vst [vmem:[%s3 + $0x64] sm:$0xf] %v512
  %577 = vst [vmem:[%s3 + $0x68] sm:$0xf] %v513
  %578 = vst [vmem:[%s3 + $0x6c] sm:$0xf] %v514
  %579 = vst [vmem:[%s3 + $0x70] sm:$0xf] %v515
  %580 = vst [vmem:[%s3 + $0x74] sm:$0xf] %v516
  %581 = vst [vmem:[%s3 + $0x78] sm:$0xf] %v517
  %582 = vst [vmem:[%s3 + $0x7c] sm:$0xf] %v518
  %583 = vst [vmem:[%s3 + $0x80] sm:$0xf] %v519
  %584 = vst [vmem:[%s3 + $0x84] sm:$0xf] %v520
  %585 = vst [vmem:[%s3 + $0x88] sm:$0xf] %v521
  %586 = vst [vmem:[%s3 + $0x8c] sm:$0xf] %v522
  %587 = vst [vmem:[%s3 + $0x90] sm:$0xf] %v523
  %588 = vst [vmem:[%s3 + $0x94] sm:$0xf] %v524
  %589 = vst [vmem:[%s3 + $0x98] sm:$0xf] %v525
  %590 = vst [vmem:[%s3 + $0x9c] sm:$0xf] %v526
  %591 = vst [vmem:[%s3 + $0xa0] sm:$0xf] %v527
  %592 = vst [vmem:[%s3 + $0xa4] sm:$0xf] %v528
  %593 = vst [vmem:[%s3 + $0xa8] sm:$0xf] %v529
  %594 = vst [vmem:[%s3 + $0xac] sm:$0xf] %v530
  %595 = vst [vmem:[%s3 + $0xb0] sm:$0xf] %v531
  %596 = vst [vmem:[%s3 + $0xb4] sm:$0xf] %v532
  %597 = vst [vmem:[%s3 + $0xb8] sm:$0xf] %v533
  %598 = vst [vmem:[%s3 + $0xbc] sm:$0xf] %v534
  %599 = vst [vmem:[%s3 + $0xc0] sm:$0xf] %v535
  %600 = vst [vmem:[%s3 + $0xc4] sm:$0xf] %v536
  %601 = vst [vmem:[%s3 + $0xc8] sm:$0xf] %v537
  %602 = vst [vmem:[%s3 + $0xcc] sm:$0xf] %v538
  %603 = vst [vmem:[%s3 + $0xd0] sm:$0xf] %v539
  %604 = vst [vmem:[%s3 + $0xd4] sm:$0xf] %v540
  %605 = vst [vmem:[%s3 + $0xd8] sm:$0xf] %v541
  %606 = vst [vmem:[%s3 + $0xdc] sm:$0xf] %v542
  %607 = vst [vmem:[%s3 + $0xe0] sm:$0xf] %v543
  %608 = vst [vmem:[%s3 + $0xe4] sm:$0xf] %v544
  %609 = vst [vmem:[%s3 + $0xe8] sm:$0xf] %v545
  %610 = vst [vmem:[%s3 + $0xec] sm:$0xf] %v546
  %611 = vst [vmem:[%s3 + $0xf0] sm:$0xf] %v547
  %612 = vst [vmem:[%s3 + $0xf4] sm:$0xf] %v548
  %613 = vst [vmem:[%s3 + $0xf8] sm:$0xf] %v549
  %614 = vst [vmem:[%s3 + $0xfc] sm:$0xf] %v550
  %v615 = vadd.f32 %v296, %v299
  %v616 = vadd.f32 %v615, %v302
  %v617 = vadd.f32 %v616, %v305
  %v618 = vadd.f32 %v617, %v308
  %v619 = vadd.f32 %v618, %v311
  %v620 = vadd.f32 %v619, %v314
  %v621 = vadd.f32 %v620, %v317
  %v622 = vadd.f32 %v621, %v320
  %v623 = vadd.f32 %v622, %v323
  %v624 = vadd.f32 %v623, %v326
  %v625 = vadd.f32 %v624, %v329
  %v626 = vadd.f32 %v625, %v332
  %v627 = vadd.f32 %v626, %v335
  %v628 = vadd.f32 %v627, %v338
  %v629 = vadd.f32 %v628, %v341
  %v630 = vadd.f32 %v629, %v344
  %v631 = vadd.f32 %v630, %v347
  %v632 = vadd.f32 %v631, %v350
  %v633 = vadd.f32 %v632, %v353
  %v634 = vadd.f32 %v633, %v356
  %v635 = vadd.f32 %v634, %v359
  %v636 = vadd.f32 %v635, %v362
  %v637 = vadd.f32 %v636, %v365
  %v638 = vadd.f32 %v637, %v368
  %v639 = vadd.f32 %v638, %v371
  %v640 = vadd.f32 %v639, %v374
  %v641 = vadd.f32 %v640, %v377
  %v642 = vadd.f32 %v641, %v380
  %v643 = vadd.f32 %v642, %v383
  %v644 = vadd.f32 %v643, %v386
  %v645 = vadd.f32 %v644, %v389
  %v646 = vadd.f32 %v645, %v392
  %v647 = vadd.f32 %v646, %v395
  %v648 = vadd.f32 %v647, %v398
  %v649 = vadd.f32 %v648, %v401
  %v650 = vadd.f32 %v649, %v404
  %v651 = vadd.f32 %v650, %v407
  %v652 = vadd.f32 %v651, %v410
  %v653 = vadd.f32 %v652, %v413
  %v654 = vadd.f32 %v653, %v416
  %v655 = vadd.f32 %v654, %v419
  %v656 = vadd.f32 %v655, %v422
  %v657 = vadd.f32 %v656, %v425
  %v658 = vadd.f32 %v657, %v428
  %v659 = vadd.f32 %v658, %v431
  %v660 = vadd.f32 %v659, %v434
  %v661 = vadd.f32 %v660, %v437
  %v662 = vadd.f32 %v661, %v440
  %v663 = vadd.f32 %v662, %v443
  %v664 = vadd.f32 %v663, %v446
  %v665 = vadd.f32 %v664, %v449
  %v666 = vadd.f32 %v665, %v452
  %v667 = vadd.f32 %v666, %v455
  %v668 = vadd.f32 %v667, %v458
  %v669 = vadd.f32 %v668, %v461
  %v670 = vadd.f32 %v669, %v464
  %v671 = vadd.f32 %v670, %v467
  %v672 = vadd.f32 %v671, %v470
  %v673 = vadd.f32 %v672, %v473
  %v674 = vadd.f32 %v673, %v476
  %v675 = vadd.f32 %v674, %v479
  %v676 = vadd.f32 %v675, %v482
  %v677 = vadd.f32 %v676, %v485
  %v678 = vrot.slane %v677, 4
  %v679 = vadd.f32 %v677, %v678
  %v680 = vrot.slane %v679, 2
  %v681 = vadd.f32 %v679, %v680
  %v682 = vrot.slane %v681, 1
  %v683 = vadd.f32 %v681, %v682
  %v684 = vmul.f32 %v296, %v296
  %v685 = vmul.f32 %v299, %v299
  %v686 = vmul.f32 %v302, %v302
  %v687 = vmul.f32 %v305, %v305
  %v688 = vmul.f32 %v308, %v308
  %v689 = vmul.f32 %v311, %v311
  %v690 = vmul.f32 %v314, %v314
  %v691 = vmul.f32 %v317, %v317
  %v692 = vmul.f32 %v320, %v320
  %v693 = vmul.f32 %v323, %v323
  %v694 = vmul.f32 %v326, %v326
  %v695 = vmul.f32 %v329, %v329
  %v696 = vmul.f32 %v332, %v332
  %v697 = vmul.f32 %v335, %v335
  %v698 = vmul.f32 %v338, %v338
  %v699 = vmul.f32 %v341, %v341
  %v700 = vmul.f32 %v344, %v344
  %v701 = vmul.f32 %v347, %v347
  %v702 = vmul.f32 %v350, %v350
  %v703 = vmul.f32 %v353, %v353
  %v704 = vmul.f32 %v356, %v356
  %v705 = vmul.f32 %v359, %v359
  %v706 = vmul.f32 %v362, %v362
  %v707 = vmul.f32 %v365, %v365
  %v708 = vmul.f32 %v368, %v368
  %v709 = vmul.f32 %v371, %v371
  %v710 = vmul.f32 %v374, %v374
  %v711 = vmul.f32 %v377, %v377
  %v712 = vmul.f32 %v380, %v380
  %v713 = vmul.f32 %v383, %v383
  %v714 = vmul.f32 %v386, %v386
  %v715 = vmul.f32 %v389, %v389
  %v716 = vmul.f32 %v392, %v392
  %v717 = vmul.f32 %v395, %v395
  %v718 = vmul.f32 %v398, %v398
  %v719 = vmul.f32 %v401, %v401
  %v720 = vmul.f32 %v404, %v404
  %v721 = vmul.f32 %v407, %v407
  %v722 = vmul.f32 %v410, %v410
  %v723 = vmul.f32 %v413, %v413
  %v724 = vmul.f32 %v416, %v416
  %v725 = vmul.f32 %v419, %v419
  %v726 = vmul.f32 %v422, %v422
  %v727 = vmul.f32 %v425, %v425
  %v728 = vmul.f32 %v428, %v428
  %v729 = vmul.f32 %v431, %v431
  %v730 = vmul.f32 %v434, %v434
  %v731 = vmul.f32 %v437, %v437
  %v732 = vmul.f32 %v440, %v440
  %v733 = vmul.f32 %v443, %v443
  %v734 = vmul.f32 %v446, %v446
  %v735 = vmul.f32 %v449, %v449
  %v736 = vmul.f32 %v452, %v452
  %v737 = vmul.f32 %v455, %v455
  %v738 = vmul.f32 %v458, %v458
  %v739 = vmul.f32 %v461, %v461
  %v740 = vmul.f32 %v464, %v464
  %v741 = vmul.f32 %v467, %v467
  %v742 = vmul.f32 %v470, %v470
  %v743 = vmul.f32 %v473, %v473
  %v744 = vmul.f32 %v476, %v476
  %v745 = vmul.f32 %v479, %v479
  %v746 = vmul.f32 %v482, %v482
  %v747 = vmul.f32 %v485, %v485
  %v748 = vadd.f32 %v684, %v685
  %v749 = vadd.f32 %v748, %v686
  %v750 = vadd.f32 %v749, %v687
  %v751 = vadd.f32 %v750, %v688
  %v752 = vadd.f32 %v751, %v689
  %v753 = vadd.f32 %v752, %v690
  %v754 = vadd.f32 %v753, %v691
  %v755 = vadd.f32 %v754, %v692
  %v756 = vadd.f32 %v755, %v693
  %v757 = vadd.f32 %v756, %v694
  %v758 = vadd.f32 %v757, %v695
  %v759 = vadd.f32 %v758, %v696
  %v760 = vadd.f32 %v759, %v697
  %v761 = vadd.f32 %v760, %v698
  %v762 = vadd.f32 %v761, %v699
  %v763 = vadd.f32 %v762, %v700
  %v764 = vadd.f32 %v763, %v701
  %v765 = vadd.f32 %v764, %v702
  %v766 = vadd.f32 %v765, %v703
  %v767 = vadd.f32 %v766, %v704
  %v768 = vadd.f32 %v767, %v705
  %v769 = vadd.f32 %v768, %v706
  %v770 = vadd.f32 %v769, %v707
  %v771 = vadd.f32 %v770, %v708
  %v772 = vadd.f32 %v771, %v709
  %v773 = vadd.f32 %v772, %v710
  %v774 = vadd.f32 %v773, %v711
  %v775 = vadd.f32 %v774, %v712
  %v776 = vadd.f32 %v775, %v713
  %v777 = vadd.f32 %v776, %v714
  %v778 = vadd.f32 %v777, %v715
  %v779 = vadd.f32 %v778, %v716
  %v780 = vadd.f32 %v779, %v717
  %v781 = vadd.f32 %v780, %v718
  %v782 = vadd.f32 %v781, %v719
  %v783 = vadd.f32 %v782, %v720
  %v784 = vadd.f32 %v783, %v721
  %v785 = vadd.f32 %v784, %v722
  %v786 = vadd.f32 %v785, %v723
  %v787 = vadd.f32 %v786, %v724
  %v788 = vadd.f32 %v787, %v725
  %v789 = vadd.f32 %v788, %v726
  %v790 = vadd.f32 %v789, %v727
  %v791 = vadd.f32 %v790, %v728
  %v792 = vadd.f32 %v791, %v729
  %v793 = vadd.f32 %v792, %v730
  %v794 = vadd.f32 %v793, %v731
  %v795 = vadd.f32 %v794, %v732
  %v796 = vadd.f32 %v795, %v733
  %v797 = vadd.f32 %v796, %v734
  %v798 = vadd.f32 %v797, %v735
  %v799 = vadd.f32 %v798, %v736
  %v800 = vadd.f32 %v799, %v737
  %v801 = vadd.f32 %v800, %v738
  %v802 = vadd.f32 %v801, %v739
  %v803 = vadd.f32 %v802, %v740
  %v804 = vadd.f32 %v803, %v741
  %v805 = vadd.f32 %v804, %v742
  %v806 = vadd.f32 %v805, %v743
  %v807 = vadd.f32 %v806, %v744
  %v808 = vadd.f32 %v807, %v745
  %v809 = vadd.f32 %v808, %v746
  %v810 = vadd.f32 %v809, %v747
  %v811 = vrot.slane %v810, 4
  %v812 = vadd.f32 %v810, %v811
  %v813 = vrot.slane %v812, 2
  %v814 = vadd.f32 %v812, %v813
  %v815 = vrot.slane %v814, 1
  %v816 = vadd.f32 %v814, %v815
  %vm817 = vcmask 1040384
  %v818 = vsel %vm817, %v683, %v816
  %819 = vst [vmem:[%s4] sm:$0x3] %v818
  // Predicated region
  $region14: #{self_attention_block.3} parent=0 // pred_check
    _
  $region15: #{self_attention_block.3} parent=0 // pred_check_branch
    %821 = sbr.rel (0) target = $region17
  $region16: #{self_attention_block.3} parent=0 // pred_region
    _
  $region17: #{self_attention_block.3} parent=0 // pred_fallthru
    _
  // Predicated region
  $region18: #{self_attention_block.3} parent=0 // pred_check
    _
  $region19: #{self_attention_block.3} parent=0 // pred_check_branch
    %823 = sbr.rel (0) target = $region21
  $region20: #{self_attention_block.3} parent=0 // pred_region
    _
  $region21: #{self_attention_block.3} parent=0 // pred_fallthru
    _
  // Predicated region
  $region22: #{self_attention_block.3} parent=0 // pred_check
    _
  $region23: #{self_attention_block.3} parent=0 // pred_check_branch
    %825 = sbr.rel (0) target = $region25
  $region24: #{self_attention_block.3} parent=0 // pred_region
    _
  $region25: #{self_attention_block.3} parent=0 // pred_fallthru
    _
  // Predicated region
  $region26: #{self_attention_block.3} parent=0 // pred_check
    _
  $region27: #{self_attention_block.3} parent=0 // pred_check_branch
    %827 = sbr.rel (0) target = $region29
  $region28: #{self_attention_block.3} parent=0 // pred_region
    _
  $region29: #{self_attention_block.3} parent=0 // pred_fallthru
    _

// kernel: self_attention_block.5
$region0: #{self_attention_block.5}
  #allocation0 [shape = 'u32[]', space=smem, size = 0x4, offset = 0x4, fixed_abs, tag = 'smem constant byte address 0x4 - core index']
  #allocation1 [shape = 'u32[72,128]{1,0:T(1,128)}', space=vmem, size = 0x9000, scoped, tag = 'internal scratch']
  #allocation2 [shape = 'f32[256,1]{1,0:T(8,128)}', space=vmem, size = 0x20000, scoped, tag = 'scratch operand']
  #allocation3 [shape = 'f32[256,1]{1,0:T(8,128)}', space=vmem, size = 0x20000, scoped, tag = 'scratch operand']
  #allocation4 [shape = 'f32[256,128]{1,0:T(8,128)}', space=vmem, size = 0x20000, scoped, tag = 'scratch operand']
  %s0 = inlined_call_operand.vmem [shape: bf16[2,256,128], index: 0, kind: input, shape index: {}, may-alias: {0,1}]
  %s1 = inlined_call_operand.vmem [shape: bf16[2,256,128], index: 1, kind: input, shape index: {}, may-alias: {0,1}]
  %s2 = inlined_call_operand.vmem [shape: bf16[2,256,128], index: 2, kind: input, shape index: {}]
  %s3 = inlined_call_operand.vmem [shape: f32[1,128], index: 3, kind: input, shape index: {}]
  %s4 = inlined_call_operand.vmem [shape: f32[1,128], index: 4, kind: input, shape index: {}]
  %s5 = inlined_call_operand.vmem [shape: f32[128,128], index: 5, kind: input, shape index: {}]
  %s6 = inlined_call_operand.vmem [shape: f32[1,128], index: 6, kind: input, shape index: {}]
  %s7 = inlined_call_operand.vmem [shape: f32[2,256,128], index: 7, kind: output, shape index: {}]
  %s8 = sld [smem:[#allocation0]]
  $region69: #{self_attention_block.5} parent=0
    _
  %s10 = ssub.s32 1, %s8
  %s11 = scalar_select 0, %s10, %s8
  loop: start=0, step=1, limit=4
  $region2: #{self_attention_block.5} parent=0 // loop_pre_header
    _
  $region3: #{self_attention_block.5} parent=0 // loop_header
    %s13 = sphi 0, %s17
    %p14 = scmp.ge.s32.totalorder %s13, 4
    %s20 = sphi 0, %s39
    %s21 = sphi 0, %s35
    %s22 = sphi 0, %s31
    %s23 = sphi 0, %s20
    %s24 = sphi 0, %s21
    %s25 = sphi 0, %s22
    %s26 = sphi 0, %s23
    %s27 = sphi 0, %s24
    %s28 = sphi 0, %s25
    %s44 = sphi 0, %s46
    %s47 = sphi 0, %s44
    %s48 = sphi 0, %s47
    %s64 = sphi 0, %s48
    %s72 = sphi 0, %s74
    %s75 = sphi 0, %s72
    %s76 = sphi 0, %s75
    %s92 = sphi 0, %s76
    %s100 = sphi 0, %s102
    %s103 = sphi 0, %s100
    %s104 = sphi 0, %s103
    %s120 = sphi 0, %s104
    %s124 = sphi 0, %s124
    %s126 = sphi 0, %s124
    %s127 = sphi 0, %s126
    %s141 = sphi 0, %s127
    %s145 = sphi 0, %s145
    %s147 = sphi 0, %s145
    %s148 = sphi 0, %s147
    %s162 = sphi 0, %s148
    %s166 = sphi 0, %s166
    %s168 = sphi 0, %s166
    %s169 = sphi 0, %s168
    %s183 = sphi 0, %s169
    %s187 = sphi 0, %s187
    %s189 = sphi 0, %s187
    %s190 = sphi 0, %s189
    %s204 = sphi 0, %s190
    %s212 = sphi 0, %s214
    %s215 = sphi 0, %s212
    %s216 = sphi 0, %s215
    %s232 = sphi 0, %s216
  $region4: #{self_attention_block.5} parent=0 // loop_header_branch
    %16 = sbr.rel (%p14) target = $region8
  $region5: #{self_attention_block.5} parent=0 // loop_body
    %s18 = ssub.s32 %s13, 1
    %s19 = ssub.s32 %s13, 2
    %s29 = sadd.s32 1, %s22
    %p30 = scmp.ge.s32.totalorder %s29, 1
    %s31 = scalar_select %p30, 0, %s29
    %s32 = sadd.s32 1, %s21
    %s33 = scalar_select %p30, %s32, %s21
    %p34 = scmp.ge.s32.totalorder %s33, 1
    %s35 = scalar_select %p34, 0, %s33
    %s36 = sadd.s32 1, %s20
    %s37 = scalar_select %p34, %s36, %s20
    %p38 = scmp.ge.s32.totalorder %s37, 2
    %s39 = scalar_select %p38, 0, %s37
    %s40 = ssub.s32 %s20, %s39
    %s41 = ssub.s32 %s21, %s35
    %s42 = sor.u32 %s40, %s41
    %p43 = scmp.eq.s32.totalorder %s42, 0
    %s45 = sadd.s32 %s44, 1
    %s46 = scalar_select %p43, %s44, %s45
    %p49 = pneg %p43
    %p50 = scmp.eq.s32.totalorder %s13, 1
    %p51 = por %p49, %p50
    %p52 = scmp.ne.s32.totalorder %s44, %s47
    %p53 = scmp.eq.s32.totalorder %s13, 0
    %p54 = por %p52, %p53
    %p55 = scmp.ne.s32.totalorder %s44, %s47
    %p56 = scmp.eq.s32.totalorder %s18, 1
    %p57 = por %p55, %p56
    %p58 = scmp.ne.s32.totalorder %s47, %s48
    %p59 = scmp.eq.s32.totalorder %s18, 0
    %p60 = por %p58, %p59
    %p61 = scmp.ne.s32.totalorder %s47, %s48
    %p62 = scmp.eq.s32.totalorder %s19, 1
    %p63 = por %p61, %p62
    %p65 = scmp.ne.s32.totalorder %s48, %s64
    %p66 = scmp.eq.s32.totalorder %s19, 0
    %p67 = por %p65, %p66
    %s68 = ssub.s32 %s20, %s39
    %s69 = ssub.s32 %s22, %s31
    %s70 = sor.u32 %s68, %s69
    %p71 = scmp.eq.s32.totalorder %s70, 0
    %s73 = sadd.s32 %s72, 1
    %s74 = scalar_select %p71, %s72, %s73
    %p77 = pneg %p71
    %p78 = scmp.eq.s32.totalorder %s13, 1
    %p79 = por %p77, %p78
    %p80 = scmp.ne.s32.totalorder %s72, %s75
    %p81 = scmp.eq.s32.totalorder %s13, 0
    %p82 = por %p80, %p81
    %p83 = scmp.ne.s32.totalorder %s72, %s75
    %p84 = scmp.eq.s32.totalorder %s18, 1
    %p85 = por %p83, %p84
    %p86 = scmp.ne.s32.totalorder %s75, %s76
    %p87 = scmp.eq.s32.totalorder %s18, 0
    %p88 = por %p86, %p87
    %p89 = scmp.ne.s32.totalorder %s75, %s76
    %p90 = scmp.eq.s32.totalorder %s19, 1
    %p91 = por %p89, %p90
    %p93 = scmp.ne.s32.totalorder %s76, %s92
    %p94 = scmp.eq.s32.totalorder %s19, 0
    %p95 = por %p93, %p94
    %s96 = ssub.s32 %s20, %s39
    %s97 = ssub.s32 %s22, %s31
    %s98 = sor.u32 %s96, %s97
    %p99 = scmp.eq.s32.totalorder %s98, 0
    %s101 = sadd.s32 %s100, 1
    %s102 = scalar_select %p99, %s100, %s101
    %p105 = pneg %p99
    %p106 = scmp.eq.s32.totalorder %s13, 1
    %p107 = por %p105, %p106
    %p108 = scmp.ne.s32.totalorder %s100, %s103
    %p109 = scmp.eq.s32.totalorder %s13, 0
    %p110 = por %p108, %p109
    %p111 = scmp.ne.s32.totalorder %s100, %s103
    %p112 = scmp.eq.s32.totalorder %s18, 1
    %p113 = por %p111, %p112
    %p114 = scmp.ne.s32.totalorder %s103, %s104
    %p115 = scmp.eq.s32.totalorder %s18, 0
    %p116 = por %p114, %p115
    %p117 = scmp.ne.s32.totalorder %s103, %s104
    %p118 = scmp.eq.s32.totalorder %s19, 1
    %p119 = por %p117, %p118
    %p121 = scmp.ne.s32.totalorder %s104, %s120
    %p122 = scmp.eq.s32.totalorder %s19, 0
    %p123 = por %p121, %p122
    %s125 = sadd.s32 %s124, 1
    %p128 = scmp.eq.s32.totalorder %s13, 1
    %p129 = scmp.ne.s32.totalorder %s124, %s126
    %p130 = scmp.eq.s32.totalorder %s13, 0
    %p131 = por %p129, %p130
    %p132 = scmp.ne.s32.totalorder %s124, %s126
    %p133 = scmp.eq.s32.totalorder %s18, 1
    %p134 = por %p132, %p133
    %p135 = scmp.ne.s32.totalorder %s126, %s127
    %p136 = scmp.eq.s32.totalorder %s18, 0
    %p137 = por %p135, %p136
    %p138 = scmp.ne.s32.totalorder %s126, %s127
    %p139 = scmp.eq.s32.totalorder %s19, 1
    %p140 = por %p138, %p139
    %p142 = scmp.ne.s32.totalorder %s127, %s141
    %p143 = scmp.eq.s32.totalorder %s19, 0
    %p144 = por %p142, %p143
    %s146 = sadd.s32 %s145, 1
    %p149 = scmp.eq.s32.totalorder %s13, 1
    %p150 = scmp.ne.s32.totalorder %s145, %s147
    %p151 = scmp.eq.s32.totalorder %s13, 0
    %p152 = por %p150, %p151
    %p153 = scmp.ne.s32.totalorder %s145, %s147
    %p154 = scmp.eq.s32.totalorder %s18, 1
    %p155 = por %p153, %p154
    %p156 = scmp.ne.s32.totalorder %s147, %s148
    %p157 = scmp.eq.s32.totalorder %s18, 0
    %p158 = por %p156, %p157
    %p159 = scmp.ne.s32.totalorder %s147, %s148
    %p160 = scmp.eq.s32.totalorder %s19, 1
    %p161 = por %p159, %p160
    %p163 = scmp.ne.s32.totalorder %s148, %s162
    %p164 = scmp.eq.s32.totalorder %s19, 0
    %p165 = por %p163, %p164
    %s167 = sadd.s32 %s166, 1
    %p170 = scmp.eq.s32.totalorder %s13, 1
    %p171 = scmp.ne.s32.totalorder %s166, %s168
    %p172 = scmp.eq.s32.totalorder %s13, 0
    %p173 = por %p171, %p172
    %p174 = scmp.ne.s32.totalorder %s166, %s168
    %p175 = scmp.eq.s32.totalorder %s18, 1
    %p176 = por %p174, %p175
    %p177 = scmp.ne.s32.totalorder %s168, %s169
    %p178 = scmp.eq.s32.totalorder %s18, 0
    %p179 = por %p177, %p178
    %p180 = scmp.ne.s32.totalorder %s168, %s169
    %p181 = scmp.eq.s32.totalorder %s19, 1
    %p182 = por %p180, %p181
    %p184 = scmp.ne.s32.totalorder %s169, %s183
    %p185 = scmp.eq.s32.totalorder %s19, 0
    %p186 = por %p184, %p185
    %s188 = sadd.s32 %s187, 1
    %p191 = scmp.eq.s32.totalorder %s13, 1
    %p192 = scmp.ne.s32.totalorder %s187, %s189
    %p193 = scmp.eq.s32.totalorder %s13, 0
    %p194 = por %p192, %p193
    %p195 = scmp.ne.s32.totalorder %s187, %s189
    %p196 = scmp.eq.s32.totalorder %s18, 1
    %p197 = por %p195, %p196
    %p198 = scmp.ne.s32.totalorder %s189, %s190
    %p199 = scmp.eq.s32.totalorder %s18, 0
    %p200 = por %p198, %p199
    %p201 = scmp.ne.s32.totalorder %s189, %s190
    %p202 = scmp.eq.s32.totalorder %s19, 1
    %p203 = por %p201, %p202
    %p205 = scmp.ne.s32.totalorder %s190, %s204
    %p206 = scmp.eq.s32.totalorder %s19, 0
    %p207 = por %p205, %p206
    %s208 = ssub.s32 %s20, %s39
    %s209 = ssub.s32 %s21, %s35
    %s210 = sor.u32 %s208, %s209
    %p211 = scmp.eq.s32.totalorder %s210, 0
    %s213 = sadd.s32 %s212, 1
    %s214 = scalar_select %p211, %s212, %s213
    %p217 = pneg %p211
    %p218 = scmp.eq.s32.totalorder %s13, 1
    %p219 = por %p217, %p218
    %p220 = scmp.ne.s32.totalorder %s212, %s215
    %p221 = scmp.eq.s32.totalorder %s13, 0
    %p222 = por %p220, %p221
    %p223 = scmp.ne.s32.totalorder %s212, %s215
    %p224 = scmp.eq.s32.totalorder %s18, 1
    %p225 = por %p223, %p224
    %p226 = scmp.ne.s32.totalorder %s215, %s216
    %p227 = scmp.eq.s32.totalorder %s18, 0
    %p228 = por %p226, %p227
    %p229 = scmp.ne.s32.totalorder %s215, %s216
    %p230 = scmp.eq.s32.totalorder %s19, 1
    %p231 = por %p229, %p230
    %p233 = scmp.ne.s32.totalorder %s216, %s232
    %p234 = scmp.eq.s32.totalorder %s19, 0
    %p235 = por %p233, %p234
    %p236 = scmp.le.s32.totalorder 1, %s13
    %p237 = scmp.lt.s32.totalorder %s13, 3
    %p238 = pnand %p236, %p237
    %p239 = pneg %p238
    // Predicated region
    $region9: #{self_attention_block.5} parent=5 // pred_check
      _
    $region10: #{self_attention_block.5} parent=5 // pred_check_branch
      %241 = sbr.rel (%p238) target = $region12
    $region11: #{self_attention_block.5} parent=5 // pred_region
      %s242 = ssub.s32 %s13, 1
      // Predicated region
      $region13: #{self_attention_block.5} parent=11 // pred_check
        %p243 = pneg %p137
      $region14: #{self_attention_block.5} parent=11 // pred_check_branch
        %245 = sbr.rel (%p243) target = $region16
      $region15: #{self_attention_block.5} parent=11 // pred_region
        _
      $region16: #{self_attention_block.5} parent=11 // pred_fallthru
        _
      // Predicated region
      $region17: #{self_attention_block.5} parent=11 // pred_check
        %p246 = pneg %p158
      $region18: #{self_attention_block.5} parent=11 // pred_check_branch
        %248 = sbr.rel (%p246) target = $region20
      $region19: #{self_attention_block.5} parent=11 // pred_region
        _
      $region20: #{self_attention_block.5} parent=11 // pred_fallthru
        _
      // Predicated region
      $region21: #{self_attention_block.5} parent=11 // pred_check
        %p249 = pneg %p179
      $region22: #{self_attention_block.5} parent=11 // pred_check_branch
        %251 = sbr.rel (%p249) target = $region24
      $region23: #{self_attention_block.5} parent=11 // pred_region
        _
      $region24: #{self_attention_block.5} parent=11 // pred_fallthru
        _
      // Predicated region
      $region25: #{self_attention_block.5} parent=11 // pred_check
        %p252 = pneg %p200
      $region26: #{self_attention_block.5} parent=11 // pred_check_branch
        %254 = sbr.rel (%p252) target = $region28
      $region27: #{self_attention_block.5} parent=11 // pred_region
        _
      $region28: #{self_attention_block.5} parent=11 // pred_fallthru
        _
    $region12: #{self_attention_block.5} parent=5 // pred_fallthru
      _
    %p255 = scmp.lt.s32.totalorder %s13, 2
    // Predicated region
    $region29: #{self_attention_block.5} parent=5 // pred_check
      %p256 = pneg %p255
    $region30: #{self_attention_block.5} parent=5 // pred_check_branch
      %258 = sbr.rel (%p256) target = $region32
    $region31: #{self_attention_block.5} parent=5 // pred_region
      // Predicated region
      $region33: #{self_attention_block.5} parent=31 // pred_check
        %p259 = pneg %p54
      $region34: #{self_attention_block.5} parent=31 // pred_check_branch
        %261 = sbr.rel (%p259) target = $region36
      $region35: #{self_attention_block.5} parent=31 // pred_region
        %s262 = smul.u32 32, %s21
        %p263 = scmp.lt.s32.totalorder %s20, 1
        %s264 = scalar_select %p263, %s20, 1
        %p265 = scmp.lt.s32.totalorder %s262, 31
        %s266 = scalar_select %p265, %s262, 31
        %s267 = smul.addr %s264, 32
        %s268 = sadd.s32 %s266, %s267
        %s269 = smul.addr %s268, 4
        %s270 = scalar_lea.vmem %s0, %s269
        %s271 = smul.u32 32, %s21
      $region36: #{self_attention_block.5} parent=31 // pred_fallthru
        _
      // Predicated region
      $region37: #{self_attention_block.5} parent=31 // pred_check
        %p272 = pneg %p82
      $region38: #{self_attention_block.5} parent=31 // pred_check_branch
        %274 = sbr.rel (%p272) target = $region40
      $region39: #{self_attention_block.5} parent=31 // pred_region
        %s275 = smul.u32 32, %s22
        %p276 = scmp.lt.s32.totalorder %s20, 1
        %s277 = scalar_select %p276, %s20, 1
        %p278 = scmp.lt.s32.totalorder %s275, 31
        %s279 = scalar_select %p278, %s275, 31
        %s280 = smul.addr %s277, 32
        %s281 = sadd.s32 %s279, %s280
        %s282 = smul.addr %s281, 4
        %s283 = scalar_lea.vmem %s1, %s282
        %s284 = smul.u32 32, %s22
      $region40: #{self_attention_block.5} parent=31 // pred_fallthru
        _
      // Predicated region
      $region41: #{self_attention_block.5} parent=31 // pred_check
        %p285 = pneg %p110
      $region42: #{self_attention_block.5} parent=31 // pred_check_branch
        %287 = sbr.rel (%p285) target = $region44
      $region43: #{self_attention_block.5} parent=31 // pred_region
        %s288 = smul.u32 32, %s22
        %p289 = scmp.lt.s32.totalorder %s20, 1
        %s290 = scalar_select %p289, %s20, 1
        %p291 = scmp.lt.s32.totalorder %s288, 31
        %s292 = scalar_select %p291, %s288, 31
        %s293 = smul.addr %s290, 32
        %s294 = sadd.s32 %s292, %s293
        %s295 = smul.addr %s294, 4
        %s296 = scalar_lea.vmem %s2, %s295
        %s297 = smul.u32 32, %s22
      $region44: #{self_attention_block.5} parent=31 // pred_fallthru
        _
    $region32: #{self_attention_block.5} parent=5 // pred_fallthru
      _
    %p298 = scmp.le.s32.totalorder 1, %s13
    %p299 = scmp.lt.s32.totalorder %s13, 3
    %p300 = pnand %p298, %p299
    %p301 = pneg %p300
    // Predicated region
    $region45: #{self_attention_block.5} parent=5 // pred_check
      _
    $region46: #{self_attention_block.5} parent=5 // pred_check_branch
      %303 = sbr.rel (%p300) target = $region48
    $region47: #{self_attention_block.5} parent=5 // pred_region
      %s304 = ssub.s32 %s13, 1
      %s305 = smul.u32 32, %s24
      %p306 = scmp.lt.s32.totalorder %s23, 1
      %s307 = scalar_select %p306, %s23, 1
      %p308 = scmp.lt.s32.totalorder %s305, 31
      %s309 = scalar_select %p308, %s305, 31
      %s310 = smul.addr %s307, 32
      %s311 = sadd.s32 %s309, %s310
      %s312 = smul.addr %s311, 4
      %s313 = scalar_lea.vmem %s0, %s312
      %p314 = pneg %p60
      %p315 = pneg %p57
      %s316 = smul.u32 32, %s25
      %p317 = scmp.lt.s32.totalorder %s23, 1
      %s318 = scalar_select %p317, %s23, 1
      %p319 = scmp.lt.s32.totalorder %s316, 31
      %s320 = scalar_select %p319, %s316, 31
      %s321 = smul.addr %s318, 32
      %s322 = sadd.s32 %s320, %s321
      %s323 = smul.addr %s322, 4
      %s324 = scalar_lea.vmem %s1, %s323
      %p325 = pneg %p88
      %p326 = pneg %p85
      %s327 = smul.u32 32, %s25
      %p328 = scmp.lt.s32.totalorder %s23, 1
      %s329 = scalar_select %p328, %s23, 1
      %p330 = scmp.lt.s32.totalorder %s327, 31
      %s331 = scalar_select %p330, %s327, 31
      %s332 = smul.addr %s329, 32
      %s333 = sadd.s32 %s331, %s332
      %s334 = smul.addr %s333, 4
      %s335 = scalar_lea.vmem %s2, %s334
      %p336 = pneg %p116
      %p337 = pneg %p113
      %p338 = pneg %p137
      %p339 = pneg %p134
      %p340 = pneg %p158
      %p341 = pneg %p155
      %p342 = pneg %p179
      %p343 = pneg %p176
      %p344 = pneg %p200
      %p345 = pneg %p197
      %p346 = pneg %p228
      %p347 = pneg %p225
      %s348 = smul.u32 32, %s24
      %p349 = scmp.lt.s32.totalorder %s23, 1
      %s350 = scalar_select %p349, %s23, 1
      %p351 = scmp.lt.s32.totalorder %s348, 31
      %s352 = scalar_select %p351, %s348, 31
      %s353 = smul.addr %s350, 32
      %s354 = sadd.s32 %s352, %s353
      %s355 = smul.addr %s354, 8
      %s356 = scalar_lea.vmem %s7, %s355
      %s357 = smul.u32 32, %s24
      %p358 = scmp.lt.s32.totalorder %s23, 1
      %s359 = scalar_select %p358, %s23, 1
      %p360 = scmp.lt.s32.totalorder %s357, 31
      %s361 = scalar_select %p360, %s357, 31
      %s362 = smul.addr %s359, 32
      %s363 = sadd.s32 %s361, %s362
      %s364 = smul.addr %s363, 4
      %s365 = scalar_lea.vmem %s0, %s364
      %s366 = smul.u32 32, %s24
      %s367 = smul.u32 32, %s25
      %p368 = scmp.lt.s32.totalorder %s23, 1
      %s369 = scalar_select %p368, %s23, 1
      %p370 = scmp.lt.s32.totalorder %s367, 31
      %s371 = scalar_select %p370, %s367, 31
      %s372 = smul.addr %s369, 32
      %s373 = sadd.s32 %s371, %s372
      %s374 = smul.addr %s373, 4
      %s375 = scalar_lea.vmem %s1, %s374
      %s376 = smul.u32 32, %s25
      %s377 = smul.u32 32, %s25
      %p378 = scmp.lt.s32.totalorder %s23, 1
      %s379 = scalar_select %p378, %s23, 1
      %p380 = scmp.lt.s32.totalorder %s377, 31
      %s381 = scalar_select %p380, %s377, 31
      %s382 = smul.addr %s379, 32
      %s383 = sadd.s32 %s381, %s382
      %s384 = smul.addr %s383, 4
      %s385 = scalar_lea.vmem %s2, %s384
      %s386 = smul.u32 32, %s25
      %s387 = smul.u32 32, %s24
      %p388 = scmp.lt.s32.totalorder %s23, 1
      %s389 = scalar_select %p388, %s23, 1
      %p390 = scmp.lt.s32.totalorder %s387, 31
      %s391 = scalar_select %p390, %s387, 31
      %s392 = smul.addr %s389, 32
      %s393 = sadd.s32 %s391, %s392
      %s394 = smul.addr %s393, 8
      %s395 = scalar_lea.vmem %s7, %s394
      %s396 = smul.u32 32, %s24
      %p397 = scmp.eq.s32.totalorder %s25, 0
      // Predicated region
      $region49: #{self_attention_block.5} parent=47 // pred_check
        %p398 = pneg %p397
      $region50: #{self_attention_block.5} parent=47 // pred_check_branch
        %400 = sbr.rel (%p398) target = $region52
      $region51: #{self_attention_block.5} parent=47 // pred_region
        %vm401 = vcmask 7168
        %402 = vst.msk [vmem:[#allocation2] sm:$0xff] %vm401, -inf
        %403 = vst.msk [vmem:[#allocation2 + $0x8] sm:$0xff] %vm401, -inf
        %404 = vst.msk [vmem:[#allocation2 + $0x10] sm:$0xff] %vm401, -inf
        %405 = vst.msk [vmem:[#allocation2 + $0x18] sm:$0xff] %vm401, -inf
        %406 = vst.msk [vmem:[#allocation2 + $0x20] sm:$0xff] %vm401, -inf
        %407 = vst.msk [vmem:[#allocation2 + $0x28] sm:$0xff] %vm401, -inf
        %408 = vst.msk [vmem:[#allocation2 + $0x30] sm:$0xff] %vm401, -inf
        %409 = vst.msk [vmem:[#allocation2 + $0x38] sm:$0xff] %vm401, -inf
        %410 = vst.msk [vmem:[#allocation2 + $0x40] sm:$0xff] %vm401, -inf
        %411 = vst.msk [vmem:[#allocation2 + $0x48] sm:$0xff] %vm401, -inf
        %412 = vst.msk [vmem:[#allocation2 + $0x50] sm:$0xff] %vm401, -inf
        %413 = vst.msk [vmem:[#allocation2 + $0x58] sm:$0xff] %vm401, -inf
        %414 = vst.msk [vmem:[#allocation2 + $0x60] sm:$0xff] %vm401, -inf
        %415 = vst.msk [vmem:[#allocation2 + $0x68] sm:$0xff] %vm401, -inf
        %416 = vst.msk [vmem:[#allocation2 + $0x70] sm:$0xff] %vm401, -inf
        %417 = vst.msk [vmem:[#allocation2 + $0x78] sm:$0xff] %vm401, -inf
        %418 = vst.msk [vmem:[#allocation2 + $0x80] sm:$0xff] %vm401, -inf
        %419 = vst.msk [vmem:[#allocation2 + $0x88] sm:$0xff] %vm401, -inf
        %420 = vst.msk [vmem:[#allocation2 + $0x90] sm:$0xff] %vm401, -inf
        %421 = vst.msk [vmem:[#allocation2 + $0x98] sm:$0xff] %vm401, -inf
        %422 = vst.msk [vmem:[#allocation2 + $0xa0] sm:$0xff] %vm401, -inf
        %423 = vst.msk [vmem:[#allocation2 + $0xa8] sm:$0xff] %vm401, -inf
        %424 = vst.msk [vmem:[#allocation2 + $0xb0] sm:$0xff] %vm401, -inf
        %425 = vst.msk [vmem:[#allocation2 + $0xb8] sm:$0xff] %vm401, -inf
        %426 = vst.msk [vmem:[#allocation2 + $0xc0] sm:$0xff] %vm401, -inf
        %427 = vst.msk [vmem:[#allocation2 + $0xc8] sm:$0xff] %vm401, -inf
        %428 = vst.msk [vmem:[#allocation2 + $0xd0] sm:$0xff] %vm401, -inf
        %429 = vst.msk [vmem:[#allocation2 + $0xd8] sm:$0xff] %vm401, -inf
        %430 = vst.msk [vmem:[#allocation2 + $0xe0] sm:$0xff] %vm401, -inf
        %431 = vst.msk [vmem:[#allocation2 + $0xe8] sm:$0xff] %vm401, -inf
        %432 = vst.msk [vmem:[#allocation2 + $0xf0] sm:$0xff] %vm401, -inf
        %433 = vst.msk [vmem:[#allocation2 + $0xf8] sm:$0xff] %vm401, -inf
        %434 = vst.msk [vmem:[#allocation3] sm:$0xff] %vm401, 0.0
        %435 = vst.msk [vmem:[#allocation3 + $0x8] sm:$0xff] %vm401, 0.0
        %436 = vst.msk [vmem:[#allocation3 + $0x10] sm:$0xff] %vm401, 0.0
        %437 = vst.msk [vmem:[#allocation3 + $0x18] sm:$0xff] %vm401, 0.0
        %438 = vst.msk [vmem:[#allocation3 + $0x20] sm:$0xff] %vm401, 0.0
        %439 = vst.msk [vmem:[#allocation3 + $0x28] sm:$0xff] %vm401, 0.0
        %440 = vst.msk [vmem:[#allocation3 + $0x30] sm:$0xff] %vm401, 0.0
        %441 = vst.msk [vmem:[#allocation3 + $0x38] sm:$0xff] %vm401, 0.0
        %442 = vst.msk [vmem:[#allocation3 + $0x40] sm:$0xff] %vm401, 0.0
        %443 = vst.msk [vmem:[#allocation3 + $0x48] sm:$0xff] %vm401, 0.0
        %444 = vst.msk [vmem:[#allocation3 + $0x50] sm:$0xff] %vm401, 0.0
        %445 = vst.msk [vmem:[#allocation3 + $0x58] sm:$0xff] %vm401, 0.0
        %446 = vst.msk [vmem:[#allocation3 + $0x60] sm:$0xff] %vm401, 0.0
        %447 = vst.msk [vmem:[#allocation3 + $0x68] sm:$0xff] %vm401, 0.0
        %448 = vst.msk [vmem:[#allocation3 + $0x70] sm:$0xff] %vm401, 0.0
        %449 = vst.msk [vmem:[#allocation3 + $0x78] sm:$0xff] %vm401, 0.0
        %450 = vst.msk [vmem:[#allocation3 + $0x80] sm:$0xff] %vm401, 0.0
        %451 = vst.msk [vmem:[#allocation3 + $0x88] sm:$0xff] %vm401, 0.0
        %452 = vst.msk [vmem:[#allocation3 + $0x90] sm:$0xff] %vm401, 0.0
        %453 = vst.msk [vmem:[#allocation3 + $0x98] sm:$0xff] %vm401, 0.0
        %454 = vst.msk [vmem:[#allocation3 + $0xa0] sm:$0xff] %vm401, 0.0
        %455 = vst.msk [vmem:[#allocation3 + $0xa8] sm:$0xff] %vm401, 0.0
        %456 = vst.msk [vmem:[#allocation3 + $0xb0] sm:$0xff] %vm401, 0.0
        %457 = vst.msk [vmem:[#allocation3 + $0xb8] sm:$0xff] %vm401, 0.0
        %458 = vst.msk [vmem:[#allocation3 + $0xc0] sm:$0xff] %vm401, 0.0
        %459 = vst.msk [vmem:[#allocation3 + $0xc8] sm:$0xff] %vm401, 0.0
        %460 = vst.msk [vmem:[#allocation3 + $0xd0] sm:$0xff] %vm401, 0.0
        %461 = vst.msk [vmem:[#allocation3 + $0xd8] sm:$0xff] %vm401, 0.0
        %462 = vst.msk [vmem:[#allocation3 + $0xe0] sm:$0xff] %vm401, 0.0
        %463 = vst.msk [vmem:[#allocation3 + $0xe8] sm:$0xff] %vm401, 0.0
        %464 = vst.msk [vmem:[#allocation3 + $0xf0] sm:$0xff] %vm401, 0.0
        %465 = vst.msk [vmem:[#allocation3 + $0xf8] sm:$0xff] %vm401, 0.0
        %466 = vst [vmem:[#allocation4] sm:$0xff] 0.0
        %467 = vst [vmem:[#allocation4 + $0x8] sm:$0xff] 0.0
        %468 = vst [vmem:[#allocation4 + $0x10] sm:$0xff] 0.0
        %469 = vst [vmem:[#allocation4 + $0x18] sm:$0xff] 0.0
        %470 = vst [vmem:[#allocation4 + $0x20] sm:$0xff] 0.0
        %471 = vst [vmem:[#allocation4 + $0x28] sm:$0xff] 0.0
        %472 = vst [vmem:[#allocation4 + $0x30] sm:$0xff] 0.0
        %473 = vst [vmem:[#allocation4 + $0x38] sm:$0xff] 0.0
        %474 = vst [vmem:[#allocation4 + $0x40] sm:$0xff] 0.0
        %475 = vst [vmem:[#allocation4 + $0x48] sm:$0xff] 0.0
        %476 = vst [vmem:[#allocation4 + $0x50] sm:$0xff] 0.0
        %477 = vst [vmem:[#allocation4 + $0x58] sm:$0xff] 0.0
        %478 = vst [vmem:[#allocation4 + $0x60] sm:$0xff] 0.0
        %479 = vst [vmem:[#allocation4 + $0x68] sm:$0xff] 0.0
        %480 = vst [vmem:[#allocation4 + $0x70] sm:$0xff] 0.0
        %481 = vst [vmem:[#allocation4 + $0x78] sm:$0xff] 0.0
        %482 = vst [vmem:[#allocation4 + $0x80] sm:$0xff] 0.0
        %483 = vst [vmem:[#allocation4 + $0x88] sm:$0xff] 0.0
        %484 = vst [vmem:[#allocation4 + $0x90] sm:$0xff] 0.0
        %485 = vst [vmem:[#allocation4 + $0x98] sm:$0xff] 0.0
        %486 = vst [vmem:[#allocation4 + $0xa0] sm:$0xff] 0.0
        %487 = vst [vmem:[#allocation4 + $0xa8] sm:$0xff] 0.0
        %488 = vst [vmem:[#allocation4 + $0xb0] sm:$0xff] 0.0
        %489 = vst [vmem:[#allocation4 + $0xb8] sm:$0xff] 0.0
        %490 = vst [vmem:[#allocation4 + $0xc0] sm:$0xff] 0.0
        %491 = vst [vmem:[#allocation4 + $0xc8] sm:$0xff] 0.0
        %492 = vst [vmem:[#allocation4 + $0xd0] sm:$0xff] 0.0
        %493 = vst [vmem:[#allocation4 + $0xd8] sm:$0xff] 0.0
        %494 = vst [vmem:[#allocation4 + $0xe0] sm:$0xff] 0.0
        %495 = vst [vmem:[#allocation4 + $0xe8] sm:$0xff] 0.0
        %496 = vst [vmem:[#allocation4 + $0xf0] sm:$0xff] 0.0
        %497 = vst [vmem:[#allocation4 + $0xf8] sm:$0xff] 0.0
      $region52: #{self_attention_block.5} parent=47 // pred_fallthru
        _
      %v498 = vld [vmem:[%s3] sm:$0x1]
      %v499 = vld [vmem:[%s4] sm:$0x1]
      %v500 = vld [vmem:[%s365] sm:$0xf]
      %v501 = vld [vmem:[%s365 + $0x4] sm:$0xf]
      %v502 = vld [vmem:[%s365 + $0x8] sm:$0xf]
      %v503 = vld [vmem:[%s365 + $0xc] sm:$0xf]
      %v504 = vld [vmem:[%s365 + $0x10] sm:$0xf]
      %v505 = vld [vmem:[%s365 + $0x14] sm:$0xf]
      %v506 = vld [vmem:[%s365 + $0x18] sm:$0xf]
      %v507 = vld [vmem:[%s365 + $0x1c] sm:$0xf]
      %v508 = vld [vmem:[%s365 + $0x20] sm:$0xf]
      %v509 = vld [vmem:[%s365 + $0x24] sm:$0xf]
      %v510 = vld [vmem:[%s365 + $0x28] sm:$0xf]
      %v511 = vld [vmem:[%s365 + $0x2c] sm:$0xf]
      %v512 = vld [vmem:[%s365 + $0x30] sm:$0xf]
      %v513 = vld [vmem:[%s365 + $0x34] sm:$0xf]
      %v514 = vld [vmem:[%s365 + $0x38] sm:$0xf]
      %v515 = vld [vmem:[%s365 + $0x3c] sm:$0xf]
      %v516 = vld [vmem:[%s365 + $0x40] sm:$0xf]
      %v517 = vld [vmem:[%s365 + $0x44] sm:$0xf]
      %v518 = vld [vmem:[%s365 + $0x48] sm:$0xf]
      %v519 = vld [vmem:[%s365 + $0x4c] sm:$0xf]
      %v520 = vld [vmem:[%s365 + $0x50] sm:$0xf]
      %v521 = vld [vmem:[%s365 + $0x54] sm:$0xf]
      %v522 = vld [vmem:[%s365 + $0x58] sm:$0xf]
      %v523 = vld [vmem:[%s365 + $0x5c] sm:$0xf]
      %v524 = vld [vmem:[%s365 + $0x60] sm:$0xf]
      %v525 = vld [vmem:[%s365 + $0x64] sm:$0xf]
      %v526 = vld [vmem:[%s365 + $0x68] sm:$0xf]
      %v527 = vld [vmem:[%s365 + $0x6c] sm:$0xf]
      %v528 = vld [vmem:[%s365 + $0x70] sm:$0xf]
      %v529 = vld [vmem:[%s365 + $0x74] sm:$0xf]
      %v530 = vld [vmem:[%s365 + $0x78] sm:$0xf]
      %v531 = vld [vmem:[%s365 + $0x7c] sm:$0xf]
      %v532 = vunpack.c.l.bf16 %v500
      %v533 = vunpack.c.l.bf16 %v501
      %v534 = vunpack.c.l.bf16 %v502
      %v535 = vunpack.c.l.bf16 %v503
      %v536 = vunpack.c.l.bf16 %v504
      %v537 = vunpack.c.l.bf16 %v505
      %v538 = vunpack.c.l.bf16 %v506
      %v539 = vunpack.c.l.bf16 %v507
      %v540 = vunpack.c.l.bf16 %v508
      %v541 = vunpack.c.l.bf16 %v509
      %v542 = vunpack.c.l.bf16 %v510
      %v543 = vunpack.c.l.bf16 %v511
      %v544 = vunpack.c.l.bf16 %v512
      %v545 = vunpack.c.l.bf16 %v513
      %v546 = vunpack.c.l.bf16 %v514
      %v547 = vunpack.c.l.bf16 %v515
      %v548 = vunpack.c.l.bf16 %v516
      %v549 = vunpack.c.l.bf16 %v517
      %v550 = vunpack.c.l.bf16 %v518
      %v551 = vunpack.c.l.bf16 %v519
      %v552 = vunpack.c.l.bf16 %v520
      %v553 = vunpack.c.l.bf16 %v521
      %v554 = vunpack.c.l.bf16 %v522
      %v555 = vunpack.c.l.bf16 %v523
      %v556 = vunpack.c.l.bf16 %v524
      %v557 = vunpack.c.l.bf16 %v525
      %v558 = vunpack.c.l.bf16 %v526
      %v559 = vunpack.c.l.bf16 %v527
      %v560 = vunpack.c.l.bf16 %v528
      %v561 = vunpack.c.l.bf16 %v529
      %v562 = vunpack.c.l.bf16 %v530
      %v563 = vunpack.c.l.bf16 %v531
      %v565 = vperm.slane %v498, 0
      %v567 = vmul.f32 %v532, %v565
      %v568 = vmul.f32 %v533, %v565
      %v569 = vmul.f32 %v534, %v565
      %v570 = vmul.f32 %v535, %v565
      %v571 = vmul.f32 %v536, %v565
      %v572 = vmul.f32 %v537, %v565
      %v573 = vmul.f32 %v538, %v565
      %v574 = vmul.f32 %v539, %v565
      %v575 = vmul.f32 %v540, %v565
      %v576 = vmul.f32 %v541, %v565
      %v577 = vmul.f32 %v542, %v565
      %v578 = vmul.f32 %v543, %v565
      %v579 = vmul.f32 %v544, %v565
      %v580 = vmul.f32 %v545, %v565
      %v581 = vmul.f32 %v546, %v565
      %v582 = vmul.f32 %v547, %v565
      %v583 = vmul.f32 %v548, %v565
      %v584 = vmul.f32 %v549, %v565
      %v585 = vmul.f32 %v550, %v565
      %v586 = vmul.f32 %v551, %v565
      %v587 = vmul.f32 %v552, %v565
      %v588 = vmul.f32 %v553, %v565
      %v589 = vmul.f32 %v554, %v565
      %v590 = vmul.f32 %v555, %v565
      %v591 = vmul.f32 %v556, %v565
      %v592 = vmul.f32 %v557, %v565
      %v593 = vmul.f32 %v558, %v565
      %v594 = vmul.f32 %v559, %v565
      %v595 = vmul.f32 %v560, %v565
      %v596 = vmul.f32 %v561, %v565
      %v597 = vmul.f32 %v562, %v565
      %v598 = vmul.f32 %v563, %v565
      %v600 = vperm.slane %v499, 0
      %v602 = vadd.f32 %v567, %v600
      %v603 = vadd.f32 %v568, %v600
      %v604 = vadd.f32 %v569, %v600
      %v605 = vadd.f32 %v570, %v600
      %v606 = vadd.f32 %v571, %v600
      %v607 = vadd.f32 %v572, %v600
      %v608 = vadd.f32 %v573, %v600
      %v609 = vadd.f32 %v574, %v600
      %v610 = vadd.f32 %v575, %v600
      %v611 = vadd.f32 %v576, %v600
      %v612 = vadd.f32 %v577, %v600
      %v613 = vadd.f32 %v578, %v600
      %v614 = vadd.f32 %v579, %v600
      %v615 = vadd.f32 %v580, %v600
      %v616 = vadd.f32 %v581, %v600
      %v617 = vadd.f32 %v582, %v600
      %v618 = vadd.f32 %v583, %v600
      %v619 = vadd.f32 %v584, %v600
      %v620 = vadd.f32 %v585, %v600
      %v621 = vadd.f32 %v586, %v600
      %v622 = vadd.f32 %v587, %v600
      %v623 = vadd.f32 %v588, %v600
      %v624 = vadd.f32 %v589, %v600
      %v625 = vadd.f32 %v590, %v600
      %v626 = vadd.f32 %v591, %v600
      %v627 = vadd.f32 %v592, %v600
      %v628 = vadd.f32 %v593, %v600
      %v629 = vadd.f32 %v594, %v600
      %v630 = vadd.f32 %v595, %v600
      %v631 = vadd.f32 %v596, %v600
      %v632 = vadd.f32 %v597, %v600
      %v633 = vadd.f32 %v598, %v600
      %v634 = vpack.c.bf16 %v603, %v602
      %v635 = vpack.c.bf16 %v605, %v604
      %v636 = vpack.c.bf16 %v607, %v606
      %v637 = vpack.c.bf16 %v609, %v608
      %v638 = vpack.c.bf16 %v611, %v610
      %v639 = vpack.c.bf16 %v613, %v612
      %v640 = vpack.c.bf16 %v615, %v614
      %v641 = vpack.c.bf16 %v617, %v616
      %v642 = vpack.c.bf16 %v619, %v618
      %v643 = vpack.c.bf16 %v621, %v620
      %v644 = vpack.c.bf16 %v623, %v622
      %v645 = vpack.c.bf16 %v625, %v624
      %v646 = vpack.c.bf16 %v627, %v626
      %v647 = vpack.c.bf16 %v629, %v628
      %v648 = vpack.c.bf16 %v631, %v630
      %v649 = vpack.c.bf16 %v633, %v632
      %v650 = vld [vmem:[%s375] sm:$0xf]
      %v651 = vld [vmem:[%s375 + $0x4] sm:$0xf]
      %v652 = vld [vmem:[%s375 + $0x8] sm:$0xf]
      %v653 = vld [vmem:[%s375 + $0xc] sm:$0xf]
      %v654 = vld [vmem:[%s375 + $0x10] sm:$0xf]
      %v655 = vld [vmem:[%s375 + $0x14] sm:$0xf]
      %v656 = vld [vmem:[%s375 + $0x18] sm:$0xf]
      %v657 = vld [vmem:[%s375 + $0x1c] sm:$0xf]
      %v658 = vld [vmem:[%s375 + $0x20] sm:$0xf]
      %v659 = vld [vmem:[%s375 + $0x24] sm:$0xf]
      %v660 = vld [vmem:[%s375 + $0x28] sm:$0xf]
      %v661 = vld [vmem:[%s375 + $0x2c] sm:$0xf]
      %v662 = vld [vmem:[%s375 + $0x30] sm:$0xf]
      %v663 = vld [vmem:[%s375 + $0x34] sm:$0xf]
      %v664 = vld [vmem:[%s375 + $0x38] sm:$0xf]
      %v665 = vld [vmem:[%s375 + $0x3c] sm:$0xf]
      %v666 = vld [vmem:[%s375 + $0x40] sm:$0xf]
      %v667 = vld [vmem:[%s375 + $0x44] sm:$0xf]
      %v668 = vld [vmem:[%s375 + $0x48] sm:$0xf]
      %v669 = vld [vmem:[%s375 + $0x4c] sm:$0xf]
      %v670 = vld [vmem:[%s375 + $0x50] sm:$0xf]
      %v671 = vld [vmem:[%s375 + $0x54] sm:$0xf]
      %v672 = vld [vmem:[%s375 + $0x58] sm:$0xf]
      %v673 = vld [vmem:[%s375 + $0x5c] sm:$0xf]
      %v674 = vld [vmem:[%s375 + $0x60] sm:$0xf]
      %v675 = vld [vmem:[%s375 + $0x64] sm:$0xf]
      %v676 = vld [vmem:[%s375 + $0x68] sm:$0xf]
      %v677 = vld [vmem:[%s375 + $0x6c] sm:$0xf]
      %v678 = vld [vmem:[%s375 + $0x70] sm:$0xf]
      %v679 = vld [vmem:[%s375 + $0x74] sm:$0xf]
      %v680 = vld [vmem:[%s375 + $0x78] sm:$0xf]
      %v681 = vld [vmem:[%s375 + $0x7c] sm:$0xf]
      %v682 = vunpack.c.l.bf16 %v650
      %v683 = vunpack.c.l.bf16 %v651
      %v684 = vunpack.c.l.bf16 %v652
      %v685 = vunpack.c.l.bf16 %v653
      %v686 = vunpack.c.l.bf16 %v654
      %v687 = vunpack.c.l.bf16 %v655
      %v688 = vunpack.c.l.bf16 %v656
      %v689 = vunpack.c.l.bf16 %v657
      %v690 = vunpack.c.l.bf16 %v658
      %v691 = vunpack.c.l.bf16 %v659
      %v692 = vunpack.c.l.bf16 %v660
      %v693 = vunpack.c.l.bf16 %v661
      %v694 = vunpack.c.l.bf16 %v662
      %v695 = vunpack.c.l.bf16 %v663
      %v696 = vunpack.c.l.bf16 %v664
      %v697 = vunpack.c.l.bf16 %v665
      %v698 = vunpack.c.l.bf16 %v666
      %v699 = vunpack.c.l.bf16 %v667
      %v700 = vunpack.c.l.bf16 %v668
      %v701 = vunpack.c.l.bf16 %v669
      %v702 = vunpack.c.l.bf16 %v670
      %v703 = vunpack.c.l.bf16 %v671
      %v704 = vunpack.c.l.bf16 %v672
      %v705 = vunpack.c.l.bf16 %v673
      %v706 = vunpack.c.l.bf16 %v674
      %v707 = vunpack.c.l.bf16 %v675
      %v708 = vunpack.c.l.bf16 %v676
      %v709 = vunpack.c.l.bf16 %v677
      %v710 = vunpack.c.l.bf16 %v678
      %v711 = vunpack.c.l.bf16 %v679
      %v712 = vunpack.c.l.bf16 %v680
      %v713 = vunpack.c.l.bf16 %v681
      %v714 = vmul.f32 %v682, %v565
      %v715 = vmul.f32 %v683, %v565
      %v716 = vmul.f32 %v684, %v565
      %v717 = vmul.f32 %v685, %v565
      %v718 = vmul.f32 %v686, %v565
      %v719 = vmul.f32 %v687, %v565
      %v720 = vmul.f32 %v688, %v565
      %v721 = vmul.f32 %v689, %v565
      %v722 = vmul.f32 %v690, %v565
      %v723 = vmul.f32 %v691, %v565
      %v724 = vmul.f32 %v692, %v565
      %v725 = vmul.f32 %v693, %v565
      %v726 = vmul.f32 %v694, %v565
      %v727 = vmul.f32 %v695, %v565
      %v728 = vmul.f32 %v696, %v565
      %v729 = vmul.f32 %v697, %v565
      %v730 = vmul.f32 %v698, %v565
      %v731 = vmul.f32 %v699, %v565
      %v732 = vmul.f32 %v700, %v565
      %v733 = vmul.f32 %v701, %v565
      %v734 = vmul.f32 %v702, %v565
      %v735 = vmul.f32 %v703, %v565
      %v736 = vmul.f32 %v704, %v565
      %v737 = vmul.f32 %v705, %v565
      %v738 = vmul.f32 %v706, %v565
      %v739 = vmul.f32 %v707, %v565
      %v740 = vmul.f32 %v708, %v565
      %v741 = vmul.f32 %v709, %v565
      %v742 = vmul.f32 %v710, %v565
      %v743 = vmul.f32 %v711, %v565
      %v744 = vmul.f32 %v712, %v565
      %v745 = vmul.f32 %v713, %v565
      %v746 = vadd.f32 %v714, %v600
      %v747 = vadd.f32 %v715, %v600
      %v748 = vadd.f32 %v716, %v600
      %v749 = vadd.f32 %v717, %v600
      %v750 = vadd.f32 %v718, %v600
      %v751 = vadd.f32 %v719, %v600
      %v752 = vadd.f32 %v720, %v600
      %v753 = vadd.f32 %v721, %v600
      %v754 = vadd.f32 %v722, %v600
      %v755 = vadd.f32 %v723, %v600
      %v756 = vadd.f32 %v724, %v600
      %v757 = vadd.f32 %v725, %v600
      %v758 = vadd.f32 %v726, %v600
      %v759 = vadd.f32 %v727, %v600
      %v760 = vadd.f32 %v728, %v600
      %v761 = vadd.f32 %v729, %v600
      %v762 = vadd.f32 %v730, %v600
      %v763 = vadd.f32 %v731, %v600
      %v764 = vadd.f32 %v732, %v600
      %v765 = vadd.f32 %v733, %v600
      %v766 = vadd.f32 %v734, %v600
      %v767 = vadd.f32 %v735, %v600
      %v768 = vadd.f32 %v736, %v600
      %v769 = vadd.f32 %v737, %v600
      %v770 = vadd.f32 %v738, %v600
      %v771 = vadd.f32 %v739, %v600
      %v772 = vadd.f32 %v740, %v600
      %v773 = vadd.f32 %v741, %v600
      %v774 = vadd.f32 %v742, %v600
      %v775 = vadd.f32 %v743, %v600
      %v776 = vadd.f32 %v744, %v600
      %v777 = vadd.f32 %v745, %v600
      %v778 = vpack.c.bf16 %v747, %v746
      %v779 = vpack.c.bf16 %v749, %v748
      %v780 = vpack.c.bf16 %v751, %v750
      %v781 = vpack.c.bf16 %v753, %v752
      %v782 = vpack.c.bf16 %v755, %v754
      %v783 = vpack.c.bf16 %v757, %v756
      %v784 = vpack.c.bf16 %v759, %v758
      %v785 = vpack.c.bf16 %v761, %v760
      %v786 = vpack.c.bf16 %v763, %v762
      %v787 = vpack.c.bf16 %v765, %v764
      %v788 = vpack.c.bf16 %v767, %v766
      %v789 = vpack.c.bf16 %v769, %v768
      %v790 = vpack.c.bf16 %v771, %v770
      %v791 = vpack.c.bf16 %v773, %v772
      %v792 = vpack.c.bf16 %v775, %v774
      %v793 = vpack.c.bf16 %v777, %v776
      %794 = vmatpush.bf16.xpose.msra.mxu0 %v785
      %795 = vmatpush.bf16.xpose.msra.mxu0 %v784
      %796 = vmatpush.bf16.xpose.msra.mxu0 %v783
      %797 = vmatpush.bf16.xpose.msra.mxu0 %v782
      %798 = vmatpush.bf16.xpose.msra.mxu0 %v781
      %799 = vmatpush.bf16.xpose.msra.mxu0 %v780
      %800 = vmatpush.bf16.xpose.msra.mxu0 %v779
      %801 = vmatpush.bf16.xpose.msra.mxu0 %v778
      %802 = vmatmul.bf16.gmra.mxu0 %v634
      %v803 = vpop.f32.mrf.mxu0
      %v804 = vadd.f32 0.0, %v803
      %v805 = vpop.f32.mrf.mxu0
      %v806 = vadd.f32 0.0, %v805
      %807 = vmatmul.bf16.gmra.mxu0 %v635
      %v808 = vpop.f32.mrf.mxu0
      %v809 = vadd.f32 0.0, %v808
      %v810 = vpop.f32.mrf.mxu0
      %v811 = vadd.f32 0.0, %v810
      %812 = vmatmul.bf16.gmra.mxu0 %v636
      %v813 = vpop.f32.mrf.mxu0
      %v814 = vadd.f32 0.0, %v813
      %v815 = vpop.f32.mrf.mxu0
      %v816 = vadd.f32 0.0, %v815
      %817 = vmatmul.bf16.gmra.mxu0 %v637
      %v818 = vpop.f32.mrf.mxu0
      %v819 = vadd.f32 0.0, %v818
      %v820 = vpop.f32.mrf.mxu0
      %v821 = vadd.f32 0.0, %v820
      %822 = vmatmul.bf16.gmra.mxu0 %v638
      %v823 = vpop.f32.mrf.mxu0
      %v824 = vadd.f32 0.0, %v823
      %v825 = vpop.f32.mrf.mxu0
      %v826 = vadd.f32 0.0, %v825
      %827 = vmatmul.bf16.gmra.mxu0 %v639
      %v828 = vpop.f32.mrf.mxu0
      %v829 = vadd.f32 0.0, %v828
      %v830 = vpop.f32.mrf.mxu0
      %v831 = vadd.f32 0.0, %v830
      %832 = vmatmul.bf16.gmra.mxu0 %v640
      %v833 = vpop.f32.mrf.mxu0
      %v834 = vadd.f32 0.0, %v833
      %v835 = vpop.f32.mrf.mxu0
      %v836 = vadd.f32 0.0, %v835
      %837 = vmatmul.bf16.gmra.mxu0 %v641
      %v838 = vpop.f32.mrf.mxu0
      %v839 = vadd.f32 0.0, %v838
      %v840 = vpop.f32.mrf.mxu0
      %v841 = vadd.f32 0.0, %v840
      %842 = vmatmul.bf16.gmra.mxu0 %v642
      %v843 = vpop.f32.mrf.mxu0
      %v844 = vadd.f32 0.0, %v843
      %v845 = vpop.f32.mrf.mxu0
      %v846 = vadd.f32 0.0, %v845
      %847 = vmatmul.bf16.gmra.mxu0 %v643
      %v848 = vpop.f32.mrf.mxu0
      %v849 = vadd.f32 0.0, %v848
      %v850 = vpop.f32.mrf.mxu0
      %v851 = vadd.f32 0.0, %v850
      %852 = vmatmul.bf16.gmra.mxu0 %v644
      %v853 = vpop.f32.mrf.mxu0
      %v854 = vadd.f32 0.0, %v853
      %v855 = vpop.f32.mrf.mxu0
      %v856 = vadd.f32 0.0, %v855
      %857 = vmatmul.bf16.gmra.mxu0 %v645
      %v858 = vpop.f32.mrf.mxu0
      %v859 = vadd.f32 0.0, %v858
      %v860 = vpop.f32.mrf.mxu0
      %v861 = vadd.f32 0.0, %v860
      %862 = vmatmul.bf16.gmra.mxu0 %v646
      %v863 = vpop.f32.mrf.mxu0
      %v864 = vadd.f32 0.0, %v863
      %v865 = vpop.f32.mrf.mxu0
      %v866 = vadd.f32 0.0, %v865
      %867 = vmatmul.bf16.gmra.mxu0 %v647
      %v868 = vpop.f32.mrf.mxu0
      %v869 = vadd.f32 0.0, %v868
      %v870 = vpop.f32.mrf.mxu0
      %v871 = vadd.f32 0.0, %v870
      %872 = vmatmul.bf16.gmra.mxu0 %v648
      %v873 = vpop.f32.mrf.mxu0
      %v874 = vadd.f32 0.0, %v873
      %v875 = vpop.f32.mrf.mxu0
      %v876 = vadd.f32 0.0, %v875
      %877 = vmatmul.bf16.gmra.mxu0 %v649
      %v878 = vpop.f32.mrf.mxu0
      %v879 = vadd.f32 0.0, %v878
      %v880 = vpop.f32.mrf.mxu0
      %v881 = vadd.f32 0.0, %v880
      %882 = vdwg.mxu0
      %883 = vmatpush.bf16.xpose.msra.mxu0 %v793
      %884 = vmatpush.bf16.xpose.msra.mxu0 %v792
      %885 = vmatpush.bf16.xpose.msra.mxu0 %v791
      %886 = vmatpush.bf16.xpose.msra.mxu0 %v790
      %887 = vmatpush.bf16.xpose.msra.mxu0 %v789
      %888 = vmatpush.bf16.xpose.msra.mxu0 %v788
      %889 = vmatpush.bf16.xpose.msra.mxu0 %v787
      %890 = vmatpush.bf16.xpose.msra.mxu0 %v786
      %891 = vmatmul.bf16.gmra.mxu0 %v634
      %v892 = vpop.f32.mrf.mxu0
      %v893 = vadd.f32 0.0, %v892
      %v894 = vpop.f32.mrf.mxu0
      %v895 = vadd.f32 0.0, %v894
      %896 = vmatmul.bf16.gmra.mxu0 %v635
      %v897 = vpop.f32.mrf.mxu0
      %v898 = vadd.f32 0.0, %v897
      %v899 = vpop.f32.mrf.mxu0
      %v900 = vadd.f32 0.0, %v899
      %901 = vmatmul.bf16.gmra.mxu0 %v636
      %v902 = vpop.f32.mrf.mxu0
      %v903 = vadd.f32 0.0, %v902
      %v904 = vpop.f32.mrf.mxu0
      %v905 = vadd.f32 0.0, %v904
      %906 = vmatmul.bf16.gmra.mxu0 %v637
      %v907 = vpop.f32.mrf.mxu0
      %v908 = vadd.f32 0.0, %v907
      %v909 = vpop.f32.mrf.mxu0
      %v910 = vadd.f32 0.0, %v909
      %911 = vmatmul.bf16.gmra.mxu0 %v638
      %v912 = vpop.f32.mrf.mxu0
      %v913 = vadd.f32 0.0, %v912
      %v914 = vpop.f32.mrf.mxu0
      %v915 = vadd.f32 0.0, %v914
      %916 = vmatmul.bf16.gmra.mxu0 %v639
      %v917 = vpop.f32.mrf.mxu0
      %v918 = vadd.f32 0.0, %v917
      %v919 = vpop.f32.mrf.mxu0
      %v920 = vadd.f32 0.0, %v919
      %921 = vmatmul.bf16.gmra.mxu0 %v640
      %v922 = vpop.f32.mrf.mxu0
      %v923 = vadd.f32 0.0, %v922
      %v924 = vpop.f32.mrf.mxu0
      %v925 = vadd.f32 0.0, %v924
      %926 = vmatmul.bf16.gmra.mxu0 %v641
      %v927 = vpop.f32.mrf.mxu0
      %v928 = vadd.f32 0.0, %v927
      %v929 = vpop.f32.mrf.mxu0
      %v930 = vadd.f32 0.0, %v929
      %931 = vmatmul.bf16.gmra.mxu0 %v642
      %v932 = vpop.f32.mrf.mxu0
      %v933 = vadd.f32 0.0, %v932
      %v934 = vpop.f32.mrf.mxu0
      %v935 = vadd.f32 0.0, %v934
      %936 = vmatmul.bf16.gmra.mxu0 %v643
      %v937 = vpop.f32.mrf.mxu0
      %v938 = vadd.f32 0.0, %v937
      %v939 = vpop.f32.mrf.mxu0
      %v940 = vadd.f32 0.0, %v939
      %941 = vmatmul.bf16.gmra.mxu0 %v644
      %v942 = vpop.f32.mrf.mxu0
      %v943 = vadd.f32 0.0, %v942
      %v944 = vpop.f32.mrf.mxu0
      %v945 = vadd.f32 0.0, %v944
      %946 = vmatmul.bf16.gmra.mxu0 %v645
      %v947 = vpop.f32.mrf.mxu0
      %v948 = vadd.f32 0.0, %v947
      %v949 = vpop.f32.mrf.mxu0
      %v950 = vadd.f32 0.0, %v949
      %951 = vmatmul.bf16.gmra.mxu0 %v646
      %v952 = vpop.f32.mrf.mxu0
      %v953 = vadd.f32 0.0, %v952
      %v954 = vpop.f32.mrf.mxu0
      %v955 = vadd.f32 0.0, %v954
      %956 = vmatmul.bf16.gmra.mxu0 %v647
      %v957 = vpop.f32.mrf.mxu0
      %v958 = vadd.f32 0.0, %v957
      %v959 = vpop.f32.mrf.mxu0
      %v960 = vadd.f32 0.0, %v959
      %961 = vmatmul.bf16.gmra.mxu0 %v648
      %v962 = vpop.f32.mrf.mxu0
      %v963 = vadd.f32 0.0, %v962
      %v964 = vpop.f32.mrf.mxu0
      %v965 = vadd.f32 0.0, %v964
      %966 = vmatmul.bf16.gmra.mxu0 %v649
      %v967 = vpop.f32.mrf.mxu0
      %v968 = vadd.f32 0.0, %v967
      %v969 = vpop.f32.mrf.mxu0
      %v970 = vadd.f32 0.0, %v969
      %971 = vdwg.mxu0
      %v972 = vld [vmem:[#allocation2] sm:$0xff]
      %v973 = vld [vmem:[#allocation2 + $0x8] sm:$0xff]
      %v974 = vld [vmem:[#allocation2 + $0x10] sm:$0xff]
      %v975 = vld [vmem:[#allocation2 + $0x18] sm:$0xff]
      %v976 = vld [vmem:[#allocation2 + $0x20] sm:$0xff]
      %v977 = vld [vmem:[#allocation2 + $0x28] sm:$0xff]
      %v978 = vld [vmem:[#allocation2 + $0x30] sm:$0xff]
      %v979 = vld [vmem:[#allocation2 + $0x38] sm:$0xff]
      %v980 = vld [vmem:[#allocation2 + $0x40] sm:$0xff]
      %v981 = vld [vmem:[#allocation2 + $0x48] sm:$0xff]
      %v982 = vld [vmem:[#allocation2 + $0x50] sm:$0xff]
      %v983 = vld [vmem:[#allocation2 + $0x58] sm:$0xff]
      %v984 = vld [vmem:[#allocation2 + $0x60] sm:$0xff]
      %v985 = vld [vmem:[#allocation2 + $0x68] sm:$0xff]
      %v986 = vld [vmem:[#allocation2 + $0x70] sm:$0xff]
      %v987 = vld [vmem:[#allocation2 + $0x78] sm:$0xff]
      %v988 = vld [vmem:[#allocation2 + $0x80] sm:$0xff]
      %v989 = vld [vmem:[#allocation2 + $0x88] sm:$0xff]
      %v990 = vld [vmem:[#allocation2 + $0x90] sm:$0xff]
      %v991 = vld [vmem:[#allocation2 + $0x98] sm:$0xff]
      %v992 = vld [vmem:[#allocation2 + $0xa0] sm:$0xff]
      %v993 = vld [vmem:[#allocation2 + $0xa8] sm:$0xff]
      %v994 = vld [vmem:[#allocation2 + $0xb0] sm:$0xff]
      %v995 = vld [vmem:[#allocation2 + $0xb8] sm:$0xff]
      %v996 = vld [vmem:[#allocation2 + $0xc0] sm:$0xff]
      %v997 = vld [vmem:[#allocation2 + $0xc8] sm:$0xff]
      %v998 = vld [vmem:[#allocation2 + $0xd0] sm:$0xff]
      %v999 = vld [vmem:[#allocation2 + $0xd8] sm:$0xff]
      %v1000 = vld [vmem:[#allocation2 + $0xe0] sm:$0xff]
      %v1001 = vld [vmem:[#allocation2 + $0xe8] sm:$0xff]
      %v1002 = vld [vmem:[#allocation2 + $0xf0] sm:$0xff]
      %v1003 = vld [vmem:[#allocation2 + $0xf8] sm:$0xff]
      %v1004 = vmax.f32 %v804, %v893
      %1005 = vmax.xlane.f32.xlu0 %v1004
      %v1006 = vpop.xlane.xlu0 %1005
      %v1007 = vmax.f32 %v806, %v895
      %1008 = vmax.xlane.f32.xlu0 %v1007
      %v1009 = vpop.xlane.xlu0 %1008
      %v1010 = vmax.f32 %v809, %v898
      %1011 = vmax.xlane.f32.xlu0 %v1010
      %v1012 = vpop.xlane.xlu0 %1011
      %v1013 = vmax.f32 %v811, %v900
      %1014 = vmax.xlane.f32.xlu0 %v1013
      %v1015 = vpop.xlane.xlu0 %1014
      %v1016 = vmax.f32 %v814, %v903
      %1017 = vmax.xlane.f32.xlu0 %v1016
      %v1018 = vpop.xlane.xlu0 %1017
      %v1019 = vmax.f32 %v816, %v905
      %1020 = vmax.xlane.f32.xlu0 %v1019
      %v1021 = vpop.xlane.xlu0 %1020
      %v1022 = vmax.f32 %v819, %v908
      %1023 = vmax.xlane.f32.xlu0 %v1022
      %v1024 = vpop.xlane.xlu0 %1023
      %v1025 = vmax.f32 %v821, %v910
      %1026 = vmax.xlane.f32.xlu0 %v1025
      %v1027 = vpop.xlane.xlu0 %1026
      %v1028 = vmax.f32 %v824, %v913
      %1029 = vmax.xlane.f32.xlu0 %v1028
      %v1030 = vpop.xlane.xlu0 %1029
      %v1031 = vmax.f32 %v826, %v915
      %1032 = vmax.xlane.f32.xlu0 %v1031
      %v1033 = vpop.xlane.xlu0 %1032
      %v1034 = vmax.f32 %v829, %v918
      %1035 = vmax.xlane.f32.xlu0 %v1034
      %v1036 = vpop.xlane.xlu0 %1035
      %v1037 = vmax.f32 %v831, %v920
      %1038 = vmax.xlane.f32.xlu0 %v1037
      %v1039 = vpop.xlane.xlu0 %1038
      %v1040 = vmax.f32 %v834, %v923
      %1041 = vmax.xlane.f32.xlu0 %v1040
      %v1042 = vpop.xlane.xlu0 %1041
      %v1043 = vmax.f32 %v836, %v925
      %1044 = vmax.xlane.f32.xlu0 %v1043
      %v1045 = vpop.xlane.xlu0 %1044
      %v1046 = vmax.f32 %v839, %v928
      %1047 = vmax.xlane.f32.xlu0 %v1046
      %v1048 = vpop.xlane.xlu0 %1047
      %v1049 = vmax.f32 %v841, %v930
      %1050 = vmax.xlane.f32.xlu0 %v1049
      %v1051 = vpop.xlane.xlu0 %1050
      %v1052 = vmax.f32 %v844, %v933
      %1053 = vmax.xlane.f32.xlu0 %v1052
      %v1054 = vpop.xlane.xlu0 %1053
      %v1055 = vmax.f32 %v846, %v935
      %1056 = vmax.xlane.f32.xlu0 %v1055
      %v1057 = vpop.xlane.xlu0 %1056
      %v1058 = vmax.f32 %v849, %v938
      %1059 = vmax.xlane.f32.xlu0 %v1058
      %v1060 = vpop.xlane.xlu0 %1059
      %v1061 = vmax.f32 %v851, %v940
      %1062 = vmax.xlane.f32.xlu0 %v1061
      %v1063 = vpop.xlane.xlu0 %1062
      %v1064 = vmax.f32 %v854, %v943
      %1065 = vmax.xlane.f32.xlu0 %v1064
      %v1066 = vpop.xlane.xlu0 %1065
      %v1067 = vmax.f32 %v856, %v945
      %1068 = vmax.xlane.f32.xlu0 %v1067
      %v1069 = vpop.xlane.xlu0 %1068
      %v1070 = vmax.f32 %v859, %v948
      %1071 = vmax.xlane.f32.xlu0 %v1070
      %v1072 = vpop.xlane.xlu0 %1071
      %v1073 = vmax.f32 %v861, %v950
      %1074 = vmax.xlane.f32.xlu0 %v1073
      %v1075 = vpop.xlane.xlu0 %1074
      %v1076 = vmax.f32 %v864, %v953
      %1077 = vmax.xlane.f32.xlu0 %v1076
      %v1078 = vpop.xlane.xlu0 %1077
      %v1079 = vmax.f32 %v866, %v955
      %1080 = vmax.xlane.f32.xlu0 %v1079
      %v1081 = vpop.xlane.xlu0 %1080
      %v1082 = vmax.f32 %v869, %v958
      %1083 = vmax.xlane.f32.xlu0 %v1082
      %v1084 = vpop.xlane.xlu0 %1083
      %v1085 = vmax.f32 %v871, %v960
      %1086 = vmax.xlane.f32.xlu0 %v1085
      %v1087 = vpop.xlane.xlu0 %1086
      %v1088 = vmax.f32 %v874, %v963
      %1089 = vmax.xlane.f32.xlu0 %v1088
      %v1090 = vpop.xlane.xlu0 %1089
      %v1091 = vmax.f32 %v876, %v965
      %1092 = vmax.xlane.f32.xlu0 %v1091
      %v1093 = vpop.xlane.xlu0 %1092
      %v1094 = vmax.f32 %v879, %v968
      %1095 = vmax.xlane.f32.xlu0 %v1094
      %v1096 = vpop.xlane.xlu0 %1095
      %v1097 = vmax.f32 %v881, %v970
      %1098 = vmax.xlane.f32.xlu0 %v1097
      %v1099 = vpop.xlane.xlu0 %1098
      %v1100 = vmax.f32 %v972, %v1006
      %v1101 = vmax.f32 %v973, %v1009
      %v1102 = vmax.f32 %v974, %v1012
      %v1103 = vmax.f32 %v975, %v1015
      %v1104 = vmax.f32 %v976, %v1018
      %v1105 = vmax.f32 %v977, %v1021
      %v1106 = vmax.f32 %v978, %v1024
      %v1107 = vmax.f32 %v979, %v1027
      %v1108 = vmax.f32 %v980, %v1030
      %v1109 = vmax.f32 %v981, %v1033
      %v1110 = vmax.f32 %v982, %v1036
      %v1111 = vmax.f32 %v983, %v1039
      %v1112 = vmax.f32 %v984, %v1042
      %v1113 = vmax.f32 %v985, %v1045
      %v1114 = vmax.f32 %v986, %v1048
      %v1115 = vmax.f32 %v987, %v1051
      %v1116 = vmax.f32 %v988, %v1054
      %v1117 = vmax.f32 %v989, %v1057
      %v1118 = vmax.f32 %v990, %v1060
      %v1119 = vmax.f32 %v991, %v1063
      %v1120 = vmax.f32 %v992, %v1066
      %v1121 = vmax.f32 %v993, %v1069
      %v1122 = vmax.f32 %v994, %v1072
      %v1123 = vmax.f32 %v995, %v1075
      %v1124 = vmax.f32 %v996, %v1078
      %v1125 = vmax.f32 %v997, %v1081
      %v1126 = vmax.f32 %v998, %v1084
      %v1127 = vmax.f32 %v999, %v1087
      %v1128 = vmax.f32 %v1000, %v1090
      %v1129 = vmax.f32 %v1001, %v1093
      %v1130 = vmax.f32 %v1002, %v1096
      %v1131 = vmax.f32 %v1003, %v1099
      %v1132 = vsub.f32 %v972, %v1100
      %v1133 = vsub.f32 %v973, %v1101
      %v1134 = vsub.f32 %v974, %v1102
      %v1135 = vsub.f32 %v975, %v1103
      %v1136 = vsub.f32 %v976, %v1104
      %v1137 = vsub.f32 %v977, %v1105
      %v1138 = vsub.f32 %v978, %v1106
      %v1139 = vsub.f32 %v979, %v1107
      %v1140 = vsub.f32 %v980, %v1108
      %v1141 = vsub.f32 %v981, %v1109
      %v1142 = vsub.f32 %v982, %v1110
      %v1143 = vsub.f32 %v983, %v1111
      %v1144 = vsub.f32 %v984, %v1112
      %v1145 = vsub.f32 %v985, %v1113
      %v1146 = vsub.f32 %v986, %v1114
      %v1147 = vsub.f32 %v987, %v1115
      %v1148 = vsub.f32 %v988, %v1116
      %v1149 = vsub.f32 %v989, %v1117
      %v1150 = vsub.f32 %v990, %v1118
      %v1151 = vsub.f32 %v991, %v1119
      %v1152 = vsub.f32 %v992, %v1120
      %v1153 = vsub.f32 %v993, %v1121
      %v1154 = vsub.f32 %v994, %v1122
      %v1155 = vsub.f32 %v995, %v1123
      %v1156 = vsub.f32 %v996, %v1124
      %v1157 = vsub.f32 %v997, %v1125
      %v1158 = vsub.f32 %v998, %v1126
      %v1159 = vsub.f32 %v999, %v1127
      %v1160 = vsub.f32 %v1000, %v1128
      %v1161 = vsub.f32 %v1001, %v1129
      %v1162 = vsub.f32 %v1002, %v1130
      %v1163 = vsub.f32 %v1003, %v1131
      %v1164 = vmul.f32 %v1132, 1.442695
      %v1165 = vpow.pop %v1164
      %v1166 = vmul.f32 %v1133, 1.442695
      %v1167 = vpow.pop %v1166
      %v1168 = vmul.f32 %v1134, 1.442695
      %v1169 = vpow.pop %v1168
      %v1170 = vmul.f32 %v1135, 1.442695
      %v1171 = vpow.pop %v1170
      %v1172 = vmul.f32 %v1136, 1.442695
      %v1173 = vpow.pop %v1172
      %v1174 = vmul.f32 %v1137, 1.442695
      %v1175 = vpow.pop %v1174
      %v1176 = vmul.f32 %v1138, 1.442695
      %v1177 = vpow.pop %v1176
      %v1178 = vmul.f32 %v1139, 1.442695
      %v1179 = vpow.pop %v1178
      %v1180 = vmul.f32 %v1140, 1.442695
      %v1181 = vpow.pop %v1180
      %v1182 = vmul.f32 %v1141, 1.442695
      %v1183 = vpow.pop %v1182
      %v1184 = vmul.f32 %v1142, 1.442695
      %v1185 = vpow.pop %v1184
      %v1186 = vmul.f32 %v1143, 1.442695
      %v1187 = vpow.pop %v1186
      %v1188 = vmul.f32 %v1144, 1.442695
      %v1189 = vpow.pop %v1188
      %v1190 = vmul.f32 %v1145, 1.442695
      %v1191 = vpow.pop %v1190
      %v1192 = vmul.f32 %v1146, 1.442695
      %v1193 = vpow.pop %v1192
      %v1194 = vmul.f32 %v1147, 1.442695
      %v1195 = vpow.pop %v1194
      %v1196 = vmul.f32 %v1148, 1.442695
      %v1197 = vpow.pop %v1196
      %v1198 = vmul.f32 %v1149, 1.442695
      %v1199 = vpow.pop %v1198
      %v1200 = vmul.f32 %v1150, 1.442695
      %v1201 = vpow.pop %v1200
      %v1202 = vmul.f32 %v1151, 1.442695
      %v1203 = vpow.pop %v1202
      %v1204 = vmul.f32 %v1152, 1.442695
      %v1205 = vpow.pop %v1204
      %v1206 = vmul.f32 %v1153, 1.442695
      %v1207 = vpow.pop %v1206
      %v1208 = vmul.f32 %v1154, 1.442695
      %v1209 = vpow.pop %v1208
      %v1210 = vmul.f32 %v1155, 1.442695
      %v1211 = vpow.pop %v1210
      %v1212 = vmul.f32 %v1156, 1.442695
      %v1213 = vpow.pop %v1212
      %v1214 = vmul.f32 %v1157, 1.442695
      %v1215 = vpow.pop %v1214
      %v1216 = vmul.f32 %v1158, 1.442695
      %v1217 = vpow.pop %v1216
      %v1218 = vmul.f32 %v1159, 1.442695
      %v1219 = vpow.pop %v1218
      %v1220 = vmul.f32 %v1160, 1.442695
      %v1221 = vpow.pop %v1220
      %v1222 = vmul.f32 %v1161, 1.442695
      %v1223 = vpow.pop %v1222
      %v1224 = vmul.f32 %v1162, 1.442695
      %v1225 = vpow.pop %v1224
      %v1226 = vmul.f32 %v1163, 1.442695
      %v1227 = vpow.pop %v1226
      %1229 = vset.pattern.permute.xlu0 0
      %1230 = vperm.xlu0 %1229, %v1100
      %v1231 = vpop.permute.xlu0 %1230
      %1234 = vset.pattern.permute.xlu0 0
      %1235 = vperm.xlu0 %1234, %v1101
      %v1236 = vpop.permute.xlu0 %1235
      %1239 = vset.pattern.permute.xlu0 0
      %1240 = vperm.xlu0 %1239, %v1102
      %v1241 = vpop.permute.xlu0 %1240
      %1244 = vset.pattern.permute.xlu0 0
      %1245 = vperm.xlu0 %1244, %v1103
      %v1246 = vpop.permute.xlu0 %1245
      %1249 = vset.pattern.permute.xlu0 0
      %1250 = vperm.xlu0 %1249, %v1104
      %v1251 = vpop.permute.xlu0 %1250
      %1254 = vset.pattern.permute.xlu0 0
      %1255 = vperm.xlu0 %1254, %v1105
      %v1256 = vpop.permute.xlu0 %1255
      %1259 = vset.pattern.permute.xlu0 0
      %1260 = vperm.xlu0 %1259, %v1106
      %v1261 = vpop.permute.xlu0 %1260
      %1264 = vset.pattern.permute.xlu0 0
      %1265 = vperm.xlu0 %1264, %v1107
      %v1266 = vpop.permute.xlu0 %1265
      %1269 = vset.pattern.permute.xlu0 0
      %1270 = vperm.xlu0 %1269, %v1108
      %v1271 = vpop.permute.xlu0 %1270
      %1274 = vset.pattern.permute.xlu0 0
      %1275 = vperm.xlu0 %1274, %v1109
      %v1276 = vpop.permute.xlu0 %1275
      %1279 = vset.pattern.permute.xlu0 0
      %1280 = vperm.xlu0 %1279, %v1110
      %v1281 = vpop.permute.xlu0 %1280
      %1284 = vset.pattern.permute.xlu0 0
      %1285 = vperm.xlu0 %1284, %v1111
      %v1286 = vpop.permute.xlu0 %1285
      %1289 = vset.pattern.permute.xlu0 0
      %1290 = vperm.xlu0 %1289, %v1112
      %v1291 = vpop.permute.xlu0 %1290
      %1294 = vset.pattern.permute.xlu0 0
      %1295 = vperm.xlu0 %1294, %v1113
      %v1296 = vpop.permute.xlu0 %1295
      %1299 = vset.pattern.permute.xlu0 0
      %1300 = vperm.xlu0 %1299, %v1114
      %v1301 = vpop.permute.xlu0 %1300
      %1304 = vset.pattern.permute.xlu0 0
      %1305 = vperm.xlu0 %1304, %v1115
      %v1306 = vpop.permute.xlu0 %1305
      %1309 = vset.pattern.permute.xlu0 0
      %1310 = vperm.xlu0 %1309, %v1116
      %v1311 = vpop.permute.xlu0 %1310
      %1314 = vset.pattern.permute.xlu0 0
      %1315 = vperm.xlu0 %1314, %v1117
      %v1316 = vpop.permute.xlu0 %1315
      %1319 = vset.pattern.permute.xlu0 0
      %1320 = vperm.xlu0 %1319, %v1118
      %v1321 = vpop.permute.xlu0 %1320
      %1324 = vset.pattern.permute.xlu0 0
      %1325 = vperm.xlu0 %1324, %v1119
      %v1326 = vpop.permute.xlu0 %1325
      %1329 = vset.pattern.permute.xlu0 0
      %1330 = vperm.xlu0 %1329, %v1120
      %v1331 = vpop.permute.xlu0 %1330
      %1334 = vset.pattern.permute.xlu0 0
      %1335 = vperm.xlu0 %1334, %v1121
      %v1336 = vpop.permute.xlu0 %1335
      %1339 = vset.pattern.permute.xlu0 0
      %1340 = vperm.xlu0 %1339, %v1122
      %v1341 = vpop.permute.xlu0 %1340
      %1344 = vset.pattern.permute.xlu0 0
      %1345 = vperm.xlu0 %1344, %v1123
      %v1346 = vpop.permute.xlu0 %1345
      %1349 = vset.pattern.permute.xlu0 0
      %1350 = vperm.xlu0 %1349, %v1124
      %v1351 = vpop.permute.xlu0 %1350
      %1354 = vset.pattern.permute.xlu0 0
      %1355 = vperm.xlu0 %1354, %v1125
      %v1356 = vpop.permute.xlu0 %1355
      %1359 = vset.pattern.permute.xlu0 0
      %1360 = vperm.xlu0 %1359, %v1126
      %v1361 = vpop.permute.xlu0 %1360
      %1364 = vset.pattern.permute.xlu0 0
      %1365 = vperm.xlu0 %1364, %v1127
      %v1366 = vpop.permute.xlu0 %1365
      %1369 = vset.pattern.permute.xlu0 0
      %1370 = vperm.xlu0 %1369, %v1128
      %v1371 = vpop.permute.xlu0 %1370
      %1374 = vset.pattern.permute.xlu0 0
      %1375 = vperm.xlu0 %1374, %v1129
      %v1376 = vpop.permute.xlu0 %1375
      %1379 = vset.pattern.permute.xlu0 0
      %1380 = vperm.xlu0 %1379, %v1130
      %v1381 = vpop.permute.xlu0 %1380
      %1384 = vset.pattern.permute.xlu0 0
      %1385 = vperm.xlu0 %1384, %v1131
      %v1386 = vpop.permute.xlu0 %1385
      %v1388 = vsub.f32 %v804, %v1231
      %v1389 = vsub.f32 %v893, %v1231
      %v1390 = vsub.f32 %v806, %v1236
      %v1391 = vsub.f32 %v895, %v1236
      %v1392 = vsub.f32 %v809, %v1241
      %v1393 = vsub.f32 %v898, %v1241
      %v1394 = vsub.f32 %v811, %v1246
      %v1395 = vsub.f32 %v900, %v1246
      %v1396 = vsub.f32 %v814, %v1251
      %v1397 = vsub.f32 %v903, %v1251
      %v1398 = vsub.f32 %v816, %v1256
      %v1399 = vsub.f32 %v905, %v1256
      %v1400 = vsub.f32 %v819, %v1261
      %v1401 = vsub.f32 %v908, %v1261
      %v1402 = vsub.f32 %v821, %v1266
      %v1403 = vsub.f32 %v910, %v1266
      %v1404 = vsub.f32 %v824, %v1271
      %v1405 = vsub.f32 %v913, %v1271
      %v1406 = vsub.f32 %v826, %v1276
      %v1407 = vsub.f32 %v915, %v1276
      %v1408 = vsub.f32 %v829, %v1281
      %v1409 = vsub.f32 %v918, %v1281
      %v1410 = vsub.f32 %v831, %v1286
      %v1411 = vsub.f32 %v920, %v1286
      %v1412 = vsub.f32 %v834, %v1291
      %v1413 = vsub.f32 %v923, %v1291
      %v1414 = vsub.f32 %v836, %v1296
      %v1415 = vsub.f32 %v925, %v1296
      %v1416 = vsub.f32 %v839, %v1301
      %v1417 = vsub.f32 %v928, %v1301
      %v1418 = vsub.f32 %v841, %v1306
      %v1419 = vsub.f32 %v930, %v1306
      %v1420 = vsub.f32 %v844, %v1311
      %v1421 = vsub.f32 %v933, %v1311
      %v1422 = vsub.f32 %v846, %v1316
      %v1423 = vsub.f32 %v935, %v1316
      %v1424 = vsub.f32 %v849, %v1321
      %v1425 = vsub.f32 %v938, %v1321
      %v1426 = vsub.f32 %v851, %v1326
      %v1427 = vsub.f32 %v940, %v1326
      %v1428 = vsub.f32 %v854, %v1331
      %v1429 = vsub.f32 %v943, %v1331
      %v1430 = vsub.f32 %v856, %v1336
      %v1431 = vsub.f32 %v945, %v1336
      %v1432 = vsub.f32 %v859, %v1341
      %v1433 = vsub.f32 %v948, %v1341
      %v1434 = vsub.f32 %v861, %v1346
      %v1435 = vsub.f32 %v950, %v1346
      %v1436 = vsub.f32 %v864, %v1351
      %v1437 = vsub.f32 %v953, %v1351
      %v1438 = vsub.f32 %v866, %v1356
      %v1439 = vsub.f32 %v955, %v1356
      %v1440 = vsub.f32 %v869, %v1361
      %v1441 = vsub.f32 %v958, %v1361
      %v1442 = vsub.f32 %v871, %v1366
      %v1443 = vsub.f32 %v960, %v1366
      %v1444 = vsub.f32 %v874, %v1371
      %v1445 = vsub.f32 %v963, %v1371
      %v1446 = vsub.f32 %v876, %v1376
      %v1447 = vsub.f32 %v965, %v1376
      %v1448 = vsub.f32 %v879, %v1381
      %v1449 = vsub.f32 %v968, %v1381
      %v1450 = vsub.f32 %v881, %v1386
      %v1451 = vsub.f32 %v970, %v1386
      %v1452 = vmul.f32 %v1388, 1.442695
      %v1453 = vpow.pop %v1452
      %v1454 = vmul.f32 %v1389, 1.442695
      %v1455 = vpow.pop %v1454
      %v1456 = vmul.f32 %v1390, 1.442695
      %v1457 = vpow.pop %v1456
      %v1458 = vmul.f32 %v1391, 1.442695
      %v1459 = vpow.pop %v1458
      %v1460 = vmul.f32 %v1392, 1.442695
      %v1461 = vpow.pop %v1460
      %v1462 = vmul.f32 %v1393, 1.442695
      %v1463 = vpow.pop %v1462
      %v1464 = vmul.f32 %v1394, 1.442695
      %v1465 = vpow.pop %v1464
      %v1466 = vmul.f32 %v1395, 1.442695
      %v1467 = vpow.pop %v1466
      %v1468 = vmul.f32 %v1396, 1.442695
      %v1469 = vpow.pop %v1468
      %v1470 = vmul.f32 %v1397, 1.442695
      %v1471 = vpow.pop %v1470
      %v1472 = vmul.f32 %v1398, 1.442695
      %v1473 = vpow.pop %v1472
      %v1474 = vmul.f32 %v1399, 1.442695
      %v1475 = vpow.pop %v1474
      %v1476 = vmul.f32 %v1400, 1.442695
      %v1477 = vpow.pop %v1476
      %v1478 = vmul.f32 %v1401, 1.442695
      %v1479 = vpow.pop %v1478
      %v1480 = vmul.f32 %v1402, 1.442695
      %v1481 = vpow.pop %v1480
      %v1482 = vmul.f32 %v1403, 1.442695
      %v1483 = vpow.pop %v1482
      %v1484 = vmul.f32 %v1404, 1.442695
      %v1485 = vpow.pop %v1484
      %v1486 = vmul.f32 %v1405, 1.442695
      %v1487 = vpow.pop %v1486
      %v1488 = vmul.f32 %v1406, 1.442695
      %v1489 = vpow.pop %v1488
      %v1490 = vmul.f32 %v1407, 1.442695
      %v1491 = vpow.pop %v1490
      %v1492 = vmul.f32 %v1408, 1.442695
      %v1493 = vpow.pop %v1492
      %v1494 = vmul.f32 %v1409, 1.442695
      %v1495 = vpow.pop %v1494
      %v1496 = vmul.f32 %v1410, 1.442695
      %v1497 = vpow.pop %v1496
      %v1498 = vmul.f32 %v1411, 1.442695
      %v1499 = vpow.pop %v1498
      %v1500 = vmul.f32 %v1412, 1.442695
      %v1501 = vpow.pop %v1500
      %v1502 = vmul.f32 %v1413, 1.442695
      %v1503 = vpow.pop %v1502
      %v1504 = vmul.f32 %v1414, 1.442695
      %v1505 = vpow.pop %v1504
      %v1506 = vmul.f32 %v1415, 1.442695
      %v1507 = vpow.pop %v1506
      %v1508 = vmul.f32 %v1416, 1.442695
      %v1509 = vpow.pop %v1508
      %v1510 = vmul.f32 %v1417, 1.442695
      %v1511 = vpow.pop %v1510
      %v1512 = vmul.f32 %v1418, 1.442695
      %v1513 = vpow.pop %v1512
      %v1514 = vmul.f32 %v1419, 1.442695
      %v1515 = vpow.pop %v1514
      %v1516 = vmul.f32 %v1420, 1.442695
      %v1517 = vpow.pop %v1516
      %v1518 = vmul.f32 %v1421, 1.442695
      %v1519 = vpow.pop %v1518
      %v1520 = vmul.f32 %v1422, 1.442695
      %v1521 = vpow.pop %v1520
      %v1522 = vmul.f32 %v1423, 1.442695
      %v1523 = vpow.pop %v1522
      %v1524 = vmul.f32 %v1424, 1.442695
      %v1525 = vpow.pop %v1524
      %v1526 = vmul.f32 %v1425, 1.442695
      %v1527 = vpow.pop %v1526
      %v1528 = vmul.f32 %v1426, 1.442695
      %v1529 = vpow.pop %v1528
      %v1530 = vmul.f32 %v1427, 1.442695
      %v1531 = vpow.pop %v1530
      %v1532 = vmul.f32 %v1428, 1.442695
      %v1533 = vpow.pop %v1532
      %v1534 = vmul.f32 %v1429, 1.442695
      %v1535 = vpow.pop %v1534
      %v1536 = vmul.f32 %v1430, 1.442695
      %v1537 = vpow.pop %v1536
      %v1538 = vmul.f32 %v1431, 1.442695
      %v1539 = vpow.pop %v1538
      %v1540 = vmul.f32 %v1432, 1.442695
      %v1541 = vpow.pop %v1540
      %v1542 = vmul.f32 %v1433, 1.442695
      %v1543 = vpow.pop %v1542
      %v1544 = vmul.f32 %v1434, 1.442695
      %v1545 = vpow.pop %v1544
      %v1546 = vmul.f32 %v1435, 1.442695
      %v1547 = vpow.pop %v1546
      %v1548 = vmul.f32 %v1436, 1.442695
      %v1549 = vpow.pop %v1548
      %v1550 = vmul.f32 %v1437, 1.442695
      %v1551 = vpow.pop %v1550
      %v1552 = vmul.f32 %v1438, 1.442695
      %v1553 = vpow.pop %v1552
      %v1554 = vmul.f32 %v1439, 1.442695
      %v1555 = vpow.pop %v1554
      %v1556 = vmul.f32 %v1440, 1.442695
      %v1557 = vpow.pop %v1556
      %v1558 = vmul.f32 %v1441, 1.442695
      %v1559 = vpow.pop %v1558
      %v1560 = vmul.f32 %v1442, 1.442695
      %v1561 = vpow.pop %v1560
      %v1562 = vmul.f32 %v1443, 1.442695
      %v1563 = vpow.pop %v1562
      %v1564 = vmul.f32 %v1444, 1.442695
      %v1565 = vpow.pop %v1564
      %v1566 = vmul.f32 %v1445, 1.442695
      %v1567 = vpow.pop %v1566
      %v1568 = vmul.f32 %v1446, 1.442695
      %v1569 = vpow.pop %v1568
      %v1570 = vmul.f32 %v1447, 1.442695
      %v1571 = vpow.pop %v1570
      %v1572 = vmul.f32 %v1448, 1.442695
      %v1573 = vpow.pop %v1572
      %v1574 = vmul.f32 %v1449, 1.442695
      %v1575 = vpow.pop %v1574
      %v1576 = vmul.f32 %v1450, 1.442695
      %v1577 = vpow.pop %v1576
      %v1578 = vmul.f32 %v1451, 1.442695
      %v1579 = vpow.pop %v1578
      %v1580 = vld [vmem:[#allocation3] sm:$0xff]
      %v1581 = vld [vmem:[#allocation3 + $0x8] sm:$0xff]
      %v1582 = vld [vmem:[#allocation3 + $0x10] sm:$0xff]
      %v1583 = vld [vmem:[#allocation3 + $0x18] sm:$0xff]
      %v1584 = vld [vmem:[#allocation3 + $0x20] sm:$0xff]
      %v1585 = vld [vmem:[#allocation3 + $0x28] sm:$0xff]
      %v1586 = vld [vmem:[#allocation3 + $0x30] sm:$0xff]
      %v1587 = vld [vmem:[#allocation3 + $0x38] sm:$0xff]
      %v1588 = vld [vmem:[#allocation3 + $0x40] sm:$0xff]
      %v1589 = vld [vmem:[#allocation3 + $0x48] sm:$0xff]
      %v1590 = vld [vmem:[#allocation3 + $0x50] sm:$0xff]
      %v1591 = vld [vmem:[#allocation3 + $0x58] sm:$0xff]
      %v1592 = vld [vmem:[#allocation3 + $0x60] sm:$0xff]
      %v1593 = vld [vmem:[#allocation3 + $0x68] sm:$0xff]
      %v1594 = vld [vmem:[#allocation3 + $0x70] sm:$0xff]
      %v1595 = vld [vmem:[#allocation3 + $0x78] sm:$0xff]
      %v1596 = vld [vmem:[#allocation3 + $0x80] sm:$0xff]
      %v1597 = vld [vmem:[#allocation3 + $0x88] sm:$0xff]
      %v1598 = vld [vmem:[#allocation3 + $0x90] sm:$0xff]
      %v1599 = vld [vmem:[#allocation3 + $0x98] sm:$0xff]
      %v1600 = vld [vmem:[#allocation3 + $0xa0] sm:$0xff]
      %v1601 = vld [vmem:[#allocation3 + $0xa8] sm:$0xff]
      %v1602 = vld [vmem:[#allocation3 + $0xb0] sm:$0xff]
      %v1603 = vld [vmem:[#allocation3 + $0xb8] sm:$0xff]
      %v1604 = vld [vmem:[#allocation3 + $0xc0] sm:$0xff]
      %v1605 = vld [vmem:[#allocation3 + $0xc8] sm:$0xff]
      %v1606 = vld [vmem:[#allocation3 + $0xd0] sm:$0xff]
      %v1607 = vld [vmem:[#allocation3 + $0xd8] sm:$0xff]
      %v1608 = vld [vmem:[#allocation3 + $0xe0] sm:$0xff]
      %v1609 = vld [vmem:[#allocation3 + $0xe8] sm:$0xff]
      %v1610 = vld [vmem:[#allocation3 + $0xf0] sm:$0xff]
      %v1611 = vld [vmem:[#allocation3 + $0xf8] sm:$0xff]
      %v1612 = vmul.f32 %v1165, %v1580
      %v1613 = vmul.f32 %v1167, %v1581
      %v1614 = vmul.f32 %v1169, %v1582
      %v1615 = vmul.f32 %v1171, %v1583
      %v1616 = vmul.f32 %v1173, %v1584
      %v1617 = vmul.f32 %v1175, %v1585
      %v1618 = vmul.f32 %v1177, %v1586
      %v1619 = vmul.f32 %v1179, %v1587
      %v1620 = vmul.f32 %v1181, %v1588
      %v1621 = vmul.f32 %v1183, %v1589
      %v1622 = vmul.f32 %v1185, %v1590
      %v1623 = vmul.f32 %v1187, %v1591
      %v1624 = vmul.f32 %v1189, %v1592
      %v1625 = vmul.f32 %v1191, %v1593
      %v1626 = vmul.f32 %v1193, %v1594
      %v1627 = vmul.f32 %v1195, %v1595
      %v1628 = vmul.f32 %v1197, %v1596
      %v1629 = vmul.f32 %v1199, %v1597
      %v1630 = vmul.f32 %v1201, %v1598
      %v1631 = vmul.f32 %v1203, %v1599
      %v1632 = vmul.f32 %v1205, %v1600
      %v1633 = vmul.f32 %v1207, %v1601
      %v1634 = vmul.f32 %v1209, %v1602
      %v1635 = vmul.f32 %v1211, %v1603
      %v1636 = vmul.f32 %v1213, %v1604
      %v1637 = vmul.f32 %v1215, %v1605
      %v1638 = vmul.f32 %v1217, %v1606
      %v1639 = vmul.f32 %v1219, %v1607
      %v1640 = vmul.f32 %v1221, %v1608
      %v1641 = vmul.f32 %v1223, %v1609
      %v1642 = vmul.f32 %v1225, %v1610
      %v1643 = vmul.f32 %v1227, %v1611
      %v1644 = vadd.f32 %v1453, %v1455
      %1645 = vadd.xlane.f32.xlu0 %v1644
      %v1646 = vpop.xlane.xlu0 %1645
      %v1647 = vadd.f32 %v1457, %v1459
      %1648 = vadd.xlane.f32.xlu0 %v1647
      %v1649 = vpop.xlane.xlu0 %1648
      %v1650 = vadd.f32 %v1461, %v1463
      %1651 = vadd.xlane.f32.xlu0 %v1650
      %v1652 = vpop.xlane.xlu0 %1651
      %v1653 = vadd.f32 %v1465, %v1467
      %1654 = vadd.xlane.f32.xlu0 %v1653
      %v1655 = vpop.xlane.xlu0 %1654
      %v1656 = vadd.f32 %v1469, %v1471
      %1657 = vadd.xlane.f32.xlu0 %v1656
      %v1658 = vpop.xlane.xlu0 %1657
      %v1659 = vadd.f32 %v1473, %v1475
      %1660 = vadd.xlane.f32.xlu0 %v1659
      %v1661 = vpop.xlane.xlu0 %1660
      %v1662 = vadd.f32 %v1477, %v1479
      %1663 = vadd.xlane.f32.xlu0 %v1662
      %v1664 = vpop.xlane.xlu0 %1663
      %v1665 = vadd.f32 %v1481, %v1483
      %1666 = vadd.xlane.f32.xlu0 %v1665
      %v1667 = vpop.xlane.xlu0 %1666
      %v1668 = vadd.f32 %v1485, %v1487
      %1669 = vadd.xlane.f32.xlu0 %v1668
      %v1670 = vpop.xlane.xlu0 %1669
      %v1671 = vadd.f32 %v1489, %v1491
      %1672 = vadd.xlane.f32.xlu0 %v1671
      %v1673 = vpop.xlane.xlu0 %1672
      %v1674 = vadd.f32 %v1493, %v1495
      %1675 = vadd.xlane.f32.xlu0 %v1674
      %v1676 = vpop.xlane.xlu0 %1675
      %v1677 = vadd.f32 %v1497, %v1499
      %1678 = vadd.xlane.f32.xlu0 %v1677
      %v1679 = vpop.xlane.xlu0 %1678
      %v1680 = vadd.f32 %v1501, %v1503
      %1681 = vadd.xlane.f32.xlu0 %v1680
      %v1682 = vpop.xlane.xlu0 %1681
      %v1683 = vadd.f32 %v1505, %v1507
      %1684 = vadd.xlane.f32.xlu0 %v1683
      %v1685 = vpop.xlane.xlu0 %1684
      %v1686 = vadd.f32 %v1509, %v1511
      %1687 = vadd.xlane.f32.xlu0 %v1686
      %v1688 = vpop.xlane.xlu0 %1687
      %v1689 = vadd.f32 %v1513, %v1515
      %1690 = vadd.xlane.f32.xlu0 %v1689
      %v1691 = vpop.xlane.xlu0 %1690
      %v1692 = vadd.f32 %v1517, %v1519
      %1693 = vadd.xlane.f32.xlu0 %v1692
      %v1694 = vpop.xlane.xlu0 %1693
      %v1695 = vadd.f32 %v1521, %v1523
      %1696 = vadd.xlane.f32.xlu0 %v1695
      %v1697 = vpop.xlane.xlu0 %1696
      %v1698 = vadd.f32 %v1525, %v1527
      %1699 = vadd.xlane.f32.xlu0 %v1698
      %v1700 = vpop.xlane.xlu0 %1699
      %v1701 = vadd.f32 %v1529, %v1531
      %1702 = vadd.xlane.f32.xlu0 %v1701
      %v1703 = vpop.xlane.xlu0 %1702
      %v1704 = vadd.f32 %v1533, %v1535
      %1705 = vadd.xlane.f32.xlu0 %v1704
      %v1706 = vpop.xlane.xlu0 %1705
      %v1707 = vadd.f32 %v1537, %v1539
      %1708 = vadd.xlane.f32.xlu0 %v1707
      %v1709 = vpop.xlane.xlu0 %1708
      %v1710 = vadd.f32 %v1541, %v1543
      %1711 = vadd.xlane.f32.xlu0 %v1710
      %v1712 = vpop.xlane.xlu0 %1711
      %v1713 = vadd.f32 %v1545, %v1547
      %1714 = vadd.xlane.f32.xlu0 %v1713
      %v1715 = vpop.xlane.xlu0 %1714
      %v1716 = vadd.f32 %v1549, %v1551
      %1717 = vadd.xlane.f32.xlu0 %v1716
      %v1718 = vpop.xlane.xlu0 %1717
      %v1719 = vadd.f32 %v1553, %v1555
      %1720 = vadd.xlane.f32.xlu0 %v1719
      %v1721 = vpop.xlane.xlu0 %1720
      %v1722 = vadd.f32 %v1557, %v1559
      %1723 = vadd.xlane.f32.xlu0 %v1722
      %v1724 = vpop.xlane.xlu0 %1723
      %v1725 = vadd.f32 %v1561, %v1563
      %1726 = vadd.xlane.f32.xlu0 %v1725
      %v1727 = vpop.xlane.xlu0 %1726
      %v1728 = vadd.f32 %v1565, %v1567
      %1729 = vadd.xlane.f32.xlu0 %v1728
      %v1730 = vpop.xlane.xlu0 %1729
      %v1731 = vadd.f32 %v1569, %v1571
      %1732 = vadd.xlane.f32.xlu0 %v1731
      %v1733 = vpop.xlane.xlu0 %1732
      %v1734 = vadd.f32 %v1573, %v1575
      %1735 = vadd.xlane.f32.xlu0 %v1734
      %v1736 = vpop.xlane.xlu0 %1735
      %v1737 = vadd.f32 %v1577, %v1579
      %1738 = vadd.xlane.f32.xlu0 %v1737
      %v1739 = vpop.xlane.xlu0 %1738
      %v1740 = vadd.f32 %v1612, %v1646
      %v1741 = vadd.f32 %v1613, %v1649
      %v1742 = vadd.f32 %v1614, %v1652
      %v1743 = vadd.f32 %v1615, %v1655
      %v1744 = vadd.f32 %v1616, %v1658
      %v1745 = vadd.f32 %v1617, %v1661
      %v1746 = vadd.f32 %v1618, %v1664
      %v1747 = vadd.f32 %v1619, %v1667
      %v1748 = vadd.f32 %v1620, %v1670
      %v1749 = vadd.f32 %v1621, %v1673
      %v1750 = vadd.f32 %v1622, %v1676
      %v1751 = vadd.f32 %v1623, %v1679
      %v1752 = vadd.f32 %v1624, %v1682
      %v1753 = vadd.f32 %v1625, %v1685
      %v1754 = vadd.f32 %v1626, %v1688
      %v1755 = vadd.f32 %v1627, %v1691
      %v1756 = vadd.f32 %v1628, %v1694
      %v1757 = vadd.f32 %v1629, %v1697
      %v1758 = vadd.f32 %v1630, %v1700
      %v1759 = vadd.f32 %v1631, %v1703
      %v1760 = vadd.f32 %v1632, %v1706
      %v1761 = vadd.f32 %v1633, %v1709
      %v1762 = vadd.f32 %v1634, %v1712
      %v1763 = vadd.f32 %v1635, %v1715
      %v1764 = vadd.f32 %v1636, %v1718
      %v1765 = vadd.f32 %v1637, %v1721
      %v1766 = vadd.f32 %v1638, %v1724
      %v1767 = vadd.f32 %v1639, %v1727
      %v1768 = vadd.f32 %v1640, %v1730
      %v1769 = vadd.f32 %v1641, %v1733
      %v1770 = vadd.f32 %v1642, %v1736
      %v1771 = vadd.f32 %v1643, %v1739
      %vm1772 = vcmask 7168
      %1773 = vst.msk [vmem:[#allocation3] sm:$0xff] %vm1772, %v1740
      %1774 = vst.msk [vmem:[#allocation3 + $0x8] sm:$0xff] %vm1772, %v1741
      %1775 = vst.msk [vmem:[#allocation3 + $0x10] sm:$0xff] %vm1772, %v1742
      %1776 = vst.msk [vmem:[#allocation3 + $0x18] sm:$0xff] %vm1772, %v1743
      %1777 = vst.msk [vmem:[#allocation3 + $0x20] sm:$0xff] %vm1772, %v1744
      %1778 = vst.msk [vmem:[#allocation3 + $0x28] sm:$0xff] %vm1772, %v1745
      %1779 = vst.msk [vmem:[#allocation3 + $0x30] sm:$0xff] %vm1772, %v1746
      %1780 = vst.msk [vmem:[#allocation3 + $0x38] sm:$0xff] %vm1772, %v1747
      %1781 = vst.msk [vmem:[#allocation3 + $0x40] sm:$0xff] %vm1772, %v1748
      %1782 = vst.msk [vmem:[#allocation3 + $0x48] sm:$0xff] %vm1772, %v1749
      %1783 = vst.msk [vmem:[#allocation3 + $0x50] sm:$0xff] %vm1772, %v1750
      %1784 = vst.msk [vmem:[#allocation3 + $0x58] sm:$0xff] %vm1772, %v1751
      %1785 = vst.msk [vmem:[#allocation3 + $0x60] sm:$0xff] %vm1772, %v1752
      %1786 = vst.msk [vmem:[#allocation3 + $0x68] sm:$0xff] %vm1772, %v1753
      %1787 = vst.msk [vmem:[#allocation3 + $0x70] sm:$0xff] %vm1772, %v1754
      %1788 = vst.msk [vmem:[#allocation3 + $0x78] sm:$0xff] %vm1772, %v1755
      %1789 = vst.msk [vmem:[#allocation3 + $0x80] sm:$0xff] %vm1772, %v1756
      %1790 = vst.msk [vmem:[#allocation3 + $0x88] sm:$0xff] %vm1772, %v1757
      %1791 = vst.msk [vmem:[#allocation3 + $0x90] sm:$0xff] %vm1772, %v1758
      %1792 = vst.msk [vmem:[#allocation3 + $0x98] sm:$0xff] %vm1772, %v1759
      %1793 = vst.msk [vmem:[#allocation3 + $0xa0] sm:$0xff] %vm1772, %v1760
      %1794 = vst.msk [vmem:[#allocation3 + $0xa8] sm:$0xff] %vm1772, %v1761
      %1795 = vst.msk [vmem:[#allocation3 + $0xb0] sm:$0xff] %vm1772, %v1762
      %1796 = vst.msk [vmem:[#allocation3 + $0xb8] sm:$0xff] %vm1772, %v1763
      %1797 = vst.msk [vmem:[#allocation3 + $0xc0] sm:$0xff] %vm1772, %v1764
      %1798 = vst.msk [vmem:[#allocation3 + $0xc8] sm:$0xff] %vm1772, %v1765
      %1799 = vst.msk [vmem:[#allocation3 + $0xd0] sm:$0xff] %vm1772, %v1766
      %1800 = vst.msk [vmem:[#allocation3 + $0xd8] sm:$0xff] %vm1772, %v1767
      %1801 = vst.msk [vmem:[#allocation3 + $0xe0] sm:$0xff] %vm1772, %v1768
      %1802 = vst.msk [vmem:[#allocation3 + $0xe8] sm:$0xff] %vm1772, %v1769
      %1803 = vst.msk [vmem:[#allocation3 + $0xf0] sm:$0xff] %vm1772, %v1770
      %1804 = vst.msk [vmem:[#allocation3 + $0xf8] sm:$0xff] %vm1772, %v1771
      %v1805 = vld [vmem:[#allocation4] sm:$0xff]
      %v1806 = vld [vmem:[#allocation4 + $0x8] sm:$0xff]
      %v1807 = vld [vmem:[#allocation4 + $0x10] sm:$0xff]
      %v1808 = vld [vmem:[#allocation4 + $0x18] sm:$0xff]
      %v1809 = vld [vmem:[#allocation4 + $0x20] sm:$0xff]
      %v1810 = vld [vmem:[#allocation4 + $0x28] sm:$0xff]
      %v1811 = vld [vmem:[#allocation4 + $0x30] sm:$0xff]
      %v1812 = vld [vmem:[#allocation4 + $0x38] sm:$0xff]
      %v1813 = vld [vmem:[#allocation4 + $0x40] sm:$0xff]
      %v1814 = vld [vmem:[#allocation4 + $0x48] sm:$0xff]
      %v1815 = vld [vmem:[#allocation4 + $0x50] sm:$0xff]
      %v1816 = vld [vmem:[#allocation4 + $0x58] sm:$0xff]
      %v1817 = vld [vmem:[#allocation4 + $0x60] sm:$0xff]
      %v1818 = vld [vmem:[#allocation4 + $0x68] sm:$0xff]
      %v1819 = vld [vmem:[#allocation4 + $0x70] sm:$0xff]
      %v1820 = vld [vmem:[#allocation4 + $0x78] sm:$0xff]
      %v1821 = vld [vmem:[#allocation4 + $0x80] sm:$0xff]
      %v1822 = vld [vmem:[#allocation4 + $0x88] sm:$0xff]
      %v1823 = vld [vmem:[#allocation4 + $0x90] sm:$0xff]
      %v1824 = vld [vmem:[#allocation4 + $0x98] sm:$0xff]
      %v1825 = vld [vmem:[#allocation4 + $0xa0] sm:$0xff]
      %v1826 = vld [vmem:[#allocation4 + $0xa8] sm:$0xff]
      %v1827 = vld [vmem:[#allocation4 + $0xb0] sm:$0xff]
      %v1828 = vld [vmem:[#allocation4 + $0xb8] sm:$0xff]
      %v1829 = vld [vmem:[#allocation4 + $0xc0] sm:$0xff]
      %v1830 = vld [vmem:[#allocation4 + $0xc8] sm:$0xff]
      %v1831 = vld [vmem:[#allocation4 + $0xd0] sm:$0xff]
      %v1832 = vld [vmem:[#allocation4 + $0xd8] sm:$0xff]
      %v1833 = vld [vmem:[#allocation4 + $0xe0] sm:$0xff]
      %v1834 = vld [vmem:[#allocation4 + $0xe8] sm:$0xff]
      %v1835 = vld [vmem:[#allocation4 + $0xf0] sm:$0xff]
      %v1836 = vld [vmem:[#allocation4 + $0xf8] sm:$0xff]
      %1838 = vset.pattern.permute.xlu0 0
      %1839 = vperm.xlu0 %1838, %v1165
      %v1840 = vpop.permute.xlu0 %1839
      %1843 = vset.pattern.permute.xlu0 0
      %1844 = vperm.xlu0 %1843, %v1167
      %v1845 = vpop.permute.xlu0 %1844
      %1848 = vset.pattern.permute.xlu0 0
      %1849 = vperm.xlu0 %1848, %v1169
      %v1850 = vpop.permute.xlu0 %1849
      %1853 = vset.pattern.permute.xlu0 0
      %1854 = vperm.xlu0 %1853, %v1171
      %v1855 = vpop.permute.xlu0 %1854
      %1858 = vset.pattern.permute.xlu0 0
      %1859 = vperm.xlu0 %1858, %v1173
      %v1860 = vpop.permute.xlu0 %1859
      %1863 = vset.pattern.permute.xlu0 0
      %1864 = vperm.xlu0 %1863, %v1175
      %v1865 = vpop.permute.xlu0 %1864
      %1868 = vset.pattern.permute.xlu0 0
      %1869 = vperm.xlu0 %1868, %v1177
      %v1870 = vpop.permute.xlu0 %1869
      %1873 = vset.pattern.permute.xlu0 0
      %1874 = vperm.xlu0 %1873, %v1179
      %v1875 = vpop.permute.xlu0 %1874
      %1878 = vset.pattern.permute.xlu0 0
      %1879 = vperm.xlu0 %1878, %v1181
      %v1880 = vpop.permute.xlu0 %1879
      %1883 = vset.pattern.permute.xlu0 0
      %1884 = vperm.xlu0 %1883, %v1183
      %v1885 = vpop.permute.xlu0 %1884
      %1888 = vset.pattern.permute.xlu0 0
      %1889 = vperm.xlu0 %1888, %v1185
      %v1890 = vpop.permute.xlu0 %1889
      %1893 = vset.pattern.permute.xlu0 0
      %1894 = vperm.xlu0 %1893, %v1187
      %v1895 = vpop.permute.xlu0 %1894
      %1898 = vset.pattern.permute.xlu0 0
      %1899 = vperm.xlu0 %1898, %v1189
      %v1900 = vpop.permute.xlu0 %1899
      %1903 = vset.pattern.permute.xlu0 0
      %1904 = vperm.xlu0 %1903, %v1191
      %v1905 = vpop.permute.xlu0 %1904
      %1908 = vset.pattern.permute.xlu0 0
      %1909 = vperm.xlu0 %1908, %v1193
      %v1910 = vpop.permute.xlu0 %1909
      %1913 = vset.pattern.permute.xlu0 0
      %1914 = vperm.xlu0 %1913, %v1195
      %v1915 = vpop.permute.xlu0 %1914
      %1918 = vset.pattern.permute.xlu0 0
      %1919 = vperm.xlu0 %1918, %v1197
      %v1920 = vpop.permute.xlu0 %1919
      %1923 = vset.pattern.permute.xlu0 0
      %1924 = vperm.xlu0 %1923, %v1199
      %v1925 = vpop.permute.xlu0 %1924
      %1928 = vset.pattern.permute.xlu0 0
      %1929 = vperm.xlu0 %1928, %v1201
      %v1930 = vpop.permute.xlu0 %1929
      %1933 = vset.pattern.permute.xlu0 0
      %1934 = vperm.xlu0 %1933, %v1203
      %v1935 = vpop.permute.xlu0 %1934
      %1938 = vset.pattern.permute.xlu0 0
      %1939 = vperm.xlu0 %1938, %v1205
      %v1940 = vpop.permute.xlu0 %1939
      %1943 = vset.pattern.permute.xlu0 0
      %1944 = vperm.xlu0 %1943, %v1207
      %v1945 = vpop.permute.xlu0 %1944
      %1948 = vset.pattern.permute.xlu0 0
      %1949 = vperm.xlu0 %1948, %v1209
      %v1950 = vpop.permute.xlu0 %1949
      %1953 = vset.pattern.permute.xlu0 0
      %1954 = vperm.xlu0 %1953, %v1211
      %v1955 = vpop.permute.xlu0 %1954
      %1958 = vset.pattern.permute.xlu0 0
      %1959 = vperm.xlu0 %1958, %v1213
      %v1960 = vpop.permute.xlu0 %1959
      %1963 = vset.pattern.permute.xlu0 0
      %1964 = vperm.xlu0 %1963, %v1215
      %v1965 = vpop.permute.xlu0 %1964
      %1968 = vset.pattern.permute.xlu0 0
      %1969 = vperm.xlu0 %1968, %v1217
      %v1970 = vpop.permute.xlu0 %1969
      %1973 = vset.pattern.permute.xlu0 0
      %1974 = vperm.xlu0 %1973, %v1219
      %v1975 = vpop.permute.xlu0 %1974
      %1978 = vset.pattern.permute.xlu0 0
      %1979 = vperm.xlu0 %1978, %v1221
      %v1980 = vpop.permute.xlu0 %1979
      %1983 = vset.pattern.permute.xlu0 0
      %1984 = vperm.xlu0 %1983, %v1223
      %v1985 = vpop.permute.xlu0 %1984
      %1988 = vset.pattern.permute.xlu0 0
      %1989 = vperm.xlu0 %1988, %v1225
      %v1990 = vpop.permute.xlu0 %1989
      %1993 = vset.pattern.permute.xlu0 0
      %1994 = vperm.xlu0 %1993, %v1227
      %v1995 = vpop.permute.xlu0 %1994
      %v1997 = vmul.f32 %v1840, %v1805
      %v1998 = vmul.f32 %v1845, %v1806
      %v1999 = vmul.f32 %v1850, %v1807
      %v2000 = vmul.f32 %v1855, %v1808
      %v2001 = vmul.f32 %v1860, %v1809
      %v2002 = vmul.f32 %v1865, %v1810
      %v2003 = vmul.f32 %v1870, %v1811
      %v2004 = vmul.f32 %v1875, %v1812
      %v2005 = vmul.f32 %v1880, %v1813
      %v2006 = vmul.f32 %v1885, %v1814
      %v2007 = vmul.f32 %v1890, %v1815
      %v2008 = vmul.f32 %v1895, %v1816
      %v2009 = vmul.f32 %v1900, %v1817
      %v2010 = vmul.f32 %v1905, %v1818
      %v2011 = vmul.f32 %v1910, %v1819
      %v2012 = vmul.f32 %v1915, %v1820
      %v2013 = vmul.f32 %v1920, %v1821
      %v2014 = vmul.f32 %v1925, %v1822
      %v2015 = vmul.f32 %v1930, %v1823
      %v2016 = vmul.f32 %v1935, %v1824
      %v2017 = vmul.f32 %v1940, %v1825
      %v2018 = vmul.f32 %v1945, %v1826
      %v2019 = vmul.f32 %v1950, %v1827
      %v2020 = vmul.f32 %v1955, %v1828
      %v2021 = vmul.f32 %v1960, %v1829
      %v2022 = vmul.f32 %v1965, %v1830
      %v2023 = vmul.f32 %v1970, %v1831
      %v2024 = vmul.f32 %v1975, %v1832
      %v2025 = vmul.f32 %v1980, %v1833
      %v2026 = vmul.f32 %v1985, %v1834
      %v2027 = vmul.f32 %v1990, %v1835
      %v2028 = vmul.f32 %v1995, %v1836
      %v2029 = vpack.c.bf16 %v1457, %v1453
      %v2030 = vpack.c.bf16 %v1459, %v1455
      %v2031 = vpack.c.bf16 %v1465, %v1461
      %v2032 = vpack.c.bf16 %v1467, %v1463
      %v2033 = vpack.c.bf16 %v1473, %v1469
      %v2034 = vpack.c.bf16 %v1475, %v1471
      %v2035 = vpack.c.bf16 %v1481, %v1477
      %v2036 = vpack.c.bf16 %v1483, %v1479
      %v2037 = vpack.c.bf16 %v1489, %v1485
      %v2038 = vpack.c.bf16 %v1491, %v1487
      %v2039 = vpack.c.bf16 %v1497, %v1493
      %v2040 = vpack.c.bf16 %v1499, %v1495
      %v2041 = vpack.c.bf16 %v1505, %v1501
      %v2042 = vpack.c.bf16 %v1507, %v1503
      %v2043 = vpack.c.bf16 %v1513, %v1509
      %v2044 = vpack.c.bf16 %v1515, %v1511
      %v2045 = vpack.c.bf16 %v1521, %v1517
      %v2046 = vpack.c.bf16 %v1523, %v1519
      %v2047 = vpack.c.bf16 %v1529, %v1525
      %v2048 = vpack.c.bf16 %v1531, %v1527
      %v2049 = vpack.c.bf16 %v1537, %v1533
      %v2050 = vpack.c.bf16 %v1539, %v1535
      %v2051 = vpack.c.bf16 %v1545, %v1541
      %v2052 = vpack.c.bf16 %v1547, %v1543
      %v2053 = vpack.c.bf16 %v1553, %v1549
      %v2054 = vpack.c.bf16 %v1555, %v1551
      %v2055 = vpack.c.bf16 %v1561, %v1557
      %v2056 = vpack.c.bf16 %v1563, %v1559
      %v2057 = vpack.c.bf16 %v1569, %v1565
      %v2058 = vpack.c.bf16 %v1571, %v1567
      %v2059 = vpack.c.bf16 %v1577, %v1573
      %v2060 = vpack.c.bf16 %v1579, %v1575
      %v2061 = vld [vmem:[%s385] sm:$0xf]
      %v2062 = vld [vmem:[%s385 + $0x4] sm:$0xf]
      %v2063 = vld [vmem:[%s385 + $0x8] sm:$0xf]
      %v2064 = vld [vmem:[%s385 + $0xc] sm:$0xf]
      %v2065 = vld [vmem:[%s385 + $0x10] sm:$0xf]
      %v2066 = vld [vmem:[%s385 + $0x14] sm:$0xf]
      %v2067 = vld [vmem:[%s385 + $0x18] sm:$0xf]
      %v2068 = vld [vmem:[%s385 + $0x1c] sm:$0xf]
      %v2069 = vld [vmem:[%s385 + $0x20] sm:$0xf]
      %v2070 = vld [vmem:[%s385 + $0x24] sm:$0xf]
      %v2071 = vld [vmem:[%s385 + $0x28] sm:$0xf]
      %v2072 = vld [vmem:[%s385 + $0x2c] sm:$0xf]
      %v2073 = vld [vmem:[%s385 + $0x30] sm:$0xf]
      %v2074 = vld [vmem:[%s385 + $0x34] sm:$0xf]
      %v2075 = vld [vmem:[%s385 + $0x38] sm:$0xf]
      %v2076 = vld [vmem:[%s385 + $0x3c] sm:$0xf]
      %v2077 = vld [vmem:[%s385 + $0x40] sm:$0xf]
      %v2078 = vld [vmem:[%s385 + $0x44] sm:$0xf]
      %v2079 = vld [vmem:[%s385 + $0x48] sm:$0xf]
      %v2080 = vld [vmem:[%s385 + $0x4c] sm:$0xf]
      %v2081 = vld [vmem:[%s385 + $0x50] sm:$0xf]
      %v2082 = vld [vmem:[%s385 + $0x54] sm:$0xf]
      %v2083 = vld [vmem:[%s385 + $0x58] sm:$0xf]
      %v2084 = vld [vmem:[%s385 + $0x5c] sm:$0xf]
      %v2085 = vld [vmem:[%s385 + $0x60] sm:$0xf]
      %v2086 = vld [vmem:[%s385 + $0x64] sm:$0xf]
      %v2087 = vld [vmem:[%s385 + $0x68] sm:$0xf]
      %v2088 = vld [vmem:[%s385 + $0x6c] sm:$0xf]
      %v2089 = vld [vmem:[%s385 + $0x70] sm:$0xf]
      %v2090 = vld [vmem:[%s385 + $0x74] sm:$0xf]
      %v2091 = vld [vmem:[%s385 + $0x78] sm:$0xf]
      %v2092 = vld [vmem:[%s385 + $0x7c] sm:$0xf]
      %v2125 = vunpack.c.l.b16 %v2061
      %v2126 = vunpack.c.l.b16 %v2062
      %v2127 = vunpack.c.l.b16 %v2063
      %v2128 = vunpack.c.l.b16 %v2064
      %v2129 = vunpack.c.l.b16 %v2065
      %v2130 = vunpack.c.l.b16 %v2066
      %v2131 = vunpack.c.l.b16 %v2067
      %v2132 = vunpack.c.l.b16 %v2068
      %v2133 = vunpack.c.l.b16 %v2069
      %v2134 = vunpack.c.l.b16 %v2070
      %v2135 = vunpack.c.l.b16 %v2071
      %v2136 = vunpack.c.l.b16 %v2072
      %v2137 = vunpack.c.l.b16 %v2073
      %v2138 = vunpack.c.l.b16 %v2074
      %v2139 = vunpack.c.l.b16 %v2075
      %v2140 = vunpack.c.l.b16 %v2076
      %v2141 = vunpack.c.l.b16 %v2077
      %v2142 = vunpack.c.l.b16 %v2078
      %v2143 = vunpack.c.l.b16 %v2079
      %v2144 = vunpack.c.l.b16 %v2080
      %v2145 = vunpack.c.l.b16 %v2081
      %v2146 = vunpack.c.l.b16 %v2082
      %v2147 = vunpack.c.l.b16 %v2083
      %v2148 = vunpack.c.l.b16 %v2084
      %v2149 = vunpack.c.l.b16 %v2085
      %v2150 = vunpack.c.l.b16 %v2086
      %v2151 = vunpack.c.l.b16 %v2087
      %v2152 = vunpack.c.l.b16 %v2088
      %v2153 = vunpack.c.l.b16 %v2089
      %v2154 = vunpack.c.l.b16 %v2090
      %v2155 = vunpack.c.l.b16 %v2091
      %v2156 = vunpack.c.l.b16 %v2092
      %v2157 = vpack.c.b16 %v2126, %v2125
      %v2158 = vpack.c.b16 %v2128, %v2127
      %v2159 = vpack.c.b16 %v2130, %v2129
      %v2160 = vpack.c.b16 %v2132, %v2131
      %v2161 = vpack.c.b16 %v2134, %v2133
      %v2162 = vpack.c.b16 %v2136, %v2135
      %v2163 = vpack.c.b16 %v2138, %v2137
      %v2164 = vpack.c.b16 %v2140, %v2139
      %v2165 = vpack.c.b16 %v2142, %v2141
      %v2166 = vpack.c.b16 %v2144, %v2143
      %v2167 = vpack.c.b16 %v2146, %v2145
      %v2168 = vpack.c.b16 %v2148, %v2147
      %v2169 = vpack.c.b16 %v2150, %v2149
      %v2170 = vpack.c.b16 %v2152, %v2151
      %v2171 = vpack.c.b16 %v2154, %v2153
      %v2172 = vpack.c.b16 %v2156, %v2155
      %2189 = vmatpush.bf16.msra.mxu0 %v2164
      %2190 = vmatpush.bf16.msra.mxu0 %v2163
      %2191 = vmatpush.bf16.msra.mxu0 %v2162
      %2192 = vmatpush.bf16.msra.mxu0 %v2161
      %2193 = vmatpush.bf16.msra.mxu0 %v2160
      %2194 = vmatpush.bf16.msra.mxu0 %v2159
      %2195 = vmatpush.bf16.msra.mxu0 %v2158
      %2196 = vmatpush.bf16.msra.mxu0 %v2157
      %2197 = vmatmul.bf16.gmra.mxu0 %v2029
      %v2198 = vpop.f32.mrf.mxu0
      %v2199 = vadd.f32 0.0, %v2198
      %v2200 = vpop.f32.mrf.mxu0
      %v2201 = vadd.f32 0.0, %v2200
      %2202 = vmatmul.bf16.gmra.mxu0 %v2031
      %v2203 = vpop.f32.mrf.mxu0
      %v2204 = vadd.f32 0.0, %v2203
      %v2205 = vpop.f32.mrf.mxu0
      %v2206 = vadd.f32 0.0, %v2205
      %2207 = vmatmul.bf16.gmra.mxu0 %v2033
      %v2208 = vpop.f32.mrf.mxu0
      %v2209 = vadd.f32 0.0, %v2208
      %v2210 = vpop.f32.mrf.mxu0
      %v2211 = vadd.f32 0.0, %v2210
      %2212 = vmatmul.bf16.gmra.mxu0 %v2035
      %v2213 = vpop.f32.mrf.mxu0
      %v2214 = vadd.f32 0.0, %v2213
      %v2215 = vpop.f32.mrf.mxu0
      %v2216 = vadd.f32 0.0, %v2215
      %2217 = vmatmul.bf16.gmra.mxu0 %v2037
      %v2218 = vpop.f32.mrf.mxu0
      %v2219 = vadd.f32 0.0, %v2218
      %v2220 = vpop.f32.mrf.mxu0
      %v2221 = vadd.f32 0.0, %v2220
      %2222 = vmatmul.bf16.gmra.mxu0 %v2039
      %v2223 = vpop.f32.mrf.mxu0
      %v2224 = vadd.f32 0.0, %v2223
      %v2225 = vpop.f32.mrf.mxu0
      %v2226 = vadd.f32 0.0, %v2225
      %2227 = vmatmul.bf16.gmra.mxu0 %v2041
      %v2228 = vpop.f32.mrf.mxu0
      %v2229 = vadd.f32 0.0, %v2228
      %v2230 = vpop.f32.mrf.mxu0
      %v2231 = vadd.f32 0.0, %v2230
      %2232 = vmatmul.bf16.gmra.mxu0 %v2043
      %v2233 = vpop.f32.mrf.mxu0
      %v2234 = vadd.f32 0.0, %v2233
      %v2235 = vpop.f32.mrf.mxu0
      %v2236 = vadd.f32 0.0, %v2235
      %2237 = vmatmul.bf16.gmra.mxu0 %v2045
      %v2238 = vpop.f32.mrf.mxu0
      %v2239 = vadd.f32 0.0, %v2238
      %v2240 = vpop.f32.mrf.mxu0
      %v2241 = vadd.f32 0.0, %v2240
      %2242 = vmatmul.bf16.gmra.mxu0 %v2047
      %v2243 = vpop.f32.mrf.mxu0
      %v2244 = vadd.f32 0.0, %v2243
      %v2245 = vpop.f32.mrf.mxu0
      %v2246 = vadd.f32 0.0, %v2245
      %2247 = vmatmul.bf16.gmra.mxu0 %v2049
      %v2248 = vpop.f32.mrf.mxu0
      %v2249 = vadd.f32 0.0, %v2248
      %v2250 = vpop.f32.mrf.mxu0
      %v2251 = vadd.f32 0.0, %v2250
      %2252 = vmatmul.bf16.gmra.mxu0 %v2051
      %v2253 = vpop.f32.mrf.mxu0
      %v2254 = vadd.f32 0.0, %v2253
      %v2255 = vpop.f32.mrf.mxu0
      %v2256 = vadd.f32 0.0, %v2255
      %2257 = vmatmul.bf16.gmra.mxu0 %v2053
      %v2258 = vpop.f32.mrf.mxu0
      %v2259 = vadd.f32 0.0, %v2258
      %v2260 = vpop.f32.mrf.mxu0
      %v2261 = vadd.f32 0.0, %v2260
      %2262 = vmatmul.bf16.gmra.mxu0 %v2055
      %v2263 = vpop.f32.mrf.mxu0
      %v2264 = vadd.f32 0.0, %v2263
      %v2265 = vpop.f32.mrf.mxu0
      %v2266 = vadd.f32 0.0, %v2265
      %2267 = vmatmul.bf16.gmra.mxu0 %v2057
      %v2268 = vpop.f32.mrf.mxu0
      %v2269 = vadd.f32 0.0, %v2268
      %v2270 = vpop.f32.mrf.mxu0
      %v2271 = vadd.f32 0.0, %v2270
      %2272 = vmatmul.bf16.gmra.mxu0 %v2059
      %v2273 = vpop.f32.mrf.mxu0
      %v2274 = vadd.f32 0.0, %v2273
      %v2275 = vpop.f32.mrf.mxu0
      %v2276 = vadd.f32 0.0, %v2275
      %2277 = vdwg.mxu0
      %2278 = vmatpush.bf16.msra.mxu0 %v2172
      %2279 = vmatpush.bf16.msra.mxu0 %v2171
      %2280 = vmatpush.bf16.msra.mxu0 %v2170
      %2281 = vmatpush.bf16.msra.mxu0 %v2169
      %2282 = vmatpush.bf16.msra.mxu0 %v2168
      %2283 = vmatpush.bf16.msra.mxu0 %v2167
      %2284 = vmatpush.bf16.msra.mxu0 %v2166
      %2285 = vmatpush.bf16.msra.mxu0 %v2165
      %2286 = vmatmul.bf16.gmra.mxu0 %v2030
      %v2287 = vpop.f32.mrf.mxu0
      %v2288 = vadd.f32 %v2199, %v2287
      %v2289 = vpop.f32.mrf.mxu0
      %v2290 = vadd.f32 %v2201, %v2289
      %2291 = vmatmul.bf16.gmra.mxu0 %v2032
      %v2292 = vpop.f32.mrf.mxu0
      %v2293 = vadd.f32 %v2204, %v2292
      %v2294 = vpop.f32.mrf.mxu0
      %v2295 = vadd.f32 %v2206, %v2294
      %2296 = vmatmul.bf16.gmra.mxu0 %v2034
      %v2297 = vpop.f32.mrf.mxu0
      %v2298 = vadd.f32 %v2209, %v2297
      %v2299 = vpop.f32.mrf.mxu0
      %v2300 = vadd.f32 %v2211, %v2299
      %2301 = vmatmul.bf16.gmra.mxu0 %v2036
      %v2302 = vpop.f32.mrf.mxu0
      %v2303 = vadd.f32 %v2214, %v2302
      %v2304 = vpop.f32.mrf.mxu0
      %v2305 = vadd.f32 %v2216, %v2304
      %2306 = vmatmul.bf16.gmra.mxu0 %v2038
      %v2307 = vpop.f32.mrf.mxu0
      %v2308 = vadd.f32 %v2219, %v2307
      %v2309 = vpop.f32.mrf.mxu0
      %v2310 = vadd.f32 %v2221, %v2309
      %2311 = vmatmul.bf16.gmra.mxu0 %v2040
      %v2312 = vpop.f32.mrf.mxu0
      %v2313 = vadd.f32 %v2224, %v2312
      %v2314 = vpop.f32.mrf.mxu0
      %v2315 = vadd.f32 %v2226, %v2314
      %2316 = vmatmul.bf16.gmra.mxu0 %v2042
      %v2317 = vpop.f32.mrf.mxu0
      %v2318 = vadd.f32 %v2229, %v2317
      %v2319 = vpop.f32.mrf.mxu0
      %v2320 = vadd.f32 %v2231, %v2319
      %2321 = vmatmul.bf16.gmra.mxu0 %v2044
      %v2322 = vpop.f32.mrf.mxu0
      %v2323 = vadd.f32 %v2234, %v2322
      %v2324 = vpop.f32.mrf.mxu0
      %v2325 = vadd.f32 %v2236, %v2324
      %2326 = vmatmul.bf16.gmra.mxu0 %v2046
      %v2327 = vpop.f32.mrf.mxu0
      %v2328 = vadd.f32 %v2239, %v2327
      %v2329 = vpop.f32.mrf.mxu0
      %v2330 = vadd.f32 %v2241, %v2329
      %2331 = vmatmul.bf16.gmra.mxu0 %v2048
      %v2332 = vpop.f32.mrf.mxu0
      %v2333 = vadd.f32 %v2244, %v2332
      %v2334 = vpop.f32.mrf.mxu0
      %v2335 = vadd.f32 %v2246, %v2334
      %2336 = vmatmul.bf16.gmra.mxu0 %v2050
      %v2337 = vpop.f32.mrf.mxu0
      %v2338 = vadd.f32 %v2249, %v2337
      %v2339 = vpop.f32.mrf.mxu0
      %v2340 = vadd.f32 %v2251, %v2339
      %2341 = vmatmul.bf16.gmra.mxu0 %v2052
      %v2342 = vpop.f32.mrf.mxu0
      %v2343 = vadd.f32 %v2254, %v2342
      %v2344 = vpop.f32.mrf.mxu0
      %v2345 = vadd.f32 %v2256, %v2344
      %2346 = vmatmul.bf16.gmra.mxu0 %v2054
      %v2347 = vpop.f32.mrf.mxu0
      %v2348 = vadd.f32 %v2259, %v2347
      %v2349 = vpop.f32.mrf.mxu0
      %v2350 = vadd.f32 %v2261, %v2349
      %2351 = vmatmul.bf16.gmra.mxu0 %v2056
      %v2352 = vpop.f32.mrf.mxu0
      %v2353 = vadd.f32 %v2264, %v2352
      %v2354 = vpop.f32.mrf.mxu0
      %v2355 = vadd.f32 %v2266, %v2354
      %2356 = vmatmul.bf16.gmra.mxu0 %v2058
      %v2357 = vpop.f32.mrf.mxu0
      %v2358 = vadd.f32 %v2269, %v2357
      %v2359 = vpop.f32.mrf.mxu0
      %v2360 = vadd.f32 %v2271, %v2359
      %2361 = vmatmul.bf16.gmra.mxu0 %v2060
      %v2362 = vpop.f32.mrf.mxu0
      %v2363 = vadd.f32 %v2274, %v2362
      %v2364 = vpop.f32.mrf.mxu0
      %v2365 = vadd.f32 %v2276, %v2364
      %2366 = vdwg.mxu0
      %v2367 = vadd.f32 %v1997, %v2288
      %v2368 = vadd.f32 %v1998, %v2290
      %v2369 = vadd.f32 %v1999, %v2293
      %v2370 = vadd.f32 %v2000, %v2295
      %v2371 = vadd.f32 %v2001, %v2298
      %v2372 = vadd.f32 %v2002, %v2300
      %v2373 = vadd.f32 %v2003, %v2303
      %v2374 = vadd.f32 %v2004, %v2305
      %v2375 = vadd.f32 %v2005, %v2308
      %v2376 = vadd.f32 %v2006, %v2310
      %v2377 = vadd.f32 %v2007, %v2313
      %v2378 = vadd.f32 %v2008, %v2315
      %v2379 = vadd.f32 %v2009, %v2318
      %v2380 = vadd.f32 %v2010, %v2320
      %v2381 = vadd.f32 %v2011, %v2323
      %v2382 = vadd.f32 %v2012, %v2325
      %v2383 = vadd.f32 %v2013, %v2328
      %v2384 = vadd.f32 %v2014, %v2330
      %v2385 = vadd.f32 %v2015, %v2333
      %v2386 = vadd.f32 %v2016, %v2335
      %v2387 = vadd.f32 %v2017, %v2338
      %v2388 = vadd.f32 %v2018, %v2340
      %v2389 = vadd.f32 %v2019, %v2343
      %v2390 = vadd.f32 %v2020, %v2345
      %v2391 = vadd.f32 %v2021, %v2348
      %v2392 = vadd.f32 %v2022, %v2350
      %v2393 = vadd.f32 %v2023, %v2353
      %v2394 = vadd.f32 %v2024, %v2355
      %v2395 = vadd.f32 %v2025, %v2358
      %v2396 = vadd.f32 %v2026, %v2360
      %v2397 = vadd.f32 %v2027, %v2363
      %v2398 = vadd.f32 %v2028, %v2365
      %2399 = vst [vmem:[#allocation4] sm:$0xff] %v2367
      %2400 = vst [vmem:[#allocation4 + $0x8] sm:$0xff] %v2368
      %2401 = vst [vmem:[#allocation4 + $0x10] sm:$0xff] %v2369
      %2402 = vst [vmem:[#allocation4 + $0x18] sm:$0xff] %v2370
      %2403 = vst [vmem:[#allocation4 + $0x20] sm:$0xff] %v2371
      %2404 = vst [vmem:[#allocation4 + $0x28] sm:$0xff] %v2372
      %2405 = vst [vmem:[#allocation4 + $0x30] sm:$0xff] %v2373
      %2406 = vst [vmem:[#allocation4 + $0x38] sm:$0xff] %v2374
      %2407 = vst [vmem:[#allocation4 + $0x40] sm:$0xff] %v2375
      %2408 = vst [vmem:[#allocation4 + $0x48] sm:$0xff] %v2376
      %2409 = vst [vmem:[#allocation4 + $0x50] sm:$0xff] %v2377
      %2410 = vst [vmem:[#allocation4 + $0x58] sm:$0xff] %v2378
      %2411 = vst [vmem:[#allocation4 + $0x60] sm:$0xff] %v2379
      %2412 = vst [vmem:[#allocation4 + $0x68] sm:$0xff] %v2380
      %2413 = vst [vmem:[#allocation4 + $0x70] sm:$0xff] %v2381
      %2414 = vst [vmem:[#allocation4 + $0x78] sm:$0xff] %v2382
      %2415 = vst [vmem:[#allocation4 + $0x80] sm:$0xff] %v2383
      %2416 = vst [vmem:[#allocation4 + $0x88] sm:$0xff] %v2384
      %2417 = vst [vmem:[#allocation4 + $0x90] sm:$0xff] %v2385
      %2418 = vst [vmem:[#allocation4 + $0x98] sm:$0xff] %v2386
      %2419 = vst [vmem:[#allocation4 + $0xa0] sm:$0xff] %v2387
      %2420 = vst [vmem:[#allocation4 + $0xa8] sm:$0xff] %v2388
      %2421 = vst [vmem:[#allocation4 + $0xb0] sm:$0xff] %v2389
      %2422 = vst [vmem:[#allocation4 + $0xb8] sm:$0xff] %v2390
      %2423 = vst [vmem:[#allocation4 + $0xc0] sm:$0xff] %v2391
      %2424 = vst [vmem:[#allocation4 + $0xc8] sm:$0xff] %v2392
      %2425 = vst [vmem:[#allocation4 + $0xd0] sm:$0xff] %v2393
      %2426 = vst [vmem:[#allocation4 + $0xd8] sm:$0xff] %v2394
      %2427 = vst [vmem:[#allocation4 + $0xe0] sm:$0xff] %v2395
      %2428 = vst [vmem:[#allocation4 + $0xe8] sm:$0xff] %v2396
      %2429 = vst [vmem:[#allocation4 + $0xf0] sm:$0xff] %v2397
      %2430 = vst [vmem:[#allocation4 + $0xf8] sm:$0xff] %v2398
      %2431 = vst.msk [vmem:[#allocation2] sm:$0xff] %vm1772, %v1100
      %2432 = vst.msk [vmem:[#allocation2 + $0x8] sm:$0xff] %vm1772, %v1101
      %2433 = vst.msk [vmem:[#allocation2 + $0x10] sm:$0xff] %vm1772, %v1102
      %2434 = vst.msk [vmem:[#allocation2 + $0x18] sm:$0xff] %vm1772, %v1103
      %2435 = vst.msk [vmem:[#allocation2 + $0x20] sm:$0xff] %vm1772, %v1104
      %2436 = vst.msk [vmem:[#allocation2 + $0x28] sm:$0xff] %vm1772, %v1105
      %2437 = vst.msk [vmem:[#allocation2 + $0x30] sm:$0xff] %vm1772, %v1106
      %2438 = vst.msk [vmem:[#allocation2 + $0x38] sm:$0xff] %vm1772, %v1107
      %2439 = vst.msk [vmem:[#allocation2 + $0x40] sm:$0xff] %vm1772, %v1108
      %2440 = vst.msk [vmem:[#allocation2 + $0x48] sm:$0xff] %vm1772, %v1109
      %2441 = vst.msk [vmem:[#allocation2 + $0x50] sm:$0xff] %vm1772, %v1110
      %2442 = vst.msk [vmem:[#allocation2 + $0x58] sm:$0xff] %vm1772, %v1111
      %2443 = vst.msk [vmem:[#allocation2 + $0x60] sm:$0xff] %vm1772, %v1112
      %2444 = vst.msk [vmem:[#allocation2 + $0x68] sm:$0xff] %vm1772, %v1113
      %2445 = vst.msk [vmem:[#allocation2 + $0x70] sm:$0xff] %vm1772, %v1114
      %2446 = vst.msk [vmem:[#allocation2 + $0x78] sm:$0xff] %vm1772, %v1115
      %2447 = vst.msk [vmem:[#allocation2 + $0x80] sm:$0xff] %vm1772, %v1116
      %2448 = vst.msk [vmem:[#allocation2 + $0x88] sm:$0xff] %vm1772, %v1117
      %2449 = vst.msk [vmem:[#allocation2 + $0x90] sm:$0xff] %vm1772, %v1118
      %2450 = vst.msk [vmem:[#allocation2 + $0x98] sm:$0xff] %vm1772, %v1119
      %2451 = vst.msk [vmem:[#allocation2 + $0xa0] sm:$0xff] %vm1772, %v1120
      %2452 = vst.msk [vmem:[#allocation2 + $0xa8] sm:$0xff] %vm1772, %v1121
      %2453 = vst.msk [vmem:[#allocation2 + $0xb0] sm:$0xff] %vm1772, %v1122
      %2454 = vst.msk [vmem:[#allocation2 + $0xb8] sm:$0xff] %vm1772, %v1123
      %2455 = vst.msk [vmem:[#allocation2 + $0xc0] sm:$0xff] %vm1772, %v1124
      %2456 = vst.msk [vmem:[#allocation2 + $0xc8] sm:$0xff] %vm1772, %v1125
      %2457 = vst.msk [vmem:[#allocation2 + $0xd0] sm:$0xff] %vm1772, %v1126
      %2458 = vst.msk [vmem:[#allocation2 + $0xd8] sm:$0xff] %vm1772, %v1127
      %2459 = vst.msk [vmem:[#allocation2 + $0xe0] sm:$0xff] %vm1772, %v1128
      %2460 = vst.msk [vmem:[#allocation2 + $0xe8] sm:$0xff] %vm1772, %v1129
      %2461 = vst.msk [vmem:[#allocation2 + $0xf0] sm:$0xff] %vm1772, %v1130
      %2462 = vst.msk [vmem:[#allocation2 + $0xf8] sm:$0xff] %vm1772, %v1131
      // Predicated region
      $region53: #{self_attention_block.5} parent=47 // pred_check
        %p2463 = pneg %p397
      $region54: #{self_attention_block.5} parent=47 // pred_check_branch
        %2465 = sbr.rel (%p2463) target = $region56
      $region55: #{self_attention_block.5} parent=47 // pred_region
        %v2466 = vld [vmem:[#allocation4] sm:$0xff]
        %v2467 = vld [vmem:[#allocation4 + $0x8] sm:$0xff]
        %v2468 = vld [vmem:[#allocation4 + $0x10] sm:$0xff]
        %v2469 = vld [vmem:[#allocation4 + $0x18] sm:$0xff]
        %v2470 = vld [vmem:[#allocation4 + $0x20] sm:$0xff]
        %v2471 = vld [vmem:[#allocation4 + $0x28] sm:$0xff]
        %v2472 = vld [vmem:[#allocation4 + $0x30] sm:$0xff]
        %v2473 = vld [vmem:[#allocation4 + $0x38] sm:$0xff]
        %v2474 = vld [vmem:[#allocation4 + $0x40] sm:$0xff]
        %v2475 = vld [vmem:[#allocation4 + $0x48] sm:$0xff]
        %v2476 = vld [vmem:[#allocation4 + $0x50] sm:$0xff]
        %v2477 = vld [vmem:[#allocation4 + $0x58] sm:$0xff]
        %v2478 = vld [vmem:[#allocation4 + $0x60] sm:$0xff]
        %v2479 = vld [vmem:[#allocation4 + $0x68] sm:$0xff]
        %v2480 = vld [vmem:[#allocation4 + $0x70] sm:$0xff]
        %v2481 = vld [vmem:[#allocation4 + $0x78] sm:$0xff]
        %v2482 = vld [vmem:[#allocation4 + $0x80] sm:$0xff]
        %v2483 = vld [vmem:[#allocation4 + $0x88] sm:$0xff]
        %v2484 = vld [vmem:[#allocation4 + $0x90] sm:$0xff]
        %v2485 = vld [vmem:[#allocation4 + $0x98] sm:$0xff]
        %v2486 = vld [vmem:[#allocation4 + $0xa0] sm:$0xff]
        %v2487 = vld [vmem:[#allocation4 + $0xa8] sm:$0xff]
        %v2488 = vld [vmem:[#allocation4 + $0xb0] sm:$0xff]
        %v2489 = vld [vmem:[#allocation4 + $0xb8] sm:$0xff]
        %v2490 = vld [vmem:[#allocation4 + $0xc0] sm:$0xff]
        %v2491 = vld [vmem:[#allocation4 + $0xc8] sm:$0xff]
        %v2492 = vld [vmem:[#allocation4 + $0xd0] sm:$0xff]
        %v2493 = vld [vmem:[#allocation4 + $0xd8] sm:$0xff]
        %v2494 = vld [vmem:[#allocation4 + $0xe0] sm:$0xff]
        %v2495 = vld [vmem:[#allocation4 + $0xe8] sm:$0xff]
        %v2496 = vld [vmem:[#allocation4 + $0xf0] sm:$0xff]
        %v2497 = vld [vmem:[#allocation4 + $0xf8] sm:$0xff]
        %v2498 = vld [vmem:[#allocation3] sm:$0xff]
        %v2499 = vld [vmem:[#allocation3 + $0x8] sm:$0xff]
        %v2500 = vld [vmem:[#allocation3 + $0x10] sm:$0xff]
        %v2501 = vld [vmem:[#allocation3 + $0x18] sm:$0xff]
        %v2502 = vld [vmem:[#allocation3 + $0x20] sm:$0xff]
        %v2503 = vld [vmem:[#allocation3 + $0x28] sm:$0xff]
        %v2504 = vld [vmem:[#allocation3 + $0x30] sm:$0xff]
        %v2505 = vld [vmem:[#allocation3 + $0x38] sm:$0xff]
        %v2506 = vld [vmem:[#allocation3 + $0x40] sm:$0xff]
        %v2507 = vld [vmem:[#allocation3 + $0x48] sm:$0xff]
        %v2508 = vld [vmem:[#allocation3 + $0x50] sm:$0xff]
        %v2509 = vld [vmem:[#allocation3 + $0x58] sm:$0xff]
        %v2510 = vld [vmem:[#allocation3 + $0x60] sm:$0xff]
        %v2511 = vld [vmem:[#allocation3 + $0x68] sm:$0xff]
        %v2512 = vld [vmem:[#allocation3 + $0x70] sm:$0xff]
        %v2513 = vld [vmem:[#allocation3 + $0x78] sm:$0xff]
        %v2514 = vld [vmem:[#allocation3 + $0x80] sm:$0xff]
        %v2515 = vld [vmem:[#allocation3 + $0x88] sm:$0xff]
        %v2516 = vld [vmem:[#allocation3 + $0x90] sm:$0xff]
        %v2517 = vld [vmem:[#allocation3 + $0x98] sm:$0xff]
        %v2518 = vld [vmem:[#allocation3 + $0xa0] sm:$0xff]
        %v2519 = vld [vmem:[#allocation3 + $0xa8] sm:$0xff]
        %v2520 = vld [vmem:[#allocation3 + $0xb0] sm:$0xff]
        %v2521 = vld [vmem:[#allocation3 + $0xb8] sm:$0xff]
        %v2522 = vld [vmem:[#allocation3 + $0xc0] sm:$0xff]
        %v2523 = vld [vmem:[#allocation3 + $0xc8] sm:$0xff]
        %v2524 = vld [vmem:[#allocation3 + $0xd0] sm:$0xff]
        %v2525 = vld [vmem:[#allocation3 + $0xd8] sm:$0xff]
        %v2526 = vld [vmem:[#allocation3 + $0xe0] sm:$0xff]
        %v2527 = vld [vmem:[#allocation3 + $0xe8] sm:$0xff]
        %v2528 = vld [vmem:[#allocation3 + $0xf0] sm:$0xff]
        %v2529 = vld [vmem:[#allocation3 + $0xf8] sm:$0xff]
        %v2530 = vrcp.pop %v2498
        %v2531 = vrcp.pop %v2499
        %v2532 = vrcp.pop %v2500
        %v2533 = vrcp.pop %v2501
        %v2534 = vrcp.pop %v2502
        %v2535 = vrcp.pop %v2503
        %v2536 = vrcp.pop %v2504
        %v2537 = vrcp.pop %v2505
        %v2538 = vrcp.pop %v2506
        %v2539 = vrcp.pop %v2507
        %v2540 = vrcp.pop %v2508
        %v2541 = vrcp.pop %v2509
        %v2542 = vrcp.pop %v2510
        %v2543 = vrcp.pop %v2511
        %v2544 = vrcp.pop %v2512
        %v2545 = vrcp.pop %v2513
        %v2546 = vrcp.pop %v2514
        %v2547 = vrcp.pop %v2515
        %v2548 = vrcp.pop %v2516
        %v2549 = vrcp.pop %v2517
        %v2550 = vrcp.pop %v2518
        %v2551 = vrcp.pop %v2519
        %v2552 = vrcp.pop %v2520
        %v2553 = vrcp.pop %v2521
        %v2554 = vrcp.pop %v2522
        %v2555 = vrcp.pop %v2523
        %v2556 = vrcp.pop %v2524
        %v2557 = vrcp.pop %v2525
        %v2558 = vrcp.pop %v2526
        %v2559 = vrcp.pop %v2527
        %v2560 = vrcp.pop %v2528
        %v2561 = vrcp.pop %v2529
        %2563 = vset.pattern.permute.xlu0 0
        %2564 = vperm.xlu0 %2563, %v2530
        %v2565 = vpop.permute.xlu0 %2564
        %2568 = vset.pattern.permute.xlu0 0
        %2569 = vperm.xlu0 %2568, %v2531
        %v2570 = vpop.permute.xlu0 %2569
        %2573 = vset.pattern.permute.xlu0 0
        %2574 = vperm.xlu0 %2573, %v2532
        %v2575 = vpop.permute.xlu0 %2574
        %2578 = vset.pattern.permute.xlu0 0
        %2579 = vperm.xlu0 %2578, %v2533
        %v2580 = vpop.permute.xlu0 %2579
        %2583 = vset.pattern.permute.xlu0 0
        %2584 = vperm.xlu0 %2583, %v2534
        %v2585 = vpop.permute.xlu0 %2584
        %2588 = vset.pattern.permute.xlu0 0
        %2589 = vperm.xlu0 %2588, %v2535
        %v2590 = vpop.permute.xlu0 %2589
        %2593 = vset.pattern.permute.xlu0 0
        %2594 = vperm.xlu0 %2593, %v2536
        %v2595 = vpop.permute.xlu0 %2594
        %2598 = vset.pattern.permute.xlu0 0
        %2599 = vperm.xlu0 %2598, %v2537
        %v2600 = vpop.permute.xlu0 %2599
        %2603 = vset.pattern.permute.xlu0 0
        %2604 = vperm.xlu0 %2603, %v2538
        %v2605 = vpop.permute.xlu0 %2604
        %2608 = vset.pattern.permute.xlu0 0
        %2609 = vperm.xlu0 %2608, %v2539
        %v2610 = vpop.permute.xlu0 %2609
        %2613 = vset.pattern.permute.xlu0 0
        %2614 = vperm.xlu0 %2613, %v2540
        %v2615 = vpop.permute.xlu0 %2614
        %2618 = vset.pattern.permute.xlu0 0
        %2619 = vperm.xlu0 %2618, %v2541
        %v2620 = vpop.permute.xlu0 %2619
        %2623 = vset.pattern.permute.xlu0 0
        %2624 = vperm.xlu0 %2623, %v2542
        %v2625 = vpop.permute.xlu0 %2624
        %2628 = vset.pattern.permute.xlu0 0
        %2629 = vperm.xlu0 %2628, %v2543
        %v2630 = vpop.permute.xlu0 %2629
        %2633 = vset.pattern.permute.xlu0 0
        %2634 = vperm.xlu0 %2633, %v2544
        %v2635 = vpop.permute.xlu0 %2634
        %2638 = vset.pattern.permute.xlu0 0
        %2639 = vperm.xlu0 %2638, %v2545
        %v2640 = vpop.permute.xlu0 %2639
        %2643 = vset.pattern.permute.xlu0 0
        %2644 = vperm.xlu0 %2643, %v2546
        %v2645 = vpop.permute.xlu0 %2644
        %2648 = vset.pattern.permute.xlu0 0
        %2649 = vperm.xlu0 %2648, %v2547
        %v2650 = vpop.permute.xlu0 %2649
        %2653 = vset.pattern.permute.xlu0 0
        %2654 = vperm.xlu0 %2653, %v2548
        %v2655 = vpop.permute.xlu0 %2654
        %2658 = vset.pattern.permute.xlu0 0
        %2659 = vperm.xlu0 %2658, %v2549
        %v2660 = vpop.permute.xlu0 %2659
        %2663 = vset.pattern.permute.xlu0 0
        %2664 = vperm.xlu0 %2663, %v2550
        %v2665 = vpop.permute.xlu0 %2664
        %2668 = vset.pattern.permute.xlu0 0
        %2669 = vperm.xlu0 %2668, %v2551
        %v2670 = vpop.permute.xlu0 %2669
        %2673 = vset.pattern.permute.xlu0 0
        %2674 = vperm.xlu0 %2673, %v2552
        %v2675 = vpop.permute.xlu0 %2674
        %2678 = vset.pattern.permute.xlu0 0
        %2679 = vperm.xlu0 %2678, %v2553
        %v2680 = vpop.permute.xlu0 %2679
        %2683 = vset.pattern.permute.xlu0 0
        %2684 = vperm.xlu0 %2683, %v2554
        %v2685 = vpop.permute.xlu0 %2684
        %2688 = vset.pattern.permute.xlu0 0
        %2689 = vperm.xlu0 %2688, %v2555
        %v2690 = vpop.permute.xlu0 %2689
        %2693 = vset.pattern.permute.xlu0 0
        %2694 = vperm.xlu0 %2693, %v2556
        %v2695 = vpop.permute.xlu0 %2694
        %2698 = vset.pattern.permute.xlu0 0
        %2699 = vperm.xlu0 %2698, %v2557
        %v2700 = vpop.permute.xlu0 %2699
        %2703 = vset.pattern.permute.xlu0 0
        %2704 = vperm.xlu0 %2703, %v2558
        %v2705 = vpop.permute.xlu0 %2704
        %2708 = vset.pattern.permute.xlu0 0
        %2709 = vperm.xlu0 %2708, %v2559
        %v2710 = vpop.permute.xlu0 %2709
        %2713 = vset.pattern.permute.xlu0 0
        %2714 = vperm.xlu0 %2713, %v2560
        %v2715 = vpop.permute.xlu0 %2714
        %2718 = vset.pattern.permute.xlu0 0
        %2719 = vperm.xlu0 %2718, %v2561
        %v2720 = vpop.permute.xlu0 %2719
        %v2722 = vmul.f32 %v2466, %v2565
        %v2723 = vmul.f32 %v2467, %v2570
        %v2724 = vmul.f32 %v2468, %v2575
        %v2725 = vmul.f32 %v2469, %v2580
        %v2726 = vmul.f32 %v2470, %v2585
        %v2727 = vmul.f32 %v2471, %v2590
        %v2728 = vmul.f32 %v2472, %v2595
        %v2729 = vmul.f32 %v2473, %v2600
        %v2730 = vmul.f32 %v2474, %v2605
        %v2731 = vmul.f32 %v2475, %v2610
        %v2732 = vmul.f32 %v2476, %v2615
        %v2733 = vmul.f32 %v2477, %v2620
        %v2734 = vmul.f32 %v2478, %v2625
        %v2735 = vmul.f32 %v2479, %v2630
        %v2736 = vmul.f32 %v2480, %v2635
        %v2737 = vmul.f32 %v2481, %v2640
        %v2738 = vmul.f32 %v2482, %v2645
        %v2739 = vmul.f32 %v2483, %v2650
        %v2740 = vmul.f32 %v2484, %v2655
        %v2741 = vmul.f32 %v2485, %v2660
        %v2742 = vmul.f32 %v2486, %v2665
        %v2743 = vmul.f32 %v2487, %v2670
        %v2744 = vmul.f32 %v2488, %v2675
        %v2745 = vmul.f32 %v2489, %v2680
        %v2746 = vmul.f32 %v2490, %v2685
        %v2747 = vmul.f32 %v2491, %v2690
        %v2748 = vmul.f32 %v2492, %v2695
        %v2749 = vmul.f32 %v2493, %v2700
        %v2750 = vmul.f32 %v2494, %v2705
        %v2751 = vmul.f32 %v2495, %v2710
        %v2752 = vmul.f32 %v2496, %v2715
        %v2753 = vmul.f32 %v2497, %v2720
        %v2754 = vld [vmem:[%s5] sm:$0xff]
        %v2755 = vld [vmem:[%s5 + $0x8] sm:$0xff]
        %v2756 = vld [vmem:[%s5 + $0x10] sm:$0xff]
        %v2757 = vld [vmem:[%s5 + $0x18] sm:$0xff]
        %v2758 = vld [vmem:[%s5 + $0x20] sm:$0xff]
        %v2759 = vld [vmem:[%s5 + $0x28] sm:$0xff]
        %v2760 = vld [vmem:[%s5 + $0x30] sm:$0xff]
        %v2761 = vld [vmem:[%s5 + $0x38] sm:$0xff]
        %v2762 = vld [vmem:[%s5 + $0x40] sm:$0xff]
        %v2763 = vld [vmem:[%s5 + $0x48] sm:$0xff]
        %v2764 = vld [vmem:[%s5 + $0x50] sm:$0xff]
        %v2765 = vld [vmem:[%s5 + $0x58] sm:$0xff]
        %v2766 = vld [vmem:[%s5 + $0x60] sm:$0xff]
        %v2767 = vld [vmem:[%s5 + $0x68] sm:$0xff]
        %v2768 = vld [vmem:[%s5 + $0x70] sm:$0xff]
        %v2769 = vld [vmem:[%s5 + $0x78] sm:$0xff]
        %v2770 = vld [vmem:[%s6] sm:$0x1]
        %v2772 = vperm.slane %v2770, 0
        %2774 = vmatpush.msra.mxu0 %v2769
        %2775 = vmatpush.msra.mxu0 %v2768
        %2776 = vmatpush.msra.mxu0 %v2767
        %2777 = vmatpush.msra.mxu0 %v2766
        %2778 = vmatpush.msra.mxu0 %v2765
        %2779 = vmatpush.msra.mxu0 %v2764
        %2780 = vmatpush.msra.mxu0 %v2763
        %2781 = vmatpush.msra.mxu0 %v2762
        %2782 = vmatpush.msra.mxu0 %v2761
        %2783 = vmatpush.msra.mxu0 %v2760
        %2784 = vmatpush.msra.mxu0 %v2759
        %2785 = vmatpush.msra.mxu0 %v2758
        %2786 = vmatpush.msra.mxu0 %v2757
        %2787 = vmatpush.msra.mxu0 %v2756
        %2788 = vmatpush.msra.mxu0 %v2755
        %2789 = vmatpush.msra.mxu0 %v2754
        %2790 = vmatmul.f32.gmra.mxu0 %v2722
        %v2791 = vpop.f32.mrf.mxu0
        %v2792 = vadd.f32 %v2772, %v2791
        %2793 = vmatmul.f32.gmra.mxu0 %v2723
        %v2794 = vpop.f32.mrf.mxu0
        %v2795 = vadd.f32 %v2772, %v2794
        %2796 = vmatmul.f32.gmra.mxu0 %v2724
        %v2797 = vpop.f32.mrf.mxu0
        %v2798 = vadd.f32 %v2772, %v2797
        %2799 = vmatmul.f32.gmra.mxu0 %v2725
        %v2800 = vpop.f32.mrf.mxu0
        %v2801 = vadd.f32 %v2772, %v2800
        %2802 = vmatmul.f32.gmra.mxu0 %v2726
        %v2803 = vpop.f32.mrf.mxu0
        %v2804 = vadd.f32 %v2772, %v2803
        %2805 = vmatmul.f32.gmra.mxu0 %v2727
        %v2806 = vpop.f32.mrf.mxu0
        %v2807 = vadd.f32 %v2772, %v2806
        %2808 = vmatmul.f32.gmra.mxu0 %v2728
        %v2809 = vpop.f32.mrf.mxu0
        %v2810 = vadd.f32 %v2772, %v2809
        %2811 = vmatmul.f32.gmra.mxu0 %v2729
        %v2812 = vpop.f32.mrf.mxu0
        %v2813 = vadd.f32 %v2772, %v2812
        %2814 = vmatmul.f32.gmra.mxu0 %v2730
        %v2815 = vpop.f32.mrf.mxu0
        %v2816 = vadd.f32 %v2772, %v2815
        %2817 = vmatmul.f32.gmra.mxu0 %v2731
        %v2818 = vpop.f32.mrf.mxu0
        %v2819 = vadd.f32 %v2772, %v2818
        %2820 = vmatmul.f32.gmra.mxu0 %v2732
        %v2821 = vpop.f32.mrf.mxu0
        %v2822 = vadd.f32 %v2772, %v2821
        %2823 = vmatmul.f32.gmra.mxu0 %v2733
        %v2824 = vpop.f32.mrf.mxu0
        %v2825 = vadd.f32 %v2772, %v2824
        %2826 = vmatmul.f32.gmra.mxu0 %v2734
        %v2827 = vpop.f32.mrf.mxu0
        %v2828 = vadd.f32 %v2772, %v2827
        %2829 = vmatmul.f32.gmra.mxu0 %v2735
        %v2830 = vpop.f32.mrf.mxu0
        %v2831 = vadd.f32 %v2772, %v2830
        %2832 = vmatmul.f32.gmra.mxu0 %v2736
        %v2833 = vpop.f32.mrf.mxu0
        %v2834 = vadd.f32 %v2772, %v2833
        %2835 = vmatmul.f32.gmra.mxu0 %v2737
        %v2836 = vpop.f32.mrf.mxu0
        %v2837 = vadd.f32 %v2772, %v2836
        %2838 = vmatmul.f32.gmra.mxu0 %v2738
        %v2839 = vpop.f32.mrf.mxu0
        %v2840 = vadd.f32 %v2772, %v2839
        %2841 = vmatmul.f32.gmra.mxu0 %v2739
        %v2842 = vpop.f32.mrf.mxu0
        %v2843 = vadd.f32 %v2772, %v2842
        %2844 = vmatmul.f32.gmra.mxu0 %v2740
        %v2845 = vpop.f32.mrf.mxu0
        %v2846 = vadd.f32 %v2772, %v2845
        %2847 = vmatmul.f32.gmra.mxu0 %v2741
        %v2848 = vpop.f32.mrf.mxu0
        %v2849 = vadd.f32 %v2772, %v2848
        %2850 = vmatmul.f32.gmra.mxu0 %v2742
        %v2851 = vpop.f32.mrf.mxu0
        %v2852 = vadd.f32 %v2772, %v2851
        %2853 = vmatmul.f32.gmra.mxu0 %v2743
        %v2854 = vpop.f32.mrf.mxu0
        %v2855 = vadd.f32 %v2772, %v2854
        %2856 = vmatmul.f32.gmra.mxu0 %v2744
        %v2857 = vpop.f32.mrf.mxu0
        %v2858 = vadd.f32 %v2772, %v2857
        %2859 = vmatmul.f32.gmra.mxu0 %v2745
        %v2860 = vpop.f32.mrf.mxu0
        %v2861 = vadd.f32 %v2772, %v2860
        %2862 = vmatmul.f32.gmra.mxu0 %v2746
        %v2863 = vpop.f32.mrf.mxu0
        %v2864 = vadd.f32 %v2772, %v2863
        %2865 = vmatmul.f32.gmra.mxu0 %v2747
        %v2866 = vpop.f32.mrf.mxu0
        %v2867 = vadd.f32 %v2772, %v2866
        %2868 = vmatmul.f32.gmra.mxu0 %v2748
        %v2869 = vpop.f32.mrf.mxu0
        %v2870 = vadd.f32 %v2772, %v2869
        %2871 = vmatmul.f32.gmra.mxu0 %v2749
        %v2872 = vpop.f32.mrf.mxu0
        %v2873 = vadd.f32 %v2772, %v2872
        %2874 = vmatmul.f32.gmra.mxu0 %v2750
        %v2875 = vpop.f32.mrf.mxu0
        %v2876 = vadd.f32 %v2772, %v2875
        %2877 = vmatmul.f32.gmra.mxu0 %v2751
        %v2878 = vpop.f32.mrf.mxu0
        %v2879 = vadd.f32 %v2772, %v2878
        %2880 = vmatmul.f32.gmra.mxu0 %v2752
        %v2881 = vpop.f32.mrf.mxu0
        %v2882 = vadd.f32 %v2772, %v2881
        %2883 = vmatmul.f32.gmra.mxu0 %v2753
        %v2884 = vpop.f32.mrf.mxu0
        %v2885 = vadd.f32 %v2772, %v2884
        %2886 = vdwg.mxu0
        %2887 = vst [vmem:[%s395] sm:$0xff] %v2792
        %2888 = vst [vmem:[%s395 + $0x8] sm:$0xff] %v2795
        %2889 = vst [vmem:[%s395 + $0x10] sm:$0xff] %v2798
        %2890 = vst [vmem:[%s395 + $0x18] sm:$0xff] %v2801
        %2891 = vst [vmem:[%s395 + $0x20] sm:$0xff] %v2804
        %2892 = vst [vmem:[%s395 + $0x28] sm:$0xff] %v2807
        %2893 = vst [vmem:[%s395 + $0x30] sm:$0xff] %v2810
        %2894 = vst [vmem:[%s395 + $0x38] sm:$0xff] %v2813
        %2895 = vst [vmem:[%s395 + $0x40] sm:$0xff] %v2816
        %2896 = vst [vmem:[%s395 + $0x48] sm:$0xff] %v2819
        %2897 = vst [vmem:[%s395 + $0x50] sm:$0xff] %v2822
        %2898 = vst [vmem:[%s395 + $0x58] sm:$0xff] %v2825
        %2899 = vst [vmem:[%s395 + $0x60] sm:$0xff] %v2828
        %2900 = vst [vmem:[%s395 + $0x68] sm:$0xff] %v2831
        %2901 = vst [vmem:[%s395 + $0x70] sm:$0xff] %v2834
        %2902 = vst [vmem:[%s395 + $0x78] sm:$0xff] %v2837
        %2903 = vst [vmem:[%s395 + $0x80] sm:$0xff] %v2840
        %2904 = vst [vmem:[%s395 + $0x88] sm:$0xff] %v2843
        %2905 = vst [vmem:[%s395 + $0x90] sm:$0xff] %v2846
        %2906 = vst [vmem:[%s395 + $0x98] sm:$0xff] %v2849
        %2907 = vst [vmem:[%s395 + $0xa0] sm:$0xff] %v2852
        %2908 = vst [vmem:[%s395 + $0xa8] sm:$0xff] %v2855
        %2909 = vst [vmem:[%s395 + $0xb0] sm:$0xff] %v2858
        %2910 = vst [vmem:[%s395 + $0xb8] sm:$0xff] %v2861
        %2911 = vst [vmem:[%s395 + $0xc0] sm:$0xff] %v2864
        %2912 = vst [vmem:[%s395 + $0xc8] sm:$0xff] %v2867
        %2913 = vst [vmem:[%s395 + $0xd0] sm:$0xff] %v2870
        %2914 = vst [vmem:[%s395 + $0xd8] sm:$0xff] %v2873
        %2915 = vst [vmem:[%s395 + $0xe0] sm:$0xff] %v2876
        %2916 = vst [vmem:[%s395 + $0xe8] sm:$0xff] %v2879
        %2917 = vst [vmem:[%s395 + $0xf0] sm:$0xff] %v2882
        %2918 = vst [vmem:[%s395 + $0xf8] sm:$0xff] %v2885
      $region56: #{self_attention_block.5} parent=47 // pred_fallthru
        _
      %s2919 = smul.u32 32, %s24
      %p2920 = scmp.lt.s32.totalorder %s23, 1
      %s2921 = scalar_select %p2920, %s23, 1
      %p2922 = scmp.lt.s32.totalorder %s2919, 31
      %s2923 = scalar_select %p2922, %s2919, 31
      %s2924 = smul.addr %s2921, 32
      %s2925 = sadd.s32 %s2923, %s2924
      %s2926 = smul.addr %s2925, 8
      %s2927 = scalar_lea.vmem %s7, %s2926
      // Predicated region
      $region57: #{self_attention_block.5} parent=47 // pred_check
        %p2928 = pneg %p225
      $region58: #{self_attention_block.5} parent=47 // pred_check_branch
        %2930 = sbr.rel (%p2928) target = $region60
      $region59: #{self_attention_block.5} parent=47 // pred_region
        %s2931 = smul.u32 32, %s24
      $region60: #{self_attention_block.5} parent=47 // pred_fallthru
        _
    $region48: #{self_attention_block.5} parent=5 // pred_fallthru
      _
    %p2932 = scmp.le.s32.totalorder 2, %s13
    // Predicated region
    $region61: #{self_attention_block.5} parent=5 // pred_check
      %p2933 = pneg %p2932
    $region62: #{self_attention_block.5} parent=5 // pred_check_branch
      %2935 = sbr.rel (%p2933) target = $region64
    $region63: #{self_attention_block.5} parent=5 // pred_region
      %s2936 = ssub.s32 %s13, 2
      // Predicated region
      $region65: #{self_attention_block.5} parent=63 // pred_check
        %p2937 = pneg %p231
      $region66: #{self_attention_block.5} parent=63 // pred_check_branch
        %2939 = sbr.rel (%p2937) target = $region68
      $region67: #{self_attention_block.5} parent=63 // pred_region
        %s2940 = smul.u32 32, %s27
        %p2941 = scmp.lt.s32.totalorder %s26, 1
        %s2942 = scalar_select %p2941, %s26, 1
        %p2943 = scmp.lt.s32.totalorder %s2940, 31
        %s2944 = scalar_select %p2943, %s2940, 31
        %s2945 = smul.addr %s2942, 32
        %s2946 = sadd.s32 %s2944, %s2945
        %s2947 = smul.addr %s2946, 8
        %s2948 = scalar_lea.vmem %s7, %s2947
      $region68: #{self_attention_block.5} parent=63 // pred_fallthru
        _
    $region64: #{self_attention_block.5} parent=5 // pred_fallthru
      _
  $region6: #{self_attention_block.5} parent=0 // loop_footer
    %s17 = sadd.s32 1, %s13
  $region7: #{self_attention_block.5} parent=0 // loop_footer_branch
    %12 = sbr.rel target = $region3
  $region8: #{self_attention_block.5} parent=0 // loop_exit
    _

// kernel: self_attention_block.4
$region0: #{self_attention_block.4}
  #allocation0 [shape = 'u32[]', space=smem, size = 0x4, offset = 0x4, fixed_abs, tag = 'smem constant byte address 0x4 - core index']
  #allocation1 [shape = 'u32[72,128]{1,0:T(1,128)}', space=vmem, size = 0x9000, scoped, tag = 'internal scratch']
  %s0 = inlined_call_operand.vmem [shape: f32[2,290,8], index: 0, kind: input, shape index: {}]
  %s1 = inlined_call_operand.vmem [shape: f32[9,8,128], index: 1, kind: input, shape index: {}]
  %s2 = inlined_call_operand.vmem [shape: f32[1,128], index: 2, kind: input, shape index: {}]
  %s3 = inlined_call_operand.vmem [shape: f32[9,256,1], index: 3, kind: input, shape index: {}]
  %s4 = inlined_call_operand.vmem [shape: bf16[2,256,128], index: 4, kind: output, shape index: {}]
  %s5 = sld [smem:[#allocation0]]
  $region49: #{self_attention_block.4} parent=0
    _
  %s7 = ssub.s32 1, %s5
  %s8 = scalar_select 0, %s7, %s5
  loop: start=0, step=1, limit=4
  $region2: #{self_attention_block.4} parent=0 // loop_pre_header
    _
  $region3: #{self_attention_block.4} parent=0 // loop_header
    %s10 = sphi 0, %s14
    %p11 = scmp.ge.s32.totalorder %s10, 4
    %s20 = sphi 0, %s22
    %s23 = sphi 0, %s20
    %s24 = sphi 0, %s23
    %s40 = sphi 0, %s24
    %s44 = sphi 0, %s44
    %s46 = sphi 0, %s44
    %s47 = sphi 0, %s46
    %s61 = sphi 0, %s47
    %s65 = sphi 0, %s65
    %s67 = sphi 0, %s65
    %s68 = sphi 0, %s67
    %s82 = sphi 0, %s68
    %s86 = sphi 0, %s86
    %s88 = sphi 0, %s86
    %s89 = sphi 0, %s88
    %s103 = sphi 0, %s89
    %s109 = sphi 0, %s111
    %s112 = sphi 0, %s109
    %s113 = sphi 0, %s112
    %s129 = sphi 0, %s113
  $region4: #{self_attention_block.4} parent=0 // loop_header_branch
    %13 = sbr.rel (%p11) target = $region8
  $region5: #{self_attention_block.4} parent=0 // loop_body
    %s15 = ssub.s32 %s10, 1
    %s16 = ssub.s32 %s10, 2
    %s17 = sadd.s32 %s10, 1
    %s18 = ssub.s32 %s10, %s17
    %p19 = scmp.eq.s32.totalorder %s18, 0
    %s21 = sadd.s32 %s20, 1
    %s22 = scalar_select %p19, %s20, %s21
    %p25 = pneg %p19
    %p26 = scmp.eq.s32.totalorder %s10, 1
    %p27 = por %p25, %p26
    %p28 = scmp.ne.s32.totalorder %s20, %s23
    %p29 = scmp.eq.s32.totalorder %s10, 0
    %p30 = por %p28, %p29
    %p31 = scmp.ne.s32.totalorder %s20, %s23
    %p32 = scmp.eq.s32.totalorder %s15, 1
    %p33 = por %p31, %p32
    %p34 = scmp.ne.s32.totalorder %s23, %s24
    %p35 = scmp.eq.s32.totalorder %s15, 0
    %p36 = por %p34, %p35
    %p37 = scmp.ne.s32.totalorder %s23, %s24
    %p38 = scmp.eq.s32.totalorder %s16, 1
    %p39 = por %p37, %p38
    %p41 = scmp.ne.s32.totalorder %s24, %s40
    %p42 = scmp.eq.s32.totalorder %s16, 0
    %p43 = por %p41, %p42
    %s45 = sadd.s32 %s44, 1
    %p48 = scmp.eq.s32.totalorder %s10, 1
    %p49 = scmp.ne.s32.totalorder %s44, %s46
    %p50 = scmp.eq.s32.totalorder %s10, 0
    %p51 = por %p49, %p50
    %p52 = scmp.ne.s32.totalorder %s44, %s46
    %p53 = scmp.eq.s32.totalorder %s15, 1
    %p54 = por %p52, %p53
    %p55 = scmp.ne.s32.totalorder %s46, %s47
    %p56 = scmp.eq.s32.totalorder %s15, 0
    %p57 = por %p55, %p56
    %p58 = scmp.ne.s32.totalorder %s46, %s47
    %p59 = scmp.eq.s32.totalorder %s16, 1
    %p60 = por %p58, %p59
    %p62 = scmp.ne.s32.totalorder %s47, %s61
    %p63 = scmp.eq.s32.totalorder %s16, 0
    %p64 = por %p62, %p63
    %s66 = sadd.s32 %s65, 1
    %p69 = scmp.eq.s32.totalorder %s10, 1
    %p70 = scmp.ne.s32.totalorder %s65, %s67
    %p71 = scmp.eq.s32.totalorder %s10, 0
    %p72 = por %p70, %p71
    %p73 = scmp.ne.s32.totalorder %s65, %s67
    %p74 = scmp.eq.s32.totalorder %s15, 1
    %p75 = por %p73, %p74
    %p76 = scmp.ne.s32.totalorder %s67, %s68
    %p77 = scmp.eq.s32.totalorder %s15, 0
    %p78 = por %p76, %p77
    %p79 = scmp.ne.s32.totalorder %s67, %s68
    %p80 = scmp.eq.s32.totalorder %s16, 1
    %p81 = por %p79, %p80
    %p83 = scmp.ne.s32.totalorder %s68, %s82
    %p84 = scmp.eq.s32.totalorder %s16, 0
    %p85 = por %p83, %p84
    %s87 = sadd.s32 %s86, 1
    %p90 = scmp.eq.s32.totalorder %s10, 1
    %p91 = scmp.ne.s32.totalorder %s86, %s88
    %p92 = scmp.eq.s32.totalorder %s10, 0
    %p93 = por %p91, %p92
    %p94 = scmp.ne.s32.totalorder %s86, %s88
    %p95 = scmp.eq.s32.totalorder %s15, 1
    %p96 = por %p94, %p95
    %p97 = scmp.ne.s32.totalorder %s88, %s89
    %p98 = scmp.eq.s32.totalorder %s15, 0
    %p99 = por %p97, %p98
    %p100 = scmp.ne.s32.totalorder %s88, %s89
    %p101 = scmp.eq.s32.totalorder %s16, 1
    %p102 = por %p100, %p101
    %p104 = scmp.ne.s32.totalorder %s89, %s103
    %p105 = scmp.eq.s32.totalorder %s16, 0
    %p106 = por %p104, %p105
    %s107 = ssub.s32 %s10, %s17
    %p108 = scmp.eq.s32.totalorder %s107, 0
    %s110 = sadd.s32 %s109, 1
    %s111 = scalar_select %p108, %s109, %s110
    %p114 = pneg %p108
    %p115 = scmp.eq.s32.totalorder %s10, 1
    %p116 = por %p114, %p115
    %p117 = scmp.ne.s32.totalorder %s109, %s112
    %p118 = scmp.eq.s32.totalorder %s10, 0
    %p119 = por %p117, %p118
    %p120 = scmp.ne.s32.totalorder %s109, %s112
    %p121 = scmp.eq.s32.totalorder %s15, 1
    %p122 = por %p120, %p121
    %p123 = scmp.ne.s32.totalorder %s112, %s113
    %p124 = scmp.eq.s32.totalorder %s15, 0
    %p125 = por %p123, %p124
    %p126 = scmp.ne.s32.totalorder %s112, %s113
    %p127 = scmp.eq.s32.totalorder %s16, 1
    %p128 = por %p126, %p127
    %p130 = scmp.ne.s32.totalorder %s113, %s129
    %p131 = scmp.eq.s32.totalorder %s16, 0
    %p132 = por %p130, %p131
    %p133 = scmp.le.s32.totalorder 1, %s10
    %p134 = scmp.lt.s32.totalorder %s10, 3
    %p135 = pnand %p133, %p134
    %p136 = pneg %p135
    // Predicated region
    $region9: #{self_attention_block.4} parent=5 // pred_check
      _
    $region10: #{self_attention_block.4} parent=5 // pred_check_branch
      %138 = sbr.rel (%p135) target = $region12
    $region11: #{self_attention_block.4} parent=5 // pred_region
      %s139 = ssub.s32 %s10, 1
      // Predicated region
      $region13: #{self_attention_block.4} parent=11 // pred_check
        %p140 = pneg %p57
      $region14: #{self_attention_block.4} parent=11 // pred_check_branch
        %142 = sbr.rel (%p140) target = $region16
      $region15: #{self_attention_block.4} parent=11 // pred_region
        _
      $region16: #{self_attention_block.4} parent=11 // pred_fallthru
        _
      // Predicated region
      $region17: #{self_attention_block.4} parent=11 // pred_check
        %p143 = pneg %p78
      $region18: #{self_attention_block.4} parent=11 // pred_check_branch
        %145 = sbr.rel (%p143) target = $region20
      $region19: #{self_attention_block.4} parent=11 // pred_region
        _
      $region20: #{self_attention_block.4} parent=11 // pred_fallthru
        _
      // Predicated region
      $region21: #{self_attention_block.4} parent=11 // pred_check
        %p146 = pneg %p99
      $region22: #{self_attention_block.4} parent=11 // pred_check_branch
        %148 = sbr.rel (%p146) target = $region24
      $region23: #{self_attention_block.4} parent=11 // pred_region
        _
      $region24: #{self_attention_block.4} parent=11 // pred_fallthru
        _
    $region12: #{self_attention_block.4} parent=5 // pred_fallthru
      _
    %p149 = scmp.lt.s32.totalorder %s10, 2
    // Predicated region
    $region25: #{self_attention_block.4} parent=5 // pred_check
      %p150 = pneg %p149
    $region26: #{self_attention_block.4} parent=5 // pred_check_branch
      %152 = sbr.rel (%p150) target = $region28
    $region27: #{self_attention_block.4} parent=5 // pred_region
      // Predicated region
      $region29: #{self_attention_block.4} parent=27 // pred_check
        %p153 = pneg %p30
      $region30: #{self_attention_block.4} parent=27 // pred_check_branch
        %155 = sbr.rel (%p153) target = $region32
      $region31: #{self_attention_block.4} parent=27 // pred_region
        %p156 = scmp.lt.s32.totalorder %s10, 1
        %s157 = scalar_select %p156, %s10, 1
        %s158 = smul.addr %s157, 37
        %s159 = smul.addr %s158, 8
        %s160 = scalar_lea.vmem %s0, %s159
      $region32: #{self_attention_block.4} parent=27 // pred_fallthru
        _
    $region28: #{self_attention_block.4} parent=5 // pred_fallthru
      _
    %p161 = scmp.le.s32.totalorder 1, %s10
    %p162 = scmp.lt.s32.totalorder %s10, 3
    %p163 = pnand %p161, %p162
    %p164 = pneg %p163
    // Predicated region
    $region33: #{self_attention_block.4} parent=5 // pred_check
      _
    $region34: #{self_attention_block.4} parent=5 // pred_check_branch
      %166 = sbr.rel (%p163) target = $region36
    $region35: #{self_attention_block.4} parent=5 // pred_region
      %s167 = ssub.s32 %s10, 1
      %p168 = scmp.lt.s32.totalorder %s15, 1
      %s169 = scalar_select %p168, %s15, 1
      %s170 = smul.addr %s169, 37
      %s171 = smul.addr %s170, 8
      %s172 = scalar_lea.vmem %s0, %s171
      %p173 = pneg %p36
      %p174 = pneg %p33
      %p175 = pneg %p57
      %p176 = pneg %p54
      %p177 = pneg %p78
      %p178 = pneg %p75
      %p179 = pneg %p99
      %p180 = pneg %p96
      %p181 = pneg %p125
      %p182 = pneg %p122
      %p183 = scmp.lt.s32.totalorder %s15, 1
      %s184 = scalar_select %p183, %s15, 1
      %s185 = smul.addr %s184, 32
      %s186 = smul.addr %s185, 4
      %s187 = scalar_lea.vmem %s4, %s186
      %p188 = scmp.lt.s32.totalorder %s15, 1
      %s189 = scalar_select %p188, %s15, 1
      %s190 = smul.addr %s189, 37
      %s191 = smul.addr %s190, 8
      %s192 = scalar_lea.vmem %s0, %s191
      %p193 = scmp.lt.s32.totalorder %s15, 1
      %s194 = scalar_select %p193, %s15, 1
      %s195 = smul.addr %s194, 32
      %s196 = smul.addr %s195, 4
      %s197 = scalar_lea.vmem %s4, %s196
      %v199 = vld [vmem:[%s2] sm:$0x1]
      %v201 = vperm.slane %v199, 0
      %v203 = vadd.f32 %v201, 0.0
      %v204 = vld [vmem:[%s192] sm:$0xff]
      %v205 = vld [vmem:[%s192 + $0x8] sm:$0xff]
      %v206 = vld [vmem:[%s192 + $0x10] sm:$0xff]
      %v207 = vld [vmem:[%s192 + $0x18] sm:$0xff]
      %v208 = vld [vmem:[%s192 + $0x20] sm:$0xff]
      %v209 = vld [vmem:[%s192 + $0x28] sm:$0xff]
      %v210 = vld [vmem:[%s192 + $0x30] sm:$0xff]
      %v211 = vld [vmem:[%s192 + $0x38] sm:$0xff]
      %v212 = vld [vmem:[%s192 + $0x40] sm:$0xff]
      %v213 = vld [vmem:[%s192 + $0x48] sm:$0xff]
      %v214 = vld [vmem:[%s192 + $0x50] sm:$0xff]
      %v215 = vld [vmem:[%s192 + $0x58] sm:$0xff]
      %v216 = vld [vmem:[%s192 + $0x60] sm:$0xff]
      %v217 = vld [vmem:[%s192 + $0x68] sm:$0xff]
      %v218 = vld [vmem:[%s192 + $0x70] sm:$0xff]
      %v219 = vld [vmem:[%s192 + $0x78] sm:$0xff]
      %v220 = vld [vmem:[%s192 + $0x80] sm:$0xff]
      %v221 = vld [vmem:[%s192 + $0x88] sm:$0xff]
      %v222 = vld [vmem:[%s192 + $0x90] sm:$0xff]
      %v223 = vld [vmem:[%s192 + $0x98] sm:$0xff]
      %v224 = vld [vmem:[%s192 + $0xa0] sm:$0xff]
      %v225 = vld [vmem:[%s192 + $0xa8] sm:$0xff]
      %v226 = vld [vmem:[%s192 + $0xb0] sm:$0xff]
      %v227 = vld [vmem:[%s192 + $0xb8] sm:$0xff]
      %v228 = vld [vmem:[%s192 + $0xc0] sm:$0xff]
      %v229 = vld [vmem:[%s192 + $0xc8] sm:$0xff]
      %v230 = vld [vmem:[%s192 + $0xd0] sm:$0xff]
      %v231 = vld [vmem:[%s192 + $0xd8] sm:$0xff]
      %v232 = vld [vmem:[%s192 + $0xe0] sm:$0xff]
      %v233 = vld [vmem:[%s192 + $0xe8] sm:$0xff]
      %v234 = vld [vmem:[%s192 + $0xf0] sm:$0xff]
      %v235 = vld [vmem:[%s192 + $0xf8] sm:$0xff]
      %v236 = vld [vmem:[%s3] sm:$0xff]
      %v237 = vld [vmem:[%s3 + $0x8] sm:$0xff]
      %v238 = vld [vmem:[%s3 + $0x10] sm:$0xff]
      %v239 = vld [vmem:[%s3 + $0x18] sm:$0xff]
      %v240 = vld [vmem:[%s3 + $0x20] sm:$0xff]
      %v241 = vld [vmem:[%s3 + $0x28] sm:$0xff]
      %v242 = vld [vmem:[%s3 + $0x30] sm:$0xff]
      %v243 = vld [vmem:[%s3 + $0x38] sm:$0xff]
      %v244 = vld [vmem:[%s3 + $0x40] sm:$0xff]
      %v245 = vld [vmem:[%s3 + $0x48] sm:$0xff]
      %v246 = vld [vmem:[%s3 + $0x50] sm:$0xff]
      %v247 = vld [vmem:[%s3 + $0x58] sm:$0xff]
      %v248 = vld [vmem:[%s3 + $0x60] sm:$0xff]
      %v249 = vld [vmem:[%s3 + $0x68] sm:$0xff]
      %v250 = vld [vmem:[%s3 + $0x70] sm:$0xff]
      %v251 = vld [vmem:[%s3 + $0x78] sm:$0xff]
      %v252 = vld [vmem:[%s3 + $0x80] sm:$0xff]
      %v253 = vld [vmem:[%s3 + $0x88] sm:$0xff]
      %v254 = vld [vmem:[%s3 + $0x90] sm:$0xff]
      %v255 = vld [vmem:[%s3 + $0x98] sm:$0xff]
      %v256 = vld [vmem:[%s3 + $0xa0] sm:$0xff]
      %v257 = vld [vmem:[%s3 + $0xa8] sm:$0xff]
      %v258 = vld [vmem:[%s3 + $0xb0] sm:$0xff]
      %v259 = vld [vmem:[%s3 + $0xb8] sm:$0xff]
      %v260 = vld [vmem:[%s3 + $0xc0] sm:$0xff]
      %v261 = vld [vmem:[%s3 + $0xc8] sm:$0xff]
      %v262 = vld [vmem:[%s3 + $0xd0] sm:$0xff]
      %v263 = vld [vmem:[%s3 + $0xd8] sm:$0xff]
      %v264 = vld [vmem:[%s3 + $0xe0] sm:$0xff]
      %v265 = vld [vmem:[%s3 + $0xe8] sm:$0xff]
      %v266 = vld [vmem:[%s3 + $0xf0] sm:$0xff]
      %v267 = vld [vmem:[%s3 + $0xf8] sm:$0xff]
      %269 = vset.pattern.permute.xlu0 0
      %270 = vperm.xlu0 %269, %v236
      %v271 = vpop.permute.xlu0 %270
      %274 = vset.pattern.permute.xlu0 0
      %275 = vperm.xlu0 %274, %v237
      %v276 = vpop.permute.xlu0 %275
      %279 = vset.pattern.permute.xlu0 0
      %280 = vperm.xlu0 %279, %v238
      %v281 = vpop.permute.xlu0 %280
      %284 = vset.pattern.permute.xlu0 0
      %285 = vperm.xlu0 %284, %v239
      %v286 = vpop.permute.xlu0 %285
      %289 = vset.pattern.permute.xlu0 0
      %290 = vperm.xlu0 %289, %v240
      %v291 = vpop.permute.xlu0 %290
      %294 = vset.pattern.permute.xlu0 0
      %295 = vperm.xlu0 %294, %v241
      %v296 = vpop.permute.xlu0 %295
      %299 = vset.pattern.permute.xlu0 0
      %300 = vperm.xlu0 %299, %v242
      %v301 = vpop.permute.xlu0 %300
      %304 = vset.pattern.permute.xlu0 0
      %305 = vperm.xlu0 %304, %v243
      %v306 = vpop.permute.xlu0 %305
      %309 = vset.pattern.permute.xlu0 0
      %310 = vperm.xlu0 %309, %v244
      %v311 = vpop.permute.xlu0 %310
      %314 = vset.pattern.permute.xlu0 0
      %315 = vperm.xlu0 %314, %v245
      %v316 = vpop.permute.xlu0 %315
      %319 = vset.pattern.permute.xlu0 0
      %320 = vperm.xlu0 %319, %v246
      %v321 = vpop.permute.xlu0 %320
      %324 = vset.pattern.permute.xlu0 0
      %325 = vperm.xlu0 %324, %v247
      %v326 = vpop.permute.xlu0 %325
      %329 = vset.pattern.permute.xlu0 0
      %330 = vperm.xlu0 %329, %v248
      %v331 = vpop.permute.xlu0 %330
      %334 = vset.pattern.permute.xlu0 0
      %335 = vperm.xlu0 %334, %v249
      %v336 = vpop.permute.xlu0 %335
      %339 = vset.pattern.permute.xlu0 0
      %340 = vperm.xlu0 %339, %v250
      %v341 = vpop.permute.xlu0 %340
      %344 = vset.pattern.permute.xlu0 0
      %345 = vperm.xlu0 %344, %v251
      %v346 = vpop.permute.xlu0 %345
      %349 = vset.pattern.permute.xlu0 0
      %350 = vperm.xlu0 %349, %v252
      %v351 = vpop.permute.xlu0 %350
      %354 = vset.pattern.permute.xlu0 0
      %355 = vperm.xlu0 %354, %v253
      %v356 = vpop.permute.xlu0 %355
      %359 = vset.pattern.permute.xlu0 0
      %360 = vperm.xlu0 %359, %v254
      %v361 = vpop.permute.xlu0 %360
      %364 = vset.pattern.permute.xlu0 0
      %365 = vperm.xlu0 %364, %v255
      %v366 = vpop.permute.xlu0 %365
      %369 = vset.pattern.permute.xlu0 0
      %370 = vperm.xlu0 %369, %v256
      %v371 = vpop.permute.xlu0 %370
      %374 = vset.pattern.permute.xlu0 0
      %375 = vperm.xlu0 %374, %v257
      %v376 = vpop.permute.xlu0 %375
      %379 = vset.pattern.permute.xlu0 0
      %380 = vperm.xlu0 %379, %v258
      %v381 = vpop.permute.xlu0 %380
      %384 = vset.pattern.permute.xlu0 0
      %385 = vperm.xlu0 %384, %v259
      %v386 = vpop.permute.xlu0 %385
      %389 = vset.pattern.permute.xlu0 0
      %390 = vperm.xlu0 %389, %v260
      %v391 = vpop.permute.xlu0 %390
      %394 = vset.pattern.permute.xlu0 0
      %395 = vperm.xlu0 %394, %v261
      %v396 = vpop.permute.xlu0 %395
      %399 = vset.pattern.permute.xlu0 0
      %400 = vperm.xlu0 %399, %v262
      %v401 = vpop.permute.xlu0 %400
      %404 = vset.pattern.permute.xlu0 0
      %405 = vperm.xlu0 %404, %v263
      %v406 = vpop.permute.xlu0 %405
      %409 = vset.pattern.permute.xlu0 0
      %410 = vperm.xlu0 %409, %v264
      %v411 = vpop.permute.xlu0 %410
      %414 = vset.pattern.permute.xlu0 0
      %415 = vperm.xlu0 %414, %v265
      %v416 = vpop.permute.xlu0 %415
      %419 = vset.pattern.permute.xlu0 0
      %420 = vperm.xlu0 %419, %v266
      %v421 = vpop.permute.xlu0 %420
      %424 = vset.pattern.permute.xlu0 0
      %425 = vperm.xlu0 %424, %v267
      %v426 = vpop.permute.xlu0 %425
      %v428 = vmul.f32 %v204, %v271
      %v429 = vmul.f32 %v205, %v276
      %v430 = vmul.f32 %v206, %v281
      %v431 = vmul.f32 %v207, %v286
      %v432 = vmul.f32 %v208, %v291
      %v433 = vmul.f32 %v209, %v296
      %v434 = vmul.f32 %v210, %v301
      %v435 = vmul.f32 %v211, %v306
      %v436 = vmul.f32 %v212, %v311
      %v437 = vmul.f32 %v213, %v316
      %v438 = vmul.f32 %v214, %v321
      %v439 = vmul.f32 %v215, %v326
      %v440 = vmul.f32 %v216, %v331
      %v441 = vmul.f32 %v217, %v336
      %v442 = vmul.f32 %v218, %v341
      %v443 = vmul.f32 %v219, %v346
      %v444 = vmul.f32 %v220, %v351
      %v445 = vmul.f32 %v221, %v356
      %v446 = vmul.f32 %v222, %v361
      %v447 = vmul.f32 %v223, %v366
      %v448 = vmul.f32 %v224, %v371
      %v449 = vmul.f32 %v225, %v376
      %v450 = vmul.f32 %v226, %v381
      %v451 = vmul.f32 %v227, %v386
      %v452 = vmul.f32 %v228, %v391
      %v453 = vmul.f32 %v229, %v396
      %v454 = vmul.f32 %v230, %v401
      %v455 = vmul.f32 %v231, %v406
      %v456 = vmul.f32 %v232, %v411
      %v457 = vmul.f32 %v233, %v416
      %v458 = vmul.f32 %v234, %v421
      %v459 = vmul.f32 %v235, %v426
      %v460 = vpack.c.bf16 %v429, %v428
      %v461 = vpack.c.bf16 %v431, %v430
      %v462 = vpack.c.bf16 %v433, %v432
      %v463 = vpack.c.bf16 %v435, %v434
      %v464 = vpack.c.bf16 %v437, %v436
      %v465 = vpack.c.bf16 %v439, %v438
      %v466 = vpack.c.bf16 %v441, %v440
      %v467 = vpack.c.bf16 %v443, %v442
      %v468 = vpack.c.bf16 %v445, %v444
      %v469 = vpack.c.bf16 %v447, %v446
      %v470 = vpack.c.bf16 %v449, %v448
      %v471 = vpack.c.bf16 %v451, %v450
      %v472 = vpack.c.bf16 %v453, %v452
      %v473 = vpack.c.bf16 %v455, %v454
      %v474 = vpack.c.bf16 %v457, %v456
      %v475 = vpack.c.bf16 %v459, %v458
      %v476 = vld [vmem:[%s1] sm:$0xff]
      %v477 = vpack.c.bf16 %v476, %v476
      %vm478 = vcmask 64512
      %v480 = vsel %vm478, %v460, 0
      %v483 = vsel %vm478, %v461, 0
      %v486 = vsel %vm478, %v462, 0
      %v489 = vsel %vm478, %v463, 0
      %v492 = vsel %vm478, %v464, 0
      %v495 = vsel %vm478, %v465, 0
      %v498 = vsel %vm478, %v466, 0
      %v501 = vsel %vm478, %v467, 0
      %v504 = vsel %vm478, %v468, 0
      %v507 = vsel %vm478, %v469, 0
      %v510 = vsel %vm478, %v470, 0
      %v513 = vsel %vm478, %v471, 0
      %v516 = vsel %vm478, %v472, 0
      %v519 = vsel %vm478, %v473, 0
      %v522 = vsel %vm478, %v474, 0
      %v525 = vsel %vm478, %v475, 0
      %vm527 = vcmask 1043456
      %v529 = vsel %vm527, %v477, 0
      %531 = vmatpush.bf16.msra.mxu0 0
      %532 = vmatpush.bf16.msra.mxu0 0
      %533 = vmatpush.bf16.msra.mxu0 0
      %534 = vmatpush.bf16.msra.mxu0 0
      %535 = vmatpush.bf16.msra.mxu0 0
      %536 = vmatpush.bf16.msra.mxu0 0
      %537 = vmatpush.bf16.msra.mxu0 0
      %538 = vmatpush.bf16.msra.mxu0 %v529
      %539 = vmatmul.bf16.gmra.mxu0 %v480
      %v540 = vpop.f32.mrf.mxu0
      %v541 = vadd.f32 0.0, %v540
      %v542 = vpop.f32.mrf.mxu0
      %v543 = vadd.f32 0.0, %v542
      %544 = vmatmul.bf16.gmra.mxu0 %v483
      %v545 = vpop.f32.mrf.mxu0
      %v546 = vadd.f32 0.0, %v545
      %v547 = vpop.f32.mrf.mxu0
      %v548 = vadd.f32 0.0, %v547
      %549 = vmatmul.bf16.gmra.mxu0 %v486
      %v550 = vpop.f32.mrf.mxu0
      %v551 = vadd.f32 0.0, %v550
      %v552 = vpop.f32.mrf.mxu0
      %v553 = vadd.f32 0.0, %v552
      %554 = vmatmul.bf16.gmra.mxu0 %v489
      %v555 = vpop.f32.mrf.mxu0
      %v556 = vadd.f32 0.0, %v555
      %v557 = vpop.f32.mrf.mxu0
      %v558 = vadd.f32 0.0, %v557
      %559 = vmatmul.bf16.gmra.mxu0 %v492
      %v560 = vpop.f32.mrf.mxu0
      %v561 = vadd.f32 0.0, %v560
      %v562 = vpop.f32.mrf.mxu0
      %v563 = vadd.f32 0.0, %v562
      %564 = vmatmul.bf16.gmra.mxu0 %v495
      %v565 = vpop.f32.mrf.mxu0
      %v566 = vadd.f32 0.0, %v565
      %v567 = vpop.f32.mrf.mxu0
      %v568 = vadd.f32 0.0, %v567
      %569 = vmatmul.bf16.gmra.mxu0 %v498
      %v570 = vpop.f32.mrf.mxu0
      %v571 = vadd.f32 0.0, %v570
      %v572 = vpop.f32.mrf.mxu0
      %v573 = vadd.f32 0.0, %v572
      %574 = vmatmul.bf16.gmra.mxu0 %v501
      %v575 = vpop.f32.mrf.mxu0
      %v576 = vadd.f32 0.0, %v575
      %v577 = vpop.f32.mrf.mxu0
      %v578 = vadd.f32 0.0, %v577
      %579 = vmatmul.bf16.gmra.mxu0 %v504
      %v580 = vpop.f32.mrf.mxu0
      %v581 = vadd.f32 0.0, %v580
      %v582 = vpop.f32.mrf.mxu0
      %v583 = vadd.f32 0.0, %v582
      %584 = vmatmul.bf16.gmra.mxu0 %v507
      %v585 = vpop.f32.mrf.mxu0
      %v586 = vadd.f32 0.0, %v585
      %v587 = vpop.f32.mrf.mxu0
      %v588 = vadd.f32 0.0, %v587
      %589 = vmatmul.bf16.gmra.mxu0 %v510
      %v590 = vpop.f32.mrf.mxu0
      %v591 = vadd.f32 0.0, %v590
      %v592 = vpop.f32.mrf.mxu0
      %v593 = vadd.f32 0.0, %v592
      %594 = vmatmul.bf16.gmra.mxu0 %v513
      %v595 = vpop.f32.mrf.mxu0
      %v596 = vadd.f32 0.0, %v595
      %v597 = vpop.f32.mrf.mxu0
      %v598 = vadd.f32 0.0, %v597
      %599 = vmatmul.bf16.gmra.mxu0 %v516
      %v600 = vpop.f32.mrf.mxu0
      %v601 = vadd.f32 0.0, %v600
      %v602 = vpop.f32.mrf.mxu0
      %v603 = vadd.f32 0.0, %v602
      %604 = vmatmul.bf16.gmra.mxu0 %v519
      %v605 = vpop.f32.mrf.mxu0
      %v606 = vadd.f32 0.0, %v605
      %v607 = vpop.f32.mrf.mxu0
      %v608 = vadd.f32 0.0, %v607
      %609 = vmatmul.bf16.gmra.mxu0 %v522
      %v610 = vpop.f32.mrf.mxu0
      %v611 = vadd.f32 0.0, %v610
      %v612 = vpop.f32.mrf.mxu0
      %v613 = vadd.f32 0.0, %v612
      %614 = vmatmul.bf16.gmra.mxu0 %v525
      %v615 = vpop.f32.mrf.mxu0
      %v616 = vadd.f32 0.0, %v615
      %v617 = vpop.f32.mrf.mxu0
      %v618 = vadd.f32 0.0, %v617
      %619 = vdwg.mxu0
      %v620 = vadd.f32 %v203, %v541
      %v621 = vadd.f32 %v203, %v543
      %v622 = vadd.f32 %v203, %v546
      %v623 = vadd.f32 %v203, %v548
      %v624 = vadd.f32 %v203, %v551
      %v625 = vadd.f32 %v203, %v553
      %v626 = vadd.f32 %v203, %v556
      %v627 = vadd.f32 %v203, %v558
      %v628 = vadd.f32 %v203, %v561
      %v629 = vadd.f32 %v203, %v563
      %v630 = vadd.f32 %v203, %v566
      %v631 = vadd.f32 %v203, %v568
      %v632 = vadd.f32 %v203, %v571
      %v633 = vadd.f32 %v203, %v573
      %v634 = vadd.f32 %v203, %v576
      %v635 = vadd.f32 %v203, %v578
      %v636 = vadd.f32 %v203, %v581
      %v637 = vadd.f32 %v203, %v583
      %v638 = vadd.f32 %v203, %v586
      %v639 = vadd.f32 %v203, %v588
      %v640 = vadd.f32 %v203, %v591
      %v641 = vadd.f32 %v203, %v593
      %v642 = vadd.f32 %v203, %v596
      %v643 = vadd.f32 %v203, %v598
      %v644 = vadd.f32 %v203, %v601
      %v645 = vadd.f32 %v203, %v603
      %v646 = vadd.f32 %v203, %v606
      %v647 = vadd.f32 %v203, %v608
      %v648 = vadd.f32 %v203, %v611
      %v649 = vadd.f32 %v203, %v613
      %v650 = vadd.f32 %v203, %v616
      %v651 = vadd.f32 %v203, %v618
      %v652 = vld [vmem:[%s192 + $0x1] sm:$0xff]
      %v653 = vld [vmem:[%s192 + $0x9] sm:$0xff]
      %v654 = vld [vmem:[%s192 + $0x11] sm:$0xff]
      %v655 = vld [vmem:[%s192 + $0x19] sm:$0xff]
      %v656 = vld [vmem:[%s192 + $0x21] sm:$0xff]
      %v657 = vld [vmem:[%s192 + $0x29] sm:$0xff]
      %v658 = vld [vmem:[%s192 + $0x31] sm:$0xff]
      %v659 = vld [vmem:[%s192 + $0x39] sm:$0xff]
      %v660 = vld [vmem:[%s192 + $0x41] sm:$0xff]
      %v661 = vld [vmem:[%s192 + $0x49] sm:$0xff]
      %v662 = vld [vmem:[%s192 + $0x51] sm:$0xff]
      %v663 = vld [vmem:[%s192 + $0x59] sm:$0xff]
      %v664 = vld [vmem:[%s192 + $0x61] sm:$0xff]
      %v665 = vld [vmem:[%s192 + $0x69] sm:$0xff]
      %v666 = vld [vmem:[%s192 + $0x71] sm:$0xff]
      %v667 = vld [vmem:[%s192 + $0x79] sm:$0xff]
      %v668 = vld [vmem:[%s192 + $0x81] sm:$0xff]
      %v669 = vld [vmem:[%s192 + $0x89] sm:$0xff]
      %v670 = vld [vmem:[%s192 + $0x91] sm:$0xff]
      %v671 = vld [vmem:[%s192 + $0x99] sm:$0xff]
      %v672 = vld [vmem:[%s192 + $0xa1] sm:$0xff]
      %v673 = vld [vmem:[%s192 + $0xa9] sm:$0xff]
      %v674 = vld [vmem:[%s192 + $0xb1] sm:$0xff]
      %v675 = vld [vmem:[%s192 + $0xb9] sm:$0xff]
      %v676 = vld [vmem:[%s192 + $0xc1] sm:$0xff]
      %v677 = vld [vmem:[%s192 + $0xc9] sm:$0xff]
      %v678 = vld [vmem:[%s192 + $0xd1] sm:$0xff]
      %v679 = vld [vmem:[%s192 + $0xd9] sm:$0xff]
      %v680 = vld [vmem:[%s192 + $0xe1] sm:$0xff]
      %v681 = vld [vmem:[%s192 + $0xe9] sm:$0xff]
      %v682 = vld [vmem:[%s192 + $0xf1] sm:$0xff]
      %v683 = vld [vmem:[%s192 + $0xf9] sm:$0xff]
      %s684 = scalar_lea.vmem %s3, 256
      %v685 = vld [vmem:[%s684] sm:$0xff]
      %v686 = vld [vmem:[%s684 + $0x8] sm:$0xff]
      %v687 = vld [vmem:[%s684 + $0x10] sm:$0xff]
      %v688 = vld [vmem:[%s684 + $0x18] sm:$0xff]
      %v689 = vld [vmem:[%s684 + $0x20] sm:$0xff]
      %v690 = vld [vmem:[%s684 + $0x28] sm:$0xff]
      %v691 = vld [vmem:[%s684 + $0x30] sm:$0xff]
      %v692 = vld [vmem:[%s684 + $0x38] sm:$0xff]
      %v693 = vld [vmem:[%s684 + $0x40] sm:$0xff]
      %v694 = vld [vmem:[%s684 + $0x48] sm:$0xff]
      %v695 = vld [vmem:[%s684 + $0x50] sm:$0xff]
      %v696 = vld [vmem:[%s684 + $0x58] sm:$0xff]
      %v697 = vld [vmem:[%s684 + $0x60] sm:$0xff]
      %v698 = vld [vmem:[%s684 + $0x68] sm:$0xff]
      %v699 = vld [vmem:[%s684 + $0x70] sm:$0xff]
      %v700 = vld [vmem:[%s684 + $0x78] sm:$0xff]
      %v701 = vld [vmem:[%s684 + $0x80] sm:$0xff]
      %v702 = vld [vmem:[%s684 + $0x88] sm:$0xff]
      %v703 = vld [vmem:[%s684 + $0x90] sm:$0xff]
      %v704 = vld [vmem:[%s684 + $0x98] sm:$0xff]
      %v705 = vld [vmem:[%s684 + $0xa0] sm:$0xff]
      %v706 = vld [vmem:[%s684 + $0xa8] sm:$0xff]
      %v707 = vld [vmem:[%s684 + $0xb0] sm:$0xff]
      %v708 = vld [vmem:[%s684 + $0xb8] sm:$0xff]
      %v709 = vld [vmem:[%s684 + $0xc0] sm:$0xff]
      %v710 = vld [vmem:[%s684 + $0xc8] sm:$0xff]
      %v711 = vld [vmem:[%s684 + $0xd0] sm:$0xff]
      %v712 = vld [vmem:[%s684 + $0xd8] sm:$0xff]
      %v713 = vld [vmem:[%s684 + $0xe0] sm:$0xff]
      %v714 = vld [vmem:[%s684 + $0xe8] sm:$0xff]
      %v715 = vld [vmem:[%s684 + $0xf0] sm:$0xff]
      %v716 = vld [vmem:[%s684 + $0xf8] sm:$0xff]
      %718 = vset.pattern.permute.xlu0 0
      %719 = vperm.xlu0 %718, %v685
      %v720 = vpop.permute.xlu0 %719
      %723 = vset.pattern.permute.xlu0 0
      %724 = vperm.xlu0 %723, %v686
      %v725 = vpop.permute.xlu0 %724
      %728 = vset.pattern.permute.xlu0 0
      %729 = vperm.xlu0 %728, %v687
      %v730 = vpop.permute.xlu0 %729
      %733 = vset.pattern.permute.xlu0 0
      %734 = vperm.xlu0 %733, %v688
      %v735 = vpop.permute.xlu0 %734
      %738 = vset.pattern.permute.xlu0 0
      %739 = vperm.xlu0 %738, %v689
      %v740 = vpop.permute.xlu0 %739
      %743 = vset.pattern.permute.xlu0 0
      %744 = vperm.xlu0 %743, %v690
      %v745 = vpop.permute.xlu0 %744
      %748 = vset.pattern.permute.xlu0 0
      %749 = vperm.xlu0 %748, %v691
      %v750 = vpop.permute.xlu0 %749
      %753 = vset.pattern.permute.xlu0 0
      %754 = vperm.xlu0 %753, %v692
      %v755 = vpop.permute.xlu0 %754
      %758 = vset.pattern.permute.xlu0 0
      %759 = vperm.xlu0 %758, %v693
      %v760 = vpop.permute.xlu0 %759
      %763 = vset.pattern.permute.xlu0 0
      %764 = vperm.xlu0 %763, %v694
      %v765 = vpop.permute.xlu0 %764
      %768 = vset.pattern.permute.xlu0 0
      %769 = vperm.xlu0 %768, %v695
      %v770 = vpop.permute.xlu0 %769
      %773 = vset.pattern.permute.xlu0 0
      %774 = vperm.xlu0 %773, %v696
      %v775 = vpop.permute.xlu0 %774
      %778 = vset.pattern.permute.xlu0 0
      %779 = vperm.xlu0 %778, %v697
      %v780 = vpop.permute.xlu0 %779
      %783 = vset.pattern.permute.xlu0 0
      %784 = vperm.xlu0 %783, %v698
      %v785 = vpop.permute.xlu0 %784
      %788 = vset.pattern.permute.xlu0 0
      %789 = vperm.xlu0 %788, %v699
      %v790 = vpop.permute.xlu0 %789
      %793 = vset.pattern.permute.xlu0 0
      %794 = vperm.xlu0 %793, %v700
      %v795 = vpop.permute.xlu0 %794
      %798 = vset.pattern.permute.xlu0 0
      %799 = vperm.xlu0 %798, %v701
      %v800 = vpop.permute.xlu0 %799
      %803 = vset.pattern.permute.xlu0 0
      %804 = vperm.xlu0 %803, %v702
      %v805 = vpop.permute.xlu0 %804
      %808 = vset.pattern.permute.xlu0 0
      %809 = vperm.xlu0 %808, %v703
      %v810 = vpop.permute.xlu0 %809
      %813 = vset.pattern.permute.xlu0 0
      %814 = vperm.xlu0 %813, %v704
      %v815 = vpop.permute.xlu0 %814
      %818 = vset.pattern.permute.xlu0 0
      %819 = vperm.xlu0 %818, %v705
      %v820 = vpop.permute.xlu0 %819
      %823 = vset.pattern.permute.xlu0 0
      %824 = vperm.xlu0 %823, %v706
      %v825 = vpop.permute.xlu0 %824
      %828 = vset.pattern.permute.xlu0 0
      %829 = vperm.xlu0 %828, %v707
      %v830 = vpop.permute.xlu0 %829
      %833 = vset.pattern.permute.xlu0 0
      %834 = vperm.xlu0 %833, %v708
      %v835 = vpop.permute.xlu0 %834
      %838 = vset.pattern.permute.xlu0 0
      %839 = vperm.xlu0 %838, %v709
      %v840 = vpop.permute.xlu0 %839
      %843 = vset.pattern.permute.xlu0 0
      %844 = vperm.xlu0 %843, %v710
      %v845 = vpop.permute.xlu0 %844
      %848 = vset.pattern.permute.xlu0 0
      %849 = vperm.xlu0 %848, %v711
      %v850 = vpop.permute.xlu0 %849
      %853 = vset.pattern.permute.xlu0 0
      %854 = vperm.xlu0 %853, %v712
      %v855 = vpop.permute.xlu0 %854
      %858 = vset.pattern.permute.xlu0 0
      %859 = vperm.xlu0 %858, %v713
      %v860 = vpop.permute.xlu0 %859
      %863 = vset.pattern.permute.xlu0 0
      %864 = vperm.xlu0 %863, %v714
      %v865 = vpop.permute.xlu0 %864
      %868 = vset.pattern.permute.xlu0 0
      %869 = vperm.xlu0 %868, %v715
      %v870 = vpop.permute.xlu0 %869
      %873 = vset.pattern.permute.xlu0 0
      %874 = vperm.xlu0 %873, %v716
      %v875 = vpop.permute.xlu0 %874
      %v877 = vmul.f32 %v652, %v720
      %v878 = vmul.f32 %v653, %v725
      %v879 = vmul.f32 %v654, %v730
      %v880 = vmul.f32 %v655, %v735
      %v881 = vmul.f32 %v656, %v740
      %v882 = vmul.f32 %v657, %v745
      %v883 = vmul.f32 %v658, %v750
      %v884 = vmul.f32 %v659, %v755
      %v885 = vmul.f32 %v660, %v760
      %v886 = vmul.f32 %v661, %v765
      %v887 = vmul.f32 %v662, %v770
      %v888 = vmul.f32 %v663, %v775
      %v889 = vmul.f32 %v664, %v780
      %v890 = vmul.f32 %v665, %v785
      %v891 = vmul.f32 %v666, %v790
      %v892 = vmul.f32 %v667, %v795
      %v893 = vmul.f32 %v668, %v800
      %v894 = vmul.f32 %v669, %v805
      %v895 = vmul.f32 %v670, %v810
      %v896 = vmul.f32 %v671, %v815
      %v897 = vmul.f32 %v672, %v820
      %v898 = vmul.f32 %v673, %v825
      %v899 = vmul.f32 %v674, %v830
      %v900 = vmul.f32 %v675, %v835
      %v901 = vmul.f32 %v676, %v840
      %v902 = vmul.f32 %v677, %v845
      %v903 = vmul.f32 %v678, %v850
      %v904 = vmul.f32 %v679, %v855
      %v905 = vmul.f32 %v680, %v860
      %v906 = vmul.f32 %v681, %v865
      %v907 = vmul.f32 %v682, %v870
      %v908 = vmul.f32 %v683, %v875
      %v909 = vpack.c.bf16 %v878, %v877
      %v910 = vpack.c.bf16 %v880, %v879
      %v911 = vpack.c.bf16 %v882, %v881
      %v912 = vpack.c.bf16 %v884, %v883
      %v913 = vpack.c.bf16 %v886, %v885
      %v914 = vpack.c.bf16 %v888, %v887
      %v915 = vpack.c.bf16 %v890, %v889
      %v916 = vpack.c.bf16 %v892, %v891
      %v917 = vpack.c.bf16 %v894, %v893
      %v918 = vpack.c.bf16 %v896, %v895
      %v919 = vpack.c.bf16 %v898, %v897
      %v920 = vpack.c.bf16 %v900, %v899
      %v921 = vpack.c.bf16 %v902, %v901
      %v922 = vpack.c.bf16 %v904, %v903
      %v923 = vpack.c.bf16 %v906, %v905
      %v924 = vpack.c.bf16 %v908, %v907
      %s925 = scalar_lea.vmem %s1, 8
      %v926 = vld [vmem:[%s925] sm:$0xff]
      %v927 = vpack.c.bf16 %v926, %v926
      %v929 = vsel %vm478, %v909, 0
      %v932 = vsel %vm478, %v910, 0
      %v935 = vsel %vm478, %v911, 0
      %v938 = vsel %vm478, %v912, 0
      %v941 = vsel %vm478, %v913, 0
      %v944 = vsel %vm478, %v914, 0
      %v947 = vsel %vm478, %v915, 0
      %v950 = vsel %vm478, %v916, 0
      %v953 = vsel %vm478, %v917, 0
      %v956 = vsel %vm478, %v918, 0
      %v959 = vsel %vm478, %v919, 0
      %v962 = vsel %vm478, %v920, 0
      %v965 = vsel %vm478, %v921, 0
      %v968 = vsel %vm478, %v922, 0
      %v971 = vsel %vm478, %v923, 0
      %v974 = vsel %vm478, %v924, 0
      %v977 = vsel %vm527, %v927, 0
      %979 = vmatpush.bf16.msra.mxu0 0
      %980 = vmatpush.bf16.msra.mxu0 0
      %981 = vmatpush.bf16.msra.mxu0 0
      %982 = vmatpush.bf16.msra.mxu0 0
      %983 = vmatpush.bf16.msra.mxu0 0
      %984 = vmatpush.bf16.msra.mxu0 0
      %985 = vmatpush.bf16.msra.mxu0 0
      %986 = vmatpush.bf16.msra.mxu0 %v977
      %987 = vmatmul.bf16.gmra.mxu0 %v929
      %v988 = vpop.f32.mrf.mxu0
      %v989 = vadd.f32 0.0, %v988
      %v990 = vpop.f32.mrf.mxu0
      %v991 = vadd.f32 0.0, %v990
      %992 = vmatmul.bf16.gmra.mxu0 %v932
      %v993 = vpop.f32.mrf.mxu0
      %v994 = vadd.f32 0.0, %v993
      %v995 = vpop.f32.mrf.mxu0
      %v996 = vadd.f32 0.0, %v995
      %997 = vmatmul.bf16.gmra.mxu0 %v935
      %v998 = vpop.f32.mrf.mxu0
      %v999 = vadd.f32 0.0, %v998
      %v1000 = vpop.f32.mrf.mxu0
      %v1001 = vadd.f32 0.0, %v1000
      %1002 = vmatmul.bf16.gmra.mxu0 %v938
      %v1003 = vpop.f32.mrf.mxu0
      %v1004 = vadd.f32 0.0, %v1003
      %v1005 = vpop.f32.mrf.mxu0
      %v1006 = vadd.f32 0.0, %v1005
      %1007 = vmatmul.bf16.gmra.mxu0 %v941
      %v1008 = vpop.f32.mrf.mxu0
      %v1009 = vadd.f32 0.0, %v1008
      %v1010 = vpop.f32.mrf.mxu0
      %v1011 = vadd.f32 0.0, %v1010
      %1012 = vmatmul.bf16.gmra.mxu0 %v944
      %v1013 = vpop.f32.mrf.mxu0
      %v1014 = vadd.f32 0.0, %v1013
      %v1015 = vpop.f32.mrf.mxu0
      %v1016 = vadd.f32 0.0, %v1015
      %1017 = vmatmul.bf16.gmra.mxu0 %v947
      %v1018 = vpop.f32.mrf.mxu0
      %v1019 = vadd.f32 0.0, %v1018
      %v1020 = vpop.f32.mrf.mxu0
      %v1021 = vadd.f32 0.0, %v1020
      %1022 = vmatmul.bf16.gmra.mxu0 %v950
      %v1023 = vpop.f32.mrf.mxu0
      %v1024 = vadd.f32 0.0, %v1023
      %v1025 = vpop.f32.mrf.mxu0
      %v1026 = vadd.f32 0.0, %v1025
      %1027 = vmatmul.bf16.gmra.mxu0 %v953
      %v1028 = vpop.f32.mrf.mxu0
      %v1029 = vadd.f32 0.0, %v1028
      %v1030 = vpop.f32.mrf.mxu0
      %v1031 = vadd.f32 0.0, %v1030
      %1032 = vmatmul.bf16.gmra.mxu0 %v956
      %v1033 = vpop.f32.mrf.mxu0
      %v1034 = vadd.f32 0.0, %v1033
      %v1035 = vpop.f32.mrf.mxu0
      %v1036 = vadd.f32 0.0, %v1035
      %1037 = vmatmul.bf16.gmra.mxu0 %v959
      %v1038 = vpop.f32.mrf.mxu0
      %v1039 = vadd.f32 0.0, %v1038
      %v1040 = vpop.f32.mrf.mxu0
      %v1041 = vadd.f32 0.0, %v1040
      %1042 = vmatmul.bf16.gmra.mxu0 %v962
      %v1043 = vpop.f32.mrf.mxu0
      %v1044 = vadd.f32 0.0, %v1043
      %v1045 = vpop.f32.mrf.mxu0
      %v1046 = vadd.f32 0.0, %v1045
      %1047 = vmatmul.bf16.gmra.mxu0 %v965
      %v1048 = vpop.f32.mrf.mxu0
      %v1049 = vadd.f32 0.0, %v1048
      %v1050 = vpop.f32.mrf.mxu0
      %v1051 = vadd.f32 0.0, %v1050
      %1052 = vmatmul.bf16.gmra.mxu0 %v968
      %v1053 = vpop.f32.mrf.mxu0
      %v1054 = vadd.f32 0.0, %v1053
      %v1055 = vpop.f32.mrf.mxu0
      %v1056 = vadd.f32 0.0, %v1055
      %1057 = vmatmul.bf16.gmra.mxu0 %v971
      %v1058 = vpop.f32.mrf.mxu0
      %v1059 = vadd.f32 0.0, %v1058
      %v1060 = vpop.f32.mrf.mxu0
      %v1061 = vadd.f32 0.0, %v1060
      %1062 = vmatmul.bf16.gmra.mxu0 %v974
      %v1063 = vpop.f32.mrf.mxu0
      %v1064 = vadd.f32 0.0, %v1063
      %v1065 = vpop.f32.mrf.mxu0
      %v1066 = vadd.f32 0.0, %v1065
      %1067 = vdwg.mxu0
      %v1068 = vadd.f32 %v620, %v989
      %v1069 = vadd.f32 %v621, %v991
      %v1070 = vadd.f32 %v622, %v994
      %v1071 = vadd.f32 %v623, %v996
      %v1072 = vadd.f32 %v624, %v999
      %v1073 = vadd.f32 %v625, %v1001
      %v1074 = vadd.f32 %v626, %v1004
      %v1075 = vadd.f32 %v627, %v1006
      %v1076 = vadd.f32 %v628, %v1009
      %v1077 = vadd.f32 %v629, %v1011
      %v1078 = vadd.f32 %v630, %v1014
      %v1079 = vadd.f32 %v631, %v1016
      %v1080 = vadd.f32 %v632, %v1019
      %v1081 = vadd.f32 %v633, %v1021
      %v1082 = vadd.f32 %v634, %v1024
      %v1083 = vadd.f32 %v635, %v1026
      %v1084 = vadd.f32 %v636, %v1029
      %v1085 = vadd.f32 %v637, %v1031
      %v1086 = vadd.f32 %v638, %v1034
      %v1087 = vadd.f32 %v639, %v1036
      %v1088 = vadd.f32 %v640, %v1039
      %v1089 = vadd.f32 %v641, %v1041
      %v1090 = vadd.f32 %v642, %v1044
      %v1091 = vadd.f32 %v643, %v1046
      %v1092 = vadd.f32 %v644, %v1049
      %v1093 = vadd.f32 %v645, %v1051
      %v1094 = vadd.f32 %v646, %v1054
      %v1095 = vadd.f32 %v647, %v1056
      %v1096 = vadd.f32 %v648, %v1059
      %v1097 = vadd.f32 %v649, %v1061
      %v1098 = vadd.f32 %v650, %v1064
      %v1099 = vadd.f32 %v651, %v1066
      %v1100 = vld [vmem:[%s192 + $0x2] sm:$0xff]
      %v1101 = vld [vmem:[%s192 + $0xa] sm:$0xff]
      %v1102 = vld [vmem:[%s192 + $0x12] sm:$0xff]
      %v1103 = vld [vmem:[%s192 + $0x1a] sm:$0xff]
      %v1104 = vld [vmem:[%s192 + $0x22] sm:$0xff]
      %v1105 = vld [vmem:[%s192 + $0x2a] sm:$0xff]
      %v1106 = vld [vmem:[%s192 + $0x32] sm:$0xff]
      %v1107 = vld [vmem:[%s192 + $0x3a] sm:$0xff]
      %v1108 = vld [vmem:[%s192 + $0x42] sm:$0xff]
      %v1109 = vld [vmem:[%s192 + $0x4a] sm:$0xff]
      %v1110 = vld [vmem:[%s192 + $0x52] sm:$0xff]
      %v1111 = vld [vmem:[%s192 + $0x5a] sm:$0xff]
      %v1112 = vld [vmem:[%s192 + $0x62] sm:$0xff]
      %v1113 = vld [vmem:[%s192 + $0x6a] sm:$0xff]
      %v1114 = vld [vmem:[%s192 + $0x72] sm:$0xff]
      %v1115 = vld [vmem:[%s192 + $0x7a] sm:$0xff]
      %v1116 = vld [vmem:[%s192 + $0x82] sm:$0xff]
      %v1117 = vld [vmem:[%s192 + $0x8a] sm:$0xff]
      %v1118 = vld [vmem:[%s192 + $0x92] sm:$0xff]
      %v1119 = vld [vmem:[%s192 + $0x9a] sm:$0xff]
      %v1120 = vld [vmem:[%s192 + $0xa2] sm:$0xff]
      %v1121 = vld [vmem:[%s192 + $0xaa] sm:$0xff]
      %v1122 = vld [vmem:[%s192 + $0xb2] sm:$0xff]
      %v1123 = vld [vmem:[%s192 + $0xba] sm:$0xff]
      %v1124 = vld [vmem:[%s192 + $0xc2] sm:$0xff]
      %v1125 = vld [vmem:[%s192 + $0xca] sm:$0xff]
      %v1126 = vld [vmem:[%s192 + $0xd2] sm:$0xff]
      %v1127 = vld [vmem:[%s192 + $0xda] sm:$0xff]
      %v1128 = vld [vmem:[%s192 + $0xe2] sm:$0xff]
      %v1129 = vld [vmem:[%s192 + $0xea] sm:$0xff]
      %v1130 = vld [vmem:[%s192 + $0xf2] sm:$0xff]
      %v1131 = vld [vmem:[%s192 + $0xfa] sm:$0xff]
      %s1132 = scalar_lea.vmem %s3, 512
      %v1133 = vld [vmem:[%s1132] sm:$0xff]
      %v1134 = vld [vmem:[%s1132 + $0x8] sm:$0xff]
      %v1135 = vld [vmem:[%s1132 + $0x10] sm:$0xff]
      %v1136 = vld [vmem:[%s1132 + $0x18] sm:$0xff]
      %v1137 = vld [vmem:[%s1132 + $0x20] sm:$0xff]
      %v1138 = vld [vmem:[%s1132 + $0x28] sm:$0xff]
      %v1139 = vld [vmem:[%s1132 + $0x30] sm:$0xff]
      %v1140 = vld [vmem:[%s1132 + $0x38] sm:$0xff]
      %v1141 = vld [vmem:[%s1132 + $0x40] sm:$0xff]
      %v1142 = vld [vmem:[%s1132 + $0x48] sm:$0xff]
      %v1143 = vld [vmem:[%s1132 + $0x50] sm:$0xff]
      %v1144 = vld [vmem:[%s1132 + $0x58] sm:$0xff]
      %v1145 = vld [vmem:[%s1132 + $0x60] sm:$0xff]
      %v1146 = vld [vmem:[%s1132 + $0x68] sm:$0xff]
      %v1147 = vld [vmem:[%s1132 + $0x70] sm:$0xff]
      %v1148 = vld [vmem:[%s1132 + $0x78] sm:$0xff]
      %v1149 = vld [vmem:[%s1132 + $0x80] sm:$0xff]
      %v1150 = vld [vmem:[%s1132 + $0x88] sm:$0xff]
      %v1151 = vld [vmem:[%s1132 + $0x90] sm:$0xff]
      %v1152 = vld [vmem:[%s1132 + $0x98] sm:$0xff]
      %v1153 = vld [vmem:[%s1132 + $0xa0] sm:$0xff]
      %v1154 = vld [vmem:[%s1132 + $0xa8] sm:$0xff]
      %v1155 = vld [vmem:[%s1132 + $0xb0] sm:$0xff]
      %v1156 = vld [vmem:[%s1132 + $0xb8] sm:$0xff]
      %v1157 = vld [vmem:[%s1132 + $0xc0] sm:$0xff]
      %v1158 = vld [vmem:[%s1132 + $0xc8] sm:$0xff]
      %v1159 = vld [vmem:[%s1132 + $0xd0] sm:$0xff]
      %v1160 = vld [vmem:[%s1132 + $0xd8] sm:$0xff]
      %v1161 = vld [vmem:[%s1132 + $0xe0] sm:$0xff]
      %v1162 = vld [vmem:[%s1132 + $0xe8] sm:$0xff]
      %v1163 = vld [vmem:[%s1132 + $0xf0] sm:$0xff]
      %v1164 = vld [vmem:[%s1132 + $0xf8] sm:$0xff]
      %1166 = vset.pattern.permute.xlu0 0
      %1167 = vperm.xlu0 %1166, %v1133
      %v1168 = vpop.permute.xlu0 %1167
      %1171 = vset.pattern.permute.xlu0 0
      %1172 = vperm.xlu0 %1171, %v1134
      %v1173 = vpop.permute.xlu0 %1172
      %1176 = vset.pattern.permute.xlu0 0
      %1177 = vperm.xlu0 %1176, %v1135
      %v1178 = vpop.permute.xlu0 %1177
      %1181 = vset.pattern.permute.xlu0 0
      %1182 = vperm.xlu0 %1181, %v1136
      %v1183 = vpop.permute.xlu0 %1182
      %1186 = vset.pattern.permute.xlu0 0
      %1187 = vperm.xlu0 %1186, %v1137
      %v1188 = vpop.permute.xlu0 %1187
      %1191 = vset.pattern.permute.xlu0 0
      %1192 = vperm.xlu0 %1191, %v1138
      %v1193 = vpop.permute.xlu0 %1192
      %1196 = vset.pattern.permute.xlu0 0
      %1197 = vperm.xlu0 %1196, %v1139
      %v1198 = vpop.permute.xlu0 %1197
      %1201 = vset.pattern.permute.xlu0 0
      %1202 = vperm.xlu0 %1201, %v1140
      %v1203 = vpop.permute.xlu0 %1202
      %1206 = vset.pattern.permute.xlu0 0
      %1207 = vperm.xlu0 %1206, %v1141
      %v1208 = vpop.permute.xlu0 %1207
      %1211 = vset.pattern.permute.xlu0 0
      %1212 = vperm.xlu0 %1211, %v1142
      %v1213 = vpop.permute.xlu0 %1212
      %1216 = vset.pattern.permute.xlu0 0
      %1217 = vperm.xlu0 %1216, %v1143
      %v1218 = vpop.permute.xlu0 %1217
      %1221 = vset.pattern.permute.xlu0 0
      %1222 = vperm.xlu0 %1221, %v1144
      %v1223 = vpop.permute.xlu0 %1222
      %1226 = vset.pattern.permute.xlu0 0
      %1227 = vperm.xlu0 %1226, %v1145
      %v1228 = vpop.permute.xlu0 %1227
      %1231 = vset.pattern.permute.xlu0 0
      %1232 = vperm.xlu0 %1231, %v1146
      %v1233 = vpop.permute.xlu0 %1232
      %1236 = vset.pattern.permute.xlu0 0
      %1237 = vperm.xlu0 %1236, %v1147
      %v1238 = vpop.permute.xlu0 %1237
      %1241 = vset.pattern.permute.xlu0 0
      %1242 = vperm.xlu0 %1241, %v1148
      %v1243 = vpop.permute.xlu0 %1242
      %1246 = vset.pattern.permute.xlu0 0
      %1247 = vperm.xlu0 %1246, %v1149
      %v1248 = vpop.permute.xlu0 %1247
      %1251 = vset.pattern.permute.xlu0 0
      %1252 = vperm.xlu0 %1251, %v1150
      %v1253 = vpop.permute.xlu0 %1252
      %1256 = vset.pattern.permute.xlu0 0
      %1257 = vperm.xlu0 %1256, %v1151
      %v1258 = vpop.permute.xlu0 %1257
      %1261 = vset.pattern.permute.xlu0 0
      %1262 = vperm.xlu0 %1261, %v1152
      %v1263 = vpop.permute.xlu0 %1262
      %1266 = vset.pattern.permute.xlu0 0
      %1267 = vperm.xlu0 %1266, %v1153
      %v1268 = vpop.permute.xlu0 %1267
      %1271 = vset.pattern.permute.xlu0 0
      %1272 = vperm.xlu0 %1271, %v1154
      %v1273 = vpop.permute.xlu0 %1272
      %1276 = vset.pattern.permute.xlu0 0
      %1277 = vperm.xlu0 %1276, %v1155
      %v1278 = vpop.permute.xlu0 %1277
      %1281 = vset.pattern.permute.xlu0 0
      %1282 = vperm.xlu0 %1281, %v1156
      %v1283 = vpop.permute.xlu0 %1282
      %1286 = vset.pattern.permute.xlu0 0
      %1287 = vperm.xlu0 %1286, %v1157
      %v1288 = vpop.permute.xlu0 %1287
      %1291 = vset.pattern.permute.xlu0 0
      %1292 = vperm.xlu0 %1291, %v1158
      %v1293 = vpop.permute.xlu0 %1292
      %1296 = vset.pattern.permute.xlu0 0
      %1297 = vperm.xlu0 %1296, %v1159
      %v1298 = vpop.permute.xlu0 %1297
      %1301 = vset.pattern.permute.xlu0 0
      %1302 = vperm.xlu0 %1301, %v1160
      %v1303 = vpop.permute.xlu0 %1302
      %1306 = vset.pattern.permute.xlu0 0
      %1307 = vperm.xlu0 %1306, %v1161
      %v1308 = vpop.permute.xlu0 %1307
      %1311 = vset.pattern.permute.xlu0 0
      %1312 = vperm.xlu0 %1311, %v1162
      %v1313 = vpop.permute.xlu0 %1312
      %1316 = vset.pattern.permute.xlu0 0
      %1317 = vperm.xlu0 %1316, %v1163
      %v1318 = vpop.permute.xlu0 %1317
      %1321 = vset.pattern.permute.xlu0 0
      %1322 = vperm.xlu0 %1321, %v1164
      %v1323 = vpop.permute.xlu0 %1322
      %v1325 = vmul.f32 %v1100, %v1168
      %v1326 = vmul.f32 %v1101, %v1173
      %v1327 = vmul.f32 %v1102, %v1178
      %v1328 = vmul.f32 %v1103, %v1183
      %v1329 = vmul.f32 %v1104, %v1188
      %v1330 = vmul.f32 %v1105, %v1193
      %v1331 = vmul.f32 %v1106, %v1198
      %v1332 = vmul.f32 %v1107, %v1203
      %v1333 = vmul.f32 %v1108, %v1208
      %v1334 = vmul.f32 %v1109, %v1213
      %v1335 = vmul.f32 %v1110, %v1218
      %v1336 = vmul.f32 %v1111, %v1223
      %v1337 = vmul.f32 %v1112, %v1228
      %v1338 = vmul.f32 %v1113, %v1233
      %v1339 = vmul.f32 %v1114, %v1238
      %v1340 = vmul.f32 %v1115, %v1243
      %v1341 = vmul.f32 %v1116, %v1248
      %v1342 = vmul.f32 %v1117, %v1253
      %v1343 = vmul.f32 %v1118, %v1258
      %v1344 = vmul.f32 %v1119, %v1263
      %v1345 = vmul.f32 %v1120, %v1268
      %v1346 = vmul.f32 %v1121, %v1273
      %v1347 = vmul.f32 %v1122, %v1278
      %v1348 = vmul.f32 %v1123, %v1283
      %v1349 = vmul.f32 %v1124, %v1288
      %v1350 = vmul.f32 %v1125, %v1293
      %v1351 = vmul.f32 %v1126, %v1298
      %v1352 = vmul.f32 %v1127, %v1303
      %v1353 = vmul.f32 %v1128, %v1308
      %v1354 = vmul.f32 %v1129, %v1313
      %v1355 = vmul.f32 %v1130, %v1318
      %v1356 = vmul.f32 %v1131, %v1323
      %v1357 = vpack.c.bf16 %v1326, %v1325
      %v1358 = vpack.c.bf16 %v1328, %v1327
      %v1359 = vpack.c.bf16 %v1330, %v1329
      %v1360 = vpack.c.bf16 %v1332, %v1331
      %v1361 = vpack.c.bf16 %v1334, %v1333
      %v1362 = vpack.c.bf16 %v1336, %v1335
      %v1363 = vpack.c.bf16 %v1338, %v1337
      %v1364 = vpack.c.bf16 %v1340, %v1339
      %v1365 = vpack.c.bf16 %v1342, %v1341
      %v1366 = vpack.c.bf16 %v1344, %v1343
      %v1367 = vpack.c.bf16 %v1346, %v1345
      %v1368 = vpack.c.bf16 %v1348, %v1347
      %v1369 = vpack.c.bf16 %v1350, %v1349
      %v1370 = vpack.c.bf16 %v1352, %v1351
      %v1371 = vpack.c.bf16 %v1354, %v1353
      %v1372 = vpack.c.bf16 %v1356, %v1355
      %s1373 = scalar_lea.vmem %s1, 16
      %v1374 = vld [vmem:[%s1373] sm:$0xff]
      %v1375 = vpack.c.bf16 %v1374, %v1374
      %v1377 = vsel %vm478, %v1357, 0
      %v1380 = vsel %vm478, %v1358, 0
      %v1383 = vsel %vm478, %v1359, 0
      %v1386 = vsel %vm478, %v1360, 0
      %v1389 = vsel %vm478, %v1361, 0
      %v1392 = vsel %vm478, %v1362, 0
      %v1395 = vsel %vm478, %v1363, 0
      %v1398 = vsel %vm478, %v1364, 0
      %v1401 = vsel %vm478, %v1365, 0
      %v1404 = vsel %vm478, %v1366, 0
      %v1407 = vsel %vm478, %v1367, 0
      %v1410 = vsel %vm478, %v1368, 0
      %v1413 = vsel %vm478, %v1369, 0
      %v1416 = vsel %vm478, %v1370, 0
      %v1419 = vsel %vm478, %v1371, 0
      %v1422 = vsel %vm478, %v1372, 0
      %v1425 = vsel %vm527, %v1375, 0
      %1427 = vmatpush.bf16.msra.mxu0 0
      %1428 = vmatpush.bf16.msra.mxu0 0
      %1429 = vmatpush.bf16.msra.mxu0 0
      %1430 = vmatpush.bf16.msra.mxu0 0
      %1431 = vmatpush.bf16.msra.mxu0 0
      %1432 = vmatpush.bf16.msra.mxu0 0
      %1433 = vmatpush.bf16.msra.mxu0 0
      %1434 = vmatpush.bf16.msra.mxu0 %v1425
      %1435 = vmatmul.bf16.gmra.mxu0 %v1377
      %v1436 = vpop.f32.mrf.mxu0
      %v1437 = vadd.f32 0.0, %v1436
      %v1438 = vpop.f32.mrf.mxu0
      %v1439 = vadd.f32 0.0, %v1438
      %1440 = vmatmul.bf16.gmra.mxu0 %v1380
      %v1441 = vpop.f32.mrf.mxu0
      %v1442 = vadd.f32 0.0, %v1441
      %v1443 = vpop.f32.mrf.mxu0
      %v1444 = vadd.f32 0.0, %v1443
      %1445 = vmatmul.bf16.gmra.mxu0 %v1383
      %v1446 = vpop.f32.mrf.mxu0
      %v1447 = vadd.f32 0.0, %v1446
      %v1448 = vpop.f32.mrf.mxu0
      %v1449 = vadd.f32 0.0, %v1448
      %1450 = vmatmul.bf16.gmra.mxu0 %v1386
      %v1451 = vpop.f32.mrf.mxu0
      %v1452 = vadd.f32 0.0, %v1451
      %v1453 = vpop.f32.mrf.mxu0
      %v1454 = vadd.f32 0.0, %v1453
      %1455 = vmatmul.bf16.gmra.mxu0 %v1389
      %v1456 = vpop.f32.mrf.mxu0
      %v1457 = vadd.f32 0.0, %v1456
      %v1458 = vpop.f32.mrf.mxu0
      %v1459 = vadd.f32 0.0, %v1458
      %1460 = vmatmul.bf16.gmra.mxu0 %v1392
      %v1461 = vpop.f32.mrf.mxu0
      %v1462 = vadd.f32 0.0, %v1461
      %v1463 = vpop.f32.mrf.mxu0
      %v1464 = vadd.f32 0.0, %v1463
      %1465 = vmatmul.bf16.gmra.mxu0 %v1395
      %v1466 = vpop.f32.mrf.mxu0
      %v1467 = vadd.f32 0.0, %v1466
      %v1468 = vpop.f32.mrf.mxu0
      %v1469 = vadd.f32 0.0, %v1468
      %1470 = vmatmul.bf16.gmra.mxu0 %v1398
      %v1471 = vpop.f32.mrf.mxu0
      %v1472 = vadd.f32 0.0, %v1471
      %v1473 = vpop.f32.mrf.mxu0
      %v1474 = vadd.f32 0.0, %v1473
      %1475 = vmatmul.bf16.gmra.mxu0 %v1401
      %v1476 = vpop.f32.mrf.mxu0
      %v1477 = vadd.f32 0.0, %v1476
      %v1478 = vpop.f32.mrf.mxu0
      %v1479 = vadd.f32 0.0, %v1478
      %1480 = vmatmul.bf16.gmra.mxu0 %v1404
      %v1481 = vpop.f32.mrf.mxu0
      %v1482 = vadd.f32 0.0, %v1481
      %v1483 = vpop.f32.mrf.mxu0
      %v1484 = vadd.f32 0.0, %v1483
      %1485 = vmatmul.bf16.gmra.mxu0 %v1407
      %v1486 = vpop.f32.mrf.mxu0
      %v1487 = vadd.f32 0.0, %v1486
      %v1488 = vpop.f32.mrf.mxu0
      %v1489 = vadd.f32 0.0, %v1488
      %1490 = vmatmul.bf16.gmra.mxu0 %v1410
      %v1491 = vpop.f32.mrf.mxu0
      %v1492 = vadd.f32 0.0, %v1491
      %v1493 = vpop.f32.mrf.mxu0
      %v1494 = vadd.f32 0.0, %v1493
      %1495 = vmatmul.bf16.gmra.mxu0 %v1413
      %v1496 = vpop.f32.mrf.mxu0
      %v1497 = vadd.f32 0.0, %v1496
      %v1498 = vpop.f32.mrf.mxu0
      %v1499 = vadd.f32 0.0, %v1498
      %1500 = vmatmul.bf16.gmra.mxu0 %v1416
      %v1501 = vpop.f32.mrf.mxu0
      %v1502 = vadd.f32 0.0, %v1501
      %v1503 = vpop.f32.mrf.mxu0
      %v1504 = vadd.f32 0.0, %v1503
      %1505 = vmatmul.bf16.gmra.mxu0 %v1419
      %v1506 = vpop.f32.mrf.mxu0
      %v1507 = vadd.f32 0.0, %v1506
      %v1508 = vpop.f32.mrf.mxu0
      %v1509 = vadd.f32 0.0, %v1508
      %1510 = vmatmul.bf16.gmra.mxu0 %v1422
      %v1511 = vpop.f32.mrf.mxu0
      %v1512 = vadd.f32 0.0, %v1511
      %v1513 = vpop.f32.mrf.mxu0
      %v1514 = vadd.f32 0.0, %v1513
      %1515 = vdwg.mxu0
      %v1516 = vadd.f32 %v1068, %v1437
      %v1517 = vadd.f32 %v1069, %v1439
      %v1518 = vadd.f32 %v1070, %v1442
      %v1519 = vadd.f32 %v1071, %v1444
      %v1520 = vadd.f32 %v1072, %v1447
      %v1521 = vadd.f32 %v1073, %v1449
      %v1522 = vadd.f32 %v1074, %v1452
      %v1523 = vadd.f32 %v1075, %v1454
      %v1524 = vadd.f32 %v1076, %v1457
      %v1525 = vadd.f32 %v1077, %v1459
      %v1526 = vadd.f32 %v1078, %v1462
      %v1527 = vadd.f32 %v1079, %v1464
      %v1528 = vadd.f32 %v1080, %v1467
      %v1529 = vadd.f32 %v1081, %v1469
      %v1530 = vadd.f32 %v1082, %v1472
      %v1531 = vadd.f32 %v1083, %v1474
      %v1532 = vadd.f32 %v1084, %v1477
      %v1533 = vadd.f32 %v1085, %v1479
      %v1534 = vadd.f32 %v1086, %v1482
      %v1535 = vadd.f32 %v1087, %v1484
      %v1536 = vadd.f32 %v1088, %v1487
      %v1537 = vadd.f32 %v1089, %v1489
      %v1538 = vadd.f32 %v1090, %v1492
      %v1539 = vadd.f32 %v1091, %v1494
      %v1540 = vadd.f32 %v1092, %v1497
      %v1541 = vadd.f32 %v1093, %v1499
      %v1542 = vadd.f32 %v1094, %v1502
      %v1543 = vadd.f32 %v1095, %v1504
      %v1544 = vadd.f32 %v1096, %v1507
      %v1545 = vadd.f32 %v1097, %v1509
      %v1546 = vadd.f32 %v1098, %v1512
      %v1547 = vadd.f32 %v1099, %v1514
      %v1548 = vld [vmem:[%s192 + $0x10] sm:$0xff]
      %v1549 = vld [vmem:[%s192 + $0x18] sm:$0xff]
      %v1550 = vld [vmem:[%s192 + $0x20] sm:$0xff]
      %v1551 = vld [vmem:[%s192 + $0x28] sm:$0xff]
      %v1552 = vld [vmem:[%s192 + $0x30] sm:$0xff]
      %v1553 = vld [vmem:[%s192 + $0x38] sm:$0xff]
      %v1554 = vld [vmem:[%s192 + $0x40] sm:$0xff]
      %v1555 = vld [vmem:[%s192 + $0x48] sm:$0xff]
      %v1556 = vld [vmem:[%s192 + $0x50] sm:$0xff]
      %v1557 = vld [vmem:[%s192 + $0x58] sm:$0xff]
      %v1558 = vld [vmem:[%s192 + $0x60] sm:$0xff]
      %v1559 = vld [vmem:[%s192 + $0x68] sm:$0xff]
      %v1560 = vld [vmem:[%s192 + $0x70] sm:$0xff]
      %v1561 = vld [vmem:[%s192 + $0x78] sm:$0xff]
      %v1562 = vld [vmem:[%s192 + $0x80] sm:$0xff]
      %v1563 = vld [vmem:[%s192 + $0x88] sm:$0xff]
      %v1564 = vld [vmem:[%s192 + $0x90] sm:$0xff]
      %v1565 = vld [vmem:[%s192 + $0x98] sm:$0xff]
      %v1566 = vld [vmem:[%s192 + $0xa0] sm:$0xff]
      %v1567 = vld [vmem:[%s192 + $0xa8] sm:$0xff]
      %v1568 = vld [vmem:[%s192 + $0xb0] sm:$0xff]
      %v1569 = vld [vmem:[%s192 + $0xb8] sm:$0xff]
      %v1570 = vld [vmem:[%s192 + $0xc0] sm:$0xff]
      %v1571 = vld [vmem:[%s192 + $0xc8] sm:$0xff]
      %v1572 = vld [vmem:[%s192 + $0xd0] sm:$0xff]
      %v1573 = vld [vmem:[%s192 + $0xd8] sm:$0xff]
      %v1574 = vld [vmem:[%s192 + $0xe0] sm:$0xff]
      %v1575 = vld [vmem:[%s192 + $0xe8] sm:$0xff]
      %v1576 = vld [vmem:[%s192 + $0xf0] sm:$0xff]
      %v1577 = vld [vmem:[%s192 + $0xf8] sm:$0xff]
      %v1578 = vld [vmem:[%s192 + $0x100] sm:$0xff]
      %v1579 = vld [vmem:[%s192 + $0x108] sm:$0xff]
      %s1580 = scalar_lea.vmem %s3, 768
      %v1581 = vld [vmem:[%s1580] sm:$0xff]
      %v1582 = vld [vmem:[%s1580 + $0x8] sm:$0xff]
      %v1583 = vld [vmem:[%s1580 + $0x10] sm:$0xff]
      %v1584 = vld [vmem:[%s1580 + $0x18] sm:$0xff]
      %v1585 = vld [vmem:[%s1580 + $0x20] sm:$0xff]
      %v1586 = vld [vmem:[%s1580 + $0x28] sm:$0xff]
      %v1587 = vld [vmem:[%s1580 + $0x30] sm:$0xff]
      %v1588 = vld [vmem:[%s1580 + $0x38] sm:$0xff]
      %v1589 = vld [vmem:[%s1580 + $0x40] sm:$0xff]
      %v1590 = vld [vmem:[%s1580 + $0x48] sm:$0xff]
      %v1591 = vld [vmem:[%s1580 + $0x50] sm:$0xff]
      %v1592 = vld [vmem:[%s1580 + $0x58] sm:$0xff]
      %v1593 = vld [vmem:[%s1580 + $0x60] sm:$0xff]
      %v1594 = vld [vmem:[%s1580 + $0x68] sm:$0xff]
      %v1595 = vld [vmem:[%s1580 + $0x70] sm:$0xff]
      %v1596 = vld [vmem:[%s1580 + $0x78] sm:$0xff]
      %v1597 = vld [vmem:[%s1580 + $0x80] sm:$0xff]
      %v1598 = vld [vmem:[%s1580 + $0x88] sm:$0xff]
      %v1599 = vld [vmem:[%s1580 + $0x90] sm:$0xff]
      %v1600 = vld [vmem:[%s1580 + $0x98] sm:$0xff]
      %v1601 = vld [vmem:[%s1580 + $0xa0] sm:$0xff]
      %v1602 = vld [vmem:[%s1580 + $0xa8] sm:$0xff]
      %v1603 = vld [vmem:[%s1580 + $0xb0] sm:$0xff]
      %v1604 = vld [vmem:[%s1580 + $0xb8] sm:$0xff]
      %v1605 = vld [vmem:[%s1580 + $0xc0] sm:$0xff]
      %v1606 = vld [vmem:[%s1580 + $0xc8] sm:$0xff]
      %v1607 = vld [vmem:[%s1580 + $0xd0] sm:$0xff]
      %v1608 = vld [vmem:[%s1580 + $0xd8] sm:$0xff]
      %v1609 = vld [vmem:[%s1580 + $0xe0] sm:$0xff]
      %v1610 = vld [vmem:[%s1580 + $0xe8] sm:$0xff]
      %v1611 = vld [vmem:[%s1580 + $0xf0] sm:$0xff]
      %v1612 = vld [vmem:[%s1580 + $0xf8] sm:$0xff]
      %1614 = vset.pattern.permute.xlu0 0
      %1615 = vperm.xlu0 %1614, %v1581
      %v1616 = vpop.permute.xlu0 %1615
      %1619 = vset.pattern.permute.xlu0 0
      %1620 = vperm.xlu0 %1619, %v1582
      %v1621 = vpop.permute.xlu0 %1620
      %1624 = vset.pattern.permute.xlu0 0
      %1625 = vperm.xlu0 %1624, %v1583
      %v1626 = vpop.permute.xlu0 %1625
      %1629 = vset.pattern.permute.xlu0 0
      %1630 = vperm.xlu0 %1629, %v1584
      %v1631 = vpop.permute.xlu0 %1630
      %1634 = vset.pattern.permute.xlu0 0
      %1635 = vperm.xlu0 %1634, %v1585
      %v1636 = vpop.permute.xlu0 %1635
      %1639 = vset.pattern.permute.xlu0 0
      %1640 = vperm.xlu0 %1639, %v1586
      %v1641 = vpop.permute.xlu0 %1640
      %1644 = vset.pattern.permute.xlu0 0
      %1645 = vperm.xlu0 %1644, %v1587
      %v1646 = vpop.permute.xlu0 %1645
      %1649 = vset.pattern.permute.xlu0 0
      %1650 = vperm.xlu0 %1649, %v1588
      %v1651 = vpop.permute.xlu0 %1650
      %1654 = vset.pattern.permute.xlu0 0
      %1655 = vperm.xlu0 %1654, %v1589
      %v1656 = vpop.permute.xlu0 %1655
      %1659 = vset.pattern.permute.xlu0 0
      %1660 = vperm.xlu0 %1659, %v1590
      %v1661 = vpop.permute.xlu0 %1660
      %1664 = vset.pattern.permute.xlu0 0
      %1665 = vperm.xlu0 %1664, %v1591
      %v1666 = vpop.permute.xlu0 %1665
      %1669 = vset.pattern.permute.xlu0 0
      %1670 = vperm.xlu0 %1669, %v1592
      %v1671 = vpop.permute.xlu0 %1670
      %1674 = vset.pattern.permute.xlu0 0
      %1675 = vperm.xlu0 %1674, %v1593
      %v1676 = vpop.permute.xlu0 %1675
      %1679 = vset.pattern.permute.xlu0 0
      %1680 = vperm.xlu0 %1679, %v1594
      %v1681 = vpop.permute.xlu0 %1680
      %1684 = vset.pattern.permute.xlu0 0
      %1685 = vperm.xlu0 %1684, %v1595
      %v1686 = vpop.permute.xlu0 %1685
      %1689 = vset.pattern.permute.xlu0 0
      %1690 = vperm.xlu0 %1689, %v1596
      %v1691 = vpop.permute.xlu0 %1690
      %1694 = vset.pattern.permute.xlu0 0
      %1695 = vperm.xlu0 %1694, %v1597
      %v1696 = vpop.permute.xlu0 %1695
      %1699 = vset.pattern.permute.xlu0 0
      %1700 = vperm.xlu0 %1699, %v1598
      %v1701 = vpop.permute.xlu0 %1700
      %1704 = vset.pattern.permute.xlu0 0
      %1705 = vperm.xlu0 %1704, %v1599
      %v1706 = vpop.permute.xlu0 %1705
      %1709 = vset.pattern.permute.xlu0 0
      %1710 = vperm.xlu0 %1709, %v1600
      %v1711 = vpop.permute.xlu0 %1710
      %1714 = vset.pattern.permute.xlu0 0
      %1715 = vperm.xlu0 %1714, %v1601
      %v1716 = vpop.permute.xlu0 %1715
      %1719 = vset.pattern.permute.xlu0 0
      %1720 = vperm.xlu0 %1719, %v1602
      %v1721 = vpop.permute.xlu0 %1720
      %1724 = vset.pattern.permute.xlu0 0
      %1725 = vperm.xlu0 %1724, %v1603
      %v1726 = vpop.permute.xlu0 %1725
      %1729 = vset.pattern.permute.xlu0 0
      %1730 = vperm.xlu0 %1729, %v1604
      %v1731 = vpop.permute.xlu0 %1730
      %1734 = vset.pattern.permute.xlu0 0
      %1735 = vperm.xlu0 %1734, %v1605
      %v1736 = vpop.permute.xlu0 %1735
      %1739 = vset.pattern.permute.xlu0 0
      %1740 = vperm.xlu0 %1739, %v1606
      %v1741 = vpop.permute.xlu0 %1740
      %1744 = vset.pattern.permute.xlu0 0
      %1745 = vperm.xlu0 %1744, %v1607
      %v1746 = vpop.permute.xlu0 %1745
      %1749 = vset.pattern.permute.xlu0 0
      %1750 = vperm.xlu0 %1749, %v1608
      %v1751 = vpop.permute.xlu0 %1750
      %1754 = vset.pattern.permute.xlu0 0
      %1755 = vperm.xlu0 %1754, %v1609
      %v1756 = vpop.permute.xlu0 %1755
      %1759 = vset.pattern.permute.xlu0 0
      %1760 = vperm.xlu0 %1759, %v1610
      %v1761 = vpop.permute.xlu0 %1760
      %1764 = vset.pattern.permute.xlu0 0
      %1765 = vperm.xlu0 %1764, %v1611
      %v1766 = vpop.permute.xlu0 %1765
      %1769 = vset.pattern.permute.xlu0 0
      %1770 = vperm.xlu0 %1769, %v1612
      %v1771 = vpop.permute.xlu0 %1770
      %v1773 = vmul.f32 %v1548, %v1616
      %v1774 = vmul.f32 %v1549, %v1621
      %v1775 = vmul.f32 %v1550, %v1626
      %v1776 = vmul.f32 %v1551, %v1631
      %v1777 = vmul.f32 %v1552, %v1636
      %v1778 = vmul.f32 %v1553, %v1641
      %v1779 = vmul.f32 %v1554, %v1646
      %v1780 = vmul.f32 %v1555, %v1651
      %v1781 = vmul.f32 %v1556, %v1656
      %v1782 = vmul.f32 %v1557, %v1661
      %v1783 = vmul.f32 %v1558, %v1666
      %v1784 = vmul.f32 %v1559, %v1671
      %v1785 = vmul.f32 %v1560, %v1676
      %v1786 = vmul.f32 %v1561, %v1681
      %v1787 = vmul.f32 %v1562, %v1686
      %v1788 = vmul.f32 %v1563, %v1691
      %v1789 = vmul.f32 %v1564, %v1696
      %v1790 = vmul.f32 %v1565, %v1701
      %v1791 = vmul.f32 %v1566, %v1706
      %v1792 = vmul.f32 %v1567, %v1711
      %v1793 = vmul.f32 %v1568, %v1716
      %v1794 = vmul.f32 %v1569, %v1721
      %v1795 = vmul.f32 %v1570, %v1726
      %v1796 = vmul.f32 %v1571, %v1731
      %v1797 = vmul.f32 %v1572, %v1736
      %v1798 = vmul.f32 %v1573, %v1741
      %v1799 = vmul.f32 %v1574, %v1746
      %v1800 = vmul.f32 %v1575, %v1751
      %v1801 = vmul.f32 %v1576, %v1756
      %v1802 = vmul.f32 %v1577, %v1761
      %v1803 = vmul.f32 %v1578, %v1766
      %v1804 = vmul.f32 %v1579, %v1771
      %v1805 = vpack.c.bf16 %v1774, %v1773
      %v1806 = vpack.c.bf16 %v1776, %v1775
      %v1807 = vpack.c.bf16 %v1778, %v1777
      %v1808 = vpack.c.bf16 %v1780, %v1779
      %v1809 = vpack.c.bf16 %v1782, %v1781
      %v1810 = vpack.c.bf16 %v1784, %v1783
      %v1811 = vpack.c.bf16 %v1786, %v1785
      %v1812 = vpack.c.bf16 %v1788, %v1787
      %v1813 = vpack.c.bf16 %v1790, %v1789
      %v1814 = vpack.c.bf16 %v1792, %v1791
      %v1815 = vpack.c.bf16 %v1794, %v1793
      %v1816 = vpack.c.bf16 %v1796, %v1795
      %v1817 = vpack.c.bf16 %v1798, %v1797
      %v1818 = vpack.c.bf16 %v1800, %v1799
      %v1819 = vpack.c.bf16 %v1802, %v1801
      %v1820 = vpack.c.bf16 %v1804, %v1803
      %s1821 = scalar_lea.vmem %s1, 24
      %v1822 = vld [vmem:[%s1821] sm:$0xff]
      %v1823 = vpack.c.bf16 %v1822, %v1822
      %v1825 = vsel %vm478, %v1805, 0
      %v1828 = vsel %vm478, %v1806, 0
      %v1831 = vsel %vm478, %v1807, 0
      %v1834 = vsel %vm478, %v1808, 0
      %v1837 = vsel %vm478, %v1809, 0
      %v1840 = vsel %vm478, %v1810, 0
      %v1843 = vsel %vm478, %v1811, 0
      %v1846 = vsel %vm478, %v1812, 0
      %v1849 = vsel %vm478, %v1813, 0
      %v1852 = vsel %vm478, %v1814, 0
      %v1855 = vsel %vm478, %v1815, 0
      %v1858 = vsel %vm478, %v1816, 0
      %v1861 = vsel %vm478, %v1817, 0
      %v1864 = vsel %vm478, %v1818, 0
      %v1867 = vsel %vm478, %v1819, 0
      %v1870 = vsel %vm478, %v1820, 0
      %v1873 = vsel %vm527, %v1823, 0
      %1875 = vmatpush.bf16.msra.mxu0 0
      %1876 = vmatpush.bf16.msra.mxu0 0
      %1877 = vmatpush.bf16.msra.mxu0 0
      %1878 = vmatpush.bf16.msra.mxu0 0
      %1879 = vmatpush.bf16.msra.mxu0 0
      %1880 = vmatpush.bf16.msra.mxu0 0
      %1881 = vmatpush.bf16.msra.mxu0 0
      %1882 = vmatpush.bf16.msra.mxu0 %v1873
      %1883 = vmatmul.bf16.gmra.mxu0 %v1825
      %v1884 = vpop.f32.mrf.mxu0
      %v1885 = vadd.f32 0.0, %v1884
      %v1886 = vpop.f32.mrf.mxu0
      %v1887 = vadd.f32 0.0, %v1886
      %1888 = vmatmul.bf16.gmra.mxu0 %v1828
      %v1889 = vpop.f32.mrf.mxu0
      %v1890 = vadd.f32 0.0, %v1889
      %v1891 = vpop.f32.mrf.mxu0
      %v1892 = vadd.f32 0.0, %v1891
      %1893 = vmatmul.bf16.gmra.mxu0 %v1831
      %v1894 = vpop.f32.mrf.mxu0
      %v1895 = vadd.f32 0.0, %v1894
      %v1896 = vpop.f32.mrf.mxu0
      %v1897 = vadd.f32 0.0, %v1896
      %1898 = vmatmul.bf16.gmra.mxu0 %v1834
      %v1899 = vpop.f32.mrf.mxu0
      %v1900 = vadd.f32 0.0, %v1899
      %v1901 = vpop.f32.mrf.mxu0
      %v1902 = vadd.f32 0.0, %v1901
      %1903 = vmatmul.bf16.gmra.mxu0 %v1837
      %v1904 = vpop.f32.mrf.mxu0
      %v1905 = vadd.f32 0.0, %v1904
      %v1906 = vpop.f32.mrf.mxu0
      %v1907 = vadd.f32 0.0, %v1906
      %1908 = vmatmul.bf16.gmra.mxu0 %v1840
      %v1909 = vpop.f32.mrf.mxu0
      %v1910 = vadd.f32 0.0, %v1909
      %v1911 = vpop.f32.mrf.mxu0
      %v1912 = vadd.f32 0.0, %v1911
      %1913 = vmatmul.bf16.gmra.mxu0 %v1843
      %v1914 = vpop.f32.mrf.mxu0
      %v1915 = vadd.f32 0.0, %v1914
      %v1916 = vpop.f32.mrf.mxu0
      %v1917 = vadd.f32 0.0, %v1916
      %1918 = vmatmul.bf16.gmra.mxu0 %v1846
      %v1919 = vpop.f32.mrf.mxu0
      %v1920 = vadd.f32 0.0, %v1919
      %v1921 = vpop.f32.mrf.mxu0
      %v1922 = vadd.f32 0.0, %v1921
      %1923 = vmatmul.bf16.gmra.mxu0 %v1849
      %v1924 = vpop.f32.mrf.mxu0
      %v1925 = vadd.f32 0.0, %v1924
      %v1926 = vpop.f32.mrf.mxu0
      %v1927 = vadd.f32 0.0, %v1926
      %1928 = vmatmul.bf16.gmra.mxu0 %v1852
      %v1929 = vpop.f32.mrf.mxu0
      %v1930 = vadd.f32 0.0, %v1929
      %v1931 = vpop.f32.mrf.mxu0
      %v1932 = vadd.f32 0.0, %v1931
      %1933 = vmatmul.bf16.gmra.mxu0 %v1855
      %v1934 = vpop.f32.mrf.mxu0
      %v1935 = vadd.f32 0.0, %v1934
      %v1936 = vpop.f32.mrf.mxu0
      %v1937 = vadd.f32 0.0, %v1936
      %1938 = vmatmul.bf16.gmra.mxu0 %v1858
      %v1939 = vpop.f32.mrf.mxu0
      %v1940 = vadd.f32 0.0, %v1939
      %v1941 = vpop.f32.mrf.mxu0
      %v1942 = vadd.f32 0.0, %v1941
      %1943 = vmatmul.bf16.gmra.mxu0 %v1861
      %v1944 = vpop.f32.mrf.mxu0
      %v1945 = vadd.f32 0.0, %v1944
      %v1946 = vpop.f32.mrf.mxu0
      %v1947 = vadd.f32 0.0, %v1946
      %1948 = vmatmul.bf16.gmra.mxu0 %v1864
      %v1949 = vpop.f32.mrf.mxu0
      %v1950 = vadd.f32 0.0, %v1949
      %v1951 = vpop.f32.mrf.mxu0
      %v1952 = vadd.f32 0.0, %v1951
      %1953 = vmatmul.bf16.gmra.mxu0 %v1867
      %v1954 = vpop.f32.mrf.mxu0
      %v1955 = vadd.f32 0.0, %v1954
      %v1956 = vpop.f32.mrf.mxu0
      %v1957 = vadd.f32 0.0, %v1956
      %1958 = vmatmul.bf16.gmra.mxu0 %v1870
      %v1959 = vpop.f32.mrf.mxu0
      %v1960 = vadd.f32 0.0, %v1959
      %v1961 = vpop.f32.mrf.mxu0
      %v1962 = vadd.f32 0.0, %v1961
      %1963 = vdwg.mxu0
      %v1964 = vadd.f32 %v1516, %v1885
      %v1965 = vadd.f32 %v1517, %v1887
      %v1966 = vadd.f32 %v1518, %v1890
      %v1967 = vadd.f32 %v1519, %v1892
      %v1968 = vadd.f32 %v1520, %v1895
      %v1969 = vadd.f32 %v1521, %v1897
      %v1970 = vadd.f32 %v1522, %v1900
      %v1971 = vadd.f32 %v1523, %v1902
      %v1972 = vadd.f32 %v1524, %v1905
      %v1973 = vadd.f32 %v1525, %v1907
      %v1974 = vadd.f32 %v1526, %v1910
      %v1975 = vadd.f32 %v1527, %v1912
      %v1976 = vadd.f32 %v1528, %v1915
      %v1977 = vadd.f32 %v1529, %v1917
      %v1978 = vadd.f32 %v1530, %v1920
      %v1979 = vadd.f32 %v1531, %v1922
      %v1980 = vadd.f32 %v1532, %v1925
      %v1981 = vadd.f32 %v1533, %v1927
      %v1982 = vadd.f32 %v1534, %v1930
      %v1983 = vadd.f32 %v1535, %v1932
      %v1984 = vadd.f32 %v1536, %v1935
      %v1985 = vadd.f32 %v1537, %v1937
      %v1986 = vadd.f32 %v1538, %v1940
      %v1987 = vadd.f32 %v1539, %v1942
      %v1988 = vadd.f32 %v1540, %v1945
      %v1989 = vadd.f32 %v1541, %v1947
      %v1990 = vadd.f32 %v1542, %v1950
      %v1991 = vadd.f32 %v1543, %v1952
      %v1992 = vadd.f32 %v1544, %v1955
      %v1993 = vadd.f32 %v1545, %v1957
      %v1994 = vadd.f32 %v1546, %v1960
      %v1995 = vadd.f32 %v1547, %v1962
      %v1996 = vld [vmem:[%s192 + $0x11] sm:$0xff]
      %v1997 = vld [vmem:[%s192 + $0x19] sm:$0xff]
      %v1998 = vld [vmem:[%s192 + $0x21] sm:$0xff]
      %v1999 = vld [vmem:[%s192 + $0x29] sm:$0xff]
      %v2000 = vld [vmem:[%s192 + $0x31] sm:$0xff]
      %v2001 = vld [vmem:[%s192 + $0x39] sm:$0xff]
      %v2002 = vld [vmem:[%s192 + $0x41] sm:$0xff]
      %v2003 = vld [vmem:[%s192 + $0x49] sm:$0xff]
      %v2004 = vld [vmem:[%s192 + $0x51] sm:$0xff]
      %v2005 = vld [vmem:[%s192 + $0x59] sm:$0xff]
      %v2006 = vld [vmem:[%s192 + $0x61] sm:$0xff]
      %v2007 = vld [vmem:[%s192 + $0x69] sm:$0xff]
      %v2008 = vld [vmem:[%s192 + $0x71] sm:$0xff]
      %v2009 = vld [vmem:[%s192 + $0x79] sm:$0xff]
      %v2010 = vld [vmem:[%s192 + $0x81] sm:$0xff]
      %v2011 = vld [vmem:[%s192 + $0x89] sm:$0xff]
      %v2012 = vld [vmem:[%s192 + $0x91] sm:$0xff]
      %v2013 = vld [vmem:[%s192 + $0x99] sm:$0xff]
      %v2014 = vld [vmem:[%s192 + $0xa1] sm:$0xff]
      %v2015 = vld [vmem:[%s192 + $0xa9] sm:$0xff]
      %v2016 = vld [vmem:[%s192 + $0xb1] sm:$0xff]
      %v2017 = vld [vmem:[%s192 + $0xb9] sm:$0xff]
      %v2018 = vld [vmem:[%s192 + $0xc1] sm:$0xff]
      %v2019 = vld [vmem:[%s192 + $0xc9] sm:$0xff]
      %v2020 = vld [vmem:[%s192 + $0xd1] sm:$0xff]
      %v2021 = vld [vmem:[%s192 + $0xd9] sm:$0xff]
      %v2022 = vld [vmem:[%s192 + $0xe1] sm:$0xff]
      %v2023 = vld [vmem:[%s192 + $0xe9] sm:$0xff]
      %v2024 = vld [vmem:[%s192 + $0xf1] sm:$0xff]
      %v2025 = vld [vmem:[%s192 + $0xf9] sm:$0xff]
      %v2026 = vld [vmem:[%s192 + $0x101] sm:$0xff]
      %v2027 = vld [vmem:[%s192 + $0x109] sm:$0xff]
      %s2028 = scalar_lea.vmem %s3, 1024
      %v2029 = vld [vmem:[%s2028] sm:$0xff]
      %v2030 = vld [vmem:[%s2028 + $0x8] sm:$0xff]
      %v2031 = vld [vmem:[%s2028 + $0x10] sm:$0xff]
      %v2032 = vld [vmem:[%s2028 + $0x18] sm:$0xff]
      %v2033 = vld [vmem:[%s2028 + $0x20] sm:$0xff]
      %v2034 = vld [vmem:[%s2028 + $0x28] sm:$0xff]
      %v2035 = vld [vmem:[%s2028 + $0x30] sm:$0xff]
      %v2036 = vld [vmem:[%s2028 + $0x38] sm:$0xff]
      %v2037 = vld [vmem:[%s2028 + $0x40] sm:$0xff]
      %v2038 = vld [vmem:[%s2028 + $0x48] sm:$0xff]
      %v2039 = vld [vmem:[%s2028 + $0x50] sm:$0xff]
      %v2040 = vld [vmem:[%s2028 + $0x58] sm:$0xff]
      %v2041 = vld [vmem:[%s2028 + $0x60] sm:$0xff]
      %v2042 = vld [vmem:[%s2028 + $0x68] sm:$0xff]
      %v2043 = vld [vmem:[%s2028 + $0x70] sm:$0xff]
      %v2044 = vld [vmem:[%s2028 + $0x78] sm:$0xff]
      %v2045 = vld [vmem:[%s2028 + $0x80] sm:$0xff]
      %v2046 = vld [vmem:[%s2028 + $0x88] sm:$0xff]
      %v2047 = vld [vmem:[%s2028 + $0x90] sm:$0xff]
      %v2048 = vld [vmem:[%s2028 + $0x98] sm:$0xff]
      %v2049 = vld [vmem:[%s2028 + $0xa0] sm:$0xff]
      %v2050 = vld [vmem:[%s2028 + $0xa8] sm:$0xff]
      %v2051 = vld [vmem:[%s2028 + $0xb0] sm:$0xff]
      %v2052 = vld [vmem:[%s2028 + $0xb8] sm:$0xff]
      %v2053 = vld [vmem:[%s2028 + $0xc0] sm:$0xff]
      %v2054 = vld [vmem:[%s2028 + $0xc8] sm:$0xff]
      %v2055 = vld [vmem:[%s2028 + $0xd0] sm:$0xff]
      %v2056 = vld [vmem:[%s2028 + $0xd8] sm:$0xff]
      %v2057 = vld [vmem:[%s2028 + $0xe0] sm:$0xff]
      %v2058 = vld [vmem:[%s2028 + $0xe8] sm:$0xff]
      %v2059 = vld [vmem:[%s2028 + $0xf0] sm:$0xff]
      %v2060 = vld [vmem:[%s2028 + $0xf8] sm:$0xff]
      %2062 = vset.pattern.permute.xlu0 0
      %2063 = vperm.xlu0 %2062, %v2029
      %v2064 = vpop.permute.xlu0 %2063
      %2067 = vset.pattern.permute.xlu0 0
      %2068 = vperm.xlu0 %2067, %v2030
      %v2069 = vpop.permute.xlu0 %2068
      %2072 = vset.pattern.permute.xlu0 0
      %2073 = vperm.xlu0 %2072, %v2031
      %v2074 = vpop.permute.xlu0 %2073
      %2077 = vset.pattern.permute.xlu0 0
      %2078 = vperm.xlu0 %2077, %v2032
      %v2079 = vpop.permute.xlu0 %2078
      %2082 = vset.pattern.permute.xlu0 0
      %2083 = vperm.xlu0 %2082, %v2033
      %v2084 = vpop.permute.xlu0 %2083
      %2087 = vset.pattern.permute.xlu0 0
      %2088 = vperm.xlu0 %2087, %v2034
      %v2089 = vpop.permute.xlu0 %2088
      %2092 = vset.pattern.permute.xlu0 0
      %2093 = vperm.xlu0 %2092, %v2035
      %v2094 = vpop.permute.xlu0 %2093
      %2097 = vset.pattern.permute.xlu0 0
      %2098 = vperm.xlu0 %2097, %v2036
      %v2099 = vpop.permute.xlu0 %2098
      %2102 = vset.pattern.permute.xlu0 0
      %2103 = vperm.xlu0 %2102, %v2037
      %v2104 = vpop.permute.xlu0 %2103
      %2107 = vset.pattern.permute.xlu0 0
      %2108 = vperm.xlu0 %2107, %v2038
      %v2109 = vpop.permute.xlu0 %2108
      %2112 = vset.pattern.permute.xlu0 0
      %2113 = vperm.xlu0 %2112, %v2039
      %v2114 = vpop.permute.xlu0 %2113
      %2117 = vset.pattern.permute.xlu0 0
      %2118 = vperm.xlu0 %2117, %v2040
      %v2119 = vpop.permute.xlu0 %2118
      %2122 = vset.pattern.permute.xlu0 0
      %2123 = vperm.xlu0 %2122, %v2041
      %v2124 = vpop.permute.xlu0 %2123
      %2127 = vset.pattern.permute.xlu0 0
      %2128 = vperm.xlu0 %2127, %v2042
      %v2129 = vpop.permute.xlu0 %2128
      %2132 = vset.pattern.permute.xlu0 0
      %2133 = vperm.xlu0 %2132, %v2043
      %v2134 = vpop.permute.xlu0 %2133
      %2137 = vset.pattern.permute.xlu0 0
      %2138 = vperm.xlu0 %2137, %v2044
      %v2139 = vpop.permute.xlu0 %2138
      %2142 = vset.pattern.permute.xlu0 0
      %2143 = vperm.xlu0 %2142, %v2045
      %v2144 = vpop.permute.xlu0 %2143
      %2147 = vset.pattern.permute.xlu0 0
      %2148 = vperm.xlu0 %2147, %v2046
      %v2149 = vpop.permute.xlu0 %2148
      %2152 = vset.pattern.permute.xlu0 0
      %2153 = vperm.xlu0 %2152, %v2047
      %v2154 = vpop.permute.xlu0 %2153
      %2157 = vset.pattern.permute.xlu0 0
      %2158 = vperm.xlu0 %2157, %v2048
      %v2159 = vpop.permute.xlu0 %2158
      %2162 = vset.pattern.permute.xlu0 0
      %2163 = vperm.xlu0 %2162, %v2049
      %v2164 = vpop.permute.xlu0 %2163
      %2167 = vset.pattern.permute.xlu0 0
      %2168 = vperm.xlu0 %2167, %v2050
      %v2169 = vpop.permute.xlu0 %2168
      %2172 = vset.pattern.permute.xlu0 0
      %2173 = vperm.xlu0 %2172, %v2051
      %v2174 = vpop.permute.xlu0 %2173
      %2177 = vset.pattern.permute.xlu0 0
      %2178 = vperm.xlu0 %2177, %v2052
      %v2179 = vpop.permute.xlu0 %2178
      %2182 = vset.pattern.permute.xlu0 0
      %2183 = vperm.xlu0 %2182, %v2053
      %v2184 = vpop.permute.xlu0 %2183
      %2187 = vset.pattern.permute.xlu0 0
      %2188 = vperm.xlu0 %2187, %v2054
      %v2189 = vpop.permute.xlu0 %2188
      %2192 = vset.pattern.permute.xlu0 0
      %2193 = vperm.xlu0 %2192, %v2055
      %v2194 = vpop.permute.xlu0 %2193
      %2197 = vset.pattern.permute.xlu0 0
      %2198 = vperm.xlu0 %2197, %v2056
      %v2199 = vpop.permute.xlu0 %2198
      %2202 = vset.pattern.permute.xlu0 0
      %2203 = vperm.xlu0 %2202, %v2057
      %v2204 = vpop.permute.xlu0 %2203
      %2207 = vset.pattern.permute.xlu0 0
      %2208 = vperm.xlu0 %2207, %v2058
      %v2209 = vpop.permute.xlu0 %2208
      %2212 = vset.pattern.permute.xlu0 0
      %2213 = vperm.xlu0 %2212, %v2059
      %v2214 = vpop.permute.xlu0 %2213
      %2217 = vset.pattern.permute.xlu0 0
      %2218 = vperm.xlu0 %2217, %v2060
      %v2219 = vpop.permute.xlu0 %2218
      %v2221 = vmul.f32 %v1996, %v2064
      %v2222 = vmul.f32 %v1997, %v2069
      %v2223 = vmul.f32 %v1998, %v2074
      %v2224 = vmul.f32 %v1999, %v2079
      %v2225 = vmul.f32 %v2000, %v2084
      %v2226 = vmul.f32 %v2001, %v2089
      %v2227 = vmul.f32 %v2002, %v2094
      %v2228 = vmul.f32 %v2003, %v2099
      %v2229 = vmul.f32 %v2004, %v2104
      %v2230 = vmul.f32 %v2005, %v2109
      %v2231 = vmul.f32 %v2006, %v2114
      %v2232 = vmul.f32 %v2007, %v2119
      %v2233 = vmul.f32 %v2008, %v2124
      %v2234 = vmul.f32 %v2009, %v2129
      %v2235 = vmul.f32 %v2010, %v2134
      %v2236 = vmul.f32 %v2011, %v2139
      %v2237 = vmul.f32 %v2012, %v2144
      %v2238 = vmul.f32 %v2013, %v2149
      %v2239 = vmul.f32 %v2014, %v2154
      %v2240 = vmul.f32 %v2015, %v2159
      %v2241 = vmul.f32 %v2016, %v2164
      %v2242 = vmul.f32 %v2017, %v2169
      %v2243 = vmul.f32 %v2018, %v2174
      %v2244 = vmul.f32 %v2019, %v2179
      %v2245 = vmul.f32 %v2020, %v2184
      %v2246 = vmul.f32 %v2021, %v2189
      %v2247 = vmul.f32 %v2022, %v2194
      %v2248 = vmul.f32 %v2023, %v2199
      %v2249 = vmul.f32 %v2024, %v2204
      %v2250 = vmul.f32 %v2025, %v2209
      %v2251 = vmul.f32 %v2026, %v2214
      %v2252 = vmul.f32 %v2027, %v2219
      %v2253 = vpack.c.bf16 %v2222, %v2221
      %v2254 = vpack.c.bf16 %v2224, %v2223
      %v2255 = vpack.c.bf16 %v2226, %v2225
      %v2256 = vpack.c.bf16 %v2228, %v2227
      %v2257 = vpack.c.bf16 %v2230, %v2229
      %v2258 = vpack.c.bf16 %v2232, %v2231
      %v2259 = vpack.c.bf16 %v2234, %v2233
      %v2260 = vpack.c.bf16 %v2236, %v2235
      %v2261 = vpack.c.bf16 %v2238, %v2237
      %v2262 = vpack.c.bf16 %v2240, %v2239
      %v2263 = vpack.c.bf16 %v2242, %v2241
      %v2264 = vpack.c.bf16 %v2244, %v2243
      %v2265 = vpack.c.bf16 %v2246, %v2245
      %v2266 = vpack.c.bf16 %v2248, %v2247
      %v2267 = vpack.c.bf16 %v2250, %v2249
      %v2268 = vpack.c.bf16 %v2252, %v2251
      %s2269 = scalar_lea.vmem %s1, 32
      %v2270 = vld [vmem:[%s2269] sm:$0xff]
      %v2271 = vpack.c.bf16 %v2270, %v2270
      %v2273 = vsel %vm478, %v2253, 0
      %v2276 = vsel %vm478, %v2254, 0
      %v2279 = vsel %vm478, %v2255, 0
      %v2282 = vsel %vm478, %v2256, 0
      %v2285 = vsel %vm478, %v2257, 0
      %v2288 = vsel %vm478, %v2258, 0
      %v2291 = vsel %vm478, %v2259, 0
      %v2294 = vsel %vm478, %v2260, 0
      %v2297 = vsel %vm478, %v2261, 0
      %v2300 = vsel %vm478, %v2262, 0
      %v2303 = vsel %vm478, %v2263, 0
      %v2306 = vsel %vm478, %v2264, 0
      %v2309 = vsel %vm478, %v2265, 0
      %v2312 = vsel %vm478, %v2266, 0
      %v2315 = vsel %vm478, %v2267, 0
      %v2318 = vsel %vm478, %v2268, 0
      %v2321 = vsel %vm527, %v2271, 0
      %2323 = vmatpush.bf16.msra.mxu0 0
      %2324 = vmatpush.bf16.msra.mxu0 0
      %2325 = vmatpush.bf16.msra.mxu0 0
      %2326 = vmatpush.bf16.msra.mxu0 0
      %2327 = vmatpush.bf16.msra.mxu0 0
      %2328 = vmatpush.bf16.msra.mxu0 0
      %2329 = vmatpush.bf16.msra.mxu0 0
      %2330 = vmatpush.bf16.msra.mxu0 %v2321
      %2331 = vmatmul.bf16.gmra.mxu0 %v2273
      %v2332 = vpop.f32.mrf.mxu0
      %v2333 = vadd.f32 0.0, %v2332
      %v2334 = vpop.f32.mrf.mxu0
      %v2335 = vadd.f32 0.0, %v2334
      %2336 = vmatmul.bf16.gmra.mxu0 %v2276
      %v2337 = vpop.f32.mrf.mxu0
      %v2338 = vadd.f32 0.0, %v2337
      %v2339 = vpop.f32.mrf.mxu0
      %v2340 = vadd.f32 0.0, %v2339
      %2341 = vmatmul.bf16.gmra.mxu0 %v2279
      %v2342 = vpop.f32.mrf.mxu0
      %v2343 = vadd.f32 0.0, %v2342
      %v2344 = vpop.f32.mrf.mxu0
      %v2345 = vadd.f32 0.0, %v2344
      %2346 = vmatmul.bf16.gmra.mxu0 %v2282
      %v2347 = vpop.f32.mrf.mxu0
      %v2348 = vadd.f32 0.0, %v2347
      %v2349 = vpop.f32.mrf.mxu0
      %v2350 = vadd.f32 0.0, %v2349
      %2351 = vmatmul.bf16.gmra.mxu0 %v2285
      %v2352 = vpop.f32.mrf.mxu0
      %v2353 = vadd.f32 0.0, %v2352
      %v2354 = vpop.f32.mrf.mxu0
      %v2355 = vadd.f32 0.0, %v2354
      %2356 = vmatmul.bf16.gmra.mxu0 %v2288
      %v2357 = vpop.f32.mrf.mxu0
      %v2358 = vadd.f32 0.0, %v2357
      %v2359 = vpop.f32.mrf.mxu0
      %v2360 = vadd.f32 0.0, %v2359
      %2361 = vmatmul.bf16.gmra.mxu0 %v2291
      %v2362 = vpop.f32.mrf.mxu0
      %v2363 = vadd.f32 0.0, %v2362
      %v2364 = vpop.f32.mrf.mxu0
      %v2365 = vadd.f32 0.0, %v2364
      %2366 = vmatmul.bf16.gmra.mxu0 %v2294
      %v2367 = vpop.f32.mrf.mxu0
      %v2368 = vadd.f32 0.0, %v2367
      %v2369 = vpop.f32.mrf.mxu0
      %v2370 = vadd.f32 0.0, %v2369
      %2371 = vmatmul.bf16.gmra.mxu0 %v2297
      %v2372 = vpop.f32.mrf.mxu0
      %v2373 = vadd.f32 0.0, %v2372
      %v2374 = vpop.f32.mrf.mxu0
      %v2375 = vadd.f32 0.0, %v2374
      %2376 = vmatmul.bf16.gmra.mxu0 %v2300
      %v2377 = vpop.f32.mrf.mxu0
      %v2378 = vadd.f32 0.0, %v2377
      %v2379 = vpop.f32.mrf.mxu0
      %v2380 = vadd.f32 0.0, %v2379
      %2381 = vmatmul.bf16.gmra.mxu0 %v2303
      %v2382 = vpop.f32.mrf.mxu0
      %v2383 = vadd.f32 0.0, %v2382
      %v2384 = vpop.f32.mrf.mxu0
      %v2385 = vadd.f32 0.0, %v2384
      %2386 = vmatmul.bf16.gmra.mxu0 %v2306
      %v2387 = vpop.f32.mrf.mxu0
      %v2388 = vadd.f32 0.0, %v2387
      %v2389 = vpop.f32.mrf.mxu0
      %v2390 = vadd.f32 0.0, %v2389
      %2391 = vmatmul.bf16.gmra.mxu0 %v2309
      %v2392 = vpop.f32.mrf.mxu0
      %v2393 = vadd.f32 0.0, %v2392
      %v2394 = vpop.f32.mrf.mxu0
      %v2395 = vadd.f32 0.0, %v2394
      %2396 = vmatmul.bf16.gmra.mxu0 %v2312
      %v2397 = vpop.f32.mrf.mxu0
      %v2398 = vadd.f32 0.0, %v2397
      %v2399 = vpop.f32.mrf.mxu0
      %v2400 = vadd.f32 0.0, %v2399
      %2401 = vmatmul.bf16.gmra.mxu0 %v2315
      %v2402 = vpop.f32.mrf.mxu0
      %v2403 = vadd.f32 0.0, %v2402
      %v2404 = vpop.f32.mrf.mxu0
      %v2405 = vadd.f32 0.0, %v2404
      %2406 = vmatmul.bf16.gmra.mxu0 %v2318
      %v2407 = vpop.f32.mrf.mxu0
      %v2408 = vadd.f32 0.0, %v2407
      %v2409 = vpop.f32.mrf.mxu0
      %v2410 = vadd.f32 0.0, %v2409
      %2411 = vdwg.mxu0
      %v2412 = vadd.f32 %v1964, %v2333
      %v2413 = vadd.f32 %v1965, %v2335
      %v2414 = vadd.f32 %v1966, %v2338
      %v2415 = vadd.f32 %v1967, %v2340
      %v2416 = vadd.f32 %v1968, %v2343
      %v2417 = vadd.f32 %v1969, %v2345
      %v2418 = vadd.f32 %v1970, %v2348
      %v2419 = vadd.f32 %v1971, %v2350
      %v2420 = vadd.f32 %v1972, %v2353
      %v2421 = vadd.f32 %v1973, %v2355
      %v2422 = vadd.f32 %v1974, %v2358
      %v2423 = vadd.f32 %v1975, %v2360
      %v2424 = vadd.f32 %v1976, %v2363
      %v2425 = vadd.f32 %v1977, %v2365
      %v2426 = vadd.f32 %v1978, %v2368
      %v2427 = vadd.f32 %v1979, %v2370
      %v2428 = vadd.f32 %v1980, %v2373
      %v2429 = vadd.f32 %v1981, %v2375
      %v2430 = vadd.f32 %v1982, %v2378
      %v2431 = vadd.f32 %v1983, %v2380
      %v2432 = vadd.f32 %v1984, %v2383
      %v2433 = vadd.f32 %v1985, %v2385
      %v2434 = vadd.f32 %v1986, %v2388
      %v2435 = vadd.f32 %v1987, %v2390
      %v2436 = vadd.f32 %v1988, %v2393
      %v2437 = vadd.f32 %v1989, %v2395
      %v2438 = vadd.f32 %v1990, %v2398
      %v2439 = vadd.f32 %v1991, %v2400
      %v2440 = vadd.f32 %v1992, %v2403
      %v2441 = vadd.f32 %v1993, %v2405
      %v2442 = vadd.f32 %v1994, %v2408
      %v2443 = vadd.f32 %v1995, %v2410
      %v2444 = vld [vmem:[%s192 + $0x12] sm:$0xff]
      %v2445 = vld [vmem:[%s192 + $0x1a] sm:$0xff]
      %v2446 = vld [vmem:[%s192 + $0x22] sm:$0xff]
      %v2447 = vld [vmem:[%s192 + $0x2a] sm:$0xff]
      %v2448 = vld [vmem:[%s192 + $0x32] sm:$0xff]
      %v2449 = vld [vmem:[%s192 + $0x3a] sm:$0xff]
      %v2450 = vld [vmem:[%s192 + $0x42] sm:$0xff]
      %v2451 = vld [vmem:[%s192 + $0x4a] sm:$0xff]
      %v2452 = vld [vmem:[%s192 + $0x52] sm:$0xff]
      %v2453 = vld [vmem:[%s192 + $0x5a] sm:$0xff]
      %v2454 = vld [vmem:[%s192 + $0x62] sm:$0xff]
      %v2455 = vld [vmem:[%s192 + $0x6a] sm:$0xff]
      %v2456 = vld [vmem:[%s192 + $0x72] sm:$0xff]
      %v2457 = vld [vmem:[%s192 + $0x7a] sm:$0xff]
      %v2458 = vld [vmem:[%s192 + $0x82] sm:$0xff]
      %v2459 = vld [vmem:[%s192 + $0x8a] sm:$0xff]
      %v2460 = vld [vmem:[%s192 + $0x92] sm:$0xff]
      %v2461 = vld [vmem:[%s192 + $0x9a] sm:$0xff]
      %v2462 = vld [vmem:[%s192 + $0xa2] sm:$0xff]
      %v2463 = vld [vmem:[%s192 + $0xaa] sm:$0xff]
      %v2464 = vld [vmem:[%s192 + $0xb2] sm:$0xff]
      %v2465 = vld [vmem:[%s192 + $0xba] sm:$0xff]
      %v2466 = vld [vmem:[%s192 + $0xc2] sm:$0xff]
      %v2467 = vld [vmem:[%s192 + $0xca] sm:$0xff]
      %v2468 = vld [vmem:[%s192 + $0xd2] sm:$0xff]
      %v2469 = vld [vmem:[%s192 + $0xda] sm:$0xff]
      %v2470 = vld [vmem:[%s192 + $0xe2] sm:$0xff]
      %v2471 = vld [vmem:[%s192 + $0xea] sm:$0xff]
      %v2472 = vld [vmem:[%s192 + $0xf2] sm:$0xff]
      %v2473 = vld [vmem:[%s192 + $0xfa] sm:$0xff]
      %v2474 = vld [vmem:[%s192 + $0x102] sm:$0xff]
      %v2475 = vld [vmem:[%s192 + $0x10a] sm:$0xff]
      %s2476 = scalar_lea.vmem %s3, 1280
      %v2477 = vld [vmem:[%s2476] sm:$0xff]
      %v2478 = vld [vmem:[%s2476 + $0x8] sm:$0xff]
      %v2479 = vld [vmem:[%s2476 + $0x10] sm:$0xff]
      %v2480 = vld [vmem:[%s2476 + $0x18] sm:$0xff]
      %v2481 = vld [vmem:[%s2476 + $0x20] sm:$0xff]
      %v2482 = vld [vmem:[%s2476 + $0x28] sm:$0xff]
      %v2483 = vld [vmem:[%s2476 + $0x30] sm:$0xff]
      %v2484 = vld [vmem:[%s2476 + $0x38] sm:$0xff]
      %v2485 = vld [vmem:[%s2476 + $0x40] sm:$0xff]
      %v2486 = vld [vmem:[%s2476 + $0x48] sm:$0xff]
      %v2487 = vld [vmem:[%s2476 + $0x50] sm:$0xff]
      %v2488 = vld [vmem:[%s2476 + $0x58] sm:$0xff]
      %v2489 = vld [vmem:[%s2476 + $0x60] sm:$0xff]
      %v2490 = vld [vmem:[%s2476 + $0x68] sm:$0xff]
      %v2491 = vld [vmem:[%s2476 + $0x70] sm:$0xff]
      %v2492 = vld [vmem:[%s2476 + $0x78] sm:$0xff]
      %v2493 = vld [vmem:[%s2476 + $0x80] sm:$0xff]
      %v2494 = vld [vmem:[%s2476 + $0x88] sm:$0xff]
      %v2495 = vld [vmem:[%s2476 + $0x90] sm:$0xff]
      %v2496 = vld [vmem:[%s2476 + $0x98] sm:$0xff]
      %v2497 = vld [vmem:[%s2476 + $0xa0] sm:$0xff]
      %v2498 = vld [vmem:[%s2476 + $0xa8] sm:$0xff]
      %v2499 = vld [vmem:[%s2476 + $0xb0] sm:$0xff]
      %v2500 = vld [vmem:[%s2476 + $0xb8] sm:$0xff]
      %v2501 = vld [vmem:[%s2476 + $0xc0] sm:$0xff]
      %v2502 = vld [vmem:[%s2476 + $0xc8] sm:$0xff]
      %v2503 = vld [vmem:[%s2476 + $0xd0] sm:$0xff]
      %v2504 = vld [vmem:[%s2476 + $0xd8] sm:$0xff]
      %v2505 = vld [vmem:[%s2476 + $0xe0] sm:$0xff]
      %v2506 = vld [vmem:[%s2476 + $0xe8] sm:$0xff]
      %v2507 = vld [vmem:[%s2476 + $0xf0] sm:$0xff]
      %v2508 = vld [vmem:[%s2476 + $0xf8] sm:$0xff]
      %2510 = vset.pattern.permute.xlu0 0
      %2511 = vperm.xlu0 %2510, %v2477
      %v2512 = vpop.permute.xlu0 %2511
      %2515 = vset.pattern.permute.xlu0 0
      %2516 = vperm.xlu0 %2515, %v2478
      %v2517 = vpop.permute.xlu0 %2516
      %2520 = vset.pattern.permute.xlu0 0
      %2521 = vperm.xlu0 %2520, %v2479
      %v2522 = vpop.permute.xlu0 %2521
      %2525 = vset.pattern.permute.xlu0 0
      %2526 = vperm.xlu0 %2525, %v2480
      %v2527 = vpop.permute.xlu0 %2526
      %2530 = vset.pattern.permute.xlu0 0
      %2531 = vperm.xlu0 %2530, %v2481
      %v2532 = vpop.permute.xlu0 %2531
      %2535 = vset.pattern.permute.xlu0 0
      %2536 = vperm.xlu0 %2535, %v2482
      %v2537 = vpop.permute.xlu0 %2536
      %2540 = vset.pattern.permute.xlu0 0
      %2541 = vperm.xlu0 %2540, %v2483
      %v2542 = vpop.permute.xlu0 %2541
      %2545 = vset.pattern.permute.xlu0 0
      %2546 = vperm.xlu0 %2545, %v2484
      %v2547 = vpop.permute.xlu0 %2546
      %2550 = vset.pattern.permute.xlu0 0
      %2551 = vperm.xlu0 %2550, %v2485
      %v2552 = vpop.permute.xlu0 %2551
      %2555 = vset.pattern.permute.xlu0 0
      %2556 = vperm.xlu0 %2555, %v2486
      %v2557 = vpop.permute.xlu0 %2556
      %2560 = vset.pattern.permute.xlu0 0
      %2561 = vperm.xlu0 %2560, %v2487
      %v2562 = vpop.permute.xlu0 %2561
      %2565 = vset.pattern.permute.xlu0 0
      %2566 = vperm.xlu0 %2565, %v2488
      %v2567 = vpop.permute.xlu0 %2566
      %2570 = vset.pattern.permute.xlu0 0
      %2571 = vperm.xlu0 %2570, %v2489
      %v2572 = vpop.permute.xlu0 %2571
      %2575 = vset.pattern.permute.xlu0 0
      %2576 = vperm.xlu0 %2575, %v2490
      %v2577 = vpop.permute.xlu0 %2576
      %2580 = vset.pattern.permute.xlu0 0
      %2581 = vperm.xlu0 %2580, %v2491
      %v2582 = vpop.permute.xlu0 %2581
      %2585 = vset.pattern.permute.xlu0 0
      %2586 = vperm.xlu0 %2585, %v2492
      %v2587 = vpop.permute.xlu0 %2586
      %2590 = vset.pattern.permute.xlu0 0
      %2591 = vperm.xlu0 %2590, %v2493
      %v2592 = vpop.permute.xlu0 %2591
      %2595 = vset.pattern.permute.xlu0 0
      %2596 = vperm.xlu0 %2595, %v2494
      %v2597 = vpop.permute.xlu0 %2596
      %2600 = vset.pattern.permute.xlu0 0
      %2601 = vperm.xlu0 %2600, %v2495
      %v2602 = vpop.permute.xlu0 %2601
      %2605 = vset.pattern.permute.xlu0 0
      %2606 = vperm.xlu0 %2605, %v2496
      %v2607 = vpop.permute.xlu0 %2606
      %2610 = vset.pattern.permute.xlu0 0
      %2611 = vperm.xlu0 %2610, %v2497
      %v2612 = vpop.permute.xlu0 %2611
      %2615 = vset.pattern.permute.xlu0 0
      %2616 = vperm.xlu0 %2615, %v2498
      %v2617 = vpop.permute.xlu0 %2616
      %2620 = vset.pattern.permute.xlu0 0
      %2621 = vperm.xlu0 %2620, %v2499
      %v2622 = vpop.permute.xlu0 %2621
      %2625 = vset.pattern.permute.xlu0 0
      %2626 = vperm.xlu0 %2625, %v2500
      %v2627 = vpop.permute.xlu0 %2626
      %2630 = vset.pattern.permute.xlu0 0
      %2631 = vperm.xlu0 %2630, %v2501
      %v2632 = vpop.permute.xlu0 %2631
      %2635 = vset.pattern.permute.xlu0 0
      %2636 = vperm.xlu0 %2635, %v2502
      %v2637 = vpop.permute.xlu0 %2636
      %2640 = vset.pattern.permute.xlu0 0
      %2641 = vperm.xlu0 %2640, %v2503
      %v2642 = vpop.permute.xlu0 %2641
      %2645 = vset.pattern.permute.xlu0 0
      %2646 = vperm.xlu0 %2645, %v2504
      %v2647 = vpop.permute.xlu0 %2646
      %2650 = vset.pattern.permute.xlu0 0
      %2651 = vperm.xlu0 %2650, %v2505
      %v2652 = vpop.permute.xlu0 %2651
      %2655 = vset.pattern.permute.xlu0 0
      %2656 = vperm.xlu0 %2655, %v2506
      %v2657 = vpop.permute.xlu0 %2656
      %2660 = vset.pattern.permute.xlu0 0
      %2661 = vperm.xlu0 %2660, %v2507
      %v2662 = vpop.permute.xlu0 %2661
      %2665 = vset.pattern.permute.xlu0 0
      %2666 = vperm.xlu0 %2665, %v2508
      %v2667 = vpop.permute.xlu0 %2666
      %v2669 = vmul.f32 %v2444, %v2512
      %v2670 = vmul.f32 %v2445, %v2517
      %v2671 = vmul.f32 %v2446, %v2522
      %v2672 = vmul.f32 %v2447, %v2527
      %v2673 = vmul.f32 %v2448, %v2532
      %v2674 = vmul.f32 %v2449, %v2537
      %v2675 = vmul.f32 %v2450, %v2542
      %v2676 = vmul.f32 %v2451, %v2547
      %v2677 = vmul.f32 %v2452, %v2552
      %v2678 = vmul.f32 %v2453, %v2557
      %v2679 = vmul.f32 %v2454, %v2562
      %v2680 = vmul.f32 %v2455, %v2567
      %v2681 = vmul.f32 %v2456, %v2572
      %v2682 = vmul.f32 %v2457, %v2577
      %v2683 = vmul.f32 %v2458, %v2582
      %v2684 = vmul.f32 %v2459, %v2587
      %v2685 = vmul.f32 %v2460, %v2592
      %v2686 = vmul.f32 %v2461, %v2597
      %v2687 = vmul.f32 %v2462, %v2602
      %v2688 = vmul.f32 %v2463, %v2607
      %v2689 = vmul.f32 %v2464, %v2612
      %v2690 = vmul.f32 %v2465, %v2617
      %v2691 = vmul.f32 %v2466, %v2622
      %v2692 = vmul.f32 %v2467, %v2627
      %v2693 = vmul.f32 %v2468, %v2632
      %v2694 = vmul.f32 %v2469, %v2637
      %v2695 = vmul.f32 %v2470, %v2642
      %v2696 = vmul.f32 %v2471, %v2647
      %v2697 = vmul.f32 %v2472, %v2652
      %v2698 = vmul.f32 %v2473, %v2657
      %v2699 = vmul.f32 %v2474, %v2662
      %v2700 = vmul.f32 %v2475, %v2667
      %v2701 = vpack.c.bf16 %v2670, %v2669
      %v2702 = vpack.c.bf16 %v2672, %v2671
      %v2703 = vpack.c.bf16 %v2674, %v2673
      %v2704 = vpack.c.bf16 %v2676, %v2675
      %v2705 = vpack.c.bf16 %v2678, %v2677
      %v2706 = vpack.c.bf16 %v2680, %v2679
      %v2707 = vpack.c.bf16 %v2682, %v2681
      %v2708 = vpack.c.bf16 %v2684, %v2683
      %v2709 = vpack.c.bf16 %v2686, %v2685
      %v2710 = vpack.c.bf16 %v2688, %v2687
      %v2711 = vpack.c.bf16 %v2690, %v2689
      %v2712 = vpack.c.bf16 %v2692, %v2691
      %v2713 = vpack.c.bf16 %v2694, %v2693
      %v2714 = vpack.c.bf16 %v2696, %v2695
      %v2715 = vpack.c.bf16 %v2698, %v2697
      %v2716 = vpack.c.bf16 %v2700, %v2699
      %s2717 = scalar_lea.vmem %s1, 40
      %v2718 = vld [vmem:[%s2717] sm:$0xff]
      %v2719 = vpack.c.bf16 %v2718, %v2718
      %v2721 = vsel %vm478, %v2701, 0
      %v2724 = vsel %vm478, %v2702, 0
      %v2727 = vsel %vm478, %v2703, 0
      %v2730 = vsel %vm478, %v2704, 0
      %v2733 = vsel %vm478, %v2705, 0
      %v2736 = vsel %vm478, %v2706, 0
      %v2739 = vsel %vm478, %v2707, 0
      %v2742 = vsel %vm478, %v2708, 0
      %v2745 = vsel %vm478, %v2709, 0
      %v2748 = vsel %vm478, %v2710, 0
      %v2751 = vsel %vm478, %v2711, 0
      %v2754 = vsel %vm478, %v2712, 0
      %v2757 = vsel %vm478, %v2713, 0
      %v2760 = vsel %vm478, %v2714, 0
      %v2763 = vsel %vm478, %v2715, 0
      %v2766 = vsel %vm478, %v2716, 0
      %v2769 = vsel %vm527, %v2719, 0
      %2771 = vmatpush.bf16.msra.mxu0 0
      %2772 = vmatpush.bf16.msra.mxu0 0
      %2773 = vmatpush.bf16.msra.mxu0 0
      %2774 = vmatpush.bf16.msra.mxu0 0
      %2775 = vmatpush.bf16.msra.mxu0 0
      %2776 = vmatpush.bf16.msra.mxu0 0
      %2777 = vmatpush.bf16.msra.mxu0 0
      %2778 = vmatpush.bf16.msra.mxu0 %v2769
      %2779 = vmatmul.bf16.gmra.mxu0 %v2721
      %v2780 = vpop.f32.mrf.mxu0
      %v2781 = vadd.f32 0.0, %v2780
      %v2782 = vpop.f32.mrf.mxu0
      %v2783 = vadd.f32 0.0, %v2782
      %2784 = vmatmul.bf16.gmra.mxu0 %v2724
      %v2785 = vpop.f32.mrf.mxu0
      %v2786 = vadd.f32 0.0, %v2785
      %v2787 = vpop.f32.mrf.mxu0
      %v2788 = vadd.f32 0.0, %v2787
      %2789 = vmatmul.bf16.gmra.mxu0 %v2727
      %v2790 = vpop.f32.mrf.mxu0
      %v2791 = vadd.f32 0.0, %v2790
      %v2792 = vpop.f32.mrf.mxu0
      %v2793 = vadd.f32 0.0, %v2792
      %2794 = vmatmul.bf16.gmra.mxu0 %v2730
      %v2795 = vpop.f32.mrf.mxu0
      %v2796 = vadd.f32 0.0, %v2795
      %v2797 = vpop.f32.mrf.mxu0
      %v2798 = vadd.f32 0.0, %v2797
      %2799 = vmatmul.bf16.gmra.mxu0 %v2733
      %v2800 = vpop.f32.mrf.mxu0
      %v2801 = vadd.f32 0.0, %v2800
      %v2802 = vpop.f32.mrf.mxu0
      %v2803 = vadd.f32 0.0, %v2802
      %2804 = vmatmul.bf16.gmra.mxu0 %v2736
      %v2805 = vpop.f32.mrf.mxu0
      %v2806 = vadd.f32 0.0, %v2805
      %v2807 = vpop.f32.mrf.mxu0
      %v2808 = vadd.f32 0.0, %v2807
      %2809 = vmatmul.bf16.gmra.mxu0 %v2739
      %v2810 = vpop.f32.mrf.mxu0
      %v2811 = vadd.f32 0.0, %v2810
      %v2812 = vpop.f32.mrf.mxu0
      %v2813 = vadd.f32 0.0, %v2812
      %2814 = vmatmul.bf16.gmra.mxu0 %v2742
      %v2815 = vpop.f32.mrf.mxu0
      %v2816 = vadd.f32 0.0, %v2815
      %v2817 = vpop.f32.mrf.mxu0
      %v2818 = vadd.f32 0.0, %v2817
      %2819 = vmatmul.bf16.gmra.mxu0 %v2745
      %v2820 = vpop.f32.mrf.mxu0
      %v2821 = vadd.f32 0.0, %v2820
      %v2822 = vpop.f32.mrf.mxu0
      %v2823 = vadd.f32 0.0, %v2822
      %2824 = vmatmul.bf16.gmra.mxu0 %v2748
      %v2825 = vpop.f32.mrf.mxu0
      %v2826 = vadd.f32 0.0, %v2825
      %v2827 = vpop.f32.mrf.mxu0
      %v2828 = vadd.f32 0.0, %v2827
      %2829 = vmatmul.bf16.gmra.mxu0 %v2751
      %v2830 = vpop.f32.mrf.mxu0
      %v2831 = vadd.f32 0.0, %v2830
      %v2832 = vpop.f32.mrf.mxu0
      %v2833 = vadd.f32 0.0, %v2832
      %2834 = vmatmul.bf16.gmra.mxu0 %v2754
      %v2835 = vpop.f32.mrf.mxu0
      %v2836 = vadd.f32 0.0, %v2835
      %v2837 = vpop.f32.mrf.mxu0
      %v2838 = vadd.f32 0.0, %v2837
      %2839 = vmatmul.bf16.gmra.mxu0 %v2757
      %v2840 = vpop.f32.mrf.mxu0
      %v2841 = vadd.f32 0.0, %v2840
      %v2842 = vpop.f32.mrf.mxu0
      %v2843 = vadd.f32 0.0, %v2842
      %2844 = vmatmul.bf16.gmra.mxu0 %v2760
      %v2845 = vpop.f32.mrf.mxu0
      %v2846 = vadd.f32 0.0, %v2845
      %v2847 = vpop.f32.mrf.mxu0
      %v2848 = vadd.f32 0.0, %v2847
      %2849 = vmatmul.bf16.gmra.mxu0 %v2763
      %v2850 = vpop.f32.mrf.mxu0
      %v2851 = vadd.f32 0.0, %v2850
      %v2852 = vpop.f32.mrf.mxu0
      %v2853 = vadd.f32 0.0, %v2852
      %2854 = vmatmul.bf16.gmra.mxu0 %v2766
      %v2855 = vpop.f32.mrf.mxu0
      %v2856 = vadd.f32 0.0, %v2855
      %v2857 = vpop.f32.mrf.mxu0
      %v2858 = vadd.f32 0.0, %v2857
      %2859 = vdwg.mxu0
      %v2860 = vadd.f32 %v2412, %v2781
      %v2861 = vadd.f32 %v2413, %v2783
      %v2862 = vadd.f32 %v2414, %v2786
      %v2863 = vadd.f32 %v2415, %v2788
      %v2864 = vadd.f32 %v2416, %v2791
      %v2865 = vadd.f32 %v2417, %v2793
      %v2866 = vadd.f32 %v2418, %v2796
      %v2867 = vadd.f32 %v2419, %v2798
      %v2868 = vadd.f32 %v2420, %v2801
      %v2869 = vadd.f32 %v2421, %v2803
      %v2870 = vadd.f32 %v2422, %v2806
      %v2871 = vadd.f32 %v2423, %v2808
      %v2872 = vadd.f32 %v2424, %v2811
      %v2873 = vadd.f32 %v2425, %v2813
      %v2874 = vadd.f32 %v2426, %v2816
      %v2875 = vadd.f32 %v2427, %v2818
      %v2876 = vadd.f32 %v2428, %v2821
      %v2877 = vadd.f32 %v2429, %v2823
      %v2878 = vadd.f32 %v2430, %v2826
      %v2879 = vadd.f32 %v2431, %v2828
      %v2880 = vadd.f32 %v2432, %v2831
      %v2881 = vadd.f32 %v2433, %v2833
      %v2882 = vadd.f32 %v2434, %v2836
      %v2883 = vadd.f32 %v2435, %v2838
      %v2884 = vadd.f32 %v2436, %v2841
      %v2885 = vadd.f32 %v2437, %v2843
      %v2886 = vadd.f32 %v2438, %v2846
      %v2887 = vadd.f32 %v2439, %v2848
      %v2888 = vadd.f32 %v2440, %v2851
      %v2889 = vadd.f32 %v2441, %v2853
      %v2890 = vadd.f32 %v2442, %v2856
      %v2891 = vadd.f32 %v2443, %v2858
      %v2892 = vld [vmem:[%s192 + $0x20] sm:$0xff]
      %v2893 = vld [vmem:[%s192 + $0x28] sm:$0xff]
      %v2894 = vld [vmem:[%s192 + $0x30] sm:$0xff]
      %v2895 = vld [vmem:[%s192 + $0x38] sm:$0xff]
      %v2896 = vld [vmem:[%s192 + $0x40] sm:$0xff]
      %v2897 = vld [vmem:[%s192 + $0x48] sm:$0xff]
      %v2898 = vld [vmem:[%s192 + $0x50] sm:$0xff]
      %v2899 = vld [vmem:[%s192 + $0x58] sm:$0xff]
      %v2900 = vld [vmem:[%s192 + $0x60] sm:$0xff]
      %v2901 = vld [vmem:[%s192 + $0x68] sm:$0xff]
      %v2902 = vld [vmem:[%s192 + $0x70] sm:$0xff]
      %v2903 = vld [vmem:[%s192 + $0x78] sm:$0xff]
      %v2904 = vld [vmem:[%s192 + $0x80] sm:$0xff]
      %v2905 = vld [vmem:[%s192 + $0x88] sm:$0xff]
      %v2906 = vld [vmem:[%s192 + $0x90] sm:$0xff]
      %v2907 = vld [vmem:[%s192 + $0x98] sm:$0xff]
      %v2908 = vld [vmem:[%s192 + $0xa0] sm:$0xff]
      %v2909 = vld [vmem:[%s192 + $0xa8] sm:$0xff]
      %v2910 = vld [vmem:[%s192 + $0xb0] sm:$0xff]
      %v2911 = vld [vmem:[%s192 + $0xb8] sm:$0xff]
      %v2912 = vld [vmem:[%s192 + $0xc0] sm:$0xff]
      %v2913 = vld [vmem:[%s192 + $0xc8] sm:$0xff]
      %v2914 = vld [vmem:[%s192 + $0xd0] sm:$0xff]
      %v2915 = vld [vmem:[%s192 + $0xd8] sm:$0xff]
      %v2916 = vld [vmem:[%s192 + $0xe0] sm:$0xff]
      %v2917 = vld [vmem:[%s192 + $0xe8] sm:$0xff]
      %v2918 = vld [vmem:[%s192 + $0xf0] sm:$0xff]
      %v2919 = vld [vmem:[%s192 + $0xf8] sm:$0xff]
      %v2920 = vld [vmem:[%s192 + $0x100] sm:$0xff]
      %v2921 = vld [vmem:[%s192 + $0x108] sm:$0xff]
      %v2922 = vld [vmem:[%s192 + $0x110] sm:$0xff]
      %v2923 = vld [vmem:[%s192 + $0x118] sm:$0xff]
      %s2924 = scalar_lea.vmem %s3, 1536
      %v2925 = vld [vmem:[%s2924] sm:$0xff]
      %v2926 = vld [vmem:[%s2924 + $0x8] sm:$0xff]
      %v2927 = vld [vmem:[%s2924 + $0x10] sm:$0xff]
      %v2928 = vld [vmem:[%s2924 + $0x18] sm:$0xff]
      %v2929 = vld [vmem:[%s2924 + $0x20] sm:$0xff]
      %v2930 = vld [vmem:[%s2924 + $0x28] sm:$0xff]
      %v2931 = vld [vmem:[%s2924 + $0x30] sm:$0xff]
      %v2932 = vld [vmem:[%s2924 + $0x38] sm:$0xff]
      %v2933 = vld [vmem:[%s2924 + $0x40] sm:$0xff]
      %v2934 = vld [vmem:[%s2924 + $0x48] sm:$0xff]
      %v2935 = vld [vmem:[%s2924 + $0x50] sm:$0xff]
      %v2936 = vld [vmem:[%s2924 + $0x58] sm:$0xff]
      %v2937 = vld [vmem:[%s2924 + $0x60] sm:$0xff]
      %v2938 = vld [vmem:[%s2924 + $0x68] sm:$0xff]
      %v2939 = vld [vmem:[%s2924 + $0x70] sm:$0xff]
      %v2940 = vld [vmem:[%s2924 + $0x78] sm:$0xff]
      %v2941 = vld [vmem:[%s2924 + $0x80] sm:$0xff]
      %v2942 = vld [vmem:[%s2924 + $0x88] sm:$0xff]
      %v2943 = vld [vmem:[%s2924 + $0x90] sm:$0xff]
      %v2944 = vld [vmem:[%s2924 + $0x98] sm:$0xff]
      %v2945 = vld [vmem:[%s2924 + $0xa0] sm:$0xff]
      %v2946 = vld [vmem:[%s2924 + $0xa8] sm:$0xff]
      %v2947 = vld [vmem:[%s2924 + $0xb0] sm:$0xff]
      %v2948 = vld [vmem:[%s2924 + $0xb8] sm:$0xff]
      %v2949 = vld [vmem:[%s2924 + $0xc0] sm:$0xff]
      %v2950 = vld [vmem:[%s2924 + $0xc8] sm:$0xff]
      %v2951 = vld [vmem:[%s2924 + $0xd0] sm:$0xff]
      %v2952 = vld [vmem:[%s2924 + $0xd8] sm:$0xff]
      %v2953 = vld [vmem:[%s2924 + $0xe0] sm:$0xff]
      %v2954 = vld [vmem:[%s2924 + $0xe8] sm:$0xff]
      %v2955 = vld [vmem:[%s2924 + $0xf0] sm:$0xff]
      %v2956 = vld [vmem:[%s2924 + $0xf8] sm:$0xff]
      %2958 = vset.pattern.permute.xlu0 0
      %2959 = vperm.xlu0 %2958, %v2925
      %v2960 = vpop.permute.xlu0 %2959
      %2963 = vset.pattern.permute.xlu0 0
      %2964 = vperm.xlu0 %2963, %v2926
      %v2965 = vpop.permute.xlu0 %2964
      %2968 = vset.pattern.permute.xlu0 0
      %2969 = vperm.xlu0 %2968, %v2927
      %v2970 = vpop.permute.xlu0 %2969
      %2973 = vset.pattern.permute.xlu0 0
      %2974 = vperm.xlu0 %2973, %v2928
      %v2975 = vpop.permute.xlu0 %2974
      %2978 = vset.pattern.permute.xlu0 0
      %2979 = vperm.xlu0 %2978, %v2929
      %v2980 = vpop.permute.xlu0 %2979
      %2983 = vset.pattern.permute.xlu0 0
      %2984 = vperm.xlu0 %2983, %v2930
      %v2985 = vpop.permute.xlu0 %2984
      %2988 = vset.pattern.permute.xlu0 0
      %2989 = vperm.xlu0 %2988, %v2931
      %v2990 = vpop.permute.xlu0 %2989
      %2993 = vset.pattern.permute.xlu0 0
      %2994 = vperm.xlu0 %2993, %v2932
      %v2995 = vpop.permute.xlu0 %2994
      %2998 = vset.pattern.permute.xlu0 0
      %2999 = vperm.xlu0 %2998, %v2933
      %v3000 = vpop.permute.xlu0 %2999
      %3003 = vset.pattern.permute.xlu0 0
      %3004 = vperm.xlu0 %3003, %v2934
      %v3005 = vpop.permute.xlu0 %3004
      %3008 = vset.pattern.permute.xlu0 0
      %3009 = vperm.xlu0 %3008, %v2935
      %v3010 = vpop.permute.xlu0 %3009
      %3013 = vset.pattern.permute.xlu0 0
      %3014 = vperm.xlu0 %3013, %v2936
      %v3015 = vpop.permute.xlu0 %3014
      %3018 = vset.pattern.permute.xlu0 0
      %3019 = vperm.xlu0 %3018, %v2937
      %v3020 = vpop.permute.xlu0 %3019
      %3023 = vset.pattern.permute.xlu0 0
      %3024 = vperm.xlu0 %3023, %v2938
      %v3025 = vpop.permute.xlu0 %3024
      %3028 = vset.pattern.permute.xlu0 0
      %3029 = vperm.xlu0 %3028, %v2939
      %v3030 = vpop.permute.xlu0 %3029
      %3033 = vset.pattern.permute.xlu0 0
      %3034 = vperm.xlu0 %3033, %v2940
      %v3035 = vpop.permute.xlu0 %3034
      %3038 = vset.pattern.permute.xlu0 0
      %3039 = vperm.xlu0 %3038, %v2941
      %v3040 = vpop.permute.xlu0 %3039
      %3043 = vset.pattern.permute.xlu0 0
      %3044 = vperm.xlu0 %3043, %v2942
      %v3045 = vpop.permute.xlu0 %3044
      %3048 = vset.pattern.permute.xlu0 0
      %3049 = vperm.xlu0 %3048, %v2943
      %v3050 = vpop.permute.xlu0 %3049
      %3053 = vset.pattern.permute.xlu0 0
      %3054 = vperm.xlu0 %3053, %v2944
      %v3055 = vpop.permute.xlu0 %3054
      %3058 = vset.pattern.permute.xlu0 0
      %3059 = vperm.xlu0 %3058, %v2945
      %v3060 = vpop.permute.xlu0 %3059
      %3063 = vset.pattern.permute.xlu0 0
      %3064 = vperm.xlu0 %3063, %v2946
      %v3065 = vpop.permute.xlu0 %3064
      %3068 = vset.pattern.permute.xlu0 0
      %3069 = vperm.xlu0 %3068, %v2947
      %v3070 = vpop.permute.xlu0 %3069
      %3073 = vset.pattern.permute.xlu0 0
      %3074 = vperm.xlu0 %3073, %v2948
      %v3075 = vpop.permute.xlu0 %3074
      %3078 = vset.pattern.permute.xlu0 0
      %3079 = vperm.xlu0 %3078, %v2949
      %v3080 = vpop.permute.xlu0 %3079
      %3083 = vset.pattern.permute.xlu0 0
      %3084 = vperm.xlu0 %3083, %v2950
      %v3085 = vpop.permute.xlu0 %3084
      %3088 = vset.pattern.permute.xlu0 0
      %3089 = vperm.xlu0 %3088, %v2951
      %v3090 = vpop.permute.xlu0 %3089
      %3093 = vset.pattern.permute.xlu0 0
      %3094 = vperm.xlu0 %3093, %v2952
      %v3095 = vpop.permute.xlu0 %3094
      %3098 = vset.pattern.permute.xlu0 0
      %3099 = vperm.xlu0 %3098, %v2953
      %v3100 = vpop.permute.xlu0 %3099
      %3103 = vset.pattern.permute.xlu0 0
      %3104 = vperm.xlu0 %3103, %v2954
      %v3105 = vpop.permute.xlu0 %3104
      %3108 = vset.pattern.permute.xlu0 0
      %3109 = vperm.xlu0 %3108, %v2955
      %v3110 = vpop.permute.xlu0 %3109
      %3113 = vset.pattern.permute.xlu0 0
      %3114 = vperm.xlu0 %3113, %v2956
      %v3115 = vpop.permute.xlu0 %3114
      %v3117 = vmul.f32 %v2892, %v2960
      %v3118 = vmul.f32 %v2893, %v2965
      %v3119 = vmul.f32 %v2894, %v2970
      %v3120 = vmul.f32 %v2895, %v2975
      %v3121 = vmul.f32 %v2896, %v2980
      %v3122 = vmul.f32 %v2897, %v2985
      %v3123 = vmul.f32 %v2898, %v2990
      %v3124 = vmul.f32 %v2899, %v2995
      %v3125 = vmul.f32 %v2900, %v3000
      %v3126 = vmul.f32 %v2901, %v3005
      %v3127 = vmul.f32 %v2902, %v3010
      %v3128 = vmul.f32 %v2903, %v3015
      %v3129 = vmul.f32 %v2904, %v3020
      %v3130 = vmul.f32 %v2905, %v3025
      %v3131 = vmul.f32 %v2906, %v3030
      %v3132 = vmul.f32 %v2907, %v3035
      %v3133 = vmul.f32 %v2908, %v3040
      %v3134 = vmul.f32 %v2909, %v3045
      %v3135 = vmul.f32 %v2910, %v3050
      %v3136 = vmul.f32 %v2911, %v3055
      %v3137 = vmul.f32 %v2912, %v3060
      %v3138 = vmul.f32 %v2913, %v3065
      %v3139 = vmul.f32 %v2914, %v3070
      %v3140 = vmul.f32 %v2915, %v3075
      %v3141 = vmul.f32 %v2916, %v3080
      %v3142 = vmul.f32 %v2917, %v3085
      %v3143 = vmul.f32 %v2918, %v3090
      %v3144 = vmul.f32 %v2919, %v3095
      %v3145 = vmul.f32 %v2920, %v3100
      %v3146 = vmul.f32 %v2921, %v3105
      %v3147 = vmul.f32 %v2922, %v3110
      %v3148 = vmul.f32 %v2923, %v3115
      %v3149 = vpack.c.bf16 %v3118, %v3117
      %v3150 = vpack.c.bf16 %v3120, %v3119
      %v3151 = vpack.c.bf16 %v3122, %v3121
      %v3152 = vpack.c.bf16 %v3124, %v3123
      %v3153 = vpack.c.bf16 %v3126, %v3125
      %v3154 = vpack.c.bf16 %v3128, %v3127
      %v3155 = vpack.c.bf16 %v3130, %v3129
      %v3156 = vpack.c.bf16 %v3132, %v3131
      %v3157 = vpack.c.bf16 %v3134, %v3133
      %v3158 = vpack.c.bf16 %v3136, %v3135
      %v3159 = vpack.c.bf16 %v3138, %v3137
      %v3160 = vpack.c.bf16 %v3140, %v3139
      %v3161 = vpack.c.bf16 %v3142, %v3141
      %v3162 = vpack.c.bf16 %v3144, %v3143
      %v3163 = vpack.c.bf16 %v3146, %v3145
      %v3164 = vpack.c.bf16 %v3148, %v3147
      %s3165 = scalar_lea.vmem %s1, 48
      %v3166 = vld [vmem:[%s3165] sm:$0xff]
      %v3167 = vpack.c.bf16 %v3166, %v3166
      %v3169 = vsel %vm478, %v3149, 0
      %v3172 = vsel %vm478, %v3150, 0
      %v3175 = vsel %vm478, %v3151, 0
      %v3178 = vsel %vm478, %v3152, 0
      %v3181 = vsel %vm478, %v3153, 0
      %v3184 = vsel %vm478, %v3154, 0
      %v3187 = vsel %vm478, %v3155, 0
      %v3190 = vsel %vm478, %v3156, 0
      %v3193 = vsel %vm478, %v3157, 0
      %v3196 = vsel %vm478, %v3158, 0
      %v3199 = vsel %vm478, %v3159, 0
      %v3202 = vsel %vm478, %v3160, 0
      %v3205 = vsel %vm478, %v3161, 0
      %v3208 = vsel %vm478, %v3162, 0
      %v3211 = vsel %vm478, %v3163, 0
      %v3214 = vsel %vm478, %v3164, 0
      %v3217 = vsel %vm527, %v3167, 0
      %3219 = vmatpush.bf16.msra.mxu0 0
      %3220 = vmatpush.bf16.msra.mxu0 0
      %3221 = vmatpush.bf16.msra.mxu0 0
      %3222 = vmatpush.bf16.msra.mxu0 0
      %3223 = vmatpush.bf16.msra.mxu0 0
      %3224 = vmatpush.bf16.msra.mxu0 0
      %3225 = vmatpush.bf16.msra.mxu0 0
      %3226 = vmatpush.bf16.msra.mxu0 %v3217
      %3227 = vmatmul.bf16.gmra.mxu0 %v3169
      %v3228 = vpop.f32.mrf.mxu0
      %v3229 = vadd.f32 0.0, %v3228
      %v3230 = vpop.f32.mrf.mxu0
      %v3231 = vadd.f32 0.0, %v3230
      %3232 = vmatmul.bf16.gmra.mxu0 %v3172
      %v3233 = vpop.f32.mrf.mxu0
      %v3234 = vadd.f32 0.0, %v3233
      %v3235 = vpop.f32.mrf.mxu0
      %v3236 = vadd.f32 0.0, %v3235
      %3237 = vmatmul.bf16.gmra.mxu0 %v3175
      %v3238 = vpop.f32.mrf.mxu0
      %v3239 = vadd.f32 0.0, %v3238
      %v3240 = vpop.f32.mrf.mxu0
      %v3241 = vadd.f32 0.0, %v3240
      %3242 = vmatmul.bf16.gmra.mxu0 %v3178
      %v3243 = vpop.f32.mrf.mxu0
      %v3244 = vadd.f32 0.0, %v3243
      %v3245 = vpop.f32.mrf.mxu0
      %v3246 = vadd.f32 0.0, %v3245
      %3247 = vmatmul.bf16.gmra.mxu0 %v3181
      %v3248 = vpop.f32.mrf.mxu0
      %v3249 = vadd.f32 0.0, %v3248
      %v3250 = vpop.f32.mrf.mxu0
      %v3251 = vadd.f32 0.0, %v3250
      %3252 = vmatmul.bf16.gmra.mxu0 %v3184
      %v3253 = vpop.f32.mrf.mxu0
      %v3254 = vadd.f32 0.0, %v3253
      %v3255 = vpop.f32.mrf.mxu0
      %v3256 = vadd.f32 0.0, %v3255
      %3257 = vmatmul.bf16.gmra.mxu0 %v3187
      %v3258 = vpop.f32.mrf.mxu0
      %v3259 = vadd.f32 0.0, %v3258
      %v3260 = vpop.f32.mrf.mxu0
      %v3261 = vadd.f32 0.0, %v3260
      %3262 = vmatmul.bf16.gmra.mxu0 %v3190
      %v3263 = vpop.f32.mrf.mxu0
      %v3264 = vadd.f32 0.0, %v3263
      %v3265 = vpop.f32.mrf.mxu0
      %v3266 = vadd.f32 0.0, %v3265
      %3267 = vmatmul.bf16.gmra.mxu0 %v3193
      %v3268 = vpop.f32.mrf.mxu0
      %v3269 = vadd.f32 0.0, %v3268
      %v3270 = vpop.f32.mrf.mxu0
      %v3271 = vadd.f32 0.0, %v3270
      %3272 = vmatmul.bf16.gmra.mxu0 %v3196
      %v3273 = vpop.f32.mrf.mxu0
      %v3274 = vadd.f32 0.0, %v3273
      %v3275 = vpop.f32.mrf.mxu0
      %v3276 = vadd.f32 0.0, %v3275
      %3277 = vmatmul.bf16.gmra.mxu0 %v3199
      %v3278 = vpop.f32.mrf.mxu0
      %v3279 = vadd.f32 0.0, %v3278
      %v3280 = vpop.f32.mrf.mxu0
      %v3281 = vadd.f32 0.0, %v3280
      %3282 = vmatmul.bf16.gmra.mxu0 %v3202
      %v3283 = vpop.f32.mrf.mxu0
      %v3284 = vadd.f32 0.0, %v3283
      %v3285 = vpop.f32.mrf.mxu0
      %v3286 = vadd.f32 0.0, %v3285
      %3287 = vmatmul.bf16.gmra.mxu0 %v3205
      %v3288 = vpop.f32.mrf.mxu0
      %v3289 = vadd.f32 0.0, %v3288
      %v3290 = vpop.f32.mrf.mxu0
      %v3291 = vadd.f32 0.0, %v3290
      %3292 = vmatmul.bf16.gmra.mxu0 %v3208
      %v3293 = vpop.f32.mrf.mxu0
      %v3294 = vadd.f32 0.0, %v3293
      %v3295 = vpop.f32.mrf.mxu0
      %v3296 = vadd.f32 0.0, %v3295
      %3297 = vmatmul.bf16.gmra.mxu0 %v3211
      %v3298 = vpop.f32.mrf.mxu0
      %v3299 = vadd.f32 0.0, %v3298
      %v3300 = vpop.f32.mrf.mxu0
      %v3301 = vadd.f32 0.0, %v3300
      %3302 = vmatmul.bf16.gmra.mxu0 %v3214
      %v3303 = vpop.f32.mrf.mxu0
      %v3304 = vadd.f32 0.0, %v3303
      %v3305 = vpop.f32.mrf.mxu0
      %v3306 = vadd.f32 0.0, %v3305
      %3307 = vdwg.mxu0
      %v3308 = vadd.f32 %v2860, %v3229
      %v3309 = vadd.f32 %v2861, %v3231
      %v3310 = vadd.f32 %v2862, %v3234
      %v3311 = vadd.f32 %v2863, %v3236
      %v3312 = vadd.f32 %v2864, %v3239
      %v3313 = vadd.f32 %v2865, %v3241
      %v3314 = vadd.f32 %v2866, %v3244
      %v3315 = vadd.f32 %v2867, %v3246
      %v3316 = vadd.f32 %v2868, %v3249
      %v3317 = vadd.f32 %v2869, %v3251
      %v3318 = vadd.f32 %v2870, %v3254
      %v3319 = vadd.f32 %v2871, %v3256
      %v3320 = vadd.f32 %v2872, %v3259
      %v3321 = vadd.f32 %v2873, %v3261
      %v3322 = vadd.f32 %v2874, %v3264
      %v3323 = vadd.f32 %v2875, %v3266
      %v3324 = vadd.f32 %v2876, %v3269
      %v3325 = vadd.f32 %v2877, %v3271
      %v3326 = vadd.f32 %v2878, %v3274
      %v3327 = vadd.f32 %v2879, %v3276
      %v3328 = vadd.f32 %v2880, %v3279
      %v3329 = vadd.f32 %v2881, %v3281
      %v3330 = vadd.f32 %v2882, %v3284
      %v3331 = vadd.f32 %v2883, %v3286
      %v3332 = vadd.f32 %v2884, %v3289
      %v3333 = vadd.f32 %v2885, %v3291
      %v3334 = vadd.f32 %v2886, %v3294
      %v3335 = vadd.f32 %v2887, %v3296
      %v3336 = vadd.f32 %v2888, %v3299
      %v3337 = vadd.f32 %v2889, %v3301
      %v3338 = vadd.f32 %v2890, %v3304
      %v3339 = vadd.f32 %v2891, %v3306
      %v3340 = vld [vmem:[%s192 + $0x21] sm:$0xff]
      %v3341 = vld [vmem:[%s192 + $0x29] sm:$0xff]
      %v3342 = vld [vmem:[%s192 + $0x31] sm:$0xff]
      %v3343 = vld [vmem:[%s192 + $0x39] sm:$0xff]
      %v3344 = vld [vmem:[%s192 + $0x41] sm:$0xff]
      %v3345 = vld [vmem:[%s192 + $0x49] sm:$0xff]
      %v3346 = vld [vmem:[%s192 + $0x51] sm:$0xff]
      %v3347 = vld [vmem:[%s192 + $0x59] sm:$0xff]
      %v3348 = vld [vmem:[%s192 + $0x61] sm:$0xff]
      %v3349 = vld [vmem:[%s192 + $0x69] sm:$0xff]
      %v3350 = vld [vmem:[%s192 + $0x71] sm:$0xff]
      %v3351 = vld [vmem:[%s192 + $0x79] sm:$0xff]
      %v3352 = vld [vmem:[%s192 + $0x81] sm:$0xff]
      %v3353 = vld [vmem:[%s192 + $0x89] sm:$0xff]
      %v3354 = vld [vmem:[%s192 + $0x91] sm:$0xff]
      %v3355 = vld [vmem:[%s192 + $0x99] sm:$0xff]
      %v3356 = vld [vmem:[%s192 + $0xa1] sm:$0xff]
      %v3357 = vld [vmem:[%s192 + $0xa9] sm:$0xff]
      %v3358 = vld [vmem:[%s192 + $0xb1] sm:$0xff]
      %v3359 = vld [vmem:[%s192 + $0xb9] sm:$0xff]
      %v3360 = vld [vmem:[%s192 + $0xc1] sm:$0xff]
      %v3361 = vld [vmem:[%s192 + $0xc9] sm:$0xff]
      %v3362 = vld [vmem:[%s192 + $0xd1] sm:$0xff]
      %v3363 = vld [vmem:[%s192 + $0xd9] sm:$0xff]
      %v3364 = vld [vmem:[%s192 + $0xe1] sm:$0xff]
      %v3365 = vld [vmem:[%s192 + $0xe9] sm:$0xff]
      %v3366 = vld [vmem:[%s192 + $0xf1] sm:$0xff]
      %v3367 = vld [vmem:[%s192 + $0xf9] sm:$0xff]
      %v3368 = vld [vmem:[%s192 + $0x101] sm:$0xff]
      %v3369 = vld [vmem:[%s192 + $0x109] sm:$0xff]
      %v3370 = vld [vmem:[%s192 + $0x111] sm:$0xff]
      %v3371 = vld [vmem:[%s192 + $0x119] sm:$0xff]
      %s3372 = scalar_lea.vmem %s3, 1792
      %v3373 = vld [vmem:[%s3372] sm:$0xff]
      %v3374 = vld [vmem:[%s3372 + $0x8] sm:$0xff]
      %v3375 = vld [vmem:[%s3372 + $0x10] sm:$0xff]
      %v3376 = vld [vmem:[%s3372 + $0x18] sm:$0xff]
      %v3377 = vld [vmem:[%s3372 + $0x20] sm:$0xff]
      %v3378 = vld [vmem:[%s3372 + $0x28] sm:$0xff]
      %v3379 = vld [vmem:[%s3372 + $0x30] sm:$0xff]
      %v3380 = vld [vmem:[%s3372 + $0x38] sm:$0xff]
      %v3381 = vld [vmem:[%s3372 + $0x40] sm:$0xff]
      %v3382 = vld [vmem:[%s3372 + $0x48] sm:$0xff]
      %v3383 = vld [vmem:[%s3372 + $0x50] sm:$0xff]
      %v3384 = vld [vmem:[%s3372 + $0x58] sm:$0xff]
      %v3385 = vld [vmem:[%s3372 + $0x60] sm:$0xff]
      %v3386 = vld [vmem:[%s3372 + $0x68] sm:$0xff]
      %v3387 = vld [vmem:[%s3372 + $0x70] sm:$0xff]
      %v3388 = vld [vmem:[%s3372 + $0x78] sm:$0xff]
      %v3389 = vld [vmem:[%s3372 + $0x80] sm:$0xff]
      %v3390 = vld [vmem:[%s3372 + $0x88] sm:$0xff]
      %v3391 = vld [vmem:[%s3372 + $0x90] sm:$0xff]
      %v3392 = vld [vmem:[%s3372 + $0x98] sm:$0xff]
      %v3393 = vld [vmem:[%s3372 + $0xa0] sm:$0xff]
      %v3394 = vld [vmem:[%s3372 + $0xa8] sm:$0xff]
      %v3395 = vld [vmem:[%s3372 + $0xb0] sm:$0xff]
      %v3396 = vld [vmem:[%s3372 + $0xb8] sm:$0xff]
      %v3397 = vld [vmem:[%s3372 + $0xc0] sm:$0xff]
      %v3398 = vld [vmem:[%s3372 + $0xc8] sm:$0xff]
      %v3399 = vld [vmem:[%s3372 + $0xd0] sm:$0xff]
      %v3400 = vld [vmem:[%s3372 + $0xd8] sm:$0xff]
      %v3401 = vld [vmem:[%s3372 + $0xe0] sm:$0xff]
      %v3402 = vld [vmem:[%s3372 + $0xe8] sm:$0xff]
      %v3403 = vld [vmem:[%s3372 + $0xf0] sm:$0xff]
      %v3404 = vld [vmem:[%s3372 + $0xf8] sm:$0xff]
      %3406 = vset.pattern.permute.xlu0 0
      %3407 = vperm.xlu0 %3406, %v3373
      %v3408 = vpop.permute.xlu0 %3407
      %3411 = vset.pattern.permute.xlu0 0
      %3412 = vperm.xlu0 %3411, %v3374
      %v3413 = vpop.permute.xlu0 %3412
      %3416 = vset.pattern.permute.xlu0 0
      %3417 = vperm.xlu0 %3416, %v3375
      %v3418 = vpop.permute.xlu0 %3417
      %3421 = vset.pattern.permute.xlu0 0
      %3422 = vperm.xlu0 %3421, %v3376
      %v3423 = vpop.permute.xlu0 %3422
      %3426 = vset.pattern.permute.xlu0 0
      %3427 = vperm.xlu0 %3426, %v3377
      %v3428 = vpop.permute.xlu0 %3427
      %3431 = vset.pattern.permute.xlu0 0
      %3432 = vperm.xlu0 %3431, %v3378
      %v3433 = vpop.permute.xlu0 %3432
      %3436 = vset.pattern.permute.xlu0 0
      %3437 = vperm.xlu0 %3436, %v3379
      %v3438 = vpop.permute.xlu0 %3437
      %3441 = vset.pattern.permute.xlu0 0
      %3442 = vperm.xlu0 %3441, %v3380
      %v3443 = vpop.permute.xlu0 %3442
      %3446 = vset.pattern.permute.xlu0 0
      %3447 = vperm.xlu0 %3446, %v3381
      %v3448 = vpop.permute.xlu0 %3447
      %3451 = vset.pattern.permute.xlu0 0
      %3452 = vperm.xlu0 %3451, %v3382
      %v3453 = vpop.permute.xlu0 %3452
      %3456 = vset.pattern.permute.xlu0 0
      %3457 = vperm.xlu0 %3456, %v3383
      %v3458 = vpop.permute.xlu0 %3457
      %3461 = vset.pattern.permute.xlu0 0
      %3462 = vperm.xlu0 %3461, %v3384
      %v3463 = vpop.permute.xlu0 %3462
      %3466 = vset.pattern.permute.xlu0 0
      %3467 = vperm.xlu0 %3466, %v3385
      %v3468 = vpop.permute.xlu0 %3467
      %3471 = vset.pattern.permute.xlu0 0
      %3472 = vperm.xlu0 %3471, %v3386
      %v3473 = vpop.permute.xlu0 %3472
      %3476 = vset.pattern.permute.xlu0 0
      %3477 = vperm.xlu0 %3476, %v3387
      %v3478 = vpop.permute.xlu0 %3477
      %3481 = vset.pattern.permute.xlu0 0
      %3482 = vperm.xlu0 %3481, %v3388
      %v3483 = vpop.permute.xlu0 %3482
      %3486 = vset.pattern.permute.xlu0 0
      %3487 = vperm.xlu0 %3486, %v3389
      %v3488 = vpop.permute.xlu0 %3487
      %3491 = vset.pattern.permute.xlu0 0
      %3492 = vperm.xlu0 %3491, %v3390
      %v3493 = vpop.permute.xlu0 %3492
      %3496 = vset.pattern.permute.xlu0 0
      %3497 = vperm.xlu0 %3496, %v3391
      %v3498 = vpop.permute.xlu0 %3497
      %3501 = vset.pattern.permute.xlu0 0
      %3502 = vperm.xlu0 %3501, %v3392
      %v3503 = vpop.permute.xlu0 %3502
      %3506 = vset.pattern.permute.xlu0 0
      %3507 = vperm.xlu0 %3506, %v3393
      %v3508 = vpop.permute.xlu0 %3507
      %3511 = vset.pattern.permute.xlu0 0
      %3512 = vperm.xlu0 %3511, %v3394
      %v3513 = vpop.permute.xlu0 %3512
      %3516 = vset.pattern.permute.xlu0 0
      %3517 = vperm.xlu0 %3516, %v3395
      %v3518 = vpop.permute.xlu0 %3517
      %3521 = vset.pattern.permute.xlu0 0
      %3522 = vperm.xlu0 %3521, %v3396
      %v3523 = vpop.permute.xlu0 %3522
      %3526 = vset.pattern.permute.xlu0 0
      %3527 = vperm.xlu0 %3526, %v3397
      %v3528 = vpop.permute.xlu0 %3527
      %3531 = vset.pattern.permute.xlu0 0
      %3532 = vperm.xlu0 %3531, %v3398
      %v3533 = vpop.permute.xlu0 %3532
      %3536 = vset.pattern.permute.xlu0 0
      %3537 = vperm.xlu0 %3536, %v3399
      %v3538 = vpop.permute.xlu0 %3537
      %3541 = vset.pattern.permute.xlu0 0
      %3542 = vperm.xlu0 %3541, %v3400
      %v3543 = vpop.permute.xlu0 %3542
      %3546 = vset.pattern.permute.xlu0 0
      %3547 = vperm.xlu0 %3546, %v3401
      %v3548 = vpop.permute.xlu0 %3547
      %3551 = vset.pattern.permute.xlu0 0
      %3552 = vperm.xlu0 %3551, %v3402
      %v3553 = vpop.permute.xlu0 %3552
      %3556 = vset.pattern.permute.xlu0 0
      %3557 = vperm.xlu0 %3556, %v3403
      %v3558 = vpop.permute.xlu0 %3557
      %3561 = vset.pattern.permute.xlu0 0
      %3562 = vperm.xlu0 %3561, %v3404
      %v3563 = vpop.permute.xlu0 %3562
      %v3565 = vmul.f32 %v3340, %v3408
      %v3566 = vmul.f32 %v3341, %v3413
      %v3567 = vmul.f32 %v3342, %v3418
      %v3568 = vmul.f32 %v3343, %v3423
      %v3569 = vmul.f32 %v3344, %v3428
      %v3570 = vmul.f32 %v3345, %v3433
      %v3571 = vmul.f32 %v3346, %v3438
      %v3572 = vmul.f32 %v3347, %v3443
      %v3573 = vmul.f32 %v3348, %v3448
      %v3574 = vmul.f32 %v3349, %v3453
      %v3575 = vmul.f32 %v3350, %v3458
      %v3576 = vmul.f32 %v3351, %v3463
      %v3577 = vmul.f32 %v3352, %v3468
      %v3578 = vmul.f32 %v3353, %v3473
      %v3579 = vmul.f32 %v3354, %v3478
      %v3580 = vmul.f32 %v3355, %v3483
      %v3581 = vmul.f32 %v3356, %v3488
      %v3582 = vmul.f32 %v3357, %v3493
      %v3583 = vmul.f32 %v3358, %v3498
      %v3584 = vmul.f32 %v3359, %v3503
      %v3585 = vmul.f32 %v3360, %v3508
      %v3586 = vmul.f32 %v3361, %v3513
      %v3587 = vmul.f32 %v3362, %v3518
      %v3588 = vmul.f32 %v3363, %v3523
      %v3589 = vmul.f32 %v3364, %v3528
      %v3590 = vmul.f32 %v3365, %v3533
      %v3591 = vmul.f32 %v3366, %v3538
      %v3592 = vmul.f32 %v3367, %v3543
      %v3593 = vmul.f32 %v3368, %v3548
      %v3594 = vmul.f32 %v3369, %v3553
      %v3595 = vmul.f32 %v3370, %v3558
      %v3596 = vmul.f32 %v3371, %v3563
      %v3597 = vpack.c.bf16 %v3566, %v3565
      %v3598 = vpack.c.bf16 %v3568, %v3567
      %v3599 = vpack.c.bf16 %v3570, %v3569
      %v3600 = vpack.c.bf16 %v3572, %v3571
      %v3601 = vpack.c.bf16 %v3574, %v3573
      %v3602 = vpack.c.bf16 %v3576, %v3575
      %v3603 = vpack.c.bf16 %v3578, %v3577
      %v3604 = vpack.c.bf16 %v3580, %v3579
      %v3605 = vpack.c.bf16 %v3582, %v3581
      %v3606 = vpack.c.bf16 %v3584, %v3583
      %v3607 = vpack.c.bf16 %v3586, %v3585
      %v3608 = vpack.c.bf16 %v3588, %v3587
      %v3609 = vpack.c.bf16 %v3590, %v3589
      %v3610 = vpack.c.bf16 %v3592, %v3591
      %v3611 = vpack.c.bf16 %v3594, %v3593
      %v3612 = vpack.c.bf16 %v3596, %v3595
      %s3613 = scalar_lea.vmem %s1, 56
      %v3614 = vld [vmem:[%s3613] sm:$0xff]
      %v3615 = vpack.c.bf16 %v3614, %v3614
      %v3617 = vsel %vm478, %v3597, 0
      %v3620 = vsel %vm478, %v3598, 0
      %v3623 = vsel %vm478, %v3599, 0
      %v3626 = vsel %vm478, %v3600, 0
      %v3629 = vsel %vm478, %v3601, 0
      %v3632 = vsel %vm478, %v3602, 0
      %v3635 = vsel %vm478, %v3603, 0
      %v3638 = vsel %vm478, %v3604, 0
      %v3641 = vsel %vm478, %v3605, 0
      %v3644 = vsel %vm478, %v3606, 0
      %v3647 = vsel %vm478, %v3607, 0
      %v3650 = vsel %vm478, %v3608, 0
      %v3653 = vsel %vm478, %v3609, 0
      %v3656 = vsel %vm478, %v3610, 0
      %v3659 = vsel %vm478, %v3611, 0
      %v3662 = vsel %vm478, %v3612, 0
      %v3665 = vsel %vm527, %v3615, 0
      %3667 = vmatpush.bf16.msra.mxu0 0
      %3668 = vmatpush.bf16.msra.mxu0 0
      %3669 = vmatpush.bf16.msra.mxu0 0
      %3670 = vmatpush.bf16.msra.mxu0 0
      %3671 = vmatpush.bf16.msra.mxu0 0
      %3672 = vmatpush.bf16.msra.mxu0 0
      %3673 = vmatpush.bf16.msra.mxu0 0
      %3674 = vmatpush.bf16.msra.mxu0 %v3665
      %3675 = vmatmul.bf16.gmra.mxu0 %v3617
      %v3676 = vpop.f32.mrf.mxu0
      %v3677 = vadd.f32 0.0, %v3676
      %v3678 = vpop.f32.mrf.mxu0
      %v3679 = vadd.f32 0.0, %v3678
      %3680 = vmatmul.bf16.gmra.mxu0 %v3620
      %v3681 = vpop.f32.mrf.mxu0
      %v3682 = vadd.f32 0.0, %v3681
      %v3683 = vpop.f32.mrf.mxu0
      %v3684 = vadd.f32 0.0, %v3683
      %3685 = vmatmul.bf16.gmra.mxu0 %v3623
      %v3686 = vpop.f32.mrf.mxu0
      %v3687 = vadd.f32 0.0, %v3686
      %v3688 = vpop.f32.mrf.mxu0
      %v3689 = vadd.f32 0.0, %v3688
      %3690 = vmatmul.bf16.gmra.mxu0 %v3626
      %v3691 = vpop.f32.mrf.mxu0
      %v3692 = vadd.f32 0.0, %v3691
      %v3693 = vpop.f32.mrf.mxu0
      %v3694 = vadd.f32 0.0, %v3693
      %3695 = vmatmul.bf16.gmra.mxu0 %v3629
      %v3696 = vpop.f32.mrf.mxu0
      %v3697 = vadd.f32 0.0, %v3696
      %v3698 = vpop.f32.mrf.mxu0
      %v3699 = vadd.f32 0.0, %v3698
      %3700 = vmatmul.bf16.gmra.mxu0 %v3632
      %v3701 = vpop.f32.mrf.mxu0
      %v3702 = vadd.f32 0.0, %v3701
      %v3703 = vpop.f32.mrf.mxu0
      %v3704 = vadd.f32 0.0, %v3703
      %3705 = vmatmul.bf16.gmra.mxu0 %v3635
      %v3706 = vpop.f32.mrf.mxu0
      %v3707 = vadd.f32 0.0, %v3706
      %v3708 = vpop.f32.mrf.mxu0
      %v3709 = vadd.f32 0.0, %v3708
      %3710 = vmatmul.bf16.gmra.mxu0 %v3638
      %v3711 = vpop.f32.mrf.mxu0
      %v3712 = vadd.f32 0.0, %v3711
      %v3713 = vpop.f32.mrf.mxu0
      %v3714 = vadd.f32 0.0, %v3713
      %3715 = vmatmul.bf16.gmra.mxu0 %v3641
      %v3716 = vpop.f32.mrf.mxu0
      %v3717 = vadd.f32 0.0, %v3716
      %v3718 = vpop.f32.mrf.mxu0
      %v3719 = vadd.f32 0.0, %v3718
      %3720 = vmatmul.bf16.gmra.mxu0 %v3644
      %v3721 = vpop.f32.mrf.mxu0
      %v3722 = vadd.f32 0.0, %v3721
      %v3723 = vpop.f32.mrf.mxu0
      %v3724 = vadd.f32 0.0, %v3723
      %3725 = vmatmul.bf16.gmra.mxu0 %v3647
      %v3726 = vpop.f32.mrf.mxu0
      %v3727 = vadd.f32 0.0, %v3726
      %v3728 = vpop.f32.mrf.mxu0
      %v3729 = vadd.f32 0.0, %v3728
      %3730 = vmatmul.bf16.gmra.mxu0 %v3650
      %v3731 = vpop.f32.mrf.mxu0
      %v3732 = vadd.f32 0.0, %v3731
      %v3733 = vpop.f32.mrf.mxu0
      %v3734 = vadd.f32 0.0, %v3733
      %3735 = vmatmul.bf16.gmra.mxu0 %v3653
      %v3736 = vpop.f32.mrf.mxu0
      %v3737 = vadd.f32 0.0, %v3736
      %v3738 = vpop.f32.mrf.mxu0
      %v3739 = vadd.f32 0.0, %v3738
      %3740 = vmatmul.bf16.gmra.mxu0 %v3656
      %v3741 = vpop.f32.mrf.mxu0
      %v3742 = vadd.f32 0.0, %v3741
      %v3743 = vpop.f32.mrf.mxu0
      %v3744 = vadd.f32 0.0, %v3743
      %3745 = vmatmul.bf16.gmra.mxu0 %v3659
      %v3746 = vpop.f32.mrf.mxu0
      %v3747 = vadd.f32 0.0, %v3746
      %v3748 = vpop.f32.mrf.mxu0
      %v3749 = vadd.f32 0.0, %v3748
      %3750 = vmatmul.bf16.gmra.mxu0 %v3662
      %v3751 = vpop.f32.mrf.mxu0
      %v3752 = vadd.f32 0.0, %v3751
      %v3753 = vpop.f32.mrf.mxu0
      %v3754 = vadd.f32 0.0, %v3753
      %3755 = vdwg.mxu0
      %v3756 = vadd.f32 %v3308, %v3677
      %v3757 = vadd.f32 %v3309, %v3679
      %v3758 = vadd.f32 %v3310, %v3682
      %v3759 = vadd.f32 %v3311, %v3684
      %v3760 = vadd.f32 %v3312, %v3687
      %v3761 = vadd.f32 %v3313, %v3689
      %v3762 = vadd.f32 %v3314, %v3692
      %v3763 = vadd.f32 %v3315, %v3694
      %v3764 = vadd.f32 %v3316, %v3697
      %v3765 = vadd.f32 %v3317, %v3699
      %v3766 = vadd.f32 %v3318, %v3702
      %v3767 = vadd.f32 %v3319, %v3704
      %v3768 = vadd.f32 %v3320, %v3707
      %v3769 = vadd.f32 %v3321, %v3709
      %v3770 = vadd.f32 %v3322, %v3712
      %v3771 = vadd.f32 %v3323, %v3714
      %v3772 = vadd.f32 %v3324, %v3717
      %v3773 = vadd.f32 %v3325, %v3719
      %v3774 = vadd.f32 %v3326, %v3722
      %v3775 = vadd.f32 %v3327, %v3724
      %v3776 = vadd.f32 %v3328, %v3727
      %v3777 = vadd.f32 %v3329, %v3729
      %v3778 = vadd.f32 %v3330, %v3732
      %v3779 = vadd.f32 %v3331, %v3734
      %v3780 = vadd.f32 %v3332, %v3737
      %v3781 = vadd.f32 %v3333, %v3739
      %v3782 = vadd.f32 %v3334, %v3742
      %v3783 = vadd.f32 %v3335, %v3744
      %v3784 = vadd.f32 %v3336, %v3747
      %v3785 = vadd.f32 %v3337, %v3749
      %v3786 = vadd.f32 %v3338, %v3752
      %v3787 = vadd.f32 %v3339, %v3754
      %v3788 = vld [vmem:[%s192 + $0x22] sm:$0xff]
      %v3789 = vld [vmem:[%s192 + $0x2a] sm:$0xff]
      %v3790 = vld [vmem:[%s192 + $0x32] sm:$0xff]
      %v3791 = vld [vmem:[%s192 + $0x3a] sm:$0xff]
      %v3792 = vld [vmem:[%s192 + $0x42] sm:$0xff]
      %v3793 = vld [vmem:[%s192 + $0x4a] sm:$0xff]
      %v3794 = vld [vmem:[%s192 + $0x52] sm:$0xff]
      %v3795 = vld [vmem:[%s192 + $0x5a] sm:$0xff]
      %v3796 = vld [vmem:[%s192 + $0x62] sm:$0xff]
      %v3797 = vld [vmem:[%s192 + $0x6a] sm:$0xff]
      %v3798 = vld [vmem:[%s192 + $0x72] sm:$0xff]
      %v3799 = vld [vmem:[%s192 + $0x7a] sm:$0xff]
      %v3800 = vld [vmem:[%s192 + $0x82] sm:$0xff]
      %v3801 = vld [vmem:[%s192 + $0x8a] sm:$0xff]
      %v3802 = vld [vmem:[%s192 + $0x92] sm:$0xff]
      %v3803 = vld [vmem:[%s192 + $0x9a] sm:$0xff]
      %v3804 = vld [vmem:[%s192 + $0xa2] sm:$0xff]
      %v3805 = vld [vmem:[%s192 + $0xaa] sm:$0xff]
      %v3806 = vld [vmem:[%s192 + $0xb2] sm:$0xff]
      %v3807 = vld [vmem:[%s192 + $0xba] sm:$0xff]
      %v3808 = vld [vmem:[%s192 + $0xc2] sm:$0xff]
      %v3809 = vld [vmem:[%s192 + $0xca] sm:$0xff]
      %v3810 = vld [vmem:[%s192 + $0xd2] sm:$0xff]
      %v3811 = vld [vmem:[%s192 + $0xda] sm:$0xff]
      %v3812 = vld [vmem:[%s192 + $0xe2] sm:$0xff]
      %v3813 = vld [vmem:[%s192 + $0xea] sm:$0xff]
      %v3814 = vld [vmem:[%s192 + $0xf2] sm:$0xff]
      %v3815 = vld [vmem:[%s192 + $0xfa] sm:$0xff]
      %v3816 = vld [vmem:[%s192 + $0x102] sm:$0xff]
      %v3817 = vld [vmem:[%s192 + $0x10a] sm:$0xff]
      %v3818 = vld [vmem:[%s192 + $0x112] sm:$0xff]
      %v3819 = vld [vmem:[%s192 + $0x11a] sm:$0xff]
      %s3820 = scalar_lea.vmem %s3, 2048
      %v3821 = vld [vmem:[%s3820] sm:$0xff]
      %v3822 = vld [vmem:[%s3820 + $0x8] sm:$0xff]
      %v3823 = vld [vmem:[%s3820 + $0x10] sm:$0xff]
      %v3824 = vld [vmem:[%s3820 + $0x18] sm:$0xff]
      %v3825 = vld [vmem:[%s3820 + $0x20] sm:$0xff]
      %v3826 = vld [vmem:[%s3820 + $0x28] sm:$0xff]
      %v3827 = vld [vmem:[%s3820 + $0x30] sm:$0xff]
      %v3828 = vld [vmem:[%s3820 + $0x38] sm:$0xff]
      %v3829 = vld [vmem:[%s3820 + $0x40] sm:$0xff]
      %v3830 = vld [vmem:[%s3820 + $0x48] sm:$0xff]
      %v3831 = vld [vmem:[%s3820 + $0x50] sm:$0xff]
      %v3832 = vld [vmem:[%s3820 + $0x58] sm:$0xff]
      %v3833 = vld [vmem:[%s3820 + $0x60] sm:$0xff]
      %v3834 = vld [vmem:[%s3820 + $0x68] sm:$0xff]
      %v3835 = vld [vmem:[%s3820 + $0x70] sm:$0xff]
      %v3836 = vld [vmem:[%s3820 + $0x78] sm:$0xff]
      %v3837 = vld [vmem:[%s3820 + $0x80] sm:$0xff]
      %v3838 = vld [vmem:[%s3820 + $0x88] sm:$0xff]
      %v3839 = vld [vmem:[%s3820 + $0x90] sm:$0xff]
      %v3840 = vld [vmem:[%s3820 + $0x98] sm:$0xff]
      %v3841 = vld [vmem:[%s3820 + $0xa0] sm:$0xff]
      %v3842 = vld [vmem:[%s3820 + $0xa8] sm:$0xff]
      %v3843 = vld [vmem:[%s3820 + $0xb0] sm:$0xff]
      %v3844 = vld [vmem:[%s3820 + $0xb8] sm:$0xff]
      %v3845 = vld [vmem:[%s3820 + $0xc0] sm:$0xff]
      %v3846 = vld [vmem:[%s3820 + $0xc8] sm:$0xff]
      %v3847 = vld [vmem:[%s3820 + $0xd0] sm:$0xff]
      %v3848 = vld [vmem:[%s3820 + $0xd8] sm:$0xff]
      %v3849 = vld [vmem:[%s3820 + $0xe0] sm:$0xff]
      %v3850 = vld [vmem:[%s3820 + $0xe8] sm:$0xff]
      %v3851 = vld [vmem:[%s3820 + $0xf0] sm:$0xff]
      %v3852 = vld [vmem:[%s3820 + $0xf8] sm:$0xff]
      %3854 = vset.pattern.permute.xlu0 0
      %3855 = vperm.xlu0 %3854, %v3821
      %v3856 = vpop.permute.xlu0 %3855
      %3859 = vset.pattern.permute.xlu0 0
      %3860 = vperm.xlu0 %3859, %v3822
      %v3861 = vpop.permute.xlu0 %3860
      %3864 = vset.pattern.permute.xlu0 0
      %3865 = vperm.xlu0 %3864, %v3823
      %v3866 = vpop.permute.xlu0 %3865
      %3869 = vset.pattern.permute.xlu0 0
      %3870 = vperm.xlu0 %3869, %v3824
      %v3871 = vpop.permute.xlu0 %3870
      %3874 = vset.pattern.permute.xlu0 0
      %3875 = vperm.xlu0 %3874, %v3825
      %v3876 = vpop.permute.xlu0 %3875
      %3879 = vset.pattern.permute.xlu0 0
      %3880 = vperm.xlu0 %3879, %v3826
      %v3881 = vpop.permute.xlu0 %3880
      %3884 = vset.pattern.permute.xlu0 0
      %3885 = vperm.xlu0 %3884, %v3827
      %v3886 = vpop.permute.xlu0 %3885
      %3889 = vset.pattern.permute.xlu0 0
      %3890 = vperm.xlu0 %3889, %v3828
      %v3891 = vpop.permute.xlu0 %3890
      %3894 = vset.pattern.permute.xlu0 0
      %3895 = vperm.xlu0 %3894, %v3829
      %v3896 = vpop.permute.xlu0 %3895
      %3899 = vset.pattern.permute.xlu0 0
      %3900 = vperm.xlu0 %3899, %v3830
      %v3901 = vpop.permute.xlu0 %3900
      %3904 = vset.pattern.permute.xlu0 0
      %3905 = vperm.xlu0 %3904, %v3831
      %v3906 = vpop.permute.xlu0 %3905
      %3909 = vset.pattern.permute.xlu0 0
      %3910 = vperm.xlu0 %3909, %v3832
      %v3911 = vpop.permute.xlu0 %3910
      %3914 = vset.pattern.permute.xlu0 0
      %3915 = vperm.xlu0 %3914, %v3833
      %v3916 = vpop.permute.xlu0 %3915
      %3919 = vset.pattern.permute.xlu0 0
      %3920 = vperm.xlu0 %3919, %v3834
      %v3921 = vpop.permute.xlu0 %3920
      %3924 = vset.pattern.permute.xlu0 0
      %3925 = vperm.xlu0 %3924, %v3835
      %v3926 = vpop.permute.xlu0 %3925
      %3929 = vset.pattern.permute.xlu0 0
      %3930 = vperm.xlu0 %3929, %v3836
      %v3931 = vpop.permute.xlu0 %3930
      %3934 = vset.pattern.permute.xlu0 0
      %3935 = vperm.xlu0 %3934, %v3837
      %v3936 = vpop.permute.xlu0 %3935
      %3939 = vset.pattern.permute.xlu0 0
      %3940 = vperm.xlu0 %3939, %v3838
      %v3941 = vpop.permute.xlu0 %3940
      %3944 = vset.pattern.permute.xlu0 0
      %3945 = vperm.xlu0 %3944, %v3839
      %v3946 = vpop.permute.xlu0 %3945
      %3949 = vset.pattern.permute.xlu0 0
      %3950 = vperm.xlu0 %3949, %v3840
      %v3951 = vpop.permute.xlu0 %3950
      %3954 = vset.pattern.permute.xlu0 0
      %3955 = vperm.xlu0 %3954, %v3841
      %v3956 = vpop.permute.xlu0 %3955
      %3959 = vset.pattern.permute.xlu0 0
      %3960 = vperm.xlu0 %3959, %v3842
      %v3961 = vpop.permute.xlu0 %3960
      %3964 = vset.pattern.permute.xlu0 0
      %3965 = vperm.xlu0 %3964, %v3843
      %v3966 = vpop.permute.xlu0 %3965
      %3969 = vset.pattern.permute.xlu0 0
      %3970 = vperm.xlu0 %3969, %v3844
      %v3971 = vpop.permute.xlu0 %3970
      %3974 = vset.pattern.permute.xlu0 0
      %3975 = vperm.xlu0 %3974, %v3845
      %v3976 = vpop.permute.xlu0 %3975
      %3979 = vset.pattern.permute.xlu0 0
      %3980 = vperm.xlu0 %3979, %v3846
      %v3981 = vpop.permute.xlu0 %3980
      %3984 = vset.pattern.permute.xlu0 0
      %3985 = vperm.xlu0 %3984, %v3847
      %v3986 = vpop.permute.xlu0 %3985
      %3989 = vset.pattern.permute.xlu0 0
      %3990 = vperm.xlu0 %3989, %v3848
      %v3991 = vpop.permute.xlu0 %3990
      %3994 = vset.pattern.permute.xlu0 0
      %3995 = vperm.xlu0 %3994, %v3849
      %v3996 = vpop.permute.xlu0 %3995
      %3999 = vset.pattern.permute.xlu0 0
      %4000 = vperm.xlu0 %3999, %v3850
      %v4001 = vpop.permute.xlu0 %4000
      %4004 = vset.pattern.permute.xlu0 0
      %4005 = vperm.xlu0 %4004, %v3851
      %v4006 = vpop.permute.xlu0 %4005
      %4009 = vset.pattern.permute.xlu0 0
      %4010 = vperm.xlu0 %4009, %v3852
      %v4011 = vpop.permute.xlu0 %4010
      %v4013 = vmul.f32 %v3788, %v3856
      %v4014 = vmul.f32 %v3789, %v3861
      %v4015 = vmul.f32 %v3790, %v3866
      %v4016 = vmul.f32 %v3791, %v3871
      %v4017 = vmul.f32 %v3792, %v3876
      %v4018 = vmul.f32 %v3793, %v3881
      %v4019 = vmul.f32 %v3794, %v3886
      %v4020 = vmul.f32 %v3795, %v3891
      %v4021 = vmul.f32 %v3796, %v3896
      %v4022 = vmul.f32 %v3797, %v3901
      %v4023 = vmul.f32 %v3798, %v3906
      %v4024 = vmul.f32 %v3799, %v3911
      %v4025 = vmul.f32 %v3800, %v3916
      %v4026 = vmul.f32 %v3801, %v3921
      %v4027 = vmul.f32 %v3802, %v3926
      %v4028 = vmul.f32 %v3803, %v3931
      %v4029 = vmul.f32 %v3804, %v3936
      %v4030 = vmul.f32 %v3805, %v3941
      %v4031 = vmul.f32 %v3806, %v3946
      %v4032 = vmul.f32 %v3807, %v3951
      %v4033 = vmul.f32 %v3808, %v3956
      %v4034 = vmul.f32 %v3809, %v3961
      %v4035 = vmul.f32 %v3810, %v3966
      %v4036 = vmul.f32 %v3811, %v3971
      %v4037 = vmul.f32 %v3812, %v3976
      %v4038 = vmul.f32 %v3813, %v3981
      %v4039 = vmul.f32 %v3814, %v3986
      %v4040 = vmul.f32 %v3815, %v3991
      %v4041 = vmul.f32 %v3816, %v3996
      %v4042 = vmul.f32 %v3817, %v4001
      %v4043 = vmul.f32 %v3818, %v4006
      %v4044 = vmul.f32 %v3819, %v4011
      %v4045 = vpack.c.bf16 %v4014, %v4013
      %v4046 = vpack.c.bf16 %v4016, %v4015
      %v4047 = vpack.c.bf16 %v4018, %v4017
      %v4048 = vpack.c.bf16 %v4020, %v4019
      %v4049 = vpack.c.bf16 %v4022, %v4021
      %v4050 = vpack.c.bf16 %v4024, %v4023
      %v4051 = vpack.c.bf16 %v4026, %v4025
      %v4052 = vpack.c.bf16 %v4028, %v4027
      %v4053 = vpack.c.bf16 %v4030, %v4029
      %v4054 = vpack.c.bf16 %v4032, %v4031
      %v4055 = vpack.c.bf16 %v4034, %v4033
      %v4056 = vpack.c.bf16 %v4036, %v4035
      %v4057 = vpack.c.bf16 %v4038, %v4037
      %v4058 = vpack.c.bf16 %v4040, %v4039
      %v4059 = vpack.c.bf16 %v4042, %v4041
      %v4060 = vpack.c.bf16 %v4044, %v4043
      %s4061 = scalar_lea.vmem %s1, 64
      %v4062 = vld [vmem:[%s4061] sm:$0xff]
      %v4063 = vpack.c.bf16 %v4062, %v4062
      %v4065 = vsel %vm478, %v4045, 0
      %v4068 = vsel %vm478, %v4046, 0
      %v4071 = vsel %vm478, %v4047, 0
      %v4074 = vsel %vm478, %v4048, 0
      %v4077 = vsel %vm478, %v4049, 0
      %v4080 = vsel %vm478, %v4050, 0
      %v4083 = vsel %vm478, %v4051, 0
      %v4086 = vsel %vm478, %v4052, 0
      %v4089 = vsel %vm478, %v4053, 0
      %v4092 = vsel %vm478, %v4054, 0
      %v4095 = vsel %vm478, %v4055, 0
      %v4098 = vsel %vm478, %v4056, 0
      %v4101 = vsel %vm478, %v4057, 0
      %v4104 = vsel %vm478, %v4058, 0
      %v4107 = vsel %vm478, %v4059, 0
      %v4110 = vsel %vm478, %v4060, 0
      %v4113 = vsel %vm527, %v4063, 0
      %4115 = vmatpush.bf16.msra.mxu0 0
      %4116 = vmatpush.bf16.msra.mxu0 0
      %4117 = vmatpush.bf16.msra.mxu0 0
      %4118 = vmatpush.bf16.msra.mxu0 0
      %4119 = vmatpush.bf16.msra.mxu0 0
      %4120 = vmatpush.bf16.msra.mxu0 0
      %4121 = vmatpush.bf16.msra.mxu0 0
      %4122 = vmatpush.bf16.msra.mxu0 %v4113
      %4123 = vmatmul.bf16.gmra.mxu0 %v4065
      %v4124 = vpop.f32.mrf.mxu0
      %v4125 = vadd.f32 0.0, %v4124
      %v4126 = vpop.f32.mrf.mxu0
      %v4127 = vadd.f32 0.0, %v4126
      %4128 = vmatmul.bf16.gmra.mxu0 %v4068
      %v4129 = vpop.f32.mrf.mxu0
      %v4130 = vadd.f32 0.0, %v4129
      %v4131 = vpop.f32.mrf.mxu0
      %v4132 = vadd.f32 0.0, %v4131
      %4133 = vmatmul.bf16.gmra.mxu0 %v4071
      %v4134 = vpop.f32.mrf.mxu0
      %v4135 = vadd.f32 0.0, %v4134
      %v4136 = vpop.f32.mrf.mxu0
      %v4137 = vadd.f32 0.0, %v4136
      %4138 = vmatmul.bf16.gmra.mxu0 %v4074
      %v4139 = vpop.f32.mrf.mxu0
      %v4140 = vadd.f32 0.0, %v4139
      %v4141 = vpop.f32.mrf.mxu0
      %v4142 = vadd.f32 0.0, %v4141
      %4143 = vmatmul.bf16.gmra.mxu0 %v4077
      %v4144 = vpop.f32.mrf.mxu0
      %v4145 = vadd.f32 0.0, %v4144
      %v4146 = vpop.f32.mrf.mxu0
      %v4147 = vadd.f32 0.0, %v4146
      %4148 = vmatmul.bf16.gmra.mxu0 %v4080
      %v4149 = vpop.f32.mrf.mxu0
      %v4150 = vadd.f32 0.0, %v4149
      %v4151 = vpop.f32.mrf.mxu0
      %v4152 = vadd.f32 0.0, %v4151
      %4153 = vmatmul.bf16.gmra.mxu0 %v4083
      %v4154 = vpop.f32.mrf.mxu0
      %v4155 = vadd.f32 0.0, %v4154
      %v4156 = vpop.f32.mrf.mxu0
      %v4157 = vadd.f32 0.0, %v4156
      %4158 = vmatmul.bf16.gmra.mxu0 %v4086
      %v4159 = vpop.f32.mrf.mxu0
      %v4160 = vadd.f32 0.0, %v4159
      %v4161 = vpop.f32.mrf.mxu0
      %v4162 = vadd.f32 0.0, %v4161
      %4163 = vmatmul.bf16.gmra.mxu0 %v4089
      %v4164 = vpop.f32.mrf.mxu0
      %v4165 = vadd.f32 0.0, %v4164
      %v4166 = vpop.f32.mrf.mxu0
      %v4167 = vadd.f32 0.0, %v4166
      %4168 = vmatmul.bf16.gmra.mxu0 %v4092
      %v4169 = vpop.f32.mrf.mxu0
      %v4170 = vadd.f32 0.0, %v4169
      %v4171 = vpop.f32.mrf.mxu0
      %v4172 = vadd.f32 0.0, %v4171
      %4173 = vmatmul.bf16.gmra.mxu0 %v4095
      %v4174 = vpop.f32.mrf.mxu0
      %v4175 = vadd.f32 0.0, %v4174
      %v4176 = vpop.f32.mrf.mxu0
      %v4177 = vadd.f32 0.0, %v4176
      %4178 = vmatmul.bf16.gmra.mxu0 %v4098
      %v4179 = vpop.f32.mrf.mxu0
      %v4180 = vadd.f32 0.0, %v4179
      %v4181 = vpop.f32.mrf.mxu0
      %v4182 = vadd.f32 0.0, %v4181
      %4183 = vmatmul.bf16.gmra.mxu0 %v4101
      %v4184 = vpop.f32.mrf.mxu0
      %v4185 = vadd.f32 0.0, %v4184
      %v4186 = vpop.f32.mrf.mxu0
      %v4187 = vadd.f32 0.0, %v4186
      %4188 = vmatmul.bf16.gmra.mxu0 %v4104
      %v4189 = vpop.f32.mrf.mxu0
      %v4190 = vadd.f32 0.0, %v4189
      %v4191 = vpop.f32.mrf.mxu0
      %v4192 = vadd.f32 0.0, %v4191
      %4193 = vmatmul.bf16.gmra.mxu0 %v4107
      %v4194 = vpop.f32.mrf.mxu0
      %v4195 = vadd.f32 0.0, %v4194
      %v4196 = vpop.f32.mrf.mxu0
      %v4197 = vadd.f32 0.0, %v4196
      %4198 = vmatmul.bf16.gmra.mxu0 %v4110
      %v4199 = vpop.f32.mrf.mxu0
      %v4200 = vadd.f32 0.0, %v4199
      %v4201 = vpop.f32.mrf.mxu0
      %v4202 = vadd.f32 0.0, %v4201
      %4203 = vdwg.mxu0
      %v4204 = vadd.f32 %v3756, %v4125
      %v4205 = vadd.f32 %v3757, %v4127
      %v4206 = vadd.f32 %v3758, %v4130
      %v4207 = vadd.f32 %v3759, %v4132
      %v4208 = vadd.f32 %v3760, %v4135
      %v4209 = vadd.f32 %v3761, %v4137
      %v4210 = vadd.f32 %v3762, %v4140
      %v4211 = vadd.f32 %v3763, %v4142
      %v4212 = vadd.f32 %v3764, %v4145
      %v4213 = vadd.f32 %v3765, %v4147
      %v4214 = vadd.f32 %v3766, %v4150
      %v4215 = vadd.f32 %v3767, %v4152
      %v4216 = vadd.f32 %v3768, %v4155
      %v4217 = vadd.f32 %v3769, %v4157
      %v4218 = vadd.f32 %v3770, %v4160
      %v4219 = vadd.f32 %v3771, %v4162
      %v4220 = vadd.f32 %v3772, %v4165
      %v4221 = vadd.f32 %v3773, %v4167
      %v4222 = vadd.f32 %v3774, %v4170
      %v4223 = vadd.f32 %v3775, %v4172
      %v4224 = vadd.f32 %v3776, %v4175
      %v4225 = vadd.f32 %v3777, %v4177
      %v4226 = vadd.f32 %v3778, %v4180
      %v4227 = vadd.f32 %v3779, %v4182
      %v4228 = vadd.f32 %v3780, %v4185
      %v4229 = vadd.f32 %v3781, %v4187
      %v4230 = vadd.f32 %v3782, %v4190
      %v4231 = vadd.f32 %v3783, %v4192
      %v4232 = vadd.f32 %v3784, %v4195
      %v4233 = vadd.f32 %v3785, %v4197
      %v4234 = vadd.f32 %v3786, %v4200
      %v4235 = vadd.f32 %v3787, %v4202
      %v4236 = vpack.c.bf16 %v4204, %v4204
      %v4237 = vpack.c.bf16 %v4205, %v4205
      %v4238 = vpack.c.bf16 %v4206, %v4206
      %v4239 = vpack.c.bf16 %v4207, %v4207
      %v4240 = vpack.c.bf16 %v4208, %v4208
      %v4241 = vpack.c.bf16 %v4209, %v4209
      %v4242 = vpack.c.bf16 %v4210, %v4210
      %v4243 = vpack.c.bf16 %v4211, %v4211
      %v4244 = vpack.c.bf16 %v4212, %v4212
      %v4245 = vpack.c.bf16 %v4213, %v4213
      %v4246 = vpack.c.bf16 %v4214, %v4214
      %v4247 = vpack.c.bf16 %v4215, %v4215
      %v4248 = vpack.c.bf16 %v4216, %v4216
      %v4249 = vpack.c.bf16 %v4217, %v4217
      %v4250 = vpack.c.bf16 %v4218, %v4218
      %v4251 = vpack.c.bf16 %v4219, %v4219
      %v4252 = vpack.c.bf16 %v4220, %v4220
      %v4253 = vpack.c.bf16 %v4221, %v4221
      %v4254 = vpack.c.bf16 %v4222, %v4222
      %v4255 = vpack.c.bf16 %v4223, %v4223
      %v4256 = vpack.c.bf16 %v4224, %v4224
      %v4257 = vpack.c.bf16 %v4225, %v4225
      %v4258 = vpack.c.bf16 %v4226, %v4226
      %v4259 = vpack.c.bf16 %v4227, %v4227
      %v4260 = vpack.c.bf16 %v4228, %v4228
      %v4261 = vpack.c.bf16 %v4229, %v4229
      %v4262 = vpack.c.bf16 %v4230, %v4230
      %v4263 = vpack.c.bf16 %v4231, %v4231
      %v4264 = vpack.c.bf16 %v4232, %v4232
      %v4265 = vpack.c.bf16 %v4233, %v4233
      %v4266 = vpack.c.bf16 %v4234, %v4234
      %v4267 = vpack.c.bf16 %v4235, %v4235
      %4268 = vst [vmem:[%s197] sm:$0xf] %v4236
      %4269 = vst [vmem:[%s197 + $0x4] sm:$0xf] %v4237
      %4270 = vst [vmem:[%s197 + $0x8] sm:$0xf] %v4238
      %4271 = vst [vmem:[%s197 + $0xc] sm:$0xf] %v4239
      %4272 = vst [vmem:[%s197 + $0x10] sm:$0xf] %v4240
      %4273 = vst [vmem:[%s197 + $0x14] sm:$0xf] %v4241
      %4274 = vst [vmem:[%s197 + $0x18] sm:$0xf] %v4242
      %4275 = vst [vmem:[%s197 + $0x1c] sm:$0xf] %v4243
      %4276 = vst [vmem:[%s197 + $0x20] sm:$0xf] %v4244
      %4277 = vst [vmem:[%s197 + $0x24] sm:$0xf] %v4245
      %4278 = vst [vmem:[%s197 + $0x28] sm:$0xf] %v4246
      %4279 = vst [vmem:[%s197 + $0x2c] sm:$0xf] %v4247
      %4280 = vst [vmem:[%s197 + $0x30] sm:$0xf] %v4248
      %4281 = vst [vmem:[%s197 + $0x34] sm:$0xf] %v4249
      %4282 = vst [vmem:[%s197 + $0x38] sm:$0xf] %v4250
      %4283 = vst [vmem:[%s197 + $0x3c] sm:$0xf] %v4251
      %4284 = vst [vmem:[%s197 + $0x40] sm:$0xf] %v4252
      %4285 = vst [vmem:[%s197 + $0x44] sm:$0xf] %v4253
      %4286 = vst [vmem:[%s197 + $0x48] sm:$0xf] %v4254
      %4287 = vst [vmem:[%s197 + $0x4c] sm:$0xf] %v4255
      %4288 = vst [vmem:[%s197 + $0x50] sm:$0xf] %v4256
      %4289 = vst [vmem:[%s197 + $0x54] sm:$0xf] %v4257
      %4290 = vst [vmem:[%s197 + $0x58] sm:$0xf] %v4258
      %4291 = vst [vmem:[%s197 + $0x5c] sm:$0xf] %v4259
      %4292 = vst [vmem:[%s197 + $0x60] sm:$0xf] %v4260
      %4293 = vst [vmem:[%s197 + $0x64] sm:$0xf] %v4261
      %4294 = vst [vmem:[%s197 + $0x68] sm:$0xf] %v4262
      %4295 = vst [vmem:[%s197 + $0x6c] sm:$0xf] %v4263
      %4296 = vst [vmem:[%s197 + $0x70] sm:$0xf] %v4264
      %4297 = vst [vmem:[%s197 + $0x74] sm:$0xf] %v4265
      %4298 = vst [vmem:[%s197 + $0x78] sm:$0xf] %v4266
      %4299 = vst [vmem:[%s197 + $0x7c] sm:$0xf] %v4267
      %p4300 = scmp.lt.s32.totalorder %s15, 1
      %s4301 = scalar_select %p4300, %s15, 1
      %s4302 = smul.addr %s4301, 32
      %s4303 = smul.addr %s4302, 4
      %s4304 = scalar_lea.vmem %s4, %s4303
      // Predicated region
      $region37: #{self_attention_block.4} parent=35 // pred_check
        %p4305 = pneg %p122
      $region38: #{self_attention_block.4} parent=35 // pred_check_branch
        %4307 = sbr.rel (%p4305) target = $region40
      $region39: #{self_attention_block.4} parent=35 // pred_region
        _
      $region40: #{self_attention_block.4} parent=35 // pred_fallthru
        _
    $region36: #{self_attention_block.4} parent=5 // pred_fallthru
      _
    %p4308 = scmp.le.s32.totalorder 2, %s10
    // Predicated region
    $region41: #{self_attention_block.4} parent=5 // pred_check
      %p4309 = pneg %p4308
    $region42: #{self_attention_block.4} parent=5 // pred_check_branch
      %4311 = sbr.rel (%p4309) target = $region44
    $region43: #{self_attention_block.4} parent=5 // pred_region
      %s4312 = ssub.s32 %s10, 2
      // Predicated region
      $region45: #{self_attention_block.4} parent=43 // pred_check
        %p4313 = pneg %p128
      $region46: #{self_attention_block.4} parent=43 // pred_check_branch
        %4315 = sbr.rel (%p4313) target = $region48
      $region47: #{self_attention_block.4} parent=43 // pred_region
        %p4316 = scmp.lt.s32.totalorder %s16, 1
        %s4317 = scalar_select %p4316, %s16, 1
        %s4318 = smul.addr %s4317, 32
        %s4319 = smul.addr %s4318, 4
        %s4320 = scalar_lea.vmem %s4, %s4319
      $region48: #{self_attention_block.4} parent=43 // pred_fallthru
        _
    $region44: #{self_attention_block.4} parent=5 // pred_fallthru
      _
  $region6: #{self_attention_block.4} parent=0 // loop_footer
    %s14 = sadd.s32 1, %s10
  $region7: #{self_attention_block.4} parent=0 // loop_footer_branch
    %9 = sbr.rel target = $region3
  $region8: #{self_attention_block.4} parent=0 // loop_exit
    _

</llo_original>
